<compile_context>
chip_gen: v6e
topology: v6e:2x2x1
jax: 0.10.0
libtpu: 0.0.40
codegen_flags: <defaults>
</compile_context>

<pallas_src>
import functools
import numpy as np

import jax
import jax.numpy as jnp
from jax.experimental import pallas as pl
from jax.experimental.pallas import tpu as pltpu


NHIDDEN = 128  # fixed by the reference module (nhidden = 128)


# ----------------------------------------------------------------------------
# Fused Pallas kernel
# ----------------------------------------------------------------------------

def _spade_fused_kernel(seg_patch_ref, x_ref, w1_ref, b1_ref, w2_ref, b2_ref,
                        o_ref, actv_ref, gb_ref, *, H, W, C, eps):
    """One image per grid step.

    seg_patch_ref : (1, L, 9*label_nc) bf16   im2col'd segmap, flat-row layout
    x_ref         : (1, H, W, C)      f32
    w1_ref        : (9*label_nc, 128) bf16    mlp_shared conv taps fused on K
    b1_ref        : (1, 128)          f32
    w2_ref        : (9*128, 2C)       bf16    gamma|beta conv, tap-major rows
    b2_ref        : (1, 2C)           f32
    o_ref         : (1, H, W, C)      f32
    actv_ref      : ((H+3)*(W+2), 128) bf16   zero-padded flat-row actv scratch
    gb_ref        : (L, 2C)           f32     gamma|beta conv output scratch
    """
    Wp = W + 2
    L = H * Wp

    # ---- conv1 (mlp_shared): ONE matmul over the im2col'd segmap + ReLU ----
    a1 = jnp.dot(seg_patch_ref[0], w1_ref[...],
                 preferred_element_type=jnp.float32) + b1_ref[...]
    a1 = jnp.maximum(a1, 0.0)
    # Zero the wrap columns (flat-row column index >= W): they become the
    # zero-padding columns of the actv map seen by the second conv.
    col = jax.lax.broadcasted_iota(jnp.int32, (L, NHIDDEN), 0) % Wp
    a1 = jnp.where(col < W, a1, 0.0).astype(jnp.bfloat16)

    # ---- place actv into the zero-padded flat-row scratch slab -------------
    # Valid pixel (h, w) of the conv1 output row h*Wp + w lands at padded flat
    # row (h+1)*Wp + (w+1), i.e. a single contiguous store at offset Wp+1.
    actv_ref[...] = jnp.zeros(actv_ref.shape, actv_ref.dtype)
    actv_ref[pl.ds(Wp + 1, L), :] = a1

    # ---- conv2 (gamma & beta fused, Cout = 2C): taps paired to K = 256 -----
    acc = jnp.zeros((L, 2 * C), jnp.float32)
    for p in range(4):
        t0, t1 = 2 * p, 2 * p + 1
        kh0, kw0 = divmod(t0, 3)
        kh1, kw1 = divmod(t1, 3)
        off0 = kh0 * Wp + kw0
        off1 = kh1 * Wp + kw1
        lhs = jnp.concatenate(
            [actv_ref[pl.ds(off0, L), :], actv_ref[pl.ds(off1, L), :]],
            axis=-1)                                            # (L, 256) bf16
        acc = acc + jnp.dot(lhs,
                            w2_ref[pl.ds(p * 2 * NHIDDEN, 2 * NHIDDEN), :],
                            preferred_element_type=jnp.float32)
    # leftover tap t = 8 (kh=2, kw=2), K = 128
    off8 = 2 * Wp + 2
    acc = acc + jnp.dot(actv_ref[pl.ds(off8, L), :],
                        w2_ref[pl.ds(8 * NHIDDEN, NHIDDEN), :],
                        preferred_element_type=jnp.float32)
    gb_ref[...] = acc + b2_ref[...]

    # ---- InstanceNorm2d(affine=False) statistics (exact, f32) --------------
    inv_n = 1.0 / float(H * W)
    sum_acc = jnp.zeros((1, C), jnp.float32)
    sq_acc = jnp.zeros((1, C), jnp.float32)
    for h in range(H):
        xh = x_ref[0, h]                                        # (W, C)
        sum_acc = sum_acc + jnp.sum(xh, axis=0, keepdims=True)
        sq_acc = sq_acc + jnp.sum(xh * xh, axis=0, keepdims=True)
    mean = sum_acc * inv_n
    var = jnp.maximum(sq_acc * inv_n - mean * mean, 0.0)        # biased var
    inv_std = jax.lax.rsqrt(var + eps)

    # ---- modulation: write a lane-dense (H, W, C) block (no wrap cols) -----
    for h in range(H):
        row = gb_ref[pl.ds(h * Wp, W), :]                       # (W, 2C)
        gamma = row[:, :C]
        beta = row[:, C:]
        xn = (x_ref[0, h] - mean) * inv_std
        o_ref[0, h, :, :] = (xn * (1.0 + gamma) + beta).astype(o_ref.dtype)


# ----------------------------------------------------------------------------
# pallas_call wrapper
# ----------------------------------------------------------------------------

def _spade_pallas(seg_patch, x_nhwc, w1, b1, w2, b2, H, W, C, eps):
    B = x_nhwc.shape[0]
    Wp = W + 2
    L = H * Wp
    R = (H + 3) * Wp
    K1 = seg_patch.shape[-1]                      # 9 * label_nc
    return pl.pallas_call(
        functools.partial(_spade_fused_kernel, H=H, W=W, C=C, eps=eps),
        out_shape=jax.ShapeDtypeStruct((B, H, W, C), jnp.float32),
        grid_spec=pltpu.PrefetchScalarGridSpec(
            num_scalar_prefetch=0,
            grid=(B,),
            in_specs=[
                pl.BlockSpec((1, L, K1), lambda i: (i, 0, 0)),
                pl.BlockSpec((1, H, W, C), lambda i: (i, 0, 0, 0)),
                pl.BlockSpec((K1, NHIDDEN), lambda i: (0, 0)),
                pl.BlockSpec((1, NHIDDEN), lambda i: (0, 0)),
                pl.BlockSpec((9 * NHIDDEN, 2 * C), lambda i: (0, 0)),
                pl.BlockSpec((1, 2 * C), lambda i: (0, 0)),
            ],
            out_specs=pl.BlockSpec((1, H, W, C), lambda i: (i, 0, 0, 0)),
            scratch_shapes=[
                pltpu.VMEM((R, NHIDDEN), jnp.bfloat16),   # padded actv slab
                pltpu.VMEM((L, 2 * C), jnp.float32),      # gamma|beta slab
            ],
        ),
        compiler_params=pltpu.CompilerParams(
            dimension_semantics=("parallel",)),
    )(seg_patch, x_nhwc, w1, b1, w2, b2)


# ----------------------------------------------------------------------------
# JAX glue (resize, layout, im2col) and full forward
# ----------------------------------------------------------------------------

def _resize_segmap(seg, H, W):
    """Replicates SPADE's per-channel-count F.interpolate branching (NCHW)."""
    C = seg.shape[1]

    def bil(t):
        return jax.image.resize(t, (t.shape[0], t.shape[1], H, W),
                                method="bilinear", antialias=False)

    def near(t):
        # TODO(synk): jax 'nearest' uses half-pixel rounding; PyTorch legacy
        # 'nearest' uses floor(scale * dst_idx) -- may differ by one pixel.
        return jax.image.resize(t, (t.shape[0], t.shape[1], H, W),
                                method="nearest")

    if C == 1:
        return near(seg)
    if C == 3:
        return bil(seg)
    if C == 4:
        return jnp.concatenate([bil(seg[:, :3]), near(seg[:, 3:4])], axis=1)
    if C == 6:
        return jnp.concatenate(
            [bil(seg[:, :3]), near(seg[:, 3:4]), bil(seg[:, 4:6])], axis=1)
    # Reference code only resizes for 1/3/4/6 label channels.
    assert seg.shape[2] == H and seg.shape[3] == W
    return seg


def spade_forward(params, x_nchw, segmap_nchw, eps=1e-5):
    B, C, H, W = x_nchw.shape
    Wp = W + 2
    L = H * Wp
    label_nc = segmap_nchw.shape[1]

    # --- pack weights: conv1 taps fused along K, gamma/beta fused on Cout ----
    w1 = params["w_shared"].reshape(9 * label_nc, NHIDDEN).astype(jnp.bfloat16)
    b1 = params["b_shared"].reshape(1, NHIDDEN).astype(jnp.float32)
    w2 = jnp.concatenate([params["w_gamma"], params["w_beta"]], axis=-1)
    w2 = w2.reshape(9 * NHIDDEN, 2 * C).astype(jnp.bfloat16)     # tap-major
    b2 = jnp.concatenate([params["b_gamma"], params["b_beta"]], axis=0)
    b2 = b2.reshape(1, 2 * C).astype(jnp.float32)

    # --- segmap resize (reference branching) -> NHWC -> flat-row im2col ------
    seg = _resize_segmap(segmap_nchw.astype(jnp.float32), H, W)
    seg = jnp.transpose(seg, (0, 2, 3, 1))                        # NHWC
    seg_pad = jnp.pad(seg, ((0, 0), (1, 2), (1, 1), (0, 0)))      # (H+3, W+2)
    seg_flat = seg_pad.reshape(B, (H + 3) * Wp, label_nc)
    taps = []
    for t in range(9):
        kh, kw = divmod(t, 3)
        off = kh * Wp + kw
        taps.append(jax.lax.slice_in_dim(seg_flat, off, off + L, axis=1))
    seg_patch = jnp.concatenate(taps, axis=-1).astype(jnp.bfloat16)  # (B,L,9*Cin)

    # --- x stays f32 NHWC (exact instance-norm statistics) -------------------
    x = jnp.transpose(x_nchw.astype(jnp.float32), (0, 2, 3, 1))   # (B,H,W,C)

    out = _spade_pallas(seg_patch, x, w1, b1, w2, b2, H, W, C, eps)
    return jnp.transpose(out, (0, 3, 1, 2))                       # NCHW


# ----------------------------------------------------------------------------
# Pure-JAX f32 reference (loose numerical sanity check; kernel matmuls = bf16)
# ----------------------------------------------------------------------------

def spade_reference(params, x_nchw, segmap_nchw, eps=1e-5):
    B, C, H, W = x_nchw.shape
    seg = _resize_segmap(segmap_nchw.astype(jnp.float32), H, W)
    seg = jnp.transpose(seg, (0, 2, 3, 1))
    dn = ("NHWC", "HWIO", "NHWC")

    def conv(t, w, b):
        return jax.lax.conv_general_dilated(
            t, w, (1, 1), "SAME", dimension_numbers=dn,
            precision=jax.lax.Precision.HIGHEST) + b

    actv = jnp.maximum(conv(seg, params["w_shared"], params["b_shared"]), 0.0)
    gamma = conv(actv, params["w_gamma"], params["b_gamma"])
    beta = conv(actv, params["w_beta"], params["b_beta"])
    x = jnp.transpose(x_nchw.astype(jnp.float32), (0, 2, 3, 1))
    mean = jnp.mean(x, axis=(1, 2), keepdims=True)
    var = jnp.mean((x - mean) ** 2, axis=(1, 2), keepdims=True)
    xn = (x - mean) * jax.lax.rsqrt(var + eps)
    out = xn * (1.0 + gamma) + beta
    return jnp.transpose(out, (0, 3, 1, 2))


# ----------------------------------------------------------------------------
# Deterministic parameter init
# ----------------------------------------------------------------------------

def init_spade_params(key, norm_nc, label_nc, nhidden=NHIDDEN):
    ks = jax.random.split(key, 6)

    def conv_w(k, cin, cout):
        return jax.random.normal(k, (3, 3, cin, cout), jnp.float32) / np.sqrt(9 * cin)

    return {
        "w_shared": conv_w(ks[0], label_nc, nhidden),
        "b_shared": 0.05 * jax.random.normal(ks[1], (nhidden,), jnp.float32),
        "w_gamma": conv_w(ks[2], nhidden, norm_nc),
        "b_gamma": 0.05 * jax.random.normal(ks[3], (norm_nc,), jnp.float32),
        "w_beta": conv_w(ks[4], nhidden, norm_nc),
        "b_beta": 0.05 * jax.random.normal(ks[5], (norm_nc,), jnp.float32),
    }


# ----------------------------------------------------------------------------
# Main
# ----------------------------------------------------------------------------

if __name__ == "__main__":
    B, norm_nc, H, W = 2, 128, 16, 16     # norm_nc=128 keeps stores lane-dense
    label_nc = 3                          # 3-channel segmap -> bilinear branch
    seg_hw = 32                           # segmap at a different resolution

    key = jax.random.PRNGKey(0)
    kx, ksg, kp = jax.random.split(key, 3)
    x = jax.random.normal(kx, (B, norm_nc, H, W), jnp.float32)
    segmap = jax.random.normal(ksg, (B, label_nc, seg_hw, seg_hw), jnp.float32)
    params = init_spade_params(kp, norm_nc, label_nc)

    fwd = jax.jit(spade_forward)
    out = jax.block_until_ready(fwd(params, x, segmap))

    assert out.shape == (B, norm_nc, H, W), out.shape
    assert bool(jnp.all(jnp.isfinite(out)))

    # Loose check against the f32 reference (kernel matmuls run in bf16).
    ref = spade_reference(params, x, segmap)
    err = float(jnp.max(jnp.abs(out - ref)))
    assert err < 0.2, f"max abs err {err}"

    print("KERNEL_OK")
</pallas_src>

<mosaic_0001>
module attributes {stable_mosaic.version = 11 : i64} {
  func.func @_spade_fused_kernel(%arg0: i32, %arg1: memref<1x288x27xbf16, #tpu.memory_space<vmem>>, %arg2: memref<1x16x16x128xf32, #tpu.memory_space<vmem>>, %arg3: memref<27x128xbf16, #tpu.memory_space<vmem>>, %arg4: memref<1x128xf32, #tpu.memory_space<vmem>>, %arg5: memref<1152x256xbf16, #tpu.memory_space<vmem>>, %arg6: memref<1x256xf32, #tpu.memory_space<vmem>>, %arg7: memref<1x16x16x128xf32, #tpu.memory_space<vmem>>, %arg8: memref<342x128xbf16, #tpu.memory_space<vmem>>, %arg9: memref<288x256xf32, #tpu.memory_space<vmem>>) attributes {dimension_semantics = [#tpu.dimension_semantics<parallel>], iteration_bounds = array<i64: 2>, scalar_prefetch = 0 : i64, scratch_operands = 2 : i64, tpu.core_type = #tpu.core_type<tc>, window_params = [{transform_indices = @transform_0, window_bounds = array<i64: 1, 288, 27>}, {transform_indices = @transform_1, window_bounds = array<i64: 1, 16, 16, 128>}, {pipeline_mode = #tpu.pipeline_mode<synchronous>, transform_indices = @transform_2, window_bounds = array<i64: 27, 128>}, {pipeline_mode = #tpu.pipeline_mode<synchronous>, transform_indices = @transform_3, window_bounds = array<i64: 1, 128>}, {pipeline_mode = #tpu.pipeline_mode<synchronous>, transform_indices = @transform_4, window_bounds = array<i64: 1152, 256>}, {pipeline_mode = #tpu.pipeline_mode<synchronous>, transform_indices = @transform_5, window_bounds = array<i64: 1, 256>}, {transform_indices = @transform_6, window_bounds = array<i64: 1, 16, 16, 128>}]} {
    %c0 = arith.constant 0 : index
    %c0_0 = arith.constant 0 : index
    %c0_1 = arith.constant 0 : index
    %0 = vector.load %arg1[%c0, %c0_0, %c0_1] : memref<1x288x27xbf16, #tpu.memory_space<vmem>>, vector<1x288x27xbf16>
    %1 = vector.shape_cast %0 : vector<1x288x27xbf16> to vector<288x27xbf16>
    %c0_2 = arith.constant 0 : index
    %c0_3 = arith.constant 0 : index
    %2 = vector.load %arg3[%c0_2, %c0_3] : memref<27x128xbf16, #tpu.memory_space<vmem>>, vector<27x128xbf16>
    %cst = arith.constant dense<0.000000e+00> : vector<288x128xf32>
    %3 = tpu.matmul %1, %2, %cst {dimension_numbers = #tpu.dot_dimension_numbers<[1], [0], [0], [1], [0, 0, 1, 1], [], []>} : vector<288x27xbf16>, vector<27x128xbf16>, vector<288x128xf32> -> vector<288x128xf32>
    %c0_4 = arith.constant 0 : index
    %c0_5 = arith.constant 0 : index
    %4 = vector.load %arg4[%c0_4, %c0_5] : memref<1x128xf32, #tpu.memory_space<vmem>>, vector<1x128xf32>
    %5 = vector.broadcast %4 : vector<1x128xf32> to vector<288x128xf32>
    %6 = arith.addf %3, %5 : vector<288x128xf32>
    %cst_6 = arith.constant 0.000000e+00 : f32
    %7 = vector.broadcast %cst_6 : f32 to vector<288x128xf32>
    %8 = arith.maximumf %6, %7 : vector<288x128xf32>
    %9 = tpu.iota {dimensions = array<i32: 0>} : vector<288x128xi32>
    %c18_i32 = arith.constant 18 : i32
    %c0_i32 = arith.constant 0 : i32
    %10 = arith.cmpi eq, %c18_i32, %c0_i32 : i32
    %c1_i32 = arith.constant 1 : i32
    %11 = arith.select %10, %c1_i32, %c18_i32 : i32
    %12 = vector.broadcast %11 : i32 to vector<288x128xi32>
    %13 = arith.remsi %9, %12 : vector<288x128xi32>
    %c0_i32_7 = arith.constant 0 : i32
    %14 = vector.broadcast %c0_i32_7 : i32 to vector<288x128xi32>
    %15 = arith.cmpi ne, %13, %14 : vector<288x128xi32>
    %c0_i32_8 = arith.constant 0 : i32
    %16 = vector.broadcast %c0_i32_8 : i32 to vector<288x128xi32>
    %17 = arith.cmpi slt, %13, %16 : vector<288x128xi32>
    %c0_i32_9 = arith.constant 0 : i32
    %18 = arith.cmpi slt, %11, %c0_i32_9 : i32
    %19 = vector.broadcast %18 : i1 to vector<288x128xi1>
    %20 = vector.broadcast %19 : vector<288x128xi1> to vector<288x128xi1>
    %21 = arith.xori %17, %20 : vector<288x128xi1>
    %22 = arith.andi %21, %15 : vector<288x128xi1>
    %23 = vector.broadcast %11 : i32 to vector<288x128xi32>
    %24 = arith.addi %13, %23 : vector<288x128xi32>
    %25 = arith.select %22, %24, %13 : vector<288x128xi1>, vector<288x128xi32>
    %c16_i32 = arith.constant 16 : i32
    %26 = vector.broadcast %c16_i32 : i32 to vector<288x128xi32>
    %27 = arith.cmpi slt, %25, %26 : vector<288x128xi32>
    %cst_10 = arith.constant 0.000000e+00 : f32
    %28 = vector.broadcast %cst_10 : f32 to vector<288x128xf32>
    %29 = arith.select %27, %8, %28 : vector<288x128xi1>, vector<288x128xf32>
    %30 = arith.truncf %29 : vector<288x128xf32> to vector<288x128xbf16>
    %cst_11 = arith.constant 0.000000e+00 : bf16
    %31 = vector.broadcast %cst_11 : bf16 to vector<342x128xbf16>
    %c0_12 = arith.constant 0 : index
    %c0_13 = arith.constant 0 : index
    %32 = vector.load %arg8[%c0_12, %c0_13] : memref<342x128xbf16, #tpu.memory_space<vmem>>, vector<342x128xbf16>
    tpu.vector_store %arg8[%c0_12, %c0_13], %31 {strides = array<i32>} : memref<342x128xbf16, #tpu.memory_space<vmem>>, vector<342x128xbf16>,
    %c19 = arith.constant 19 : index
    %c0_14 = arith.constant 0 : index
    %33 = vector.load %arg8[%c19, %c0_14] : memref<342x128xbf16, #tpu.memory_space<vmem>>, vector<288x128xbf16>
    tpu.vector_store %arg8[%c19, %c0_14], %30 {strides = array<i32>} : memref<342x128xbf16, #tpu.memory_space<vmem>>, vector<288x128xbf16>,
    %cst_15 = arith.constant 0.000000e+00 : f32
    %34 = vector.broadcast %cst_15 : f32 to vector<288x256xf32>
    %c0_16 = arith.constant 0 : index
    %c0_17 = arith.constant 0 : index
    %35 = vector.load %arg8[%c0_16, %c0_17] : memref<342x128xbf16, #tpu.memory_space<vmem>>, vector<288x128xbf16>
    %c1 = arith.constant 1 : index
    %c0_18 = arith.constant 0 : index
    %36 = vector.load %arg8[%c1, %c0_18] : memref<342x128xbf16, #tpu.memory_space<vmem>>, vector<288x128xbf16>
    %37 = tpu.concatenate %35, %36 in 1 : vector<288x128xbf16>, vector<288x128xbf16> -> vector<288x256xbf16>
    %c0_19 = arith.constant 0 : index
    %c0_20 = arith.constant 0 : index
    %38 = vector.load %arg5[%c0_19, %c0_20] : memref<1152x256xbf16, #tpu.memory_space<vmem>>, vector<256x256xbf16>
    %cst_21 = arith.constant dense<0.000000e+00> : vector<288x256xf32>
    %39 = tpu.matmul %37, %38, %cst_21 {dimension_numbers = #tpu.dot_dimension_numbers<[1], [0], [0], [1], [0, 0, 1, 1], [], []>} : vector<288x256xbf16>, vector<256x256xbf16>, vector<288x256xf32> -> vector<288x256xf32>
    %40 = arith.addf %34, %39 : vector<288x256xf32>
    %c2 = arith.constant 2 : index
    %c0_22 = arith.constant 0 : index
    %41 = vector.load %arg8[%c2, %c0_22] : memref<342x128xbf16, #tpu.memory_space<vmem>>, vector<288x128xbf16>
    %c18 = arith.constant 18 : index
    %c0_23 = arith.constant 0 : index
    %42 = vector.load %arg8[%c18, %c0_23] : memref<342x128xbf16, #tpu.memory_space<vmem>>, vector<288x128xbf16>
    %43 = tpu.concatenate %41, %42 in 1 : vector<288x128xbf16>, vector<288x128xbf16> -> vector<288x256xbf16>
    %c256 = arith.constant 256 : index
    %c0_24 = arith.constant 0 : index
    %44 = vector.load %arg5[%c256, %c0_24] : memref<1152x256xbf16, #tpu.memory_space<vmem>>, vector<256x256xbf16>
    %cst_25 = arith.constant dense<0.000000e+00> : vector<288x256xf32>
    %45 = tpu.matmul %43, %44, %cst_25 {dimension_numbers = #tpu.dot_dimension_numbers<[1], [0], [0], [1], [0, 0, 1, 1], [], []>} : vector<288x256xbf16>, vector<256x256xbf16>, vector<288x256xf32> -> vector<288x256xf32>
    %46 = arith.addf %40, %45 : vector<288x256xf32>
    %c19_26 = arith.constant 19 : index
    %c0_27 = arith.constant 0 : index
    %47 = vector.load %arg8[%c19_26, %c0_27] : memref<342x128xbf16, #tpu.memory_space<vmem>>, vector<288x128xbf16>
    %c20 = arith.constant 20 : index
    %c0_28 = arith.constant 0 : index
    %48 = vector.load %arg8[%c20, %c0_28] : memref<342x128xbf16, #tpu.memory_space<vmem>>, vector<288x128xbf16>
    %49 = tpu.concatenate %47, %48 in 1 : vector<288x128xbf16>, vector<288x128xbf16> -> vector<288x256xbf16>
    %c512 = arith.constant 512 : index
    %c0_29 = arith.constant 0 : index
    %50 = vector.load %arg5[%c512, %c0_29] : memref<1152x256xbf16, #tpu.memory_space<vmem>>, vector<256x256xbf16>
    %cst_30 = arith.constant dense<0.000000e+00> : vector<288x256xf32>
    %51 = tpu.matmul %49, %50, %cst_30 {dimension_numbers = #tpu.dot_dimension_numbers<[1], [0], [0], [1], [0, 0, 1, 1], [], []>} : vector<288x256xbf16>, vector<256x256xbf16>, vector<288x256xf32> -> vector<288x256xf32>
    %52 = arith.addf %46, %51 : vector<288x256xf32>
    %c36 = arith.constant 36 : index
    %c0_31 = arith.constant 0 : index
    %53 = vector.load %arg8[%c36, %c0_31] : memref<342x128xbf16, #tpu.memory_space<vmem>>, vector<288x128xbf16>
    %c37 = arith.constant 37 : index
    %c0_32 = arith.constant 0 : index
    %54 = vector.load %arg8[%c37, %c0_32] : memref<342x128xbf16, #tpu.memory_space<vmem>>, vector<288x128xbf16>
    %55 = tpu.concatenate %53, %54 in 1 : vector<288x128xbf16>, vector<288x128xbf16> -> vector<288x256xbf16>
    %c768 = arith.constant 768 : index
    %c0_33 = arith.constant 0 : index
    %56 = vector.load %arg5[%c768, %c0_33] : memref<1152x256xbf16, #tpu.memory_space<vmem>>, vector<256x256xbf16>
    %cst_34 = arith.constant dense<0.000000e+00> : vector<288x256xf32>
    %57 = tpu.matmul %55, %56, %cst_34 {dimension_numbers = #tpu.dot_dimension_numbers<[1], [0], [0], [1], [0, 0, 1, 1], [], []>} : vector<288x256xbf16>, vector<256x256xbf16>, vector<288x256xf32> -> vector<288x256xf32>
    %58 = arith.addf %52, %57 : vector<288x256xf32>
    %c38 = arith.constant 38 : index
    %c0_35 = arith.constant 0 : index
    %59 = vector.load %arg8[%c38, %c0_35] : memref<342x128xbf16, #tpu.memory_space<vmem>>, vector<288x128xbf16>
    %c1024 = arith.constant 1024 : index
    %c0_36 = arith.constant 0 : index
    %60 = vector.load %arg5[%c1024, %c0_36] : memref<1152x256xbf16, #tpu.memory_space<vmem>>, vector<128x256xbf16>
    %cst_37 = arith.constant dense<0.000000e+00> : vector<288x256xf32>
    %61 = tpu.matmul %59, %60, %cst_37 {dimension_numbers = #tpu.dot_dimension_numbers<[1], [0], [0], [1], [0, 0, 1, 1], [], []>} : vector<288x128xbf16>, vector<128x256xbf16>, vector<288x256xf32> -> vector<288x256xf32>
    %62 = arith.addf %58, %61 : vector<288x256xf32>
    %c0_38 = arith.constant 0 : index
    %c0_39 = arith.constant 0 : index
    %63 = vector.load %arg6[%c0_38, %c0_39] : memref<1x256xf32, #tpu.memory_space<vmem>>, vector<1x256xf32>
    %64 = vector.broadcast %63 : vector<1x256xf32> to vector<288x256xf32>
    %65 = arith.addf %62, %64 : vector<288x256xf32>
    %c0_40 = arith.constant 0 : index
    %c0_41 = arith.constant 0 : index
    %66 = vector.load %arg9[%c0_40, %c0_41] : memref<288x256xf32, #tpu.memory_space<vmem>>, vector<288x256xf32>
    tpu.vector_store %arg9[%c0_40, %c0_41], %65 {strides = array<i32>} : memref<288x256xf32, #tpu.memory_space<vmem>>, vector<288x256xf32>,
    %cst_42 = arith.constant 0.000000e+00 : f32
    %67 = vector.broadcast %cst_42 : f32 to vector<1x128xf32>
    %cst_43 = arith.constant 0.000000e+00 : f32
    %68 = vector.broadcast %cst_43 : f32 to vector<1x128xf32>
    %c0_44 = arith.constant 0 : index
    %c0_45 = arith.constant 0 : index
    %c0_46 = arith.constant 0 : index
    %c0_47 = arith.constant 0 : index
    %69 = vector.load %arg2[%c0_44, %c0_45, %c0_46, %c0_47] : memref<1x16x16x128xf32, #tpu.memory_space<vmem>>, vector<1x1x16x128xf32>
    %70 = vector.shape_cast %69 : vector<1x1x16x128xf32> to vector<16x128xf32>
    %cst_48 = arith.constant dense<0.000000e+00> : vector<128xf32>
    %71 = vector.multi_reduction <add>, %70, %cst_48 [0] : vector<16x128xf32> to vector<128xf32>
    %72 = vector.shape_cast %71 : vector<128xf32> to vector<1x128xf32>
    %73 = arith.addf %67, %72 : vector<1x128xf32>
    %74 = arith.mulf %70, %70 : vector<16x128xf32>
    %cst_49 = arith.constant dense<0.000000e+00> : vector<128xf32>
    %75 = vector.multi_reduction <add>, %74, %cst_49 [0] : vector<16x128xf32> to vector<128xf32>
    %76 = vector.shape_cast %75 : vector<128xf32> to vector<1x128xf32>
    %77 = arith.addf %68, %76 : vector<1x128xf32>
    %c0_50 = arith.constant 0 : index
    %c1_51 = arith.constant 1 : index
    %c0_52 = arith.constant 0 : index
    %c0_53 = arith.constant 0 : index
    %78 = vector.load %arg2[%c0_50, %c1_51, %c0_52, %c0_53] : memref<1x16x16x128xf32, #tpu.memory_space<vmem>>, vector<1x1x16x128xf32>
    %79 = vector.shape_cast %78 : vector<1x1x16x128xf32> to vector<16x128xf32>
    %cst_54 = arith.constant dense<0.000000e+00> : vector<128xf32>
    %80 = vector.multi_reduction <add>, %79, %cst_54 [0] : vector<16x128xf32> to vector<128xf32>
    %81 = vector.shape_cast %80 : vector<128xf32> to vector<1x128xf32>
    %82 = arith.addf %73, %81 : vector<1x128xf32>
    %83 = arith.mulf %79, %79 : vector<16x128xf32>
    %cst_55 = arith.constant dense<0.000000e+00> : vector<128xf32>
    %84 = vector.multi_reduction <add>, %83, %cst_55 [0] : vector<16x128xf32> to vector<128xf32>
    %85 = vector.shape_cast %84 : vector<128xf32> to vector<1x128xf32>
    %86 = arith.addf %77, %85 : vector<1x128xf32>
    %c0_56 = arith.constant 0 : index
    %c2_57 = arith.constant 2 : index
    %c0_58 = arith.constant 0 : index
    %c0_59 = arith.constant 0 : index
    %87 = vector.load %arg2[%c0_56, %c2_57, %c0_58, %c0_59] : memref<1x16x16x128xf32, #tpu.memory_space<vmem>>, vector<1x1x16x128xf32>
    %88 = vector.shape_cast %87 : vector<1x1x16x128xf32> to vector<16x128xf32>
    %cst_60 = arith.constant dense<0.000000e+00> : vector<128xf32>
    %89 = vector.multi_reduction <add>, %88, %cst_60 [0] : vector<16x128xf32> to vector<128xf32>
    %90 = vector.shape_cast %89 : vector<128xf32> to vector<1x128xf32>
    %91 = arith.addf %82, %90 : vector<1x128xf32>
    %92 = arith.mulf %88, %88 : vector<16x128xf32>
    %cst_61 = arith.constant dense<0.000000e+00> : vector<128xf32>
    %93 = vector.multi_reduction <add>, %92, %cst_61 [0] : vector<16x128xf32> to vector<128xf32>
    %94 = vector.shape_cast %93 : vector<128xf32> to vector<1x128xf32>
    %95 = arith.addf %86, %94 : vector<1x128xf32>
    %c0_62 = arith.constant 0 : index
    %c3 = arith.constant 3 : index
    %c0_63 = arith.constant 0 : index
    %c0_64 = arith.constant 0 : index
    %96 = vector.load %arg2[%c0_62, %c3, %c0_63, %c0_64] : memref<1x16x16x128xf32, #tpu.memory_space<vmem>>, vector<1x1x16x128xf32>
    %97 = vector.shape_cast %96 : vector<1x1x16x128xf32> to vector<16x128xf32>
    %cst_65 = arith.constant dense<0.000000e+00> : vector<128xf32>
    %98 = vector.multi_reduction <add>, %97, %cst_65 [0] : vector<16x128xf32> to vector<128xf32>
    %99 = vector.shape_cast %98 : vector<128xf32> to vector<1x128xf32>
    %100 = arith.addf %91, %99 : vector<1x128xf32>
    %101 = arith.mulf %97, %97 : vector<16x128xf32>
    %cst_66 = arith.constant dense<0.000000e+00> : vector<128xf32>
    %102 = vector.multi_reduction <add>, %101, %cst_66 [0] : vector<16x128xf32> to vector<128xf32>
    %103 = vector.shape_cast %102 : vector<128xf32> to vector<1x128xf32>
    %104 = arith.addf %95, %103 : vector<1x128xf32>
    %c0_67 = arith.constant 0 : index
    %c4 = arith.constant 4 : index
    %c0_68 = arith.constant 0 : index
    %c0_69 = arith.constant 0 : index
    %105 = vector.load %arg2[%c0_67, %c4, %c0_68, %c0_69] : memref<1x16x16x128xf32, #tpu.memory_space<vmem>>, vector<1x1x16x128xf32>
    %106 = vector.shape_cast %105 : vector<1x1x16x128xf32> to vector<16x128xf32>
    %cst_70 = arith.constant dense<0.000000e+00> : vector<128xf32>
    %107 = vector.multi_reduction <add>, %106, %cst_70 [0] : vector<16x128xf32> to vector<128xf32>
    %108 = vector.shape_cast %107 : vector<128xf32> to vector<1x128xf32>
    %109 = arith.addf %100, %108 : vector<1x128xf32>
    %110 = arith.mulf %106, %106 : vector<16x128xf32>
    %cst_71 = arith.constant dense<0.000000e+00> : vector<128xf32>
    %111 = vector.multi_reduction <add>, %110, %cst_71 [0] : vector<16x128xf32> to vector<128xf32>
    %112 = vector.shape_cast %111 : vector<128xf32> to vector<1x128xf32>
    %113 = arith.addf %104, %112 : vector<1x128xf32>
    %c0_72 = arith.constant 0 : index
    %c5 = arith.constant 5 : index
    %c0_73 = arith.constant 0 : index
    %c0_74 = arith.constant 0 : index
    %114 = vector.load %arg2[%c0_72, %c5, %c0_73, %c0_74] : memref<1x16x16x128xf32, #tpu.memory_space<vmem>>, vector<1x1x16x128xf32>
    %115 = vector.shape_cast %114 : vector<1x1x16x128xf32> to vector<16x128xf32>
    %cst_75 = arith.constant dense<0.000000e+00> : vector<128xf32>
    %116 = vector.multi_reduction <add>, %115, %cst_75 [0] : vector<16x128xf32> to vector<128xf32>
    %117 = vector.shape_cast %116 : vector<128xf32> to vector<1x128xf32>
    %118 = arith.addf %109, %117 : vector<1x128xf32>
    %119 = arith.mulf %115, %115 : vector<16x128xf32>
    %cst_76 = arith.constant dense<0.000000e+00> : vector<128xf32>
    %120 = vector.multi_reduction <add>, %119, %cst_76 [0] : vector<16x128xf32> to vector<128xf32>
    %121 = vector.shape_cast %120 : vector<128xf32> to vector<1x128xf32>
    %122 = arith.addf %113, %121 : vector<1x128xf32>
    %c0_77 = arith.constant 0 : index
    %c6 = arith.constant 6 : index
    %c0_78 = arith.constant 0 : index
    %c0_79 = arith.constant 0 : index
    %123 = vector.load %arg2[%c0_77, %c6, %c0_78, %c0_79] : memref<1x16x16x128xf32, #tpu.memory_space<vmem>>, vector<1x1x16x128xf32>
    %124 = vector.shape_cast %123 : vector<1x1x16x128xf32> to vector<16x128xf32>
    %cst_80 = arith.constant dense<0.000000e+00> : vector<128xf32>
    %125 = vector.multi_reduction <add>, %124, %cst_80 [0] : vector<16x128xf32> to vector<128xf32>
    %126 = vector.shape_cast %125 : vector<128xf32> to vector<1x128xf32>
    %127 = arith.addf %118, %126 : vector<1x128xf32>
    %128 = arith.mulf %124, %124 : vector<16x128xf32>
    %cst_81 = arith.constant dense<0.000000e+00> : vector<128xf32>
    %129 = vector.multi_reduction <add>, %128, %cst_81 [0] : vector<16x128xf32> to vector<128xf32>
    %130 = vector.shape_cast %129 : vector<128xf32> to vector<1x128xf32>
    %131 = arith.addf %122, %130 : vector<1x128xf32>
    %c0_82 = arith.constant 0 : index
    %c7 = arith.constant 7 : index
    %c0_83 = arith.constant 0 : index
    %c0_84 = arith.constant 0 : index
    %132 = vector.load %arg2[%c0_82, %c7, %c0_83, %c0_84] : memref<1x16x16x128xf32, #tpu.memory_space<vmem>>, vector<1x1x16x128xf32>
    %133 = vector.shape_cast %132 : vector<1x1x16x128xf32> to vector<16x128xf32>
    %cst_85 = arith.constant dense<0.000000e+00> : vector<128xf32>
    %134 = vector.multi_reduction <add>, %133, %cst_85 [0] : vector<16x128xf32> to vector<128xf32>
    %135 = vector.shape_cast %134 : vector<128xf32> to vector<1x128xf32>
    %136 = arith.addf %127, %135 : vector<1x128xf32>
    %137 = arith.mulf %133, %133 : vector<16x128xf32>
    %cst_86 = arith.constant dense<0.000000e+00> : vector<128xf32>
    %138 = vector.multi_reduction <add>, %137, %cst_86 [0] : vector<16x128xf32> to vector<128xf32>
    %139 = vector.shape_cast %138 : vector<128xf32> to vector<1x128xf32>
    %140 = arith.addf %131, %139 : vector<1x128xf32>
    %c0_87 = arith.constant 0 : index
    %c8 = arith.constant 8 : index
    %c0_88 = arith.constant 0 : index
    %c0_89 = arith.constant 0 : index
    %141 = vector.load %arg2[%c0_87, %c8, %c0_88, %c0_89] : memref<1x16x16x128xf32, #tpu.memory_space<vmem>>, vector<1x1x16x128xf32>
    %142 = vector.shape_cast %141 : vector<1x1x16x128xf32> to vector<16x128xf32>
    %cst_90 = arith.constant dense<0.000000e+00> : vector<128xf32>
    %143 = vector.multi_reduction <add>, %142, %cst_90 [0] : vector<16x128xf32> to vector<128xf32>
    %144 = vector.shape_cast %143 : vector<128xf32> to vector<1x128xf32>
    %145 = arith.addf %136, %144 : vector<1x128xf32>
    %146 = arith.mulf %142, %142 : vector<16x128xf32>
    %cst_91 = arith.constant dense<0.000000e+00> : vector<128xf32>
    %147 = vector.multi_reduction <add>, %146, %cst_91 [0] : vector<16x128xf32> to vector<128xf32>
    %148 = vector.shape_cast %147 : vector<128xf32> to vector<1x128xf32>
    %149 = arith.addf %140, %148 : vector<1x128xf32>
    %c0_92 = arith.constant 0 : index
    %c9 = arith.constant 9 : index
    %c0_93 = arith.constant 0 : index
    %c0_94 = arith.constant 0 : index
    %150 = vector.load %arg2[%c0_92, %c9, %c0_93, %c0_94] : memref<1x16x16x128xf32, #tpu.memory_space<vmem>>, vector<1x1x16x128xf32>
    %151 = vector.shape_cast %150 : vector<1x1x16x128xf32> to vector<16x128xf32>
    %cst_95 = arith.constant dense<0.000000e+00> : vector<128xf32>
    %152 = vector.multi_reduction <add>, %151, %cst_95 [0] : vector<16x128xf32> to vector<128xf32>
    %153 = vector.shape_cast %152 : vector<128xf32> to vector<1x128xf32>
    %154 = arith.addf %145, %153 : vector<1x128xf32>
    %155 = arith.mulf %151, %151 : vector<16x128xf32>
    %cst_96 = arith.constant dense<0.000000e+00> : vector<128xf32>
    %156 = vector.multi_reduction <add>, %155, %cst_96 [0] : vector<16x128xf32> to vector<128xf32>
    %157 = vector.shape_cast %156 : vector<128xf32> to vector<1x128xf32>
    %158 = arith.addf %149, %157 : vector<1x128xf32>
    %c0_97 = arith.constant 0 : index
    %c10 = arith.constant 10 : index
    %c0_98 = arith.constant 0 : index
    %c0_99 = arith.constant 0 : index
    %159 = vector.load %arg2[%c0_97, %c10, %c0_98, %c0_99] : memref<1x16x16x128xf32, #tpu.memory_space<vmem>>, vector<1x1x16x128xf32>
    %160 = vector.shape_cast %159 : vector<1x1x16x128xf32> to vector<16x128xf32>
    %cst_100 = arith.constant dense<0.000000e+00> : vector<128xf32>
    %161 = vector.multi_reduction <add>, %160, %cst_100 [0] : vector<16x128xf32> to vector<128xf32>
    %162 = vector.shape_cast %161 : vector<128xf32> to vector<1x128xf32>
    %163 = arith.addf %154, %162 : vector<1x128xf32>
    %164 = arith.mulf %160, %160 : vector<16x128xf32>
    %cst_101 = arith.constant dense<0.000000e+00> : vector<128xf32>
    %165 = vector.multi_reduction <add>, %164, %cst_101 [0] : vector<16x128xf32> to vector<128xf32>
    %166 = vector.shape_cast %165 : vector<128xf32> to vector<1x128xf32>
    %167 = arith.addf %158, %166 : vector<1x128xf32>
    %c0_102 = arith.constant 0 : index
    %c11 = arith.constant 11 : index
    %c0_103 = arith.constant 0 : index
    %c0_104 = arith.constant 0 : index
    %168 = vector.load %arg2[%c0_102, %c11, %c0_103, %c0_104] : memref<1x16x16x128xf32, #tpu.memory_space<vmem>>, vector<1x1x16x128xf32>
    %169 = vector.shape_cast %168 : vector<1x1x16x128xf32> to vector<16x128xf32>
    %cst_105 = arith.constant dense<0.000000e+00> : vector<128xf32>
    %170 = vector.multi_reduction <add>, %169, %cst_105 [0] : vector<16x128xf32> to vector<128xf32>
    %171 = vector.shape_cast %170 : vector<128xf32> to vector<1x128xf32>
    %172 = arith.addf %163, %171 : vector<1x128xf32>
    %173 = arith.mulf %169, %169 : vector<16x128xf32>
    %cst_106 = arith.constant dense<0.000000e+00> : vector<128xf32>
    %174 = vector.multi_reduction <add>, %173, %cst_106 [0] : vector<16x128xf32> to vector<128xf32>
    %175 = vector.shape_cast %174 : vector<128xf32> to vector<1x128xf32>
    %176 = arith.addf %167, %175 : vector<1x128xf32>
    %c0_107 = arith.constant 0 : index
    %c12 = arith.constant 12 : index
    %c0_108 = arith.constant 0 : index
    %c0_109 = arith.constant 0 : index
    %177 = vector.load %arg2[%c0_107, %c12, %c0_108, %c0_109] : memref<1x16x16x128xf32, #tpu.memory_space<vmem>>, vector<1x1x16x128xf32>
    %178 = vector.shape_cast %177 : vector<1x1x16x128xf32> to vector<16x128xf32>
    %cst_110 = arith.constant dense<0.000000e+00> : vector<128xf32>
    %179 = vector.multi_reduction <add>, %178, %cst_110 [0] : vector<16x128xf32> to vector<128xf32>
    %180 = vector.shape_cast %179 : vector<128xf32> to vector<1x128xf32>
    %181 = arith.addf %172, %180 : vector<1x128xf32>
    %182 = arith.mulf %178, %178 : vector<16x128xf32>
    %cst_111 = arith.constant dense<0.000000e+00> : vector<128xf32>
    %183 = vector.multi_reduction <add>, %182, %cst_111 [0] : vector<16x128xf32> to vector<128xf32>
    %184 = vector.shape_cast %183 : vector<128xf32> to vector<1x128xf32>
    %185 = arith.addf %176, %184 : vector<1x128xf32>
    %c0_112 = arith.constant 0 : index
    %c13 = arith.constant 13 : index
    %c0_113 = arith.constant 0 : index
    %c0_114 = arith.constant 0 : index
    %186 = vector.load %arg2[%c0_112, %c13, %c0_113, %c0_114] : memref<1x16x16x128xf32, #tpu.memory_space<vmem>>, vector<1x1x16x128xf32>
    %187 = vector.shape_cast %186 : vector<1x1x16x128xf32> to vector<16x128xf32>
    %cst_115 = arith.constant dense<0.000000e+00> : vector<128xf32>
    %188 = vector.multi_reduction <add>, %187, %cst_115 [0] : vector<16x128xf32> to vector<128xf32>
    %189 = vector.shape_cast %188 : vector<128xf32> to vector<1x128xf32>
    %190 = arith.addf %181, %189 : vector<1x128xf32>
    %191 = arith.mulf %187, %187 : vector<16x128xf32>
    %cst_116 = arith.constant dense<0.000000e+00> : vector<128xf32>
    %192 = vector.multi_reduction <add>, %191, %cst_116 [0] : vector<16x128xf32> to vector<128xf32>
    %193 = vector.shape_cast %192 : vector<128xf32> to vector<1x128xf32>
    %194 = arith.addf %185, %193 : vector<1x128xf32>
    %c0_117 = arith.constant 0 : index
    %c14 = arith.constant 14 : index
    %c0_118 = arith.constant 0 : index
    %c0_119 = arith.constant 0 : index
    %195 = vector.load %arg2[%c0_117, %c14, %c0_118, %c0_119] : memref<1x16x16x128xf32, #tpu.memory_space<vmem>>, vector<1x1x16x128xf32>
    %196 = vector.shape_cast %195 : vector<1x1x16x128xf32> to vector<16x128xf32>
    %cst_120 = arith.constant dense<0.000000e+00> : vector<128xf32>
    %197 = vector.multi_reduction <add>, %196, %cst_120 [0] : vector<16x128xf32> to vector<128xf32>
    %198 = vector.shape_cast %197 : vector<128xf32> to vector<1x128xf32>
    %199 = arith.addf %190, %198 : vector<1x128xf32>
    %200 = arith.mulf %196, %196 : vector<16x128xf32>
    %cst_121 = arith.constant dense<0.000000e+00> : vector<128xf32>
    %201 = vector.multi_reduction <add>, %200, %cst_121 [0] : vector<16x128xf32> to vector<128xf32>
    %202 = vector.shape_cast %201 : vector<128xf32> to vector<1x128xf32>
    %203 = arith.addf %194, %202 : vector<1x128xf32>
    %c0_122 = arith.constant 0 : index
    %c15 = arith.constant 15 : index
    %c0_123 = arith.constant 0 : index
    %c0_124 = arith.constant 0 : index
    %204 = vector.load %arg2[%c0_122, %c15, %c0_123, %c0_124] : memref<1x16x16x128xf32, #tpu.memory_space<vmem>>, vector<1x1x16x128xf32>
    %205 = vector.shape_cast %204 : vector<1x1x16x128xf32> to vector<16x128xf32>
    %cst_125 = arith.constant dense<0.000000e+00> : vector<128xf32>
    %206 = vector.multi_reduction <add>, %205, %cst_125 [0] : vector<16x128xf32> to vector<128xf32>
    %207 = vector.shape_cast %206 : vector<128xf32> to vector<1x128xf32>
    %208 = arith.addf %199, %207 : vector<1x128xf32>
    %209 = arith.mulf %205, %205 : vector<16x128xf32>
    %cst_126 = arith.constant dense<0.000000e+00> : vector<128xf32>
    %210 = vector.multi_reduction <add>, %209, %cst_126 [0] : vector<16x128xf32> to vector<128xf32>
    %211 = vector.shape_cast %210 : vector<128xf32> to vector<1x128xf32>
    %212 = arith.addf %203, %211 : vector<1x128xf32>
    %cst_127 = arith.constant 3.906250e-03 : f32
    %213 = vector.broadcast %cst_127 : f32 to vector<1x128xf32>
    %214 = arith.mulf %208, %213 : vector<1x128xf32>
    %cst_128 = arith.constant 3.906250e-03 : f32
    %215 = vector.broadcast %cst_128 : f32 to vector<1x128xf32>
    %216 = arith.mulf %212, %215 : vector<1x128xf32>
    %217 = arith.mulf %214, %214 : vector<1x128xf32>
    %218 = arith.subf %216, %217 : vector<1x128xf32>
    %cst_129 = arith.constant 0.000000e+00 : f32
    %219 = vector.broadcast %cst_129 : f32 to vector<1x128xf32>
    %220 = arith.maximumf %218, %219 : vector<1x128xf32>
    %cst_130 = arith.constant 9.99999974E-6 : f32
    %221 = vector.broadcast %cst_130 : f32 to vector<1x128xf32>
    %222 = arith.addf %220, %221 : vector<1x128xf32>
    %223 = math.rsqrt %222 : vector<1x128xf32>
    %c0_131 = arith.constant 0 : index
    %c0_132 = arith.constant 0 : index
    %224 = vector.load %arg9[%c0_131, %c0_132] : memref<288x256xf32, #tpu.memory_space<vmem>>, vector<16x256xf32>
    %225 = vector.extract_strided_slice %224 {offsets = [0, 0], sizes = [16, 128], strides = [1, 1]} : vector<16x256xf32> to vector<16x128xf32>
    %226 = vector.extract_strided_slice %224 {offsets = [0, 128], sizes = [16, 128], strides = [1, 1]} : vector<16x256xf32> to vector<16x128xf32>
    %c0_133 = arith.constant 0 : index
    %c0_134 = arith.constant 0 : index
    %c0_135 = arith.constant 0 : index
    %c0_136 = arith.constant 0 : index
    %227 = vector.load %arg2[%c0_133, %c0_134, %c0_135, %c0_136] : memref<1x16x16x128xf32, #tpu.memory_space<vmem>>, vector<1x1x16x128xf32>
    %228 = vector.shape_cast %227 : vector<1x1x16x128xf32> to vector<16x128xf32>
    %229 = vector.broadcast %214 : vector<1x128xf32> to vector<16x128xf32>
    %230 = arith.subf %228, %229 : vector<16x128xf32>
    %231 = vector.broadcast %223 : vector<1x128xf32> to vector<16x128xf32>
    %232 = arith.mulf %230, %231 : vector<16x128xf32>
    %cst_137 = arith.constant 1.000000e+00 : f32
    %233 = vector.broadcast %cst_137 : f32 to vector<16x128xf32>
    %234 = arith.addf %233, %225 : vector<16x128xf32>
    %235 = arith.mulf %232, %234 : vector<16x128xf32>
    %236 = arith.addf %235, %226 : vector<16x128xf32>
    %c0_138 = arith.constant 0 : index
    %c0_139 = arith.constant 0 : index
    %c0_140 = arith.constant 0 : index
    %c0_141 = arith.constant 0 : index
    %237 = vector.load %arg7[%c0_138, %c0_139, %c0_140, %c0_141] : memref<1x16x16x128xf32, #tpu.memory_space<vmem>>, vector<1x1x16x128xf32>
    %238 = vector.shape_cast %237 : vector<1x1x16x128xf32> to vector<16x128xf32>
    %239 = vector.shape_cast %236 : vector<16x128xf32> to vector<1x1x16x128xf32>
    tpu.vector_store %arg7[%c0_138, %c0_139, %c0_140, %c0_141], %239 {strides = array<i32>} : memref<1x16x16x128xf32, #tpu.memory_space<vmem>>, vector<1x1x16x128xf32>,
    %c18_142 = arith.constant 18 : index
    %c0_143 = arith.constant 0 : index
    %240 = vector.load %arg9[%c18_142, %c0_143] : memref<288x256xf32, #tpu.memory_space<vmem>>, vector<16x256xf32>
    %241 = vector.extract_strided_slice %240 {offsets = [0, 0], sizes = [16, 128], strides = [1, 1]} : vector<16x256xf32> to vector<16x128xf32>
    %242 = vector.extract_strided_slice %240 {offsets = [0, 128], sizes = [16, 128], strides = [1, 1]} : vector<16x256xf32> to vector<16x128xf32>
    %c0_144 = arith.constant 0 : index
    %c1_145 = arith.constant 1 : index
    %c0_146 = arith.constant 0 : index
    %c0_147 = arith.constant 0 : index
    %243 = vector.load %arg2[%c0_144, %c1_145, %c0_146, %c0_147] : memref<1x16x16x128xf32, #tpu.memory_space<vmem>>, vector<1x1x16x128xf32>
    %244 = vector.shape_cast %243 : vector<1x1x16x128xf32> to vector<16x128xf32>
    %245 = vector.broadcast %214 : vector<1x128xf32> to vector<16x128xf32>
    %246 = arith.subf %244, %245 : vector<16x128xf32>
    %247 = vector.broadcast %223 : vector<1x128xf32> to vector<16x128xf32>
    %248 = arith.mulf %246, %247 : vector<16x128xf32>
    %cst_148 = arith.constant 1.000000e+00 : f32
    %249 = vector.broadcast %cst_148 : f32 to vector<16x128xf32>
    %250 = arith.addf %249, %241 : vector<16x128xf32>
    %251 = arith.mulf %248, %250 : vector<16x128xf32>
    %252 = arith.addf %251, %242 : vector<16x128xf32>
    %c0_149 = arith.constant 0 : index
    %c1_150 = arith.constant 1 : index
    %c0_151 = arith.constant 0 : index
    %c0_152 = arith.constant 0 : index
    %253 = vector.load %arg7[%c0_149, %c1_150, %c0_151, %c0_152] : memref<1x16x16x128xf32, #tpu.memory_space<vmem>>, vector<1x1x16x128xf32>
    %254 = vector.shape_cast %253 : vector<1x1x16x128xf32> to vector<16x128xf32>
    %255 = vector.shape_cast %252 : vector<16x128xf32> to vector<1x1x16x128xf32>
    tpu.vector_store %arg7[%c0_149, %c1_150, %c0_151, %c0_152], %255 {strides = array<i32>} : memref<1x16x16x128xf32, #tpu.memory_space<vmem>>, vector<1x1x16x128xf32>,
    %c36_153 = arith.constant 36 : index
    %c0_154 = arith.constant 0 : index
    %256 = vector.load %arg9[%c36_153, %c0_154] : memref<288x256xf32, #tpu.memory_space<vmem>>, vector<16x256xf32>
    %257 = vector.extract_strided_slice %256 {offsets = [0, 0], sizes = [16, 128], strides = [1, 1]} : vector<16x256xf32> to vector<16x128xf32>
    %258 = vector.extract_strided_slice %256 {offsets = [0, 128], sizes = [16, 128], strides = [1, 1]} : vector<16x256xf32> to vector<16x128xf32>
    %c0_155 = arith.constant 0 : index
    %c2_156 = arith.constant 2 : index
    %c0_157 = arith.constant 0 : index
    %c0_158 = arith.constant 0 : index
    %259 = vector.load %arg2[%c0_155, %c2_156, %c0_157, %c0_158] : memref<1x16x16x128xf32, #tpu.memory_space<vmem>>, vector<1x1x16x128xf32>
    %260 = vector.shape_cast %259 : vector<1x1x16x128xf32> to vector<16x128xf32>
    %261 = vector.broadcast %214 : vector<1x128xf32> to vector<16x128xf32>
    %262 = arith.subf %260, %261 : vector<16x128xf32>
    %263 = vector.broadcast %223 : vector<1x128xf32> to vector<16x128xf32>
    %264 = arith.mulf %262, %263 : vector<16x128xf32>
    %cst_159 = arith.constant 1.000000e+00 : f32
    %265 = vector.broadcast %cst_159 : f32 to vector<16x128xf32>
    %266 = arith.addf %265, %257 : vector<16x128xf32>
    %267 = arith.mulf %264, %266 : vector<16x128xf32>
    %268 = arith.addf %267, %258 : vector<16x128xf32>
    %c0_160 = arith.constant 0 : index
    %c2_161 = arith.constant 2 : index
    %c0_162 = arith.constant 0 : index
    %c0_163 = arith.constant 0 : index
    %269 = vector.load %arg7[%c0_160, %c2_161, %c0_162, %c0_163] : memref<1x16x16x128xf32, #tpu.memory_space<vmem>>, vector<1x1x16x128xf32>
    %270 = vector.shape_cast %269 : vector<1x1x16x128xf32> to vector<16x128xf32>
    %271 = vector.shape_cast %268 : vector<16x128xf32> to vector<1x1x16x128xf32>
    tpu.vector_store %arg7[%c0_160, %c2_161, %c0_162, %c0_163], %271 {strides = array<i32>} : memref<1x16x16x128xf32, #tpu.memory_space<vmem>>, vector<1x1x16x128xf32>,
    %c54 = arith.constant 54 : index
    %c0_164 = arith.constant 0 : index
    %272 = vector.load %arg9[%c54, %c0_164] : memref<288x256xf32, #tpu.memory_space<vmem>>, vector<16x256xf32>
    %273 = vector.extract_strided_slice %272 {offsets = [0, 0], sizes = [16, 128], strides = [1, 1]} : vector<16x256xf32> to vector<16x128xf32>
    %274 = vector.extract_strided_slice %272 {offsets = [0, 128], sizes = [16, 128], strides = [1, 1]} : vector<16x256xf32> to vector<16x128xf32>
    %c0_165 = arith.constant 0 : index
    %c3_166 = arith.constant 3 : index
    %c0_167 = arith.constant 0 : index
    %c0_168 = arith.constant 0 : index
    %275 = vector.load %arg2[%c0_165, %c3_166, %c0_167, %c0_168] : memref<1x16x16x128xf32, #tpu.memory_space<vmem>>, vector<1x1x16x128xf32>
    %276 = vector.shape_cast %275 : vector<1x1x16x128xf32> to vector<16x128xf32>
    %277 = vector.broadcast %214 : vector<1x128xf32> to vector<16x128xf32>
    %278 = arith.subf %276, %277 : vector<16x128xf32>
    %279 = vector.broadcast %223 : vector<1x128xf32> to vector<16x128xf32>
    %280 = arith.mulf %278, %279 : vector<16x128xf32>
    %cst_169 = arith.constant 1.000000e+00 : f32
    %281 = vector.broadcast %cst_169 : f32 to vector<16x128xf32>
    %282 = arith.addf %281, %273 : vector<16x128xf32>
    %283 = arith.mulf %280, %282 : vector<16x128xf32>
    %284 = arith.addf %283, %274 : vector<16x128xf32>
    %c0_170 = arith.constant 0 : index
    %c3_171 = arith.constant 3 : index
    %c0_172 = arith.constant 0 : index
    %c0_173 = arith.constant 0 : index
    %285 = vector.load %arg7[%c0_170, %c3_171, %c0_172, %c0_173] : memref<1x16x16x128xf32, #tpu.memory_space<vmem>>, vector<1x1x16x128xf32>
    %286 = vector.shape_cast %285 : vector<1x1x16x128xf32> to vector<16x128xf32>
    %287 = vector.shape_cast %284 : vector<16x128xf32> to vector<1x1x16x128xf32>
    tpu.vector_store %arg7[%c0_170, %c3_171, %c0_172, %c0_173], %287 {strides = array<i32>} : memref<1x16x16x128xf32, #tpu.memory_space<vmem>>, vector<1x1x16x128xf32>,
    %c72 = arith.constant 72 : index
    %c0_174 = arith.constant 0 : index
    %288 = vector.load %arg9[%c72, %c0_174] : memref<288x256xf32, #tpu.memory_space<vmem>>, vector<16x256xf32>
    %289 = vector.extract_strided_slice %288 {offsets = [0, 0], sizes = [16, 128], strides = [1, 1]} : vector<16x256xf32> to vector<16x128xf32>
    %290 = vector.extract_strided_slice %288 {offsets = [0, 128], sizes = [16, 128], strides = [1, 1]} : vector<16x256xf32> to vector<16x128xf32>
    %c0_175 = arith.constant 0 : index
    %c4_176 = arith.constant 4 : index
    %c0_177 = arith.constant 0 : index
    %c0_178 = arith.constant 0 : index
    %291 = vector.load %arg2[%c0_175, %c4_176, %c0_177, %c0_178] : memref<1x16x16x128xf32, #tpu.memory_space<vmem>>, vector<1x1x16x128xf32>
    %292 = vector.shape_cast %291 : vector<1x1x16x128xf32> to vector<16x128xf32>
    %293 = vector.broadcast %214 : vector<1x128xf32> to vector<16x128xf32>
    %294 = arith.subf %292, %293 : vector<16x128xf32>
    %295 = vector.broadcast %223 : vector<1x128xf32> to vector<16x128xf32>
    %296 = arith.mulf %294, %295 : vector<16x128xf32>
    %cst_179 = arith.constant 1.000000e+00 : f32
    %297 = vector.broadcast %cst_179 : f32 to vector<16x128xf32>
    %298 = arith.addf %297, %289 : vector<16x128xf32>
    %299 = arith.mulf %296, %298 : vector<16x128xf32>
    %300 = arith.addf %299, %290 : vector<16x128xf32>
    %c0_180 = arith.constant 0 : index
    %c4_181 = arith.constant 4 : index
    %c0_182 = arith.constant 0 : index
    %c0_183 = arith.constant 0 : index
    %301 = vector.load %arg7[%c0_180, %c4_181, %c0_182, %c0_183] : memref<1x16x16x128xf32, #tpu.memory_space<vmem>>, vector<1x1x16x128xf32>
    %302 = vector.shape_cast %301 : vector<1x1x16x128xf32> to vector<16x128xf32>
    %303 = vector.shape_cast %300 : vector<16x128xf32> to vector<1x1x16x128xf32>
    tpu.vector_store %arg7[%c0_180, %c4_181, %c0_182, %c0_183], %303 {strides = array<i32>} : memref<1x16x16x128xf32, #tpu.memory_space<vmem>>, vector<1x1x16x128xf32>,
    %c90 = arith.constant 90 : index
    %c0_184 = arith.constant 0 : index
    %304 = vector.load %arg9[%c90, %c0_184] : memref<288x256xf32, #tpu.memory_space<vmem>>, vector<16x256xf32>
    %305 = vector.extract_strided_slice %304 {offsets = [0, 0], sizes = [16, 128], strides = [1, 1]} : vector<16x256xf32> to vector<16x128xf32>
    %306 = vector.extract_strided_slice %304 {offsets = [0, 128], sizes = [16, 128], strides = [1, 1]} : vector<16x256xf32> to vector<16x128xf32>
    %c0_185 = arith.constant 0 : index
    %c5_186 = arith.constant 5 : index
    %c0_187 = arith.constant 0 : index
    %c0_188 = arith.constant 0 : index
    %307 = vector.load %arg2[%c0_185, %c5_186, %c0_187, %c0_188] : memref<1x16x16x128xf32, #tpu.memory_space<vmem>>, vector<1x1x16x128xf32>
    %308 = vector.shape_cast %307 : vector<1x1x16x128xf32> to vector<16x128xf32>
    %309 = vector.broadcast %214 : vector<1x128xf32> to vector<16x128xf32>
    %310 = arith.subf %308, %309 : vector<16x128xf32>
    %311 = vector.broadcast %223 : vector<1x128xf32> to vector<16x128xf32>
    %312 = arith.mulf %310, %311 : vector<16x128xf32>
    %cst_189 = arith.constant 1.000000e+00 : f32
    %313 = vector.broadcast %cst_189 : f32 to vector<16x128xf32>
    %314 = arith.addf %313, %305 : vector<16x128xf32>
    %315 = arith.mulf %312, %314 : vector<16x128xf32>
    %316 = arith.addf %315, %306 : vector<16x128xf32>
    %c0_190 = arith.constant 0 : index
    %c5_191 = arith.constant 5 : index
    %c0_192 = arith.constant 0 : index
    %c0_193 = arith.constant 0 : index
    %317 = vector.load %arg7[%c0_190, %c5_191, %c0_192, %c0_193] : memref<1x16x16x128xf32, #tpu.memory_space<vmem>>, vector<1x1x16x128xf32>
    %318 = vector.shape_cast %317 : vector<1x1x16x128xf32> to vector<16x128xf32>
    %319 = vector.shape_cast %316 : vector<16x128xf32> to vector<1x1x16x128xf32>
    tpu.vector_store %arg7[%c0_190, %c5_191, %c0_192, %c0_193], %319 {strides = array<i32>} : memref<1x16x16x128xf32, #tpu.memory_space<vmem>>, vector<1x1x16x128xf32>,
    %c108 = arith.constant 108 : index
    %c0_194 = arith.constant 0 : index
    %320 = vector.load %arg9[%c108, %c0_194] : memref<288x256xf32, #tpu.memory_space<vmem>>, vector<16x256xf32>
    %321 = vector.extract_strided_slice %320 {offsets = [0, 0], sizes = [16, 128], strides = [1, 1]} : vector<16x256xf32> to vector<16x128xf32>
    %322 = vector.extract_strided_slice %320 {offsets = [0, 128], sizes = [16, 128], strides = [1, 1]} : vector<16x256xf32> to vector<16x128xf32>
    %c0_195 = arith.constant 0 : index
    %c6_196 = arith.constant 6 : index
    %c0_197 = arith.constant 0 : index
    %c0_198 = arith.constant 0 : index
    %323 = vector.load %arg2[%c0_195, %c6_196, %c0_197, %c0_198] : memref<1x16x16x128xf32, #tpu.memory_space<vmem>>, vector<1x1x16x128xf32>
    %324 = vector.shape_cast %323 : vector<1x1x16x128xf32> to vector<16x128xf32>
    %325 = vector.broadcast %214 : vector<1x128xf32> to vector<16x128xf32>
    %326 = arith.subf %324, %325 : vector<16x128xf32>
    %327 = vector.broadcast %223 : vector<1x128xf32> to vector<16x128xf32>
    %328 = arith.mulf %326, %327 : vector<16x128xf32>
    %cst_199 = arith.constant 1.000000e+00 : f32
    %329 = vector.broadcast %cst_199 : f32 to vector<16x128xf32>
    %330 = arith.addf %329, %321 : vector<16x128xf32>
    %331 = arith.mulf %328, %330 : vector<16x128xf32>
    %332 = arith.addf %331, %322 : vector<16x128xf32>
    %c0_200 = arith.constant 0 : index
    %c6_201 = arith.constant 6 : index
    %c0_202 = arith.constant 0 : index
    %c0_203 = arith.constant 0 : index
    %333 = vector.load %arg7[%c0_200, %c6_201, %c0_202, %c0_203] : memref<1x16x16x128xf32, #tpu.memory_space<vmem>>, vector<1x1x16x128xf32>
    %334 = vector.shape_cast %333 : vector<1x1x16x128xf32> to vector<16x128xf32>
    %335 = vector.shape_cast %332 : vector<16x128xf32> to vector<1x1x16x128xf32>
    tpu.vector_store %arg7[%c0_200, %c6_201, %c0_202, %c0_203], %335 {strides = array<i32>} : memref<1x16x16x128xf32, #tpu.memory_space<vmem>>, vector<1x1x16x128xf32>,
    %c126 = arith.constant 126 : index
    %c0_204 = arith.constant 0 : index
    %336 = vector.load %arg9[%c126, %c0_204] : memref<288x256xf32, #tpu.memory_space<vmem>>, vector<16x256xf32>
    %337 = vector.extract_strided_slice %336 {offsets = [0, 0], sizes = [16, 128], strides = [1, 1]} : vector<16x256xf32> to vector<16x128xf32>
    %338 = vector.extract_strided_slice %336 {offsets = [0, 128], sizes = [16, 128], strides = [1, 1]} : vector<16x256xf32> to vector<16x128xf32>
    %c0_205 = arith.constant 0 : index
    %c7_206 = arith.constant 7 : index
    %c0_207 = arith.constant 0 : index
    %c0_208 = arith.constant 0 : index
    %339 = vector.load %arg2[%c0_205, %c7_206, %c0_207, %c0_208] : memref<1x16x16x128xf32, #tpu.memory_space<vmem>>, vector<1x1x16x128xf32>
    %340 = vector.shape_cast %339 : vector<1x1x16x128xf32> to vector<16x128xf32>
    %341 = vector.broadcast %214 : vector<1x128xf32> to vector<16x128xf32>
    %342 = arith.subf %340, %341 : vector<16x128xf32>
    %343 = vector.broadcast %223 : vector<1x128xf32> to vector<16x128xf32>
    %344 = arith.mulf %342, %343 : vector<16x128xf32>
    %cst_209 = arith.constant 1.000000e+00 : f32
    %345 = vector.broadcast %cst_209 : f32 to vector<16x128xf32>
    %346 = arith.addf %345, %337 : vector<16x128xf32>
    %347 = arith.mulf %344, %346 : vector<16x128xf32>
    %348 = arith.addf %347, %338 : vector<16x128xf32>
    %c0_210 = arith.constant 0 : index
    %c7_211 = arith.constant 7 : index
    %c0_212 = arith.constant 0 : index
    %c0_213 = arith.constant 0 : index
    %349 = vector.load %arg7[%c0_210, %c7_211, %c0_212, %c0_213] : memref<1x16x16x128xf32, #tpu.memory_space<vmem>>, vector<1x1x16x128xf32>
    %350 = vector.shape_cast %349 : vector<1x1x16x128xf32> to vector<16x128xf32>
    %351 = vector.shape_cast %348 : vector<16x128xf32> to vector<1x1x16x128xf32>
    tpu.vector_store %arg7[%c0_210, %c7_211, %c0_212, %c0_213], %351 {strides = array<i32>} : memref<1x16x16x128xf32, #tpu.memory_space<vmem>>, vector<1x1x16x128xf32>,
    %c144 = arith.constant 144 : index
    %c0_214 = arith.constant 0 : index
    %352 = vector.load %arg9[%c144, %c0_214] : memref<288x256xf32, #tpu.memory_space<vmem>>, vector<16x256xf32>
    %353 = vector.extract_strided_slice %352 {offsets = [0, 0], sizes = [16, 128], strides = [1, 1]} : vector<16x256xf32> to vector<16x128xf32>
    %354 = vector.extract_strided_slice %352 {offsets = [0, 128], sizes = [16, 128], strides = [1, 1]} : vector<16x256xf32> to vector<16x128xf32>
    %c0_215 = arith.constant 0 : index
    %c8_216 = arith.constant 8 : index
    %c0_217 = arith.constant 0 : index
    %c0_218 = arith.constant 0 : index
    %355 = vector.load %arg2[%c0_215, %c8_216, %c0_217, %c0_218] : memref<1x16x16x128xf32, #tpu.memory_space<vmem>>, vector<1x1x16x128xf32>
    %356 = vector.shape_cast %355 : vector<1x1x16x128xf32> to vector<16x128xf32>
    %357 = vector.broadcast %214 : vector<1x128xf32> to vector<16x128xf32>
    %358 = arith.subf %356, %357 : vector<16x128xf32>
    %359 = vector.broadcast %223 : vector<1x128xf32> to vector<16x128xf32>
    %360 = arith.mulf %358, %359 : vector<16x128xf32>
    %cst_219 = arith.constant 1.000000e+00 : f32
    %361 = vector.broadcast %cst_219 : f32 to vector<16x128xf32>
    %362 = arith.addf %361, %353 : vector<16x128xf32>
    %363 = arith.mulf %360, %362 : vector<16x128xf32>
    %364 = arith.addf %363, %354 : vector<16x128xf32>
    %c0_220 = arith.constant 0 : index
    %c8_221 = arith.constant 8 : index
    %c0_222 = arith.constant 0 : index
    %c0_223 = arith.constant 0 : index
    %365 = vector.load %arg7[%c0_220, %c8_221, %c0_222, %c0_223] : memref<1x16x16x128xf32, #tpu.memory_space<vmem>>, vector<1x1x16x128xf32>
    %366 = vector.shape_cast %365 : vector<1x1x16x128xf32> to vector<16x128xf32>
    %367 = vector.shape_cast %364 : vector<16x128xf32> to vector<1x1x16x128xf32>
    tpu.vector_store %arg7[%c0_220, %c8_221, %c0_222, %c0_223], %367 {strides = array<i32>} : memref<1x16x16x128xf32, #tpu.memory_space<vmem>>, vector<1x1x16x128xf32>,
    %c162 = arith.constant 162 : index
    %c0_224 = arith.constant 0 : index
    %368 = vector.load %arg9[%c162, %c0_224] : memref<288x256xf32, #tpu.memory_space<vmem>>, vector<16x256xf32>
    %369 = vector.extract_strided_slice %368 {offsets = [0, 0], sizes = [16, 128], strides = [1, 1]} : vector<16x256xf32> to vector<16x128xf32>
    %370 = vector.extract_strided_slice %368 {offsets = [0, 128], sizes = [16, 128], strides = [1, 1]} : vector<16x256xf32> to vector<16x128xf32>
    %c0_225 = arith.constant 0 : index
    %c9_226 = arith.constant 9 : index
    %c0_227 = arith.constant 0 : index
    %c0_228 = arith.constant 0 : index
    %371 = vector.load %arg2[%c0_225, %c9_226, %c0_227, %c0_228] : memref<1x16x16x128xf32, #tpu.memory_space<vmem>>, vector<1x1x16x128xf32>
    %372 = vector.shape_cast %371 : vector<1x1x16x128xf32> to vector<16x128xf32>
    %373 = vector.broadcast %214 : vector<1x128xf32> to vector<16x128xf32>
    %374 = arith.subf %372, %373 : vector<16x128xf32>
    %375 = vector.broadcast %223 : vector<1x128xf32> to vector<16x128xf32>
    %376 = arith.mulf %374, %375 : vector<16x128xf32>
    %cst_229 = arith.constant 1.000000e+00 : f32
    %377 = vector.broadcast %cst_229 : f32 to vector<16x128xf32>
    %378 = arith.addf %377, %369 : vector<16x128xf32>
    %379 = arith.mulf %376, %378 : vector<16x128xf32>
    %380 = arith.addf %379, %370 : vector<16x128xf32>
    %c0_230 = arith.constant 0 : index
    %c9_231 = arith.constant 9 : index
    %c0_232 = arith.constant 0 : index
    %c0_233 = arith.constant 0 : index
    %381 = vector.load %arg7[%c0_230, %c9_231, %c0_232, %c0_233] : memref<1x16x16x128xf32, #tpu.memory_space<vmem>>, vector<1x1x16x128xf32>
    %382 = vector.shape_cast %381 : vector<1x1x16x128xf32> to vector<16x128xf32>
    %383 = vector.shape_cast %380 : vector<16x128xf32> to vector<1x1x16x128xf32>
    tpu.vector_store %arg7[%c0_230, %c9_231, %c0_232, %c0_233], %383 {strides = array<i32>} : memref<1x16x16x128xf32, #tpu.memory_space<vmem>>, vector<1x1x16x128xf32>,
    %c180 = arith.constant 180 : index
    %c0_234 = arith.constant 0 : index
    %384 = vector.load %arg9[%c180, %c0_234] : memref<288x256xf32, #tpu.memory_space<vmem>>, vector<16x256xf32>
    %385 = vector.extract_strided_slice %384 {offsets = [0, 0], sizes = [16, 128], strides = [1, 1]} : vector<16x256xf32> to vector<16x128xf32>
    %386 = vector.extract_strided_slice %384 {offsets = [0, 128], sizes = [16, 128], strides = [1, 1]} : vector<16x256xf32> to vector<16x128xf32>
    %c0_235 = arith.constant 0 : index
    %c10_236 = arith.constant 10 : index
    %c0_237 = arith.constant 0 : index
    %c0_238 = arith.constant 0 : index
    %387 = vector.load %arg2[%c0_235, %c10_236, %c0_237, %c0_238] : memref<1x16x16x128xf32, #tpu.memory_space<vmem>>, vector<1x1x16x128xf32>
    %388 = vector.shape_cast %387 : vector<1x1x16x128xf32> to vector<16x128xf32>
    %389 = vector.broadcast %214 : vector<1x128xf32> to vector<16x128xf32>
    %390 = arith.subf %388, %389 : vector<16x128xf32>
    %391 = vector.broadcast %223 : vector<1x128xf32> to vector<16x128xf32>
    %392 = arith.mulf %390, %391 : vector<16x128xf32>
    %cst_239 = arith.constant 1.000000e+00 : f32
    %393 = vector.broadcast %cst_239 : f32 to vector<16x128xf32>
    %394 = arith.addf %393, %385 : vector<16x128xf32>
    %395 = arith.mulf %392, %394 : vector<16x128xf32>
    %396 = arith.addf %395, %386 : vector<16x128xf32>
    %c0_240 = arith.constant 0 : index
    %c10_241 = arith.constant 10 : index
    %c0_242 = arith.constant 0 : index
    %c0_243 = arith.constant 0 : index
    %397 = vector.load %arg7[%c0_240, %c10_241, %c0_242, %c0_243] : memref<1x16x16x128xf32, #tpu.memory_space<vmem>>, vector<1x1x16x128xf32>
    %398 = vector.shape_cast %397 : vector<1x1x16x128xf32> to vector<16x128xf32>
    %399 = vector.shape_cast %396 : vector<16x128xf32> to vector<1x1x16x128xf32>
    tpu.vector_store %arg7[%c0_240, %c10_241, %c0_242, %c0_243], %399 {strides = array<i32>} : memref<1x16x16x128xf32, #tpu.memory_space<vmem>>, vector<1x1x16x128xf32>,
    %c198 = arith.constant 198 : index
    %c0_244 = arith.constant 0 : index
    %400 = vector.load %arg9[%c198, %c0_244] : memref<288x256xf32, #tpu.memory_space<vmem>>, vector<16x256xf32>
    %401 = vector.extract_strided_slice %400 {offsets = [0, 0], sizes = [16, 128], strides = [1, 1]} : vector<16x256xf32> to vector<16x128xf32>
    %402 = vector.extract_strided_slice %400 {offsets = [0, 128], sizes = [16, 128], strides = [1, 1]} : vector<16x256xf32> to vector<16x128xf32>
    %c0_245 = arith.constant 0 : index
    %c11_246 = arith.constant 11 : index
    %c0_247 = arith.constant 0 : index
    %c0_248 = arith.constant 0 : index
    %403 = vector.load %arg2[%c0_245, %c11_246, %c0_247, %c0_248] : memref<1x16x16x128xf32, #tpu.memory_space<vmem>>, vector<1x1x16x128xf32>
    %404 = vector.shape_cast %403 : vector<1x1x16x128xf32> to vector<16x128xf32>
    %405 = vector.broadcast %214 : vector<1x128xf32> to vector<16x128xf32>
    %406 = arith.subf %404, %405 : vector<16x128xf32>
    %407 = vector.broadcast %223 : vector<1x128xf32> to vector<16x128xf32>
    %408 = arith.mulf %406, %407 : vector<16x128xf32>
    %cst_249 = arith.constant 1.000000e+00 : f32
    %409 = vector.broadcast %cst_249 : f32 to vector<16x128xf32>
    %410 = arith.addf %409, %401 : vector<16x128xf32>
    %411 = arith.mulf %408, %410 : vector<16x128xf32>
    %412 = arith.addf %411, %402 : vector<16x128xf32>
    %c0_250 = arith.constant 0 : index
    %c11_251 = arith.constant 11 : index
    %c0_252 = arith.constant 0 : index
    %c0_253 = arith.constant 0 : index
    %413 = vector.load %arg7[%c0_250, %c11_251, %c0_252, %c0_253] : memref<1x16x16x128xf32, #tpu.memory_space<vmem>>, vector<1x1x16x128xf32>
    %414 = vector.shape_cast %413 : vector<1x1x16x128xf32> to vector<16x128xf32>
    %415 = vector.shape_cast %412 : vector<16x128xf32> to vector<1x1x16x128xf32>
    tpu.vector_store %arg7[%c0_250, %c11_251, %c0_252, %c0_253], %415 {strides = array<i32>} : memref<1x16x16x128xf32, #tpu.memory_space<vmem>>, vector<1x1x16x128xf32>,
    %c216 = arith.constant 216 : index
    %c0_254 = arith.constant 0 : index
    %416 = vector.load %arg9[%c216, %c0_254] : memref<288x256xf32, #tpu.memory_space<vmem>>, vector<16x256xf32>
    %417 = vector.extract_strided_slice %416 {offsets = [0, 0], sizes = [16, 128], strides = [1, 1]} : vector<16x256xf32> to vector<16x128xf32>
    %418 = vector.extract_strided_slice %416 {offsets = [0, 128], sizes = [16, 128], strides = [1, 1]} : vector<16x256xf32> to vector<16x128xf32>
    %c0_255 = arith.constant 0 : index
    %c12_256 = arith.constant 12 : index
    %c0_257 = arith.constant 0 : index
    %c0_258 = arith.constant 0 : index
    %419 = vector.load %arg2[%c0_255, %c12_256, %c0_257, %c0_258] : memref<1x16x16x128xf32, #tpu.memory_space<vmem>>, vector<1x1x16x128xf32>
    %420 = vector.shape_cast %419 : vector<1x1x16x128xf32> to vector<16x128xf32>
    %421 = vector.broadcast %214 : vector<1x128xf32> to vector<16x128xf32>
    %422 = arith.subf %420, %421 : vector<16x128xf32>
    %423 = vector.broadcast %223 : vector<1x128xf32> to vector<16x128xf32>
    %424 = arith.mulf %422, %423 : vector<16x128xf32>
    %cst_259 = arith.constant 1.000000e+00 : f32
    %425 = vector.broadcast %cst_259 : f32 to vector<16x128xf32>
    %426 = arith.addf %425, %417 : vector<16x128xf32>
    %427 = arith.mulf %424, %426 : vector<16x128xf32>
    %428 = arith.addf %427, %418 : vector<16x128xf32>
    %c0_260 = arith.constant 0 : index
    %c12_261 = arith.constant 12 : index
    %c0_262 = arith.constant 0 : index
    %c0_263 = arith.constant 0 : index
    %429 = vector.load %arg7[%c0_260, %c12_261, %c0_262, %c0_263] : memref<1x16x16x128xf32, #tpu.memory_space<vmem>>, vector<1x1x16x128xf32>
    %430 = vector.shape_cast %429 : vector<1x1x16x128xf32> to vector<16x128xf32>
    %431 = vector.shape_cast %428 : vector<16x128xf32> to vector<1x1x16x128xf32>
    tpu.vector_store %arg7[%c0_260, %c12_261, %c0_262, %c0_263], %431 {strides = array<i32>} : memref<1x16x16x128xf32, #tpu.memory_space<vmem>>, vector<1x1x16x128xf32>,
    %c234 = arith.constant 234 : index
    %c0_264 = arith.constant 0 : index
    %432 = vector.load %arg9[%c234, %c0_264] : memref<288x256xf32, #tpu.memory_space<vmem>>, vector<16x256xf32>
    %433 = vector.extract_strided_slice %432 {offsets = [0, 0], sizes = [16, 128], strides = [1, 1]} : vector<16x256xf32> to vector<16x128xf32>
    %434 = vector.extract_strided_slice %432 {offsets = [0, 128], sizes = [16, 128], strides = [1, 1]} : vector<16x256xf32> to vector<16x128xf32>
    %c0_265 = arith.constant 0 : index
    %c13_266 = arith.constant 13 : index
    %c0_267 = arith.constant 0 : index
    %c0_268 = arith.constant 0 : index
    %435 = vector.load %arg2[%c0_265, %c13_266, %c0_267, %c0_268] : memref<1x16x16x128xf32, #tpu.memory_space<vmem>>, vector<1x1x16x128xf32>
    %436 = vector.shape_cast %435 : vector<1x1x16x128xf32> to vector<16x128xf32>
    %437 = vector.broadcast %214 : vector<1x128xf32> to vector<16x128xf32>
    %438 = arith.subf %436, %437 : vector<16x128xf32>
    %439 = vector.broadcast %223 : vector<1x128xf32> to vector<16x128xf32>
    %440 = arith.mulf %438, %439 : vector<16x128xf32>
    %cst_269 = arith.constant 1.000000e+00 : f32
    %441 = vector.broadcast %cst_269 : f32 to vector<16x128xf32>
    %442 = arith.addf %441, %433 : vector<16x128xf32>
    %443 = arith.mulf %440, %442 : vector<16x128xf32>
    %444 = arith.addf %443, %434 : vector<16x128xf32>
    %c0_270 = arith.constant 0 : index
    %c13_271 = arith.constant 13 : index
    %c0_272 = arith.constant 0 : index
    %c0_273 = arith.constant 0 : index
    %445 = vector.load %arg7[%c0_270, %c13_271, %c0_272, %c0_273] : memref<1x16x16x128xf32, #tpu.memory_space<vmem>>, vector<1x1x16x128xf32>
    %446 = vector.shape_cast %445 : vector<1x1x16x128xf32> to vector<16x128xf32>
    %447 = vector.shape_cast %444 : vector<16x128xf32> to vector<1x1x16x128xf32>
    tpu.vector_store %arg7[%c0_270, %c13_271, %c0_272, %c0_273], %447 {strides = array<i32>} : memref<1x16x16x128xf32, #tpu.memory_space<vmem>>, vector<1x1x16x128xf32>,
    %c252 = arith.constant 252 : index
    %c0_274 = arith.constant 0 : index
    %448 = vector.load %arg9[%c252, %c0_274] : memref<288x256xf32, #tpu.memory_space<vmem>>, vector<16x256xf32>
    %449 = vector.extract_strided_slice %448 {offsets = [0, 0], sizes = [16, 128], strides = [1, 1]} : vector<16x256xf32> to vector<16x128xf32>
    %450 = vector.extract_strided_slice %448 {offsets = [0, 128], sizes = [16, 128], strides = [1, 1]} : vector<16x256xf32> to vector<16x128xf32>
    %c0_275 = arith.constant 0 : index
    %c14_276 = arith.constant 14 : index
    %c0_277 = arith.constant 0 : index
    %c0_278 = arith.constant 0 : index
    %451 = vector.load %arg2[%c0_275, %c14_276, %c0_277, %c0_278] : memref<1x16x16x128xf32, #tpu.memory_space<vmem>>, vector<1x1x16x128xf32>
    %452 = vector.shape_cast %451 : vector<1x1x16x128xf32> to vector<16x128xf32>
    %453 = vector.broadcast %214 : vector<1x128xf32> to vector<16x128xf32>
    %454 = arith.subf %452, %453 : vector<16x128xf32>
    %455 = vector.broadcast %223 : vector<1x128xf32> to vector<16x128xf32>
    %456 = arith.mulf %454, %455 : vector<16x128xf32>
    %cst_279 = arith.constant 1.000000e+00 : f32
    %457 = vector.broadcast %cst_279 : f32 to vector<16x128xf32>
    %458 = arith.addf %457, %449 : vector<16x128xf32>
    %459 = arith.mulf %456, %458 : vector<16x128xf32>
    %460 = arith.addf %459, %450 : vector<16x128xf32>
    %c0_280 = arith.constant 0 : index
    %c14_281 = arith.constant 14 : index
    %c0_282 = arith.constant 0 : index
    %c0_283 = arith.constant 0 : index
    %461 = vector.load %arg7[%c0_280, %c14_281, %c0_282, %c0_283] : memref<1x16x16x128xf32, #tpu.memory_space<vmem>>, vector<1x1x16x128xf32>
    %462 = vector.shape_cast %461 : vector<1x1x16x128xf32> to vector<16x128xf32>
    %463 = vector.shape_cast %460 : vector<16x128xf32> to vector<1x1x16x128xf32>
    tpu.vector_store %arg7[%c0_280, %c14_281, %c0_282, %c0_283], %463 {strides = array<i32>} : memref<1x16x16x128xf32, #tpu.memory_space<vmem>>, vector<1x1x16x128xf32>,
    %c270 = arith.constant 270 : index
    %c0_284 = arith.constant 0 : index
    %464 = vector.load %arg9[%c270, %c0_284] : memref<288x256xf32, #tpu.memory_space<vmem>>, vector<16x256xf32>
    %465 = vector.extract_strided_slice %464 {offsets = [0, 0], sizes = [16, 128], strides = [1, 1]} : vector<16x256xf32> to vector<16x128xf32>
    %466 = vector.extract_strided_slice %464 {offsets = [0, 128], sizes = [16, 128], strides = [1, 1]} : vector<16x256xf32> to vector<16x128xf32>
    %c0_285 = arith.constant 0 : index
    %c15_286 = arith.constant 15 : index
    %c0_287 = arith.constant 0 : index
    %c0_288 = arith.constant 0 : index
    %467 = vector.load %arg2[%c0_285, %c15_286, %c0_287, %c0_288] : memref<1x16x16x128xf32, #tpu.memory_space<vmem>>, vector<1x1x16x128xf32>
    %468 = vector.shape_cast %467 : vector<1x1x16x128xf32> to vector<16x128xf32>
    %469 = vector.broadcast %214 : vector<1x128xf32> to vector<16x128xf32>
    %470 = arith.subf %468, %469 : vector<16x128xf32>
    %471 = vector.broadcast %223 : vector<1x128xf32> to vector<16x128xf32>
    %472 = arith.mulf %470, %471 : vector<16x128xf32>
    %cst_289 = arith.constant 1.000000e+00 : f32
    %473 = vector.broadcast %cst_289 : f32 to vector<16x128xf32>
    %474 = arith.addf %473, %465 : vector<16x128xf32>
    %475 = arith.mulf %472, %474 : vector<16x128xf32>
    %476 = arith.addf %475, %466 : vector<16x128xf32>
    %c0_290 = arith.constant 0 : index
    %c15_291 = arith.constant 15 : index
    %c0_292 = arith.constant 0 : index
    %c0_293 = arith.constant 0 : index
    %477 = vector.load %arg7[%c0_290, %c15_291, %c0_292, %c0_293] : memref<1x16x16x128xf32, #tpu.memory_space<vmem>>, vector<1x1x16x128xf32>
    %478 = vector.shape_cast %477 : vector<1x1x16x128xf32> to vector<16x128xf32>
    %479 = vector.shape_cast %476 : vector<16x128xf32> to vector<1x1x16x128xf32>
    tpu.vector_store %arg7[%c0_290, %c15_291, %c0_292, %c0_293], %479 {strides = array<i32>} : memref<1x16x16x128xf32, #tpu.memory_space<vmem>>, vector<1x1x16x128xf32>,
    return
  }
  func.func @transform_0(%arg0: i32) -> (i32, i32, i32) {
    %c0_i32 = arith.constant 0 : i32
    %c0_i32_0 = arith.constant 0 : i32
    %c0_i32_1 = arith.constant 0 : i32
    return %arg0, %c0_i32, %c0_i32_0 : i32, i32, i32
  }
  func.func @transform_1(%arg0: i32) -> (i32, i32, i32, i32) {
    %c0_i32 = arith.constant 0 : i32
    %c0_i32_0 = arith.constant 0 : i32
    %c0_i32_1 = arith.constant 0 : i32
    %c0_i32_2 = arith.constant 0 : i32
    return %arg0, %c0_i32, %c0_i32_0, %c0_i32_1 : i32, i32, i32, i32
  }
  func.func @transform_2(%arg0: i32) -> (i32, i32) {
    %c0_i32 = arith.constant 0 : i32
    %c0_i32_0 = arith.constant 0 : i32
    %c0_i32_1 = arith.constant 0 : i32
    return %c0_i32, %c0_i32_0 : i32, i32
  }
  func.func @transform_3(%arg0: i32) -> (i32, i32) {
    %c0_i32 = arith.constant 0 : i32
    %c0_i32_0 = arith.constant 0 : i32
    %c0_i32_1 = arith.constant 0 : i32
    return %c0_i32, %c0_i32_0 : i32, i32
  }
  func.func @transform_4(%arg0: i32) -> (i32, i32) {
    %c0_i32 = arith.constant 0 : i32
    %c0_i32_0 = arith.constant 0 : i32
    %c0_i32_1 = arith.constant 0 : i32
    return %c0_i32, %c0_i32_0 : i32, i32
  }
  func.func @transform_5(%arg0: i32) -> (i32, i32) {
    %c0_i32 = arith.constant 0 : i32
    %c0_i32_0 = arith.constant 0 : i32
    %c0_i32_1 = arith.constant 0 : i32
    return %c0_i32, %c0_i32_0 : i32, i32
  }
  func.func @transform_6(%arg0: i32) -> (i32, i32, i32, i32) {
    %c0_i32 = arith.constant 0 : i32
    %c0_i32_0 = arith.constant 0 : i32
    %c0_i32_1 = arith.constant 0 : i32
    %c0_i32_2 = arith.constant 0 : i32
    return %arg0, %c0_i32, %c0_i32_0, %c0_i32_1 : i32, i32, i32, i32
  }
}

</mosaic_0001>

<llo_original>
// kernel: spade_forward.1
$region0: #{spade_forward.1}
  #allocation0 [shape = 'u32[]', space=smem, size = 0x4, offset = 0x4, fixed_abs, tag = 'smem constant byte address 0x4 - core index']
  #allocation1 [shape = 'u32[144,128]{1,0:T(1,128)}', space=vmem, size = 0x12000, scoped, tag = 'internal scratch']
  #allocation2 [shape = 'bf16[342,128]{1,0:T(8,128)(2,1)}', space=vmem, size = 0x15800, scoped, tag = 'scratch operand']
  #allocation3 [shape = 'f32[288,256]{1,0:T(8,128)}', space=vmem, size = 0x48000, scoped, tag = 'scratch operand']
  %s0 = inlined_call_operand.vmem [shape: bf16[2,288,27], index: 0, kind: input, shape index: {}]
  %s1 = inlined_call_operand.vmem [shape: f32[2,16,16,128], index: 1, kind: input, shape index: {}]
  %s2 = inlined_call_operand.vmem [shape: bf16[27,128], index: 2, kind: input, shape index: {}]
  %s3 = inlined_call_operand.vmem [shape: f32[1,128], index: 3, kind: input, shape index: {}]
  %s4 = inlined_call_operand.vmem [shape: bf16[1152,256], index: 4, kind: input, shape index: {}]
  %s5 = inlined_call_operand.vmem [shape: f32[1,256], index: 5, kind: input, shape index: {}]
  %s6 = inlined_call_operand.hbm [shape: f32[2,16,16,128], index: 6, kind: output, shape index: {}]
  %s7 = sld [smem:[#allocation0]]
  $region57: #{spade_forward.1} parent=0
    _
  %s9 = ssub.s32 1, %s7
  %s10 = scalar_select 0, %s9, %s7
  $region1: #{spade_forward.1} parent=0
    #allocation4 [shape = 'u8[262144]{0}', space=vmem, size = 0x40000, scoped, tag = 'output window, operand 0']
    #allocation5 [shape = 's32[2]{0}', space=sflag, size = 0x8, scoped, tag = 'scoped memory for spade_forward.1']
    %11 = vsyncpa [#allocation5], 0
    %s12 = scalar_lea.sflag [#allocation5], 1
    %13 = vsyncpa %s12, 0
    loop: start=0, step=1, limit=4
    $region2: #{spade_forward.1} parent=1 // loop_pre_header
      _
    $region3: #{spade_forward.1} parent=1 // loop_header
      %s15 = sphi 0, %s19
      %p16 = scmp.ge.s32.totalorder %s15, 4
      %s25 = sphi 0, %s27
      %s28 = sphi 0, %s25
      %s29 = sphi 0, %s28
      %s45 = sphi 0, %s29
      %s51 = sphi 0, %s53
      %s54 = sphi 0, %s51
      %s55 = sphi 0, %s54
      %s71 = sphi 0, %s55
      %s75 = sphi 0, %s75
      %s77 = sphi 0, %s75
      %s78 = sphi 0, %s77
      %s92 = sphi 0, %s78
      %s96 = sphi 0, %s96
      %s98 = sphi 0, %s96
      %s99 = sphi 0, %s98
      %s113 = sphi 0, %s99
      %s117 = sphi 0, %s117
      %s119 = sphi 0, %s117
      %s120 = sphi 0, %s119
      %s134 = sphi 0, %s120
      %s138 = sphi 0, %s138
      %s140 = sphi 0, %s138
      %s141 = sphi 0, %s140
      %s155 = sphi 0, %s141
      %s161 = sphi 0, %s163
      %s164 = sphi 0, %s161
      %s165 = sphi 0, %s164
      %s181 = sphi 0, %s165
    $region4: #{spade_forward.1} parent=1 // loop_header_branch
      %18 = sbr.rel (%p16) target = $region8
    $region5: #{spade_forward.1} parent=1 // loop_body
      %s20 = ssub.s32 %s15, 1
      %s21 = ssub.s32 %s15, 2
      %s22 = sadd.s32 %s15, 1
      %s23 = ssub.s32 %s15, %s22
      %p24 = scmp.eq.s32.totalorder %s23, 0
      %s26 = sadd.s32 %s25, 1
      %s27 = scalar_select %p24, %s25, %s26
      %p30 = pneg %p24
      %p31 = scmp.eq.s32.totalorder %s15, 1
      %p32 = por %p30, %p31
      %p33 = scmp.ne.s32.totalorder %s25, %s28
      %p34 = scmp.eq.s32.totalorder %s15, 0
      %p35 = por %p33, %p34
      %p36 = scmp.ne.s32.totalorder %s25, %s28
      %p37 = scmp.eq.s32.totalorder %s20, 1
      %p38 = por %p36, %p37
      %p39 = scmp.ne.s32.totalorder %s28, %s29
      %p40 = scmp.eq.s32.totalorder %s20, 0
      %p41 = por %p39, %p40
      %p42 = scmp.ne.s32.totalorder %s28, %s29
      %p43 = scmp.eq.s32.totalorder %s21, 1
      %p44 = por %p42, %p43
      %p46 = scmp.ne.s32.totalorder %s29, %s45
      %p47 = scmp.eq.s32.totalorder %s21, 0
      %p48 = por %p46, %p47
      %s49 = ssub.s32 %s15, %s22
      %p50 = scmp.eq.s32.totalorder %s49, 0
      %s52 = sadd.s32 %s51, 1
      %s53 = scalar_select %p50, %s51, %s52
      %p56 = pneg %p50
      %p57 = scmp.eq.s32.totalorder %s15, 1
      %p58 = por %p56, %p57
      %p59 = scmp.ne.s32.totalorder %s51, %s54
      %p60 = scmp.eq.s32.totalorder %s15, 0
      %p61 = por %p59, %p60
      %p62 = scmp.ne.s32.totalorder %s51, %s54
      %p63 = scmp.eq.s32.totalorder %s20, 1
      %p64 = por %p62, %p63
      %p65 = scmp.ne.s32.totalorder %s54, %s55
      %p66 = scmp.eq.s32.totalorder %s20, 0
      %p67 = por %p65, %p66
      %p68 = scmp.ne.s32.totalorder %s54, %s55
      %p69 = scmp.eq.s32.totalorder %s21, 1
      %p70 = por %p68, %p69
      %p72 = scmp.ne.s32.totalorder %s55, %s71
      %p73 = scmp.eq.s32.totalorder %s21, 0
      %p74 = por %p72, %p73
      %s76 = sadd.s32 %s75, 1
      %p79 = scmp.eq.s32.totalorder %s15, 1
      %p80 = scmp.ne.s32.totalorder %s75, %s77
      %p81 = scmp.eq.s32.totalorder %s15, 0
      %p82 = por %p80, %p81
      %p83 = scmp.ne.s32.totalorder %s75, %s77
      %p84 = scmp.eq.s32.totalorder %s20, 1
      %p85 = por %p83, %p84
      %p86 = scmp.ne.s32.totalorder %s77, %s78
      %p87 = scmp.eq.s32.totalorder %s20, 0
      %p88 = por %p86, %p87
      %p89 = scmp.ne.s32.totalorder %s77, %s78
      %p90 = scmp.eq.s32.totalorder %s21, 1
      %p91 = por %p89, %p90
      %p93 = scmp.ne.s32.totalorder %s78, %s92
      %p94 = scmp.eq.s32.totalorder %s21, 0
      %p95 = por %p93, %p94
      %s97 = sadd.s32 %s96, 1
      %p100 = scmp.eq.s32.totalorder %s15, 1
      %p101 = scmp.ne.s32.totalorder %s96, %s98
      %p102 = scmp.eq.s32.totalorder %s15, 0
      %p103 = por %p101, %p102
      %p104 = scmp.ne.s32.totalorder %s96, %s98
      %p105 = scmp.eq.s32.totalorder %s20, 1
      %p106 = por %p104, %p105
      %p107 = scmp.ne.s32.totalorder %s98, %s99
      %p108 = scmp.eq.s32.totalorder %s20, 0
      %p109 = por %p107, %p108
      %p110 = scmp.ne.s32.totalorder %s98, %s99
      %p111 = scmp.eq.s32.totalorder %s21, 1
      %p112 = por %p110, %p111
      %p114 = scmp.ne.s32.totalorder %s99, %s113
      %p115 = scmp.eq.s32.totalorder %s21, 0
      %p116 = por %p114, %p115
      %s118 = sadd.s32 %s117, 1
      %p121 = scmp.eq.s32.totalorder %s15, 1
      %p122 = scmp.ne.s32.totalorder %s117, %s119
      %p123 = scmp.eq.s32.totalorder %s15, 0
      %p124 = por %p122, %p123
      %p125 = scmp.ne.s32.totalorder %s117, %s119
      %p126 = scmp.eq.s32.totalorder %s20, 1
      %p127 = por %p125, %p126
      %p128 = scmp.ne.s32.totalorder %s119, %s120
      %p129 = scmp.eq.s32.totalorder %s20, 0
      %p130 = por %p128, %p129
      %p131 = scmp.ne.s32.totalorder %s119, %s120
      %p132 = scmp.eq.s32.totalorder %s21, 1
      %p133 = por %p131, %p132
      %p135 = scmp.ne.s32.totalorder %s120, %s134
      %p136 = scmp.eq.s32.totalorder %s21, 0
      %p137 = por %p135, %p136
      %s139 = sadd.s32 %s138, 1
      %p142 = scmp.eq.s32.totalorder %s15, 1
      %p143 = scmp.ne.s32.totalorder %s138, %s140
      %p144 = scmp.eq.s32.totalorder %s15, 0
      %p145 = por %p143, %p144
      %p146 = scmp.ne.s32.totalorder %s138, %s140
      %p147 = scmp.eq.s32.totalorder %s20, 1
      %p148 = por %p146, %p147
      %p149 = scmp.ne.s32.totalorder %s140, %s141
      %p150 = scmp.eq.s32.totalorder %s20, 0
      %p151 = por %p149, %p150
      %p152 = scmp.ne.s32.totalorder %s140, %s141
      %p153 = scmp.eq.s32.totalorder %s21, 1
      %p154 = por %p152, %p153
      %p156 = scmp.ne.s32.totalorder %s141, %s155
      %p157 = scmp.eq.s32.totalorder %s21, 0
      %p158 = por %p156, %p157
      %s159 = ssub.s32 %s15, %s22
      %p160 = scmp.eq.s32.totalorder %s159, 0
      %s162 = sadd.s32 %s161, 1
      %s163 = scalar_select %p160, %s161, %s162
      %p166 = pneg %p160
      %p167 = scmp.eq.s32.totalorder %s15, 1
      %p168 = por %p166, %p167
      %p169 = scmp.ne.s32.totalorder %s161, %s164
      %p170 = scmp.eq.s32.totalorder %s15, 0
      %p171 = por %p169, %p170
      %p172 = scmp.ne.s32.totalorder %s161, %s164
      %p173 = scmp.eq.s32.totalorder %s20, 1
      %p174 = por %p172, %p173
      %p175 = scmp.ne.s32.totalorder %s164, %s165
      %p176 = scmp.eq.s32.totalorder %s20, 0
      %p177 = por %p175, %p176
      %p178 = scmp.ne.s32.totalorder %s164, %s165
      %p179 = scmp.eq.s32.totalorder %s21, 1
      %p180 = por %p178, %p179
      %p182 = scmp.ne.s32.totalorder %s165, %s181
      %p183 = scmp.eq.s32.totalorder %s21, 0
      %p184 = por %p182, %p183
      %p185 = scmp.le.s32.totalorder 1, %s15
      %p186 = scmp.lt.s32.totalorder %s15, 3
      %p187 = pnand %p185, %p186
      %p188 = pneg %p187
      // Predicated region
      $region9: #{spade_forward.1} parent=5 // pred_check
        _
      $region10: #{spade_forward.1} parent=5 // pred_check_branch
        %190 = sbr.rel (%p187) target = $region12
      $region11: #{spade_forward.1} parent=5 // pred_region
        %s191 = ssub.s32 %s15, 1
        // Predicated region
        $region13: #{spade_forward.1} parent=11 // pred_check
          %p192 = pneg %p88
        $region14: #{spade_forward.1} parent=11 // pred_check_branch
          %194 = sbr.rel (%p192) target = $region16
        $region15: #{spade_forward.1} parent=11 // pred_region
          _
        $region16: #{spade_forward.1} parent=11 // pred_fallthru
          _
        // Predicated region
        $region17: #{spade_forward.1} parent=11 // pred_check
          %p195 = pneg %p109
        $region18: #{spade_forward.1} parent=11 // pred_check_branch
          %197 = sbr.rel (%p195) target = $region20
        $region19: #{spade_forward.1} parent=11 // pred_region
          _
        $region20: #{spade_forward.1} parent=11 // pred_fallthru
          _
        // Predicated region
        $region21: #{spade_forward.1} parent=11 // pred_check
          %p198 = pneg %p130
        $region22: #{spade_forward.1} parent=11 // pred_check_branch
          %200 = sbr.rel (%p198) target = $region24
        $region23: #{spade_forward.1} parent=11 // pred_region
          _
        $region24: #{spade_forward.1} parent=11 // pred_fallthru
          _
        // Predicated region
        $region25: #{spade_forward.1} parent=11 // pred_check
          %p201 = pneg %p151
        $region26: #{spade_forward.1} parent=11 // pred_check_branch
          %203 = sbr.rel (%p201) target = $region28
        $region27: #{spade_forward.1} parent=11 // pred_region
          _
        $region28: #{spade_forward.1} parent=11 // pred_fallthru
          _
      $region12: #{spade_forward.1} parent=5 // pred_fallthru
        _
      %p204 = scmp.lt.s32.totalorder %s15, 2
      // Predicated region
      $region29: #{spade_forward.1} parent=5 // pred_check
        %p205 = pneg %p204
      $region30: #{spade_forward.1} parent=5 // pred_check_branch
        %207 = sbr.rel (%p205) target = $region32
      $region31: #{spade_forward.1} parent=5 // pred_region
        // Predicated region
        $region33: #{spade_forward.1} parent=31 // pred_check
          %p208 = pneg %p35
        $region34: #{spade_forward.1} parent=31 // pred_check_branch
          %210 = sbr.rel (%p208) target = $region36
        $region35: #{spade_forward.1} parent=31 // pred_region
          %p211 = scmp.lt.s32.totalorder %s15, 1
          %s212 = scalar_select %p211, %s15, 1
          %s213 = smul.addr %s212, 36
          %s214 = smul.addr %s213, 4
          %s215 = scalar_lea.vmem %s0, %s214
        $region36: #{spade_forward.1} parent=31 // pred_fallthru
          _
        // Predicated region
        $region37: #{spade_forward.1} parent=31 // pred_check
          %p216 = pneg %p61
        $region38: #{spade_forward.1} parent=31 // pred_check_branch
          %218 = sbr.rel (%p216) target = $region40
        $region39: #{spade_forward.1} parent=31 // pred_region
          %p219 = scmp.lt.s32.totalorder %s15, 1
          %s220 = scalar_select %p219, %s15, 1
          %s221 = smul.addr %s220, 32
          %s222 = smul.addr %s221, 8
          %s223 = scalar_lea.vmem %s1, %s222
        $region40: #{spade_forward.1} parent=31 // pred_fallthru
          _
      $region32: #{spade_forward.1} parent=5 // pred_fallthru
        _
      %p224 = scmp.le.s32.totalorder 1, %s15
      %p225 = scmp.lt.s32.totalorder %s15, 3
      %p226 = pnand %p224, %p225
      %p227 = pneg %p226
      // Predicated region
      $region41: #{spade_forward.1} parent=5 // pred_check
        _
      $region42: #{spade_forward.1} parent=5 // pred_check_branch
        %229 = sbr.rel (%p226) target = $region44
      $region43: #{spade_forward.1} parent=5 // pred_region
        %s230 = ssub.s32 %s15, 1
        %p231 = scmp.lt.s32.totalorder %s20, 1
        %s232 = scalar_select %p231, %s20, 1
        %s233 = smul.addr %s232, 36
        %s234 = smul.addr %s233, 4
        %s235 = scalar_lea.vmem %s0, %s234
        %p236 = pneg %p41
        %p237 = pneg %p38
        %p238 = scmp.lt.s32.totalorder %s20, 1
        %s239 = scalar_select %p238, %s20, 1
        %s240 = smul.addr %s239, 32
        %s241 = smul.addr %s240, 8
        %s242 = scalar_lea.vmem %s1, %s241
        %p243 = pneg %p67
        %p244 = pneg %p64
        %p245 = pneg %p88
        %p246 = pneg %p85
        %p247 = pneg %p109
        %p248 = pneg %p106
        %p249 = pneg %p130
        %p250 = pneg %p127
        %p251 = pneg %p151
        %p252 = pneg %p148
        %p253 = pneg %p177
        %p254 = pneg %p174
        %s255 = sand.u32 %s164, 1
        %s256 = scalar_lea.sflag [#allocation5], %s255
        %s257 = sand.u32 %s164, 1
        %s258 = smul.addr %s257, 256
        %s259 = scalar_lea.vmem [#allocation4], %s258
        %p260 = scmp.lt.s32.totalorder %s20, 1
        %s261 = scalar_select %p260, %s20, 1
        %s262 = smul.addr %s261, 36
        %s263 = smul.addr %s262, 4
        %s264 = scalar_lea.vmem %s0, %s263
        %p265 = scmp.lt.s32.totalorder %s20, 1
        %s266 = scalar_select %p265, %s20, 1
        %s267 = smul.addr %s266, 32
        %s268 = smul.addr %s267, 8
        %s269 = scalar_lea.vmem %s1, %s268
        %v271 = vld [vmem:[%s264] sm:$0xf]
        %v272 = vld [vmem:[%s264 + $0x4] sm:$0xf]
        %v273 = vld [vmem:[%s264 + $0x8] sm:$0xf]
        %v274 = vld [vmem:[%s264 + $0xc] sm:$0xf]
        %v275 = vld [vmem:[%s264 + $0x10] sm:$0xf]
        %v276 = vld [vmem:[%s264 + $0x14] sm:$0xf]
        %v277 = vld [vmem:[%s264 + $0x18] sm:$0xf]
        %v278 = vld [vmem:[%s264 + $0x1c] sm:$0xf]
        %v279 = vld [vmem:[%s264 + $0x20] sm:$0xf]
        %v280 = vld [vmem:[%s264 + $0x24] sm:$0xf]
        %v281 = vld [vmem:[%s264 + $0x28] sm:$0xf]
        %v282 = vld [vmem:[%s264 + $0x2c] sm:$0xf]
        %v283 = vld [vmem:[%s264 + $0x30] sm:$0xf]
        %v284 = vld [vmem:[%s264 + $0x34] sm:$0xf]
        %v285 = vld [vmem:[%s264 + $0x38] sm:$0xf]
        %v286 = vld [vmem:[%s264 + $0x3c] sm:$0xf]
        %v287 = vld [vmem:[%s264 + $0x40] sm:$0xf]
        %v288 = vld [vmem:[%s264 + $0x44] sm:$0xf]
        %v289 = vld [vmem:[%s264 + $0x48] sm:$0xf]
        %v290 = vld [vmem:[%s264 + $0x4c] sm:$0xf]
        %v291 = vld [vmem:[%s264 + $0x50] sm:$0xf]
        %v292 = vld [vmem:[%s264 + $0x54] sm:$0xf]
        %v293 = vld [vmem:[%s264 + $0x58] sm:$0xf]
        %v294 = vld [vmem:[%s264 + $0x5c] sm:$0xf]
        %v295 = vld [vmem:[%s264 + $0x60] sm:$0xf]
        %v296 = vld [vmem:[%s264 + $0x64] sm:$0xf]
        %v297 = vld [vmem:[%s264 + $0x68] sm:$0xf]
        %v298 = vld [vmem:[%s264 + $0x6c] sm:$0xf]
        %v299 = vld [vmem:[%s264 + $0x70] sm:$0xf]
        %v300 = vld [vmem:[%s264 + $0x74] sm:$0xf]
        %v301 = vld [vmem:[%s264 + $0x78] sm:$0xf]
        %v302 = vld [vmem:[%s264 + $0x7c] sm:$0xf]
        %v303 = vld [vmem:[%s264 + $0x80] sm:$0xf]
        %v304 = vld [vmem:[%s264 + $0x84] sm:$0xf]
        %v305 = vld [vmem:[%s264 + $0x88] sm:$0xf]
        %v306 = vld [vmem:[%s264 + $0x8c] sm:$0xf]
        %v307 = vld [vmem:[%s2] sm:$0xf]
        %v308 = vld [vmem:[%s2 + $0x4] sm:$0xf]
        %v309 = vld [vmem:[%s2 + $0x8] sm:$0xf]
        %v310 = vld [vmem:[%s2 + $0xc] sm:$0x3]
        %v311 = vld [vmem:[%s3] sm:$0x1]
        %v313 = vlaneseq
        %v314 = vshrl.u32 %v313, 7
        %v315 = vsub.s32 0, %v314
        %v316 = vrot.slane %v311, %v315
        %v354 = vunpack.c.l.b16 %v271
        %v355 = vunpack.c.l.b16 %v272
        %v356 = vunpack.c.l.b16 %v273
        %v357 = vunpack.c.l.b16 %v274
        %v358 = vunpack.c.l.b16 %v275
        %v359 = vunpack.c.l.b16 %v276
        %v360 = vunpack.c.l.b16 %v277
        %v361 = vunpack.c.l.b16 %v278
        %v362 = vunpack.c.l.b16 %v279
        %v363 = vunpack.c.l.b16 %v280
        %v364 = vunpack.c.l.b16 %v281
        %v365 = vunpack.c.l.b16 %v282
        %v366 = vunpack.c.l.b16 %v283
        %v367 = vunpack.c.l.b16 %v284
        %v368 = vunpack.c.l.b16 %v285
        %v369 = vunpack.c.l.b16 %v286
        %v370 = vunpack.c.l.b16 %v287
        %v371 = vunpack.c.l.b16 %v288
        %v372 = vunpack.c.l.b16 %v289
        %v373 = vunpack.c.l.b16 %v290
        %v374 = vunpack.c.l.b16 %v291
        %v375 = vunpack.c.l.b16 %v292
        %v376 = vunpack.c.l.b16 %v293
        %v377 = vunpack.c.l.b16 %v294
        %v378 = vunpack.c.l.b16 %v295
        %v379 = vunpack.c.l.b16 %v296
        %v380 = vunpack.c.l.b16 %v297
        %v381 = vunpack.c.l.b16 %v298
        %v382 = vunpack.c.l.b16 %v299
        %v383 = vunpack.c.l.b16 %v300
        %v384 = vunpack.c.l.b16 %v301
        %v385 = vunpack.c.l.b16 %v302
        %v386 = vunpack.c.l.b16 %v303
        %v387 = vunpack.c.l.b16 %v304
        %v388 = vunpack.c.l.b16 %v305
        %v389 = vunpack.c.l.b16 %v306
        %v390 = vpack.c.b16 %v355, %v354
        %v391 = vpack.c.b16 %v357, %v356
        %v392 = vpack.c.b16 %v359, %v358
        %v393 = vpack.c.b16 %v361, %v360
        %v394 = vpack.c.b16 %v363, %v362
        %v395 = vpack.c.b16 %v365, %v364
        %v396 = vpack.c.b16 %v367, %v366
        %v397 = vpack.c.b16 %v369, %v368
        %v398 = vpack.c.b16 %v371, %v370
        %v399 = vpack.c.b16 %v373, %v372
        %v400 = vpack.c.b16 %v375, %v374
        %v401 = vpack.c.b16 %v377, %v376
        %v402 = vpack.c.b16 %v379, %v378
        %v403 = vpack.c.b16 %v381, %v380
        %v404 = vpack.c.b16 %v383, %v382
        %v405 = vpack.c.b16 %v385, %v384
        %v406 = vpack.c.b16 %v387, %v386
        %v407 = vpack.c.b16 %v389, %v388
        %v412 = vunpack.c.l.b16 %v307
        %v413 = vunpack.c.l.b16 %v308
        %v414 = vunpack.c.l.b16 %v309
        %v415 = vunpack.c.l.b16 %v310
        %v416 = vpack.c.b16 %v413, %v412
        %v417 = vpack.c.b16 %v415, %v414
        %vm419 = vcmask 220160
        %v421 = vsel %vm419, %v390, 0
        %v424 = vsel %vm419, %v391, 0
        %v427 = vsel %vm419, %v392, 0
        %v430 = vsel %vm419, %v393, 0
        %v433 = vsel %vm419, %v394, 0
        %v436 = vsel %vm419, %v395, 0
        %v439 = vsel %vm419, %v396, 0
        %v442 = vsel %vm419, %v397, 0
        %v445 = vsel %vm419, %v398, 0
        %v448 = vsel %vm419, %v399, 0
        %v451 = vsel %vm419, %v400, 0
        %v454 = vsel %vm419, %v401, 0
        %v457 = vsel %vm419, %v402, 0
        %v460 = vsel %vm419, %v403, 0
        %v463 = vsel %vm419, %v404, 0
        %v466 = vsel %vm419, %v405, 0
        %v469 = vsel %vm419, %v406, 0
        %v472 = vsel %vm419, %v407, 0
        %vm474 = vcmask 1044480
        %vm475 = vcmask 1045504
        %v476 = vsel %vm474, 4294967295, 65535
        %v477 = vsel %vm475, %v476, 0
        %v479 = vand.u32 %v417, %v477
        %481 = vmatprep.subr.bf16.mxu0 0
        %482 = vmatpush1.bf16.msra.mxu0 0
        %483 = vmatprep.subr.bf16.mxu0 0
        %484 = vmatpush1.bf16.msra.mxu0 0
        %485 = vmatprep.subr.bf16.mxu0 0
        %486 = vmatpush1.bf16.msra.mxu0 0
        %487 = vmatprep.subr.bf16.mxu0 0
        %488 = vmatpush1.bf16.msra.mxu0 0
        %489 = vmatprep.subr.bf16.mxu0 0
        %490 = vmatpush1.bf16.msra.mxu0 0
        %491 = vmatprep.subr.bf16.mxu0 0
        %492 = vmatpush1.bf16.msra.mxu0 0
        %493 = vmatprep.subr.bf16.mxu0 0
        %494 = vmatpush1.bf16.msra.mxu0 %v479
        %495 = vmatprep.subr.bf16.mxu0 0
        %496 = vmatpush1.bf16.msra.mxu0 %v416
        %497 = vmatprep.subr.bf16.mxu0 0
        %498 = vmatpush2.bf16.msra.mxu0 0
        %499 = vmatprep.subr.bf16.mxu0 0
        %500 = vmatpush2.bf16.msra.mxu0 0
        %501 = vmatprep.subr.bf16.mxu0 0
        %502 = vmatpush2.bf16.msra.mxu0 0
        %503 = vmatprep.subr.bf16.mxu0 0
        %504 = vmatpush2.bf16.msra.mxu0 0
        %505 = vmatprep.subr.bf16.mxu0 0
        %506 = vmatpush2.bf16.msra.mxu0 0
        %507 = vmatprep.subr.bf16.mxu0 0
        %508 = vmatpush2.bf16.msra.mxu0 0
        %509 = vmatprep.subr.bf16.mxu0 0
        %510 = vmatpush2.bf16.msra.mxu0 0
        %511 = vmatprep.subr.bf16.mxu0 0
        %512 = vmatpush2.bf16.msra.mxu0 0
        %513 = vmatprep.mubr.bf16.mxu0 0
        %514 = vmatmul.mubr.bf16.gmra.mxu0 %v421
        %v515 = vpop.f32.mrf.mxu0
        %v516 = vadd.f32 %v316, %v515
        %v517 = vpop.f32.mrf.mxu0
        %v518 = vpop.f32.mrf.mxu0
        %v519 = vadd.f32 %v316, %v518
        %v520 = vpop.f32.mrf.mxu0
        %521 = vmatprep.mubr.bf16.mxu0 0
        %522 = vmatmul.mubr.bf16.gmra.mxu0 %v424
        %v523 = vpop.f32.mrf.mxu0
        %v524 = vadd.f32 %v316, %v523
        %v525 = vpop.f32.mrf.mxu0
        %v526 = vpop.f32.mrf.mxu0
        %v527 = vadd.f32 %v316, %v526
        %v528 = vpop.f32.mrf.mxu0
        %529 = vmatprep.mubr.bf16.mxu0 0
        %530 = vmatmul.mubr.bf16.gmra.mxu0 %v427
        %v531 = vpop.f32.mrf.mxu0
        %v532 = vadd.f32 %v316, %v531
        %v533 = vpop.f32.mrf.mxu0
        %v534 = vpop.f32.mrf.mxu0
        %v535 = vadd.f32 %v316, %v534
        %v536 = vpop.f32.mrf.mxu0
        %537 = vmatprep.mubr.bf16.mxu0 0
        %538 = vmatmul.mubr.bf16.gmra.mxu0 %v430
        %v539 = vpop.f32.mrf.mxu0
        %v540 = vadd.f32 %v316, %v539
        %v541 = vpop.f32.mrf.mxu0
        %v542 = vpop.f32.mrf.mxu0
        %v543 = vadd.f32 %v316, %v542
        %v544 = vpop.f32.mrf.mxu0
        %545 = vmatprep.mubr.bf16.mxu0 0
        %546 = vmatmul.mubr.bf16.gmra.mxu0 %v433
        %v547 = vpop.f32.mrf.mxu0
        %v548 = vadd.f32 %v316, %v547
        %v549 = vpop.f32.mrf.mxu0
        %v550 = vpop.f32.mrf.mxu0
        %v551 = vadd.f32 %v316, %v550
        %v552 = vpop.f32.mrf.mxu0
        %553 = vmatprep.mubr.bf16.mxu0 0
        %554 = vmatmul.mubr.bf16.gmra.mxu0 %v436
        %v555 = vpop.f32.mrf.mxu0
        %v556 = vadd.f32 %v316, %v555
        %v557 = vpop.f32.mrf.mxu0
        %v558 = vpop.f32.mrf.mxu0
        %v559 = vadd.f32 %v316, %v558
        %v560 = vpop.f32.mrf.mxu0
        %561 = vmatprep.mubr.bf16.mxu0 0
        %562 = vmatmul.mubr.bf16.gmra.mxu0 %v439
        %v563 = vpop.f32.mrf.mxu0
        %v564 = vadd.f32 %v316, %v563
        %v565 = vpop.f32.mrf.mxu0
        %v566 = vpop.f32.mrf.mxu0
        %v567 = vadd.f32 %v316, %v566
        %v568 = vpop.f32.mrf.mxu0
        %569 = vmatprep.mubr.bf16.mxu0 0
        %570 = vmatmul.mubr.bf16.gmra.mxu0 %v442
        %v571 = vpop.f32.mrf.mxu0
        %v572 = vadd.f32 %v316, %v571
        %v573 = vpop.f32.mrf.mxu0
        %v574 = vpop.f32.mrf.mxu0
        %v575 = vadd.f32 %v316, %v574
        %v576 = vpop.f32.mrf.mxu0
        %577 = vmatprep.mubr.bf16.mxu0 0
        %578 = vmatmul.mubr.bf16.gmra.mxu0 %v445
        %v579 = vpop.f32.mrf.mxu0
        %v580 = vadd.f32 %v316, %v579
        %v581 = vpop.f32.mrf.mxu0
        %v582 = vpop.f32.mrf.mxu0
        %v583 = vadd.f32 %v316, %v582
        %v584 = vpop.f32.mrf.mxu0
        %585 = vmatprep.mubr.bf16.mxu0 0
        %586 = vmatmul.mubr.bf16.gmra.mxu0 %v448
        %v587 = vpop.f32.mrf.mxu0
        %v588 = vadd.f32 %v316, %v587
        %v589 = vpop.f32.mrf.mxu0
        %v590 = vpop.f32.mrf.mxu0
        %v591 = vadd.f32 %v316, %v590
        %v592 = vpop.f32.mrf.mxu0
        %593 = vmatprep.mubr.bf16.mxu0 0
        %594 = vmatmul.mubr.bf16.gmra.mxu0 %v451
        %v595 = vpop.f32.mrf.mxu0
        %v596 = vadd.f32 %v316, %v595
        %v597 = vpop.f32.mrf.mxu0
        %v598 = vpop.f32.mrf.mxu0
        %v599 = vadd.f32 %v316, %v598
        %v600 = vpop.f32.mrf.mxu0
        %601 = vmatprep.mubr.bf16.mxu0 0
        %602 = vmatmul.mubr.bf16.gmra.mxu0 %v454
        %v603 = vpop.f32.mrf.mxu0
        %v604 = vadd.f32 %v316, %v603
        %v605 = vpop.f32.mrf.mxu0
        %v606 = vpop.f32.mrf.mxu0
        %v607 = vadd.f32 %v316, %v606
        %v608 = vpop.f32.mrf.mxu0
        %609 = vmatprep.mubr.bf16.mxu0 0
        %610 = vmatmul.mubr.bf16.gmra.mxu0 %v457
        %v611 = vpop.f32.mrf.mxu0
        %v612 = vadd.f32 %v316, %v611
        %v613 = vpop.f32.mrf.mxu0
        %v614 = vpop.f32.mrf.mxu0
        %v615 = vadd.f32 %v316, %v614
        %v616 = vpop.f32.mrf.mxu0
        %617 = vmatprep.mubr.bf16.mxu0 0
        %618 = vmatmul.mubr.bf16.gmra.mxu0 %v460
        %v619 = vpop.f32.mrf.mxu0
        %v620 = vadd.f32 %v316, %v619
        %v621 = vpop.f32.mrf.mxu0
        %v622 = vpop.f32.mrf.mxu0
        %v623 = vadd.f32 %v316, %v622
        %v624 = vpop.f32.mrf.mxu0
        %625 = vmatprep.mubr.bf16.mxu0 0
        %626 = vmatmul.mubr.bf16.gmra.mxu0 %v463
        %v627 = vpop.f32.mrf.mxu0
        %v628 = vadd.f32 %v316, %v627
        %v629 = vpop.f32.mrf.mxu0
        %v630 = vpop.f32.mrf.mxu0
        %v631 = vadd.f32 %v316, %v630
        %v632 = vpop.f32.mrf.mxu0
        %633 = vmatprep.mubr.bf16.mxu0 0
        %634 = vmatmul.mubr.bf16.gmra.mxu0 %v466
        %v635 = vpop.f32.mrf.mxu0
        %v636 = vadd.f32 %v316, %v635
        %v637 = vpop.f32.mrf.mxu0
        %v638 = vpop.f32.mrf.mxu0
        %v639 = vadd.f32 %v316, %v638
        %v640 = vpop.f32.mrf.mxu0
        %641 = vmatprep.mubr.bf16.mxu0 0
        %642 = vmatmul.mubr.bf16.gmra.mxu0 %v469
        %v643 = vpop.f32.mrf.mxu0
        %v644 = vadd.f32 %v316, %v643
        %v645 = vpop.f32.mrf.mxu0
        %v646 = vpop.f32.mrf.mxu0
        %v647 = vadd.f32 %v316, %v646
        %v648 = vpop.f32.mrf.mxu0
        %649 = vmatprep.mubr.bf16.mxu0 0
        %650 = vmatmul.mubr.bf16.gmra.mxu0 %v472
        %v651 = vpop.f32.mrf.mxu0
        %v652 = vadd.f32 %v316, %v651
        %v653 = vpop.f32.mrf.mxu0
        %v654 = vpop.f32.mrf.mxu0
        %v655 = vadd.f32 %v316, %v654
        %v656 = vpop.f32.mrf.mxu0
        %657 = vdwg.mxu0
        %v658 = vmax.f32 %v516, 0.0
        %v659 = vmax.f32 %v519, 0.0
        %v660 = vmax.f32 %v524, 0.0
        %v661 = vmax.f32 %v527, 0.0
        %v662 = vmax.f32 %v532, 0.0
        %v663 = vmax.f32 %v535, 0.0
        %v664 = vmax.f32 %v540, 0.0
        %v665 = vmax.f32 %v543, 0.0
        %v666 = vmax.f32 %v548, 0.0
        %v667 = vmax.f32 %v551, 0.0
        %v668 = vmax.f32 %v556, 0.0
        %v669 = vmax.f32 %v559, 0.0
        %v670 = vmax.f32 %v564, 0.0
        %v671 = vmax.f32 %v567, 0.0
        %v672 = vmax.f32 %v572, 0.0
        %v673 = vmax.f32 %v575, 0.0
        %v674 = vmax.f32 %v580, 0.0
        %v675 = vmax.f32 %v583, 0.0
        %v676 = vmax.f32 %v588, 0.0
        %v677 = vmax.f32 %v591, 0.0
        %v678 = vmax.f32 %v596, 0.0
        %v679 = vmax.f32 %v599, 0.0
        %v680 = vmax.f32 %v604, 0.0
        %v681 = vmax.f32 %v607, 0.0
        %v682 = vmax.f32 %v612, 0.0
        %v683 = vmax.f32 %v615, 0.0
        %v684 = vmax.f32 %v620, 0.0
        %v685 = vmax.f32 %v623, 0.0
        %v686 = vmax.f32 %v628, 0.0
        %v687 = vmax.f32 %v631, 0.0
        %v688 = vmax.f32 %v636, 0.0
        %v689 = vmax.f32 %v639, 0.0
        %v690 = vmax.f32 %v644, 0.0
        %v691 = vmax.f32 %v647, 0.0
        %v692 = vmax.f32 %v652, 0.0
        %v693 = vmax.f32 %v655, 0.0
        %v694 = vlaneseq
        %v695 = vshrl.u32 %v694, 7
        %v696 = vadd.s32 %v695, 8
        %v697 = vadd.s32 %v695, 16
        %v698 = vadd.s32 %v695, 24
        %v699 = vadd.s32 %v695, 32
        %v700 = vadd.s32 %v695, 40
        %v701 = vadd.s32 %v695, 48
        %v702 = vadd.s32 %v695, 56
        %v703 = vadd.s32 %v695, 64
        %v704 = vadd.s32 %v695, 72
        %v705 = vadd.s32 %v695, 80
        %v706 = vadd.s32 %v695, 88
        %v707 = vadd.s32 %v695, 96
        %v708 = vadd.s32 %v695, 104
        %v709 = vadd.s32 %v695, 112
        %v710 = vadd.s32 %v695, 120
        %v711 = vadd.s32 %v695, 128
        %v712 = vadd.s32 %v695, 136
        %v713 = vadd.s32 %v695, 144
        %v714 = vadd.s32 %v695, 152
        %v715 = vadd.s32 %v695, 160
        %v716 = vadd.s32 %v695, 168
        %v717 = vadd.s32 %v695, 176
        %v718 = vadd.s32 %v695, 184
        %v719 = vadd.s32 %v695, 192
        %v720 = vadd.s32 %v695, 200
        %v721 = vadd.s32 %v695, 208
        %v722 = vadd.s32 %v695, 216
        %v723 = vadd.s32 %v695, 224
        %v724 = vadd.s32 %v695, 232
        %v725 = vadd.s32 %v695, 240
        %v726 = vadd.s32 %v695, 248
        %v727 = vadd.s32 %v695, 256
        %v728 = vadd.s32 %v695, 264
        %v729 = vadd.s32 %v695, 272
        %v730 = vadd.s32 %v695, 280
        %vm731 = vcmp.lt.s32.totalorder %v695, 0
        %v732 = vsub.s32 0, %v695
        %v733 = vsel %vm731, %v732, %v695
        %v734 = vmul.u32.u64.compose %v733, 3817748708
        %v735 = vextract.low.u32 %v734
        %v736 = vextract.high.u32 %v734
        %v737 = vshrl.u32 %v736, 4
        %v738 = vmul.u32 %v737, 18
        %v739 = vsub.s32 %v733, %v738
        %v740 = vsub.s32 0, %v739
        %v741 = vsel %vm731, %v740, %v739
        %vm742 = vcmp.lt.s32.totalorder %v696, 0
        %v743 = vsub.s32 0, %v696
        %v744 = vsel %vm742, %v743, %v696
        %v745 = vmul.u32.u64.compose %v744, 3817748708
        %v746 = vextract.low.u32 %v745
        %v747 = vextract.high.u32 %v745
        %v748 = vshrl.u32 %v747, 4
        %v749 = vmul.u32 %v748, 18
        %v750 = vsub.s32 %v744, %v749
        %v751 = vsub.s32 0, %v750
        %v752 = vsel %vm742, %v751, %v750
        %vm753 = vcmp.lt.s32.totalorder %v697, 0
        %v754 = vsub.s32 0, %v697
        %v755 = vsel %vm753, %v754, %v697
        %v756 = vmul.u32.u64.compose %v755, 3817748708
        %v757 = vextract.low.u32 %v756
        %v758 = vextract.high.u32 %v756
        %v759 = vshrl.u32 %v758, 4
        %v760 = vmul.u32 %v759, 18
        %v761 = vsub.s32 %v755, %v760
        %v762 = vsub.s32 0, %v761
        %v763 = vsel %vm753, %v762, %v761
        %vm764 = vcmp.lt.s32.totalorder %v698, 0
        %v765 = vsub.s32 0, %v698
        %v766 = vsel %vm764, %v765, %v698
        %v767 = vmul.u32.u64.compose %v766, 3817748708
        %v768 = vextract.low.u32 %v767
        %v769 = vextract.high.u32 %v767
        %v770 = vshrl.u32 %v769, 4
        %v771 = vmul.u32 %v770, 18
        %v772 = vsub.s32 %v766, %v771
        %v773 = vsub.s32 0, %v772
        %v774 = vsel %vm764, %v773, %v772
        %vm775 = vcmp.lt.s32.totalorder %v699, 0
        %v776 = vsub.s32 0, %v699
        %v777 = vsel %vm775, %v776, %v699
        %v778 = vmul.u32.u64.compose %v777, 3817748708
        %v779 = vextract.low.u32 %v778
        %v780 = vextract.high.u32 %v778
        %v781 = vshrl.u32 %v780, 4
        %v782 = vmul.u32 %v781, 18
        %v783 = vsub.s32 %v777, %v782
        %v784 = vsub.s32 0, %v783
        %v785 = vsel %vm775, %v784, %v783
        %vm786 = vcmp.lt.s32.totalorder %v700, 0
        %v787 = vsub.s32 0, %v700
        %v788 = vsel %vm786, %v787, %v700
        %v789 = vmul.u32.u64.compose %v788, 3817748708
        %v790 = vextract.low.u32 %v789
        %v791 = vextract.high.u32 %v789
        %v792 = vshrl.u32 %v791, 4
        %v793 = vmul.u32 %v792, 18
        %v794 = vsub.s32 %v788, %v793
        %v795 = vsub.s32 0, %v794
        %v796 = vsel %vm786, %v795, %v794
        %vm797 = vcmp.lt.s32.totalorder %v701, 0
        %v798 = vsub.s32 0, %v701
        %v799 = vsel %vm797, %v798, %v701
        %v800 = vmul.u32.u64.compose %v799, 3817748708
        %v801 = vextract.low.u32 %v800
        %v802 = vextract.high.u32 %v800
        %v803 = vshrl.u32 %v802, 4
        %v804 = vmul.u32 %v803, 18
        %v805 = vsub.s32 %v799, %v804
        %v806 = vsub.s32 0, %v805
        %v807 = vsel %vm797, %v806, %v805
        %vm808 = vcmp.lt.s32.totalorder %v702, 0
        %v809 = vsub.s32 0, %v702
        %v810 = vsel %vm808, %v809, %v702
        %v811 = vmul.u32.u64.compose %v810, 3817748708
        %v812 = vextract.low.u32 %v811
        %v813 = vextract.high.u32 %v811
        %v814 = vshrl.u32 %v813, 4
        %v815 = vmul.u32 %v814, 18
        %v816 = vsub.s32 %v810, %v815
        %v817 = vsub.s32 0, %v816
        %v818 = vsel %vm808, %v817, %v816
        %vm819 = vcmp.lt.s32.totalorder %v703, 0
        %v820 = vsub.s32 0, %v703
        %v821 = vsel %vm819, %v820, %v703
        %v822 = vmul.u32.u64.compose %v821, 3817748708
        %v823 = vextract.low.u32 %v822
        %v824 = vextract.high.u32 %v822
        %v825 = vshrl.u32 %v824, 4
        %v826 = vmul.u32 %v825, 18
        %v827 = vsub.s32 %v821, %v826
        %v828 = vsub.s32 0, %v827
        %v829 = vsel %vm819, %v828, %v827
        %vm830 = vcmp.lt.s32.totalorder %v704, 0
        %v831 = vsub.s32 0, %v704
        %v832 = vsel %vm830, %v831, %v704
        %v833 = vmul.u32.u64.compose %v832, 3817748708
        %v834 = vextract.low.u32 %v833
        %v835 = vextract.high.u32 %v833
        %v836 = vshrl.u32 %v835, 4
        %v837 = vmul.u32 %v836, 18
        %v838 = vsub.s32 %v832, %v837
        %v839 = vsub.s32 0, %v838
        %v840 = vsel %vm830, %v839, %v838
        %vm841 = vcmp.lt.s32.totalorder %v705, 0
        %v842 = vsub.s32 0, %v705
        %v843 = vsel %vm841, %v842, %v705
        %v844 = vmul.u32.u64.compose %v843, 3817748708
        %v845 = vextract.low.u32 %v844
        %v846 = vextract.high.u32 %v844
        %v847 = vshrl.u32 %v846, 4
        %v848 = vmul.u32 %v847, 18
        %v849 = vsub.s32 %v843, %v848
        %v850 = vsub.s32 0, %v849
        %v851 = vsel %vm841, %v850, %v849
        %vm852 = vcmp.lt.s32.totalorder %v706, 0
        %v853 = vsub.s32 0, %v706
        %v854 = vsel %vm852, %v853, %v706
        %v855 = vmul.u32.u64.compose %v854, 3817748708
        %v856 = vextract.low.u32 %v855
        %v857 = vextract.high.u32 %v855
        %v858 = vshrl.u32 %v857, 4
        %v859 = vmul.u32 %v858, 18
        %v860 = vsub.s32 %v854, %v859
        %v861 = vsub.s32 0, %v860
        %v862 = vsel %vm852, %v861, %v860
        %vm863 = vcmp.lt.s32.totalorder %v707, 0
        %v864 = vsub.s32 0, %v707
        %v865 = vsel %vm863, %v864, %v707
        %v866 = vmul.u32.u64.compose %v865, 3817748708
        %v867 = vextract.low.u32 %v866
        %v868 = vextract.high.u32 %v866
        %v869 = vshrl.u32 %v868, 4
        %v870 = vmul.u32 %v869, 18
        %v871 = vsub.s32 %v865, %v870
        %v872 = vsub.s32 0, %v871
        %v873 = vsel %vm863, %v872, %v871
        %vm874 = vcmp.lt.s32.totalorder %v708, 0
        %v875 = vsub.s32 0, %v708
        %v876 = vsel %vm874, %v875, %v708
        %v877 = vmul.u32.u64.compose %v876, 3817748708
        %v878 = vextract.low.u32 %v877
        %v879 = vextract.high.u32 %v877
        %v880 = vshrl.u32 %v879, 4
        %v881 = vmul.u32 %v880, 18
        %v882 = vsub.s32 %v876, %v881
        %v883 = vsub.s32 0, %v882
        %v884 = vsel %vm874, %v883, %v882
        %vm885 = vcmp.lt.s32.totalorder %v709, 0
        %v886 = vsub.s32 0, %v709
        %v887 = vsel %vm885, %v886, %v709
        %v888 = vmul.u32.u64.compose %v887, 3817748708
        %v889 = vextract.low.u32 %v888
        %v890 = vextract.high.u32 %v888
        %v891 = vshrl.u32 %v890, 4
        %v892 = vmul.u32 %v891, 18
        %v893 = vsub.s32 %v887, %v892
        %v894 = vsub.s32 0, %v893
        %v895 = vsel %vm885, %v894, %v893
        %vm896 = vcmp.lt.s32.totalorder %v710, 0
        %v897 = vsub.s32 0, %v710
        %v898 = vsel %vm896, %v897, %v710
        %v899 = vmul.u32.u64.compose %v898, 3817748708
        %v900 = vextract.low.u32 %v899
        %v901 = vextract.high.u32 %v899
        %v902 = vshrl.u32 %v901, 4
        %v903 = vmul.u32 %v902, 18
        %v904 = vsub.s32 %v898, %v903
        %v905 = vsub.s32 0, %v904
        %v906 = vsel %vm896, %v905, %v904
        %vm907 = vcmp.lt.s32.totalorder %v711, 0
        %v908 = vsub.s32 0, %v711
        %v909 = vsel %vm907, %v908, %v711
        %v910 = vmul.u32.u64.compose %v909, 3817748708
        %v911 = vextract.low.u32 %v910
        %v912 = vextract.high.u32 %v910
        %v913 = vshrl.u32 %v912, 4
        %v914 = vmul.u32 %v913, 18
        %v915 = vsub.s32 %v909, %v914
        %v916 = vsub.s32 0, %v915
        %v917 = vsel %vm907, %v916, %v915
        %vm918 = vcmp.lt.s32.totalorder %v712, 0
        %v919 = vsub.s32 0, %v712
        %v920 = vsel %vm918, %v919, %v712
        %v921 = vmul.u32.u64.compose %v920, 3817748708
        %v922 = vextract.low.u32 %v921
        %v923 = vextract.high.u32 %v921
        %v924 = vshrl.u32 %v923, 4
        %v925 = vmul.u32 %v924, 18
        %v926 = vsub.s32 %v920, %v925
        %v927 = vsub.s32 0, %v926
        %v928 = vsel %vm918, %v927, %v926
        %vm929 = vcmp.lt.s32.totalorder %v713, 0
        %v930 = vsub.s32 0, %v713
        %v931 = vsel %vm929, %v930, %v713
        %v932 = vmul.u32.u64.compose %v931, 3817748708
        %v933 = vextract.low.u32 %v932
        %v934 = vextract.high.u32 %v932
        %v935 = vshrl.u32 %v934, 4
        %v936 = vmul.u32 %v935, 18
        %v937 = vsub.s32 %v931, %v936
        %v938 = vsub.s32 0, %v937
        %v939 = vsel %vm929, %v938, %v937
        %vm940 = vcmp.lt.s32.totalorder %v714, 0
        %v941 = vsub.s32 0, %v714
        %v942 = vsel %vm940, %v941, %v714
        %v943 = vmul.u32.u64.compose %v942, 3817748708
        %v944 = vextract.low.u32 %v943
        %v945 = vextract.high.u32 %v943
        %v946 = vshrl.u32 %v945, 4
        %v947 = vmul.u32 %v946, 18
        %v948 = vsub.s32 %v942, %v947
        %v949 = vsub.s32 0, %v948
        %v950 = vsel %vm940, %v949, %v948
        %vm951 = vcmp.lt.s32.totalorder %v715, 0
        %v952 = vsub.s32 0, %v715
        %v953 = vsel %vm951, %v952, %v715
        %v954 = vmul.u32.u64.compose %v953, 3817748708
        %v955 = vextract.low.u32 %v954
        %v956 = vextract.high.u32 %v954
        %v957 = vshrl.u32 %v956, 4
        %v958 = vmul.u32 %v957, 18
        %v959 = vsub.s32 %v953, %v958
        %v960 = vsub.s32 0, %v959
        %v961 = vsel %vm951, %v960, %v959
        %vm962 = vcmp.lt.s32.totalorder %v716, 0
        %v963 = vsub.s32 0, %v716
        %v964 = vsel %vm962, %v963, %v716
        %v965 = vmul.u32.u64.compose %v964, 3817748708
        %v966 = vextract.low.u32 %v965
        %v967 = vextract.high.u32 %v965
        %v968 = vshrl.u32 %v967, 4
        %v969 = vmul.u32 %v968, 18
        %v970 = vsub.s32 %v964, %v969
        %v971 = vsub.s32 0, %v970
        %v972 = vsel %vm962, %v971, %v970
        %vm973 = vcmp.lt.s32.totalorder %v717, 0
        %v974 = vsub.s32 0, %v717
        %v975 = vsel %vm973, %v974, %v717
        %v976 = vmul.u32.u64.compose %v975, 3817748708
        %v977 = vextract.low.u32 %v976
        %v978 = vextract.high.u32 %v976
        %v979 = vshrl.u32 %v978, 4
        %v980 = vmul.u32 %v979, 18
        %v981 = vsub.s32 %v975, %v980
        %v982 = vsub.s32 0, %v981
        %v983 = vsel %vm973, %v982, %v981
        %vm984 = vcmp.lt.s32.totalorder %v718, 0
        %v985 = vsub.s32 0, %v718
        %v986 = vsel %vm984, %v985, %v718
        %v987 = vmul.u32.u64.compose %v986, 3817748708
        %v988 = vextract.low.u32 %v987
        %v989 = vextract.high.u32 %v987
        %v990 = vshrl.u32 %v989, 4
        %v991 = vmul.u32 %v990, 18
        %v992 = vsub.s32 %v986, %v991
        %v993 = vsub.s32 0, %v992
        %v994 = vsel %vm984, %v993, %v992
        %vm995 = vcmp.lt.s32.totalorder %v719, 0
        %v996 = vsub.s32 0, %v719
        %v997 = vsel %vm995, %v996, %v719
        %v998 = vmul.u32.u64.compose %v997, 3817748708
        %v999 = vextract.low.u32 %v998
        %v1000 = vextract.high.u32 %v998
        %v1001 = vshrl.u32 %v1000, 4
        %v1002 = vmul.u32 %v1001, 18
        %v1003 = vsub.s32 %v997, %v1002
        %v1004 = vsub.s32 0, %v1003
        %v1005 = vsel %vm995, %v1004, %v1003
        %vm1006 = vcmp.lt.s32.totalorder %v720, 0
        %v1007 = vsub.s32 0, %v720
        %v1008 = vsel %vm1006, %v1007, %v720
        %v1009 = vmul.u32.u64.compose %v1008, 3817748708
        %v1010 = vextract.low.u32 %v1009
        %v1011 = vextract.high.u32 %v1009
        %v1012 = vshrl.u32 %v1011, 4
        %v1013 = vmul.u32 %v1012, 18
        %v1014 = vsub.s32 %v1008, %v1013
        %v1015 = vsub.s32 0, %v1014
        %v1016 = vsel %vm1006, %v1015, %v1014
        %vm1017 = vcmp.lt.s32.totalorder %v721, 0
        %v1018 = vsub.s32 0, %v721
        %v1019 = vsel %vm1017, %v1018, %v721
        %v1020 = vmul.u32.u64.compose %v1019, 3817748708
        %v1021 = vextract.low.u32 %v1020
        %v1022 = vextract.high.u32 %v1020
        %v1023 = vshrl.u32 %v1022, 4
        %v1024 = vmul.u32 %v1023, 18
        %v1025 = vsub.s32 %v1019, %v1024
        %v1026 = vsub.s32 0, %v1025
        %v1027 = vsel %vm1017, %v1026, %v1025
        %vm1028 = vcmp.lt.s32.totalorder %v722, 0
        %v1029 = vsub.s32 0, %v722
        %v1030 = vsel %vm1028, %v1029, %v722
        %v1031 = vmul.u32.u64.compose %v1030, 3817748708
        %v1032 = vextract.low.u32 %v1031
        %v1033 = vextract.high.u32 %v1031
        %v1034 = vshrl.u32 %v1033, 4
        %v1035 = vmul.u32 %v1034, 18
        %v1036 = vsub.s32 %v1030, %v1035
        %v1037 = vsub.s32 0, %v1036
        %v1038 = vsel %vm1028, %v1037, %v1036
        %vm1039 = vcmp.lt.s32.totalorder %v723, 0
        %v1040 = vsub.s32 0, %v723
        %v1041 = vsel %vm1039, %v1040, %v723
        %v1042 = vmul.u32.u64.compose %v1041, 3817748708
        %v1043 = vextract.low.u32 %v1042
        %v1044 = vextract.high.u32 %v1042
        %v1045 = vshrl.u32 %v1044, 4
        %v1046 = vmul.u32 %v1045, 18
        %v1047 = vsub.s32 %v1041, %v1046
        %v1048 = vsub.s32 0, %v1047
        %v1049 = vsel %vm1039, %v1048, %v1047
        %vm1050 = vcmp.lt.s32.totalorder %v724, 0
        %v1051 = vsub.s32 0, %v724
        %v1052 = vsel %vm1050, %v1051, %v724
        %v1053 = vmul.u32.u64.compose %v1052, 3817748708
        %v1054 = vextract.low.u32 %v1053
        %v1055 = vextract.high.u32 %v1053
        %v1056 = vshrl.u32 %v1055, 4
        %v1057 = vmul.u32 %v1056, 18
        %v1058 = vsub.s32 %v1052, %v1057
        %v1059 = vsub.s32 0, %v1058
        %v1060 = vsel %vm1050, %v1059, %v1058
        %vm1061 = vcmp.lt.s32.totalorder %v725, 0
        %v1062 = vsub.s32 0, %v725
        %v1063 = vsel %vm1061, %v1062, %v725
        %v1064 = vmul.u32.u64.compose %v1063, 3817748708
        %v1065 = vextract.low.u32 %v1064
        %v1066 = vextract.high.u32 %v1064
        %v1067 = vshrl.u32 %v1066, 4
        %v1068 = vmul.u32 %v1067, 18
        %v1069 = vsub.s32 %v1063, %v1068
        %v1070 = vsub.s32 0, %v1069
        %v1071 = vsel %vm1061, %v1070, %v1069
        %vm1072 = vcmp.lt.s32.totalorder %v726, 0
        %v1073 = vsub.s32 0, %v726
        %v1074 = vsel %vm1072, %v1073, %v726
        %v1075 = vmul.u32.u64.compose %v1074, 3817748708
        %v1076 = vextract.low.u32 %v1075
        %v1077 = vextract.high.u32 %v1075
        %v1078 = vshrl.u32 %v1077, 4
        %v1079 = vmul.u32 %v1078, 18
        %v1080 = vsub.s32 %v1074, %v1079
        %v1081 = vsub.s32 0, %v1080
        %v1082 = vsel %vm1072, %v1081, %v1080
        %vm1083 = vcmp.lt.s32.totalorder %v727, 0
        %v1084 = vsub.s32 0, %v727
        %v1085 = vsel %vm1083, %v1084, %v727
        %v1086 = vmul.u32.u64.compose %v1085, 3817748708
        %v1087 = vextract.low.u32 %v1086
        %v1088 = vextract.high.u32 %v1086
        %v1089 = vshrl.u32 %v1088, 4
        %v1090 = vmul.u32 %v1089, 18
        %v1091 = vsub.s32 %v1085, %v1090
        %v1092 = vsub.s32 0, %v1091
        %v1093 = vsel %vm1083, %v1092, %v1091
        %vm1094 = vcmp.lt.s32.totalorder %v728, 0
        %v1095 = vsub.s32 0, %v728
        %v1096 = vsel %vm1094, %v1095, %v728
        %v1097 = vmul.u32.u64.compose %v1096, 3817748708
        %v1098 = vextract.low.u32 %v1097
        %v1099 = vextract.high.u32 %v1097
        %v1100 = vshrl.u32 %v1099, 4
        %v1101 = vmul.u32 %v1100, 18
        %v1102 = vsub.s32 %v1096, %v1101
        %v1103 = vsub.s32 0, %v1102
        %v1104 = vsel %vm1094, %v1103, %v1102
        %vm1105 = vcmp.lt.s32.totalorder %v729, 0
        %v1106 = vsub.s32 0, %v729
        %v1107 = vsel %vm1105, %v1106, %v729
        %v1108 = vmul.u32.u64.compose %v1107, 3817748708
        %v1109 = vextract.low.u32 %v1108
        %v1110 = vextract.high.u32 %v1108
        %v1111 = vshrl.u32 %v1110, 4
        %v1112 = vmul.u32 %v1111, 18
        %v1113 = vsub.s32 %v1107, %v1112
        %v1114 = vsub.s32 0, %v1113
        %v1115 = vsel %vm1105, %v1114, %v1113
        %vm1116 = vcmp.lt.s32.totalorder %v730, 0
        %v1117 = vsub.s32 0, %v730
        %v1118 = vsel %vm1116, %v1117, %v730
        %v1119 = vmul.u32.u64.compose %v1118, 3817748708
        %v1120 = vextract.low.u32 %v1119
        %v1121 = vextract.high.u32 %v1119
        %v1122 = vshrl.u32 %v1121, 4
        %v1123 = vmul.u32 %v1122, 18
        %v1124 = vsub.s32 %v1118, %v1123
        %v1125 = vsub.s32 0, %v1124
        %v1126 = vsel %vm1116, %v1125, %v1124
        %vm1127 = vcmp.ne.s32.totalorder %v741, 0
        %vm1128 = vcmp.ne.s32.totalorder %v752, 0
        %vm1129 = vcmp.ne.s32.totalorder %v763, 0
        %vm1130 = vcmp.ne.s32.totalorder %v774, 0
        %vm1131 = vcmp.ne.s32.totalorder %v785, 0
        %vm1132 = vcmp.ne.s32.totalorder %v796, 0
        %vm1133 = vcmp.ne.s32.totalorder %v807, 0
        %vm1134 = vcmp.ne.s32.totalorder %v818, 0
        %vm1135 = vcmp.ne.s32.totalorder %v829, 0
        %vm1136 = vcmp.ne.s32.totalorder %v840, 0
        %vm1137 = vcmp.ne.s32.totalorder %v851, 0
        %vm1138 = vcmp.ne.s32.totalorder %v862, 0
        %vm1139 = vcmp.ne.s32.totalorder %v873, 0
        %vm1140 = vcmp.ne.s32.totalorder %v884, 0
        %vm1141 = vcmp.ne.s32.totalorder %v895, 0
        %vm1142 = vcmp.ne.s32.totalorder %v906, 0
        %vm1143 = vcmp.ne.s32.totalorder %v917, 0
        %vm1144 = vcmp.ne.s32.totalorder %v928, 0
        %vm1145 = vcmp.ne.s32.totalorder %v939, 0
        %vm1146 = vcmp.ne.s32.totalorder %v950, 0
        %vm1147 = vcmp.ne.s32.totalorder %v961, 0
        %vm1148 = vcmp.ne.s32.totalorder %v972, 0
        %vm1149 = vcmp.ne.s32.totalorder %v983, 0
        %vm1150 = vcmp.ne.s32.totalorder %v994, 0
        %vm1151 = vcmp.ne.s32.totalorder %v1005, 0
        %vm1152 = vcmp.ne.s32.totalorder %v1016, 0
        %vm1153 = vcmp.ne.s32.totalorder %v1027, 0
        %vm1154 = vcmp.ne.s32.totalorder %v1038, 0
        %vm1155 = vcmp.ne.s32.totalorder %v1049, 0
        %vm1156 = vcmp.ne.s32.totalorder %v1060, 0
        %vm1157 = vcmp.ne.s32.totalorder %v1071, 0
        %vm1158 = vcmp.ne.s32.totalorder %v1082, 0
        %vm1159 = vcmp.ne.s32.totalorder %v1093, 0
        %vm1160 = vcmp.ne.s32.totalorder %v1104, 0
        %vm1161 = vcmp.ne.s32.totalorder %v1115, 0
        %vm1162 = vcmp.ne.s32.totalorder %v1126, 0
        %vm1163 = vcmp.lt.s32.totalorder %v741, 0
        %vm1164 = vcmp.lt.s32.totalorder %v752, 0
        %vm1165 = vcmp.lt.s32.totalorder %v763, 0
        %vm1166 = vcmp.lt.s32.totalorder %v774, 0
        %vm1167 = vcmp.lt.s32.totalorder %v785, 0
        %vm1168 = vcmp.lt.s32.totalorder %v796, 0
        %vm1169 = vcmp.lt.s32.totalorder %v807, 0
        %vm1170 = vcmp.lt.s32.totalorder %v818, 0
        %vm1171 = vcmp.lt.s32.totalorder %v829, 0
        %vm1172 = vcmp.lt.s32.totalorder %v840, 0
        %vm1173 = vcmp.lt.s32.totalorder %v851, 0
        %vm1174 = vcmp.lt.s32.totalorder %v862, 0
        %vm1175 = vcmp.lt.s32.totalorder %v873, 0
        %vm1176 = vcmp.lt.s32.totalorder %v884, 0
        %vm1177 = vcmp.lt.s32.totalorder %v895, 0
        %vm1178 = vcmp.lt.s32.totalorder %v906, 0
        %vm1179 = vcmp.lt.s32.totalorder %v917, 0
        %vm1180 = vcmp.lt.s32.totalorder %v928, 0
        %vm1181 = vcmp.lt.s32.totalorder %v939, 0
        %vm1182 = vcmp.lt.s32.totalorder %v950, 0
        %vm1183 = vcmp.lt.s32.totalorder %v961, 0
        %vm1184 = vcmp.lt.s32.totalorder %v972, 0
        %vm1185 = vcmp.lt.s32.totalorder %v983, 0
        %vm1186 = vcmp.lt.s32.totalorder %v994, 0
        %vm1187 = vcmp.lt.s32.totalorder %v1005, 0
        %vm1188 = vcmp.lt.s32.totalorder %v1016, 0
        %vm1189 = vcmp.lt.s32.totalorder %v1027, 0
        %vm1190 = vcmp.lt.s32.totalorder %v1038, 0
        %vm1191 = vcmp.lt.s32.totalorder %v1049, 0
        %vm1192 = vcmp.lt.s32.totalorder %v1060, 0
        %vm1193 = vcmp.lt.s32.totalorder %v1071, 0
        %vm1194 = vcmp.lt.s32.totalorder %v1082, 0
        %vm1195 = vcmp.lt.s32.totalorder %v1093, 0
        %vm1196 = vcmp.lt.s32.totalorder %v1104, 0
        %vm1197 = vcmp.lt.s32.totalorder %v1115, 0
        %vm1198 = vcmp.lt.s32.totalorder %v1126, 0
        %vm1199 = vmand %vm1163, %vm1127
        %vm1200 = vmand %vm1164, %vm1128
        %vm1201 = vmand %vm1165, %vm1129
        %vm1202 = vmand %vm1166, %vm1130
        %vm1203 = vmand %vm1167, %vm1131
        %vm1204 = vmand %vm1168, %vm1132
        %vm1205 = vmand %vm1169, %vm1133
        %vm1206 = vmand %vm1170, %vm1134
        %vm1207 = vmand %vm1171, %vm1135
        %vm1208 = vmand %vm1172, %vm1136
        %vm1209 = vmand %vm1173, %vm1137
        %vm1210 = vmand %vm1174, %vm1138
        %vm1211 = vmand %vm1175, %vm1139
        %vm1212 = vmand %vm1176, %vm1140
        %vm1213 = vmand %vm1177, %vm1141
        %vm1214 = vmand %vm1178, %vm1142
        %vm1215 = vmand %vm1179, %vm1143
        %vm1216 = vmand %vm1180, %vm1144
        %vm1217 = vmand %vm1181, %vm1145
        %vm1218 = vmand %vm1182, %vm1146
        %vm1219 = vmand %vm1183, %vm1147
        %vm1220 = vmand %vm1184, %vm1148
        %vm1221 = vmand %vm1185, %vm1149
        %vm1222 = vmand %vm1186, %vm1150
        %vm1223 = vmand %vm1187, %vm1151
        %vm1224 = vmand %vm1188, %vm1152
        %vm1225 = vmand %vm1189, %vm1153
        %vm1226 = vmand %vm1190, %vm1154
        %vm1227 = vmand %vm1191, %vm1155
        %vm1228 = vmand %vm1192, %vm1156
        %vm1229 = vmand %vm1193, %vm1157
        %vm1230 = vmand %vm1194, %vm1158
        %vm1231 = vmand %vm1195, %vm1159
        %vm1232 = vmand %vm1196, %vm1160
        %vm1233 = vmand %vm1197, %vm1161
        %vm1234 = vmand %vm1198, %vm1162
        %v1235 = vadd.s32 %v741, 18
        %v1236 = vadd.s32 %v752, 18
        %v1237 = vadd.s32 %v763, 18
        %v1238 = vadd.s32 %v774, 18
        %v1239 = vadd.s32 %v785, 18
        %v1240 = vadd.s32 %v796, 18
        %v1241 = vadd.s32 %v807, 18
        %v1242 = vadd.s32 %v818, 18
        %v1243 = vadd.s32 %v829, 18
        %v1244 = vadd.s32 %v840, 18
        %v1245 = vadd.s32 %v851, 18
        %v1246 = vadd.s32 %v862, 18
        %v1247 = vadd.s32 %v873, 18
        %v1248 = vadd.s32 %v884, 18
        %v1249 = vadd.s32 %v895, 18
        %v1250 = vadd.s32 %v906, 18
        %v1251 = vadd.s32 %v917, 18
        %v1252 = vadd.s32 %v928, 18
        %v1253 = vadd.s32 %v939, 18
        %v1254 = vadd.s32 %v950, 18
        %v1255 = vadd.s32 %v961, 18
        %v1256 = vadd.s32 %v972, 18
        %v1257 = vadd.s32 %v983, 18
        %v1258 = vadd.s32 %v994, 18
        %v1259 = vadd.s32 %v1005, 18
        %v1260 = vadd.s32 %v1016, 18
        %v1261 = vadd.s32 %v1027, 18
        %v1262 = vadd.s32 %v1038, 18
        %v1263 = vadd.s32 %v1049, 18
        %v1264 = vadd.s32 %v1060, 18
        %v1265 = vadd.s32 %v1071, 18
        %v1266 = vadd.s32 %v1082, 18
        %v1267 = vadd.s32 %v1093, 18
        %v1268 = vadd.s32 %v1104, 18
        %v1269 = vadd.s32 %v1115, 18
        %v1270 = vadd.s32 %v1126, 18
        %v1271 = vsel %vm1199, %v1235, %v741
        %v1272 = vsel %vm1200, %v1236, %v752
        %v1273 = vsel %vm1201, %v1237, %v763
        %v1274 = vsel %vm1202, %v1238, %v774
        %v1275 = vsel %vm1203, %v1239, %v785
        %v1276 = vsel %vm1204, %v1240, %v796
        %v1277 = vsel %vm1205, %v1241, %v807
        %v1278 = vsel %vm1206, %v1242, %v818
        %v1279 = vsel %vm1207, %v1243, %v829
        %v1280 = vsel %vm1208, %v1244, %v840
        %v1281 = vsel %vm1209, %v1245, %v851
        %v1282 = vsel %vm1210, %v1246, %v862
        %v1283 = vsel %vm1211, %v1247, %v873
        %v1284 = vsel %vm1212, %v1248, %v884
        %v1285 = vsel %vm1213, %v1249, %v895
        %v1286 = vsel %vm1214, %v1250, %v906
        %v1287 = vsel %vm1215, %v1251, %v917
        %v1288 = vsel %vm1216, %v1252, %v928
        %v1289 = vsel %vm1217, %v1253, %v939
        %v1290 = vsel %vm1218, %v1254, %v950
        %v1291 = vsel %vm1219, %v1255, %v961
        %v1292 = vsel %vm1220, %v1256, %v972
        %v1293 = vsel %vm1221, %v1257, %v983
        %v1294 = vsel %vm1222, %v1258, %v994
        %v1295 = vsel %vm1223, %v1259, %v1005
        %v1296 = vsel %vm1224, %v1260, %v1016
        %v1297 = vsel %vm1225, %v1261, %v1027
        %v1298 = vsel %vm1226, %v1262, %v1038
        %v1299 = vsel %vm1227, %v1263, %v1049
        %v1300 = vsel %vm1228, %v1264, %v1060
        %v1301 = vsel %vm1229, %v1265, %v1071
        %v1302 = vsel %vm1230, %v1266, %v1082
        %v1303 = vsel %vm1231, %v1267, %v1093
        %v1304 = vsel %vm1232, %v1268, %v1104
        %v1305 = vsel %vm1233, %v1269, %v1115
        %v1306 = vsel %vm1234, %v1270, %v1126
        %vm1307 = vcmp.lt.s32.totalorder %v1271, 16
        %vm1308 = vcmp.lt.s32.totalorder %v1272, 16
        %vm1309 = vcmp.lt.s32.totalorder %v1273, 16
        %vm1310 = vcmp.lt.s32.totalorder %v1274, 16
        %vm1311 = vcmp.lt.s32.totalorder %v1275, 16
        %vm1312 = vcmp.lt.s32.totalorder %v1276, 16
        %vm1313 = vcmp.lt.s32.totalorder %v1277, 16
        %vm1314 = vcmp.lt.s32.totalorder %v1278, 16
        %vm1315 = vcmp.lt.s32.totalorder %v1279, 16
        %vm1316 = vcmp.lt.s32.totalorder %v1280, 16
        %vm1317 = vcmp.lt.s32.totalorder %v1281, 16
        %vm1318 = vcmp.lt.s32.totalorder %v1282, 16
        %vm1319 = vcmp.lt.s32.totalorder %v1283, 16
        %vm1320 = vcmp.lt.s32.totalorder %v1284, 16
        %vm1321 = vcmp.lt.s32.totalorder %v1285, 16
        %vm1322 = vcmp.lt.s32.totalorder %v1286, 16
        %vm1323 = vcmp.lt.s32.totalorder %v1287, 16
        %vm1324 = vcmp.lt.s32.totalorder %v1288, 16
        %vm1325 = vcmp.lt.s32.totalorder %v1289, 16
        %vm1326 = vcmp.lt.s32.totalorder %v1290, 16
        %vm1327 = vcmp.lt.s32.totalorder %v1291, 16
        %vm1328 = vcmp.lt.s32.totalorder %v1292, 16
        %vm1329 = vcmp.lt.s32.totalorder %v1293, 16
        %vm1330 = vcmp.lt.s32.totalorder %v1294, 16
        %vm1331 = vcmp.lt.s32.totalorder %v1295, 16
        %vm1332 = vcmp.lt.s32.totalorder %v1296, 16
        %vm1333 = vcmp.lt.s32.totalorder %v1297, 16
        %vm1334 = vcmp.lt.s32.totalorder %v1298, 16
        %vm1335 = vcmp.lt.s32.totalorder %v1299, 16
        %vm1336 = vcmp.lt.s32.totalorder %v1300, 16
        %vm1337 = vcmp.lt.s32.totalorder %v1301, 16
        %vm1338 = vcmp.lt.s32.totalorder %v1302, 16
        %vm1339 = vcmp.lt.s32.totalorder %v1303, 16
        %vm1340 = vcmp.lt.s32.totalorder %v1304, 16
        %vm1341 = vcmp.lt.s32.totalorder %v1305, 16
        %vm1342 = vcmp.lt.s32.totalorder %v1306, 16
        %v1343 = vsel %vm1307, %v658, 0.0
        %v1344 = vsel %vm1308, %v659, 0.0
        %v1345 = vsel %vm1309, %v660, 0.0
        %v1346 = vsel %vm1310, %v661, 0.0
        %v1347 = vsel %vm1311, %v662, 0.0
        %v1348 = vsel %vm1312, %v663, 0.0
        %v1349 = vsel %vm1313, %v664, 0.0
        %v1350 = vsel %vm1314, %v665, 0.0
        %v1351 = vsel %vm1315, %v666, 0.0
        %v1352 = vsel %vm1316, %v667, 0.0
        %v1353 = vsel %vm1317, %v668, 0.0
        %v1354 = vsel %vm1318, %v669, 0.0
        %v1355 = vsel %vm1319, %v670, 0.0
        %v1356 = vsel %vm1320, %v671, 0.0
        %v1357 = vsel %vm1321, %v672, 0.0
        %v1358 = vsel %vm1322, %v673, 0.0
        %v1359 = vsel %vm1323, %v674, 0.0
        %v1360 = vsel %vm1324, %v675, 0.0
        %v1361 = vsel %vm1325, %v676, 0.0
        %v1362 = vsel %vm1326, %v677, 0.0
        %v1363 = vsel %vm1327, %v678, 0.0
        %v1364 = vsel %vm1328, %v679, 0.0
        %v1365 = vsel %vm1329, %v680, 0.0
        %v1366 = vsel %vm1330, %v681, 0.0
        %v1367 = vsel %vm1331, %v682, 0.0
        %v1368 = vsel %vm1332, %v683, 0.0
        %v1369 = vsel %vm1333, %v684, 0.0
        %v1370 = vsel %vm1334, %v685, 0.0
        %v1371 = vsel %vm1335, %v686, 0.0
        %v1372 = vsel %vm1336, %v687, 0.0
        %v1373 = vsel %vm1337, %v688, 0.0
        %v1374 = vsel %vm1338, %v689, 0.0
        %v1375 = vsel %vm1339, %v690, 0.0
        %v1376 = vsel %vm1340, %v691, 0.0
        %v1377 = vsel %vm1341, %v692, 0.0
        %v1378 = vsel %vm1342, %v693, 0.0
        %v1379 = vpack.c.bf16 %v1344, %v1343
        %v1380 = vpack.c.bf16 %v1346, %v1345
        %v1381 = vpack.c.bf16 %v1348, %v1347
        %v1382 = vpack.c.bf16 %v1350, %v1349
        %v1383 = vpack.c.bf16 %v1352, %v1351
        %v1384 = vpack.c.bf16 %v1354, %v1353
        %v1385 = vpack.c.bf16 %v1356, %v1355
        %v1386 = vpack.c.bf16 %v1358, %v1357
        %v1387 = vpack.c.bf16 %v1360, %v1359
        %v1388 = vpack.c.bf16 %v1362, %v1361
        %v1389 = vpack.c.bf16 %v1364, %v1363
        %v1390 = vpack.c.bf16 %v1366, %v1365
        %v1391 = vpack.c.bf16 %v1368, %v1367
        %v1392 = vpack.c.bf16 %v1370, %v1369
        %v1393 = vpack.c.bf16 %v1372, %v1371
        %v1394 = vpack.c.bf16 %v1374, %v1373
        %v1395 = vpack.c.bf16 %v1376, %v1375
        %v1396 = vpack.c.bf16 %v1378, %v1377
        %1397 = vst [vmem:[#allocation2] sm:$0xf] 0
        %1398 = vst [vmem:[#allocation2 + $0x4] sm:$0xf] 0
        %1399 = vst [vmem:[#allocation2 + $0x8] sm:$0xf] 0
        %1400 = vst [vmem:[#allocation2 + $0xc] sm:$0xf] 0
        %1401 = vst [vmem:[#allocation2 + $0x10] sm:$0xf] 0
        %1402 = vst [vmem:[#allocation2 + $0x14] sm:$0xf] 0
        %1403 = vst [vmem:[#allocation2 + $0x18] sm:$0xf] 0
        %1404 = vst [vmem:[#allocation2 + $0x1c] sm:$0xf] 0
        %1405 = vst [vmem:[#allocation2 + $0x20] sm:$0xf] 0
        %1406 = vst [vmem:[#allocation2 + $0x24] sm:$0xf] 0
        %1407 = vst [vmem:[#allocation2 + $0x28] sm:$0xf] 0
        %1408 = vst [vmem:[#allocation2 + $0x2c] sm:$0xf] 0
        %1409 = vst [vmem:[#allocation2 + $0x30] sm:$0xf] 0
        %1410 = vst [vmem:[#allocation2 + $0x34] sm:$0xf] 0
        %1411 = vst [vmem:[#allocation2 + $0x38] sm:$0xf] 0
        %1412 = vst [vmem:[#allocation2 + $0x3c] sm:$0xf] 0
        %1413 = vst [vmem:[#allocation2 + $0x40] sm:$0xf] 0
        %1414 = vst [vmem:[#allocation2 + $0x44] sm:$0xf] 0
        %1415 = vst [vmem:[#allocation2 + $0x48] sm:$0xf] 0
        %1416 = vst [vmem:[#allocation2 + $0x4c] sm:$0xf] 0
        %1417 = vst [vmem:[#allocation2 + $0x50] sm:$0xf] 0
        %1418 = vst [vmem:[#allocation2 + $0x54] sm:$0xf] 0
        %1419 = vst [vmem:[#allocation2 + $0x58] sm:$0xf] 0
        %1420 = vst [vmem:[#allocation2 + $0x5c] sm:$0xf] 0
        %1421 = vst [vmem:[#allocation2 + $0x60] sm:$0xf] 0
        %1422 = vst [vmem:[#allocation2 + $0x64] sm:$0xf] 0
        %1423 = vst [vmem:[#allocation2 + $0x68] sm:$0xf] 0
        %1424 = vst [vmem:[#allocation2 + $0x6c] sm:$0xf] 0
        %1425 = vst [vmem:[#allocation2 + $0x70] sm:$0xf] 0
        %1426 = vst [vmem:[#allocation2 + $0x74] sm:$0xf] 0
        %1427 = vst [vmem:[#allocation2 + $0x78] sm:$0xf] 0
        %1428 = vst [vmem:[#allocation2 + $0x7c] sm:$0xf] 0
        %1429 = vst [vmem:[#allocation2 + $0x80] sm:$0xf] 0
        %1430 = vst [vmem:[#allocation2 + $0x84] sm:$0xf] 0
        %1431 = vst [vmem:[#allocation2 + $0x88] sm:$0xf] 0
        %1432 = vst [vmem:[#allocation2 + $0x8c] sm:$0xf] 0
        %1433 = vst [vmem:[#allocation2 + $0x90] sm:$0xf] 0
        %1434 = vst [vmem:[#allocation2 + $0x94] sm:$0xf] 0
        %1435 = vst [vmem:[#allocation2 + $0x98] sm:$0xf] 0
        %1436 = vst [vmem:[#allocation2 + $0x9c] sm:$0xf] 0
        %1437 = vst [vmem:[#allocation2 + $0xa0] sm:$0xf] 0
        %1438 = vst [vmem:[#allocation2 + $0xa4] sm:$0xf] 0
        %1439 = vst [vmem:[#allocation2 + $0xa8] sm:$0x7] 0
        %v1458 = vunpack.c.l.b16 %v1379
        %v1459 = vunpack.c.h.b16 %v1379
        %v1460 = vunpack.c.l.b16 %v1380
        %v1461 = vunpack.c.h.b16 %v1380
        %v1462 = vunpack.c.l.b16 %v1381
        %v1463 = vunpack.c.h.b16 %v1381
        %v1464 = vunpack.c.l.b16 %v1382
        %v1465 = vunpack.c.h.b16 %v1382
        %v1466 = vunpack.c.l.b16 %v1383
        %v1467 = vunpack.c.h.b16 %v1383
        %v1468 = vunpack.c.l.b16 %v1384
        %v1469 = vunpack.c.h.b16 %v1384
        %v1470 = vunpack.c.l.b16 %v1385
        %v1471 = vunpack.c.h.b16 %v1385
        %v1472 = vunpack.c.l.b16 %v1386
        %v1473 = vunpack.c.h.b16 %v1386
        %v1474 = vunpack.c.l.b16 %v1387
        %v1475 = vunpack.c.h.b16 %v1387
        %v1476 = vunpack.c.l.b16 %v1388
        %v1477 = vunpack.c.h.b16 %v1388
        %v1478 = vunpack.c.l.b16 %v1389
        %v1479 = vunpack.c.h.b16 %v1389
        %v1480 = vunpack.c.l.b16 %v1390
        %v1481 = vunpack.c.h.b16 %v1390
        %v1482 = vunpack.c.l.b16 %v1391
        %v1483 = vunpack.c.h.b16 %v1391
        %v1484 = vunpack.c.l.b16 %v1392
        %v1485 = vunpack.c.h.b16 %v1392
        %v1486 = vunpack.c.l.b16 %v1393
        %v1487 = vunpack.c.h.b16 %v1393
        %v1488 = vunpack.c.l.b16 %v1394
        %v1489 = vunpack.c.h.b16 %v1394
        %v1490 = vunpack.c.l.b16 %v1395
        %v1491 = vunpack.c.h.b16 %v1395
        %v1492 = vunpack.c.l.b16 %v1396
        %v1493 = vunpack.c.h.b16 %v1396
        %v1494 = vpack.c.b16 %v1458, %v1458
        %v1495 = vpack.c.b16 %v1459, %v1459
        %v1496 = vpack.c.b16 %v1460, %v1460
        %v1497 = vpack.c.b16 %v1461, %v1461
        %v1498 = vpack.c.b16 %v1462, %v1462
        %v1499 = vpack.c.b16 %v1463, %v1463
        %v1500 = vpack.c.b16 %v1464, %v1464
        %v1501 = vpack.c.b16 %v1465, %v1465
        %v1502 = vpack.c.b16 %v1466, %v1466
        %v1503 = vpack.c.b16 %v1467, %v1467
        %v1504 = vpack.c.b16 %v1468, %v1468
        %v1505 = vpack.c.b16 %v1469, %v1469
        %v1506 = vpack.c.b16 %v1470, %v1470
        %v1507 = vpack.c.b16 %v1471, %v1471
        %v1508 = vpack.c.b16 %v1472, %v1472
        %v1509 = vpack.c.b16 %v1473, %v1473
        %v1510 = vpack.c.b16 %v1474, %v1474
        %v1511 = vpack.c.b16 %v1475, %v1475
        %v1512 = vpack.c.b16 %v1476, %v1476
        %v1513 = vpack.c.b16 %v1477, %v1477
        %v1514 = vpack.c.b16 %v1478, %v1478
        %v1515 = vpack.c.b16 %v1479, %v1479
        %v1516 = vpack.c.b16 %v1480, %v1480
        %v1517 = vpack.c.b16 %v1481, %v1481
        %v1518 = vpack.c.b16 %v1482, %v1482
        %v1519 = vpack.c.b16 %v1483, %v1483
        %v1520 = vpack.c.b16 %v1484, %v1484
        %v1521 = vpack.c.b16 %v1485, %v1485
        %v1522 = vpack.c.b16 %v1486, %v1486
        %v1523 = vpack.c.b16 %v1487, %v1487
        %v1524 = vpack.c.b16 %v1488, %v1488
        %v1525 = vpack.c.b16 %v1489, %v1489
        %v1526 = vpack.c.b16 %v1490, %v1490
        %v1527 = vpack.c.b16 %v1491, %v1491
        %v1528 = vpack.c.b16 %v1492, %v1492
        %v1529 = vpack.c.b16 %v1493, %v1493
        %vm1530 = vsmask.f32 1280
        %vm1531 = vsmask.f32 5392
        %vm1532 = vmor %vm1530, %vm1531
        %v1534 = vshrl.u32 %v1494, 16
        %v1536 = vrot.slane %v1534, 6
        %v1537 = vshll.u32 %v1494, 16
        %v1539 = vrot.slane %v1537, 7
        %v1540 = vor.u32 %v1536, %v1539
        %v1541 = vrot.slane %v1540, 4
        %v1543 = vshrl.u32 %v1495, 16
        %v1545 = vrot.slane %v1543, 6
        %v1546 = vshll.u32 %v1495, 16
        %v1548 = vrot.slane %v1546, 7
        %v1549 = vor.u32 %v1545, %v1548
        %v1550 = vsel %vm1532, %v1541, %v1549
        %v1551 = vrot.slane %v1549, 4
        %v1553 = vshrl.u32 %v1496, 16
        %v1555 = vrot.slane %v1553, 6
        %v1556 = vshll.u32 %v1496, 16
        %v1558 = vrot.slane %v1556, 7
        %v1559 = vor.u32 %v1555, %v1558
        %v1560 = vsel %vm1532, %v1551, %v1559
        %v1561 = vrot.slane %v1559, 4
        %v1563 = vshrl.u32 %v1497, 16
        %v1565 = vrot.slane %v1563, 6
        %v1566 = vshll.u32 %v1497, 16
        %v1568 = vrot.slane %v1566, 7
        %v1569 = vor.u32 %v1565, %v1568
        %v1570 = vsel %vm1532, %v1561, %v1569
        %v1571 = vrot.slane %v1569, 4
        %v1573 = vshrl.u32 %v1498, 16
        %v1575 = vrot.slane %v1573, 6
        %v1576 = vshll.u32 %v1498, 16
        %v1578 = vrot.slane %v1576, 7
        %v1579 = vor.u32 %v1575, %v1578
        %v1580 = vsel %vm1532, %v1571, %v1579
        %v1581 = vrot.slane %v1579, 4
        %v1583 = vshrl.u32 %v1499, 16
        %v1585 = vrot.slane %v1583, 6
        %v1586 = vshll.u32 %v1499, 16
        %v1588 = vrot.slane %v1586, 7
        %v1589 = vor.u32 %v1585, %v1588
        %v1590 = vsel %vm1532, %v1581, %v1589
        %v1591 = vrot.slane %v1589, 4
        %v1593 = vshrl.u32 %v1500, 16
        %v1595 = vrot.slane %v1593, 6
        %v1596 = vshll.u32 %v1500, 16
        %v1598 = vrot.slane %v1596, 7
        %v1599 = vor.u32 %v1595, %v1598
        %v1600 = vsel %vm1532, %v1591, %v1599
        %v1601 = vrot.slane %v1599, 4
        %v1603 = vshrl.u32 %v1501, 16
        %v1605 = vrot.slane %v1603, 6
        %v1606 = vshll.u32 %v1501, 16
        %v1608 = vrot.slane %v1606, 7
        %v1609 = vor.u32 %v1605, %v1608
        %v1610 = vsel %vm1532, %v1601, %v1609
        %v1611 = vrot.slane %v1609, 4
        %v1613 = vshrl.u32 %v1502, 16
        %v1615 = vrot.slane %v1613, 6
        %v1616 = vshll.u32 %v1502, 16
        %v1618 = vrot.slane %v1616, 7
        %v1619 = vor.u32 %v1615, %v1618
        %v1620 = vsel %vm1532, %v1611, %v1619
        %v1621 = vrot.slane %v1619, 4
        %v1623 = vshrl.u32 %v1503, 16
        %v1625 = vrot.slane %v1623, 6
        %v1626 = vshll.u32 %v1503, 16
        %v1628 = vrot.slane %v1626, 7
        %v1629 = vor.u32 %v1625, %v1628
        %v1630 = vsel %vm1532, %v1621, %v1629
        %v1631 = vrot.slane %v1629, 4
        %v1633 = vshrl.u32 %v1504, 16
        %v1635 = vrot.slane %v1633, 6
        %v1636 = vshll.u32 %v1504, 16
        %v1638 = vrot.slane %v1636, 7
        %v1639 = vor.u32 %v1635, %v1638
        %v1640 = vsel %vm1532, %v1631, %v1639
        %v1641 = vrot.slane %v1639, 4
        %v1643 = vshrl.u32 %v1505, 16
        %v1645 = vrot.slane %v1643, 6
        %v1646 = vshll.u32 %v1505, 16
        %v1648 = vrot.slane %v1646, 7
        %v1649 = vor.u32 %v1645, %v1648
        %v1650 = vsel %vm1532, %v1641, %v1649
        %v1651 = vrot.slane %v1649, 4
        %v1653 = vshrl.u32 %v1506, 16
        %v1655 = vrot.slane %v1653, 6
        %v1656 = vshll.u32 %v1506, 16
        %v1658 = vrot.slane %v1656, 7
        %v1659 = vor.u32 %v1655, %v1658
        %v1660 = vsel %vm1532, %v1651, %v1659
        %v1661 = vrot.slane %v1659, 4
        %v1663 = vshrl.u32 %v1507, 16
        %v1665 = vrot.slane %v1663, 6
        %v1666 = vshll.u32 %v1507, 16
        %v1668 = vrot.slane %v1666, 7
        %v1669 = vor.u32 %v1665, %v1668
        %v1670 = vsel %vm1532, %v1661, %v1669
        %v1671 = vrot.slane %v1669, 4
        %v1673 = vshrl.u32 %v1508, 16
        %v1675 = vrot.slane %v1673, 6
        %v1676 = vshll.u32 %v1508, 16
        %v1678 = vrot.slane %v1676, 7
        %v1679 = vor.u32 %v1675, %v1678
        %v1680 = vsel %vm1532, %v1671, %v1679
        %v1681 = vrot.slane %v1679, 4
        %v1683 = vshrl.u32 %v1509, 16
        %v1685 = vrot.slane %v1683, 6
        %v1686 = vshll.u32 %v1509, 16
        %v1688 = vrot.slane %v1686, 7
        %v1689 = vor.u32 %v1685, %v1688
        %v1690 = vsel %vm1532, %v1681, %v1689
        %v1691 = vrot.slane %v1689, 4
        %v1693 = vshrl.u32 %v1510, 16
        %v1695 = vrot.slane %v1693, 6
        %v1696 = vshll.u32 %v1510, 16
        %v1698 = vrot.slane %v1696, 7
        %v1699 = vor.u32 %v1695, %v1698
        %v1700 = vsel %vm1532, %v1691, %v1699
        %v1701 = vrot.slane %v1699, 4
        %v1703 = vshrl.u32 %v1511, 16
        %v1705 = vrot.slane %v1703, 6
        %v1706 = vshll.u32 %v1511, 16
        %v1708 = vrot.slane %v1706, 7
        %v1709 = vor.u32 %v1705, %v1708
        %v1710 = vsel %vm1532, %v1701, %v1709
        %v1711 = vrot.slane %v1709, 4
        %v1713 = vshrl.u32 %v1512, 16
        %v1715 = vrot.slane %v1713, 6
        %v1716 = vshll.u32 %v1512, 16
        %v1718 = vrot.slane %v1716, 7
        %v1719 = vor.u32 %v1715, %v1718
        %v1720 = vsel %vm1532, %v1711, %v1719
        %v1721 = vrot.slane %v1719, 4
        %v1723 = vshrl.u32 %v1513, 16
        %v1725 = vrot.slane %v1723, 6
        %v1726 = vshll.u32 %v1513, 16
        %v1728 = vrot.slane %v1726, 7
        %v1729 = vor.u32 %v1725, %v1728
        %v1730 = vsel %vm1532, %v1721, %v1729
        %v1731 = vrot.slane %v1729, 4
        %v1733 = vshrl.u32 %v1514, 16
        %v1735 = vrot.slane %v1733, 6
        %v1736 = vshll.u32 %v1514, 16
        %v1738 = vrot.slane %v1736, 7
        %v1739 = vor.u32 %v1735, %v1738
        %v1740 = vsel %vm1532, %v1731, %v1739
        %v1741 = vrot.slane %v1739, 4
        %v1743 = vshrl.u32 %v1515, 16
        %v1745 = vrot.slane %v1743, 6
        %v1746 = vshll.u32 %v1515, 16
        %v1748 = vrot.slane %v1746, 7
        %v1749 = vor.u32 %v1745, %v1748
        %v1750 = vsel %vm1532, %v1741, %v1749
        %v1751 = vrot.slane %v1749, 4
        %v1753 = vshrl.u32 %v1516, 16
        %v1755 = vrot.slane %v1753, 6
        %v1756 = vshll.u32 %v1516, 16
        %v1758 = vrot.slane %v1756, 7
        %v1759 = vor.u32 %v1755, %v1758
        %v1760 = vsel %vm1532, %v1751, %v1759
        %v1761 = vrot.slane %v1759, 4
        %v1763 = vshrl.u32 %v1517, 16
        %v1765 = vrot.slane %v1763, 6
        %v1766 = vshll.u32 %v1517, 16
        %v1768 = vrot.slane %v1766, 7
        %v1769 = vor.u32 %v1765, %v1768
        %v1770 = vsel %vm1532, %v1761, %v1769
        %v1771 = vrot.slane %v1769, 4
        %v1773 = vshrl.u32 %v1518, 16
        %v1775 = vrot.slane %v1773, 6
        %v1776 = vshll.u32 %v1518, 16
        %v1778 = vrot.slane %v1776, 7
        %v1779 = vor.u32 %v1775, %v1778
        %v1780 = vsel %vm1532, %v1771, %v1779
        %v1781 = vrot.slane %v1779, 4
        %v1783 = vshrl.u32 %v1519, 16
        %v1785 = vrot.slane %v1783, 6
        %v1786 = vshll.u32 %v1519, 16
        %v1788 = vrot.slane %v1786, 7
        %v1789 = vor.u32 %v1785, %v1788
        %v1790 = vsel %vm1532, %v1781, %v1789
        %v1791 = vrot.slane %v1789, 4
        %v1793 = vshrl.u32 %v1520, 16
        %v1795 = vrot.slane %v1793, 6
        %v1796 = vshll.u32 %v1520, 16
        %v1798 = vrot.slane %v1796, 7
        %v1799 = vor.u32 %v1795, %v1798
        %v1800 = vsel %vm1532, %v1791, %v1799
        %v1801 = vrot.slane %v1799, 4
        %v1803 = vshrl.u32 %v1521, 16
        %v1805 = vrot.slane %v1803, 6
        %v1806 = vshll.u32 %v1521, 16
        %v1808 = vrot.slane %v1806, 7
        %v1809 = vor.u32 %v1805, %v1808
        %v1810 = vsel %vm1532, %v1801, %v1809
        %v1811 = vrot.slane %v1809, 4
        %v1813 = vshrl.u32 %v1522, 16
        %v1815 = vrot.slane %v1813, 6
        %v1816 = vshll.u32 %v1522, 16
        %v1818 = vrot.slane %v1816, 7
        %v1819 = vor.u32 %v1815, %v1818
        %v1820 = vsel %vm1532, %v1811, %v1819
        %v1821 = vrot.slane %v1819, 4
        %v1823 = vshrl.u32 %v1523, 16
        %v1825 = vrot.slane %v1823, 6
        %v1826 = vshll.u32 %v1523, 16
        %v1828 = vrot.slane %v1826, 7
        %v1829 = vor.u32 %v1825, %v1828
        %v1830 = vsel %vm1532, %v1821, %v1829
        %v1831 = vrot.slane %v1829, 4
        %v1833 = vshrl.u32 %v1524, 16
        %v1835 = vrot.slane %v1833, 6
        %v1836 = vshll.u32 %v1524, 16
        %v1838 = vrot.slane %v1836, 7
        %v1839 = vor.u32 %v1835, %v1838
        %v1840 = vsel %vm1532, %v1831, %v1839
        %v1841 = vrot.slane %v1839, 4
        %v1843 = vshrl.u32 %v1525, 16
        %v1845 = vrot.slane %v1843, 6
        %v1846 = vshll.u32 %v1525, 16
        %v1848 = vrot.slane %v1846, 7
        %v1849 = vor.u32 %v1845, %v1848
        %v1850 = vsel %vm1532, %v1841, %v1849
        %v1851 = vrot.slane %v1849, 4
        %v1853 = vshrl.u32 %v1526, 16
        %v1855 = vrot.slane %v1853, 6
        %v1856 = vshll.u32 %v1526, 16
        %v1858 = vrot.slane %v1856, 7
        %v1859 = vor.u32 %v1855, %v1858
        %v1860 = vsel %vm1532, %v1851, %v1859
        %v1861 = vrot.slane %v1859, 4
        %v1863 = vshrl.u32 %v1527, 16
        %v1865 = vrot.slane %v1863, 6
        %v1866 = vshll.u32 %v1527, 16
        %v1868 = vrot.slane %v1866, 7
        %v1869 = vor.u32 %v1865, %v1868
        %v1870 = vsel %vm1532, %v1861, %v1869
        %v1871 = vrot.slane %v1869, 4
        %v1873 = vshrl.u32 %v1528, 16
        %v1875 = vrot.slane %v1873, 6
        %v1876 = vshll.u32 %v1528, 16
        %v1878 = vrot.slane %v1876, 7
        %v1879 = vor.u32 %v1875, %v1878
        %v1880 = vsel %vm1532, %v1871, %v1879
        %v1881 = vrot.slane %v1879, 4
        %v1883 = vshrl.u32 %v1529, 16
        %v1885 = vrot.slane %v1883, 6
        %v1886 = vshll.u32 %v1529, 16
        %v1888 = vrot.slane %v1886, 7
        %v1889 = vor.u32 %v1885, %v1888
        %v1890 = vsel %vm1532, %v1881, %v1889
        %v1891 = vrot.slane %v1889, 4
        %vm1929 = vcmask 1043457
        %vm1930 = vsmask.f32 7942
        %vm1931 = vmand %vm1929, %vm1930
        %v1932 = vld [vmem:[#allocation2 + $0x8] sm:$0xe]
        %v1933 = vsel %vm1931, %v1540, %v1932
        %1934 = vst [vmem:[#allocation2 + $0x8] sm:$0xe] %v1933
        %1935 = vst [vmem:[#allocation2 + $0xc] sm:$0xf] %v1550
        %1936 = vst [vmem:[#allocation2 + $0x10] sm:$0xf] %v1560
        %1937 = vst [vmem:[#allocation2 + $0x14] sm:$0xf] %v1570
        %1938 = vst [vmem:[#allocation2 + $0x18] sm:$0xf] %v1580
        %1939 = vst [vmem:[#allocation2 + $0x1c] sm:$0xf] %v1590
        %1940 = vst [vmem:[#allocation2 + $0x20] sm:$0xf] %v1600
        %1941 = vst [vmem:[#allocation2 + $0x24] sm:$0xf] %v1610
        %1942 = vst [vmem:[#allocation2 + $0x28] sm:$0xf] %v1620
        %1943 = vst [vmem:[#allocation2 + $0x2c] sm:$0xf] %v1630
        %1944 = vst [vmem:[#allocation2 + $0x30] sm:$0xf] %v1640
        %1945 = vst [vmem:[#allocation2 + $0x34] sm:$0xf] %v1650
        %1946 = vst [vmem:[#allocation2 + $0x38] sm:$0xf] %v1660
        %1947 = vst [vmem:[#allocation2 + $0x3c] sm:$0xf] %v1670
        %1948 = vst [vmem:[#allocation2 + $0x40] sm:$0xf] %v1680
        %1949 = vst [vmem:[#allocation2 + $0x44] sm:$0xf] %v1690
        %1950 = vst [vmem:[#allocation2 + $0x48] sm:$0xf] %v1700
        %1951 = vst [vmem:[#allocation2 + $0x4c] sm:$0xf] %v1710
        %1952 = vst [vmem:[#allocation2 + $0x50] sm:$0xf] %v1720
        %1953 = vst [vmem:[#allocation2 + $0x54] sm:$0xf] %v1730
        %1954 = vst [vmem:[#allocation2 + $0x58] sm:$0xf] %v1740
        %1955 = vst [vmem:[#allocation2 + $0x5c] sm:$0xf] %v1750
        %1956 = vst [vmem:[#allocation2 + $0x60] sm:$0xf] %v1760
        %1957 = vst [vmem:[#allocation2 + $0x64] sm:$0xf] %v1770
        %1958 = vst [vmem:[#allocation2 + $0x68] sm:$0xf] %v1780
        %1959 = vst [vmem:[#allocation2 + $0x6c] sm:$0xf] %v1790
        %1960 = vst [vmem:[#allocation2 + $0x70] sm:$0xf] %v1800
        %1961 = vst [vmem:[#allocation2 + $0x74] sm:$0xf] %v1810
        %1962 = vst [vmem:[#allocation2 + $0x78] sm:$0xf] %v1820
        %1963 = vst [vmem:[#allocation2 + $0x7c] sm:$0xf] %v1830
        %1964 = vst [vmem:[#allocation2 + $0x80] sm:$0xf] %v1840
        %1965 = vst [vmem:[#allocation2 + $0x84] sm:$0xf] %v1850
        %1966 = vst [vmem:[#allocation2 + $0x88] sm:$0xf] %v1860
        %1967 = vst [vmem:[#allocation2 + $0x8c] sm:$0xf] %v1870
        %1968 = vst [vmem:[#allocation2 + $0x90] sm:$0xf] %v1880
        %1969 = vst [vmem:[#allocation2 + $0x94] sm:$0xf] %v1890
        %vm1970 = vcmask 1041408
        %vm1971 = vmand %vm1970, %vm1530
        %v1972 = vld [vmem:[#allocation2 + $0x98] sm:$0x3]
        %v1973 = vsel %vm1971, %v1891, %v1972
        %1974 = vst [vmem:[#allocation2 + $0x98] sm:$0x3] %v1973
        %v1975 = vld [vmem:[#allocation2] sm:$0xf]
        %v1976 = vld [vmem:[#allocation2 + $0x4] sm:$0xf]
        %v1977 = vld [vmem:[#allocation2 + $0x8] sm:$0xf]
        %v1978 = vld [vmem:[#allocation2 + $0xc] sm:$0xf]
        %v1979 = vld [vmem:[#allocation2 + $0x10] sm:$0xf]
        %v1980 = vld [vmem:[#allocation2 + $0x14] sm:$0xf]
        %v1981 = vld [vmem:[#allocation2 + $0x18] sm:$0xf]
        %v1982 = vld [vmem:[#allocation2 + $0x1c] sm:$0xf]
        %v1983 = vld [vmem:[#allocation2 + $0x20] sm:$0xf]
        %v1984 = vld [vmem:[#allocation2 + $0x24] sm:$0xf]
        %v1985 = vld [vmem:[#allocation2 + $0x28] sm:$0xf]
        %v1986 = vld [vmem:[#allocation2 + $0x2c] sm:$0xf]
        %v1987 = vld [vmem:[#allocation2 + $0x30] sm:$0xf]
        %v1988 = vld [vmem:[#allocation2 + $0x34] sm:$0xf]
        %v1989 = vld [vmem:[#allocation2 + $0x38] sm:$0xf]
        %v1990 = vld [vmem:[#allocation2 + $0x3c] sm:$0xf]
        %v1991 = vld [vmem:[#allocation2 + $0x40] sm:$0xf]
        %v1992 = vld [vmem:[#allocation2 + $0x44] sm:$0xf]
        %v1993 = vld [vmem:[#allocation2 + $0x48] sm:$0xf]
        %v1994 = vld [vmem:[#allocation2 + $0x4c] sm:$0xf]
        %v1995 = vld [vmem:[#allocation2 + $0x50] sm:$0xf]
        %v1996 = vld [vmem:[#allocation2 + $0x54] sm:$0xf]
        %v1997 = vld [vmem:[#allocation2 + $0x58] sm:$0xf]
        %v1998 = vld [vmem:[#allocation2 + $0x5c] sm:$0xf]
        %v1999 = vld [vmem:[#allocation2 + $0x60] sm:$0xf]
        %v2000 = vld [vmem:[#allocation2 + $0x64] sm:$0xf]
        %v2001 = vld [vmem:[#allocation2 + $0x68] sm:$0xf]
        %v2002 = vld [vmem:[#allocation2 + $0x6c] sm:$0xf]
        %v2003 = vld [vmem:[#allocation2 + $0x70] sm:$0xf]
        %v2004 = vld [vmem:[#allocation2 + $0x74] sm:$0xf]
        %v2005 = vld [vmem:[#allocation2 + $0x78] sm:$0xf]
        %v2006 = vld [vmem:[#allocation2 + $0x7c] sm:$0xf]
        %v2007 = vld [vmem:[#allocation2 + $0x80] sm:$0xf]
        %v2008 = vld [vmem:[#allocation2 + $0x84] sm:$0xf]
        %v2009 = vld [vmem:[#allocation2 + $0x88] sm:$0xf]
        %v2010 = vld [vmem:[#allocation2 + $0x8c] sm:$0xf]
        %v2011 = vld [vmem:[#allocation2 + $0x90] sm:$0x1]
        %v2048 = vunpack.c.l.b16 %v1975
        %v2049 = vunpack.c.l.b16 %v1976
        %v2050 = vunpack.c.l.b16 %v1977
        %v2051 = vunpack.c.l.b16 %v1978
        %v2052 = vunpack.c.l.b16 %v1979
        %v2053 = vunpack.c.l.b16 %v1980
        %v2054 = vunpack.c.l.b16 %v1981
        %v2055 = vunpack.c.l.b16 %v1982
        %v2056 = vunpack.c.l.b16 %v1983
        %v2057 = vunpack.c.l.b16 %v1984
        %v2058 = vunpack.c.l.b16 %v1985
        %v2059 = vunpack.c.l.b16 %v1986
        %v2060 = vunpack.c.l.b16 %v1987
        %v2061 = vunpack.c.l.b16 %v1988
        %v2062 = vunpack.c.l.b16 %v1989
        %v2063 = vunpack.c.l.b16 %v1990
        %v2064 = vunpack.c.l.b16 %v1991
        %v2065 = vunpack.c.l.b16 %v1992
        %v2066 = vunpack.c.l.b16 %v1993
        %v2067 = vunpack.c.l.b16 %v1994
        %v2068 = vunpack.c.l.b16 %v1995
        %v2069 = vunpack.c.l.b16 %v1996
        %v2070 = vunpack.c.l.b16 %v1997
        %v2071 = vunpack.c.l.b16 %v1998
        %v2072 = vunpack.c.l.b16 %v1999
        %v2073 = vunpack.c.l.b16 %v2000
        %v2074 = vunpack.c.l.b16 %v2001
        %v2075 = vunpack.c.l.b16 %v2002
        %v2076 = vunpack.c.l.b16 %v2003
        %v2077 = vunpack.c.l.b16 %v2004
        %v2078 = vunpack.c.l.b16 %v2005
        %v2079 = vunpack.c.l.b16 %v2006
        %v2080 = vunpack.c.l.b16 %v2007
        %v2081 = vunpack.c.l.b16 %v2008
        %v2082 = vunpack.c.l.b16 %v2009
        %v2083 = vunpack.c.l.b16 %v2010
        %v2084 = vpack.c.b16 %v2049, %v2048
        %v2085 = vpack.c.b16 %v2051, %v2050
        %v2086 = vpack.c.b16 %v2053, %v2052
        %v2087 = vpack.c.b16 %v2055, %v2054
        %v2088 = vpack.c.b16 %v2057, %v2056
        %v2089 = vpack.c.b16 %v2059, %v2058
        %v2090 = vpack.c.b16 %v2061, %v2060
        %v2091 = vpack.c.b16 %v2063, %v2062
        %v2092 = vpack.c.b16 %v2065, %v2064
        %v2093 = vpack.c.b16 %v2067, %v2066
        %v2094 = vpack.c.b16 %v2069, %v2068
        %v2095 = vpack.c.b16 %v2071, %v2070
        %v2096 = vpack.c.b16 %v2073, %v2072
        %v2097 = vpack.c.b16 %v2075, %v2074
        %v2098 = vpack.c.b16 %v2077, %v2076
        %v2099 = vpack.c.b16 %v2079, %v2078
        %v2100 = vpack.c.b16 %v2081, %v2080
        %v2101 = vpack.c.b16 %v2083, %v2082
        %v2121 = vunpack.c.l.b16 %v2011
        %v2122 = vpack.c.b16 %v2121, %v2121
        %vm2123 = vsmask.f32 7424
        %v2125 = vshrl.u32 %v2084, 16
        %v2127 = vshll.u32 %v2084, 16
        %v2129 = vrot.slane %v2127, 1
        %v2130 = vor.u32 %v2125, %v2129
        %v2132 = vshll.u32 %v2085, 16
        %v2134 = vrot.slane %v2132, 1
        %v2135 = vsel %vm2123, %v2130, %v2134
        %v2136 = vshrl.u32 %v2085, 16
        %v2138 = vor.u32 %v2136, %v2134
        %v2140 = vshll.u32 %v2086, 16
        %v2142 = vrot.slane %v2140, 1
        %v2143 = vsel %vm2123, %v2138, %v2142
        %v2144 = vshrl.u32 %v2086, 16
        %v2146 = vor.u32 %v2144, %v2142
        %v2148 = vshll.u32 %v2087, 16
        %v2150 = vrot.slane %v2148, 1
        %v2151 = vsel %vm2123, %v2146, %v2150
        %v2152 = vshrl.u32 %v2087, 16
        %v2154 = vor.u32 %v2152, %v2150
        %v2156 = vshll.u32 %v2088, 16
        %v2158 = vrot.slane %v2156, 1
        %v2159 = vsel %vm2123, %v2154, %v2158
        %v2160 = vshrl.u32 %v2088, 16
        %v2162 = vor.u32 %v2160, %v2158
        %v2164 = vshll.u32 %v2089, 16
        %v2166 = vrot.slane %v2164, 1
        %v2167 = vsel %vm2123, %v2162, %v2166
        %v2168 = vshrl.u32 %v2089, 16
        %v2170 = vor.u32 %v2168, %v2166
        %v2172 = vshll.u32 %v2090, 16
        %v2174 = vrot.slane %v2172, 1
        %v2175 = vsel %vm2123, %v2170, %v2174
        %v2176 = vshrl.u32 %v2090, 16
        %v2178 = vor.u32 %v2176, %v2174
        %v2180 = vshll.u32 %v2091, 16
        %v2182 = vrot.slane %v2180, 1
        %v2183 = vsel %vm2123, %v2178, %v2182
        %v2184 = vshrl.u32 %v2091, 16
        %v2186 = vor.u32 %v2184, %v2182
        %v2188 = vshll.u32 %v2092, 16
        %v2190 = vrot.slane %v2188, 1
        %v2191 = vsel %vm2123, %v2186, %v2190
        %v2192 = vshrl.u32 %v2092, 16
        %v2194 = vor.u32 %v2192, %v2190
        %v2196 = vshll.u32 %v2093, 16
        %v2198 = vrot.slane %v2196, 1
        %v2199 = vsel %vm2123, %v2194, %v2198
        %v2200 = vshrl.u32 %v2093, 16
        %v2202 = vor.u32 %v2200, %v2198
        %v2204 = vshll.u32 %v2094, 16
        %v2206 = vrot.slane %v2204, 1
        %v2207 = vsel %vm2123, %v2202, %v2206
        %v2208 = vshrl.u32 %v2094, 16
        %v2210 = vor.u32 %v2208, %v2206
        %v2212 = vshll.u32 %v2095, 16
        %v2214 = vrot.slane %v2212, 1
        %v2215 = vsel %vm2123, %v2210, %v2214
        %v2216 = vshrl.u32 %v2095, 16
        %v2218 = vor.u32 %v2216, %v2214
        %v2220 = vshll.u32 %v2096, 16
        %v2222 = vrot.slane %v2220, 1
        %v2223 = vsel %vm2123, %v2218, %v2222
        %v2224 = vshrl.u32 %v2096, 16
        %v2226 = vor.u32 %v2224, %v2222
        %v2228 = vshll.u32 %v2097, 16
        %v2230 = vrot.slane %v2228, 1
        %v2231 = vsel %vm2123, %v2226, %v2230
        %v2232 = vshrl.u32 %v2097, 16
        %v2234 = vor.u32 %v2232, %v2230
        %v2236 = vshll.u32 %v2098, 16
        %v2238 = vrot.slane %v2236, 1
        %v2239 = vsel %vm2123, %v2234, %v2238
        %v2240 = vshrl.u32 %v2098, 16
        %v2242 = vor.u32 %v2240, %v2238
        %v2244 = vshll.u32 %v2099, 16
        %v2246 = vrot.slane %v2244, 1
        %v2247 = vsel %vm2123, %v2242, %v2246
        %v2248 = vshrl.u32 %v2099, 16
        %v2250 = vor.u32 %v2248, %v2246
        %v2252 = vshll.u32 %v2100, 16
        %v2254 = vrot.slane %v2252, 1
        %v2255 = vsel %vm2123, %v2250, %v2254
        %v2256 = vshrl.u32 %v2100, 16
        %v2258 = vor.u32 %v2256, %v2254
        %v2260 = vshll.u32 %v2101, 16
        %v2262 = vrot.slane %v2260, 1
        %v2263 = vsel %vm2123, %v2258, %v2262
        %v2264 = vshrl.u32 %v2101, 16
        %v2266 = vor.u32 %v2264, %v2262
        %v2268 = vshll.u32 %v2122, 16
        %v2270 = vrot.slane %v2268, 1
        %v2271 = vsel %vm2123, %v2266, %v2270
        %v2290 = vld [vmem:[%s4] sm:$0xff]
        %v2291 = vld [vmem:[%s4 + $0x8] sm:$0xff]
        %v2292 = vld [vmem:[%s4 + $0x10] sm:$0xff]
        %v2293 = vld [vmem:[%s4 + $0x18] sm:$0xff]
        %v2294 = vld [vmem:[%s4 + $0x20] sm:$0xff]
        %v2295 = vld [vmem:[%s4 + $0x28] sm:$0xff]
        %v2296 = vld [vmem:[%s4 + $0x30] sm:$0xff]
        %v2297 = vld [vmem:[%s4 + $0x38] sm:$0xff]
        %v2298 = vld [vmem:[%s4 + $0x40] sm:$0xff]
        %v2299 = vld [vmem:[%s4 + $0x48] sm:$0xff]
        %v2300 = vld [vmem:[%s4 + $0x50] sm:$0xff]
        %v2301 = vld [vmem:[%s4 + $0x58] sm:$0xff]
        %v2302 = vld [vmem:[%s4 + $0x60] sm:$0xff]
        %v2303 = vld [vmem:[%s4 + $0x68] sm:$0xff]
        %v2304 = vld [vmem:[%s4 + $0x70] sm:$0xff]
        %v2305 = vld [vmem:[%s4 + $0x78] sm:$0xff]
        %v2306 = vld [vmem:[%s4 + $0x80] sm:$0xff]
        %v2307 = vld [vmem:[%s4 + $0x88] sm:$0xff]
        %v2308 = vld [vmem:[%s4 + $0x90] sm:$0xff]
        %v2309 = vld [vmem:[%s4 + $0x98] sm:$0xff]
        %v2310 = vld [vmem:[%s4 + $0xa0] sm:$0xff]
        %v2311 = vld [vmem:[%s4 + $0xa8] sm:$0xff]
        %v2312 = vld [vmem:[%s4 + $0xb0] sm:$0xff]
        %v2313 = vld [vmem:[%s4 + $0xb8] sm:$0xff]
        %v2314 = vld [vmem:[%s4 + $0xc0] sm:$0xff]
        %v2315 = vld [vmem:[%s4 + $0xc8] sm:$0xff]
        %v2316 = vld [vmem:[%s4 + $0xd0] sm:$0xff]
        %v2317 = vld [vmem:[%s4 + $0xd8] sm:$0xff]
        %v2318 = vld [vmem:[%s4 + $0xe0] sm:$0xff]
        %v2319 = vld [vmem:[%s4 + $0xe8] sm:$0xff]
        %v2320 = vld [vmem:[%s4 + $0xf0] sm:$0xff]
        %v2321 = vld [vmem:[%s4 + $0xf8] sm:$0xff]
        %v2322 = vld [vmem:[#allocation2] sm:$0xe]
        %v2323 = vld [vmem:[#allocation2 + $0x8] sm:$0xe]
        %v2324 = vld [vmem:[#allocation2 + $0x90] sm:$0xf]
        %v2325 = vld [vmem:[#allocation2 + $0x94] sm:$0xf]
        %v2326 = vld [vmem:[#allocation2 + $0x98] sm:$0x1]
        %v2328 = vunpack.c.l.b16 %v2322
        %v2329 = vpack.c.b16 %v2049, %v2328
        %v2334 = vunpack.c.l.b16 %v2323
        %v2335 = vunpack.c.l.b16 %v2324
        %v2336 = vunpack.c.l.b16 %v2325
        %v2337 = vunpack.c.l.b16 %v2326
        %v2338 = vpack.c.b16 %v2051, %v2334
        %v2339 = vpack.c.b16 %v2336, %v2335
        %v2340 = vpack.c.b16 %v2337, %v2337
        %v2341 = vld [vmem:[%s4 + $0x100] sm:$0xff]
        %v2342 = vld [vmem:[%s4 + $0x108] sm:$0xff]
        %v2343 = vld [vmem:[%s4 + $0x110] sm:$0xff]
        %v2344 = vld [vmem:[%s4 + $0x118] sm:$0xff]
        %v2345 = vld [vmem:[%s4 + $0x120] sm:$0xff]
        %v2346 = vld [vmem:[%s4 + $0x128] sm:$0xff]
        %v2347 = vld [vmem:[%s4 + $0x130] sm:$0xff]
        %v2348 = vld [vmem:[%s4 + $0x138] sm:$0xff]
        %v2349 = vld [vmem:[%s4 + $0x140] sm:$0xff]
        %v2350 = vld [vmem:[%s4 + $0x148] sm:$0xff]
        %v2351 = vld [vmem:[%s4 + $0x150] sm:$0xff]
        %v2352 = vld [vmem:[%s4 + $0x158] sm:$0xff]
        %v2353 = vld [vmem:[%s4 + $0x160] sm:$0xff]
        %v2354 = vld [vmem:[%s4 + $0x168] sm:$0xff]
        %v2355 = vld [vmem:[%s4 + $0x170] sm:$0xff]
        %v2356 = vld [vmem:[%s4 + $0x178] sm:$0xff]
        %v2357 = vld [vmem:[%s4 + $0x180] sm:$0xff]
        %v2358 = vld [vmem:[%s4 + $0x188] sm:$0xff]
        %v2359 = vld [vmem:[%s4 + $0x190] sm:$0xff]
        %v2360 = vld [vmem:[%s4 + $0x198] sm:$0xff]
        %v2361 = vld [vmem:[%s4 + $0x1a0] sm:$0xff]
        %v2362 = vld [vmem:[%s4 + $0x1a8] sm:$0xff]
        %v2363 = vld [vmem:[%s4 + $0x1b0] sm:$0xff]
        %v2364 = vld [vmem:[%s4 + $0x1b8] sm:$0xff]
        %v2365 = vld [vmem:[%s4 + $0x1c0] sm:$0xff]
        %v2366 = vld [vmem:[%s4 + $0x1c8] sm:$0xff]
        %v2367 = vld [vmem:[%s4 + $0x1d0] sm:$0xff]
        %v2368 = vld [vmem:[%s4 + $0x1d8] sm:$0xff]
        %v2369 = vld [vmem:[%s4 + $0x1e0] sm:$0xff]
        %v2370 = vld [vmem:[%s4 + $0x1e8] sm:$0xff]
        %v2371 = vld [vmem:[%s4 + $0x1f0] sm:$0xff]
        %v2372 = vld [vmem:[%s4 + $0x1f8] sm:$0xff]
        %vm2373 = vcmask 1046528
        %v2374 = vrot.slane %v2329, 1
        %v2375 = vrot.slane %v2085, 1
        %v2376 = vsel %vm2373, %v2374, %v2375
        %v2377 = vrot.slane %v2338, 1
        %v2378 = vrot.slane %v2086, 1
        %v2379 = vsel %vm2373, %v2377, %v2378
        %v2380 = vsel %vm2373, %v2375, %v2378
        %v2381 = vrot.slane %v2087, 1
        %v2382 = vsel %vm2373, %v2378, %v2381
        %v2383 = vrot.slane %v2088, 1
        %v2384 = vsel %vm2373, %v2381, %v2383
        %v2385 = vrot.slane %v2089, 1
        %v2386 = vsel %vm2373, %v2383, %v2385
        %v2387 = vrot.slane %v2090, 1
        %v2388 = vsel %vm2373, %v2385, %v2387
        %v2389 = vrot.slane %v2091, 1
        %v2390 = vsel %vm2373, %v2387, %v2389
        %v2391 = vrot.slane %v2092, 1
        %v2392 = vsel %vm2373, %v2389, %v2391
        %v2393 = vrot.slane %v2093, 1
        %v2394 = vsel %vm2373, %v2391, %v2393
        %v2395 = vrot.slane %v2094, 1
        %v2396 = vsel %vm2373, %v2393, %v2395
        %v2397 = vrot.slane %v2095, 1
        %v2398 = vsel %vm2373, %v2395, %v2397
        %v2399 = vrot.slane %v2096, 1
        %v2400 = vsel %vm2373, %v2397, %v2399
        %v2401 = vrot.slane %v2097, 1
        %v2402 = vsel %vm2373, %v2399, %v2401
        %v2403 = vrot.slane %v2098, 1
        %v2404 = vsel %vm2373, %v2401, %v2403
        %v2405 = vrot.slane %v2099, 1
        %v2406 = vsel %vm2373, %v2403, %v2405
        %v2407 = vrot.slane %v2100, 1
        %v2408 = vsel %vm2373, %v2405, %v2407
        %v2409 = vrot.slane %v2101, 1
        %v2410 = vsel %vm2373, %v2407, %v2409
        %v2411 = vrot.slane %v2339, 1
        %v2412 = vsel %vm2373, %v2409, %v2411
        %v2413 = vrot.slane %v2122, 1
        %v2414 = vsel %vm2373, %v2409, %v2413
        %v2415 = vrot.slane %v2340, 1
        %v2416 = vsel %vm2373, %v2411, %v2415
        %v2470 = vunpack.c.l.b16 %v2341
        %v2471 = vunpack.c.h.b16 %v2341
        %v2472 = vunpack.c.l.b16 %v2342
        %v2473 = vunpack.c.h.b16 %v2342
        %v2474 = vunpack.c.l.b16 %v2343
        %v2475 = vunpack.c.h.b16 %v2343
        %v2476 = vunpack.c.l.b16 %v2344
        %v2477 = vunpack.c.h.b16 %v2344
        %v2478 = vunpack.c.l.b16 %v2345
        %v2479 = vunpack.c.h.b16 %v2345
        %v2480 = vunpack.c.l.b16 %v2346
        %v2481 = vunpack.c.h.b16 %v2346
        %v2482 = vunpack.c.l.b16 %v2347
        %v2483 = vunpack.c.h.b16 %v2347
        %v2484 = vunpack.c.l.b16 %v2348
        %v2485 = vunpack.c.h.b16 %v2348
        %v2486 = vunpack.c.l.b16 %v2349
        %v2487 = vunpack.c.h.b16 %v2349
        %v2488 = vunpack.c.l.b16 %v2350
        %v2489 = vunpack.c.h.b16 %v2350
        %v2490 = vunpack.c.l.b16 %v2351
        %v2491 = vunpack.c.h.b16 %v2351
        %v2492 = vunpack.c.l.b16 %v2352
        %v2493 = vunpack.c.h.b16 %v2352
        %v2494 = vunpack.c.l.b16 %v2353
        %v2495 = vunpack.c.h.b16 %v2353
        %v2496 = vunpack.c.l.b16 %v2354
        %v2497 = vunpack.c.h.b16 %v2354
        %v2498 = vunpack.c.l.b16 %v2355
        %v2499 = vunpack.c.h.b16 %v2355
        %v2500 = vunpack.c.l.b16 %v2356
        %v2501 = vunpack.c.h.b16 %v2356
        %v2502 = vunpack.c.l.b16 %v2357
        %v2503 = vunpack.c.h.b16 %v2357
        %v2504 = vunpack.c.l.b16 %v2358
        %v2505 = vunpack.c.h.b16 %v2358
        %v2506 = vunpack.c.l.b16 %v2359
        %v2507 = vunpack.c.h.b16 %v2359
        %v2508 = vunpack.c.l.b16 %v2360
        %v2509 = vunpack.c.h.b16 %v2360
        %v2510 = vunpack.c.l.b16 %v2361
        %v2511 = vunpack.c.h.b16 %v2361
        %v2512 = vunpack.c.l.b16 %v2362
        %v2513 = vunpack.c.h.b16 %v2362
        %v2514 = vunpack.c.l.b16 %v2363
        %v2515 = vunpack.c.h.b16 %v2363
        %v2516 = vunpack.c.l.b16 %v2364
        %v2517 = vunpack.c.h.b16 %v2364
        %v2518 = vunpack.c.l.b16 %v2365
        %v2519 = vunpack.c.h.b16 %v2365
        %v2520 = vunpack.c.l.b16 %v2366
        %v2521 = vunpack.c.h.b16 %v2366
        %v2522 = vunpack.c.l.b16 %v2367
        %v2523 = vunpack.c.h.b16 %v2367
        %v2524 = vunpack.c.l.b16 %v2368
        %v2525 = vunpack.c.h.b16 %v2368
        %v2526 = vunpack.c.l.b16 %v2369
        %v2527 = vunpack.c.h.b16 %v2369
        %v2528 = vunpack.c.l.b16 %v2370
        %v2529 = vunpack.c.h.b16 %v2370
        %v2530 = vunpack.c.l.b16 %v2371
        %v2531 = vunpack.c.h.b16 %v2371
        %v2532 = vunpack.c.l.b16 %v2372
        %v2533 = vunpack.c.h.b16 %v2372
        %v2534 = vpack.c.b16 %v2472, %v2470
        %v2535 = vpack.c.b16 %v2473, %v2471
        %v2536 = vpack.c.b16 %v2476, %v2474
        %v2537 = vpack.c.b16 %v2477, %v2475
        %v2538 = vpack.c.b16 %v2480, %v2478
        %v2539 = vpack.c.b16 %v2481, %v2479
        %v2540 = vpack.c.b16 %v2484, %v2482
        %v2541 = vpack.c.b16 %v2485, %v2483
        %v2542 = vpack.c.b16 %v2488, %v2486
        %v2543 = vpack.c.b16 %v2489, %v2487
        %v2544 = vpack.c.b16 %v2492, %v2490
        %v2545 = vpack.c.b16 %v2493, %v2491
        %v2546 = vpack.c.b16 %v2496, %v2494
        %v2547 = vpack.c.b16 %v2497, %v2495
        %v2548 = vpack.c.b16 %v2500, %v2498
        %v2549 = vpack.c.b16 %v2501, %v2499
        %v2550 = vpack.c.b16 %v2504, %v2502
        %v2551 = vpack.c.b16 %v2505, %v2503
        %v2552 = vpack.c.b16 %v2508, %v2506
        %v2553 = vpack.c.b16 %v2509, %v2507
        %v2554 = vpack.c.b16 %v2512, %v2510
        %v2555 = vpack.c.b16 %v2513, %v2511
        %v2556 = vpack.c.b16 %v2516, %v2514
        %v2557 = vpack.c.b16 %v2517, %v2515
        %v2558 = vpack.c.b16 %v2520, %v2518
        %v2559 = vpack.c.b16 %v2521, %v2519
        %v2560 = vpack.c.b16 %v2524, %v2522
        %v2561 = vpack.c.b16 %v2525, %v2523
        %v2562 = vpack.c.b16 %v2528, %v2526
        %v2563 = vpack.c.b16 %v2529, %v2527
        %v2564 = vpack.c.b16 %v2532, %v2530
        %v2565 = vpack.c.b16 %v2533, %v2531
        %2598 = vmatprep.subr.bf16.mxu0 %v2549
        %2599 = vmatpush1.bf16.msra.mxu0 %v2548
        %2600 = vmatprep.subr.bf16.mxu0 %v2547
        %2601 = vmatpush1.bf16.msra.mxu0 %v2546
        %2602 = vmatprep.subr.bf16.mxu0 %v2545
        %2603 = vmatpush1.bf16.msra.mxu0 %v2544
        %2604 = vmatprep.subr.bf16.mxu0 %v2543
        %2605 = vmatpush1.bf16.msra.mxu0 %v2542
        %2606 = vmatprep.subr.bf16.mxu0 %v2541
        %2607 = vmatpush1.bf16.msra.mxu0 %v2540
        %2608 = vmatprep.subr.bf16.mxu0 %v2539
        %2609 = vmatpush1.bf16.msra.mxu0 %v2538
        %2610 = vmatprep.subr.bf16.mxu0 %v2537
        %2611 = vmatpush1.bf16.msra.mxu0 %v2536
        %2612 = vmatprep.subr.bf16.mxu0 %v2535
        %2613 = vmatpush1.bf16.msra.mxu0 %v2534
        %2614 = vmatprep.subr.bf16.mxu0 %v2565
        %2615 = vmatpush2.bf16.msra.mxu0 %v2564
        %2616 = vmatprep.subr.bf16.mxu0 %v2563
        %2617 = vmatpush2.bf16.msra.mxu0 %v2562
        %2618 = vmatprep.subr.bf16.mxu0 %v2561
        %2619 = vmatpush2.bf16.msra.mxu0 %v2560
        %2620 = vmatprep.subr.bf16.mxu0 %v2559
        %2621 = vmatpush2.bf16.msra.mxu0 %v2558
        %2622 = vmatprep.subr.bf16.mxu0 %v2557
        %2623 = vmatpush2.bf16.msra.mxu0 %v2556
        %2624 = vmatprep.subr.bf16.mxu0 %v2555
        %2625 = vmatpush2.bf16.msra.mxu0 %v2554
        %2626 = vmatprep.subr.bf16.mxu0 %v2553
        %2627 = vmatpush2.bf16.msra.mxu0 %v2552
        %2628 = vmatprep.subr.bf16.mxu0 %v2551
        %2629 = vmatpush2.bf16.msra.mxu0 %v2550
        %2630 = vmatprep.mubr.bf16.mxu0 %v2379
        %2631 = vmatmul.mubr.bf16.gmra.mxu0 %v2376
        %v2632 = vpop.f32.mrf.mxu0
        %v2633 = vadd.f32 0.0, %v2632
        %v2634 = vpop.f32.mrf.mxu0
        %v2635 = vadd.f32 0.0, %v2634
        %v2636 = vpop.f32.mrf.mxu0
        %v2637 = vadd.f32 0.0, %v2636
        %v2638 = vpop.f32.mrf.mxu0
        %v2639 = vadd.f32 0.0, %v2638
        %2640 = vmatprep.mubr.bf16.mxu0 %v2382
        %2641 = vmatmul.mubr.bf16.gmra.mxu0 %v2380
        %v2642 = vpop.f32.mrf.mxu0
        %v2643 = vadd.f32 0.0, %v2642
        %v2644 = vpop.f32.mrf.mxu0
        %v2645 = vadd.f32 0.0, %v2644
        %v2646 = vpop.f32.mrf.mxu0
        %v2647 = vadd.f32 0.0, %v2646
        %v2648 = vpop.f32.mrf.mxu0
        %v2649 = vadd.f32 0.0, %v2648
        %2650 = vmatprep.mubr.bf16.mxu0 %v2384
        %2651 = vmatmul.mubr.bf16.gmra.mxu0 %v2382
        %v2652 = vpop.f32.mrf.mxu0
        %v2653 = vadd.f32 0.0, %v2652
        %v2654 = vpop.f32.mrf.mxu0
        %v2655 = vadd.f32 0.0, %v2654
        %v2656 = vpop.f32.mrf.mxu0
        %v2657 = vadd.f32 0.0, %v2656
        %v2658 = vpop.f32.mrf.mxu0
        %v2659 = vadd.f32 0.0, %v2658
        %2660 = vmatprep.mubr.bf16.mxu0 %v2386
        %2661 = vmatmul.mubr.bf16.gmra.mxu0 %v2384
        %v2662 = vpop.f32.mrf.mxu0
        %v2663 = vadd.f32 0.0, %v2662
        %v2664 = vpop.f32.mrf.mxu0
        %v2665 = vadd.f32 0.0, %v2664
        %v2666 = vpop.f32.mrf.mxu0
        %v2667 = vadd.f32 0.0, %v2666
        %v2668 = vpop.f32.mrf.mxu0
        %v2669 = vadd.f32 0.0, %v2668
        %2670 = vmatprep.mubr.bf16.mxu0 %v2388
        %2671 = vmatmul.mubr.bf16.gmra.mxu0 %v2386
        %v2672 = vpop.f32.mrf.mxu0
        %v2673 = vadd.f32 0.0, %v2672
        %v2674 = vpop.f32.mrf.mxu0
        %v2675 = vadd.f32 0.0, %v2674
        %v2676 = vpop.f32.mrf.mxu0
        %v2677 = vadd.f32 0.0, %v2676
        %v2678 = vpop.f32.mrf.mxu0
        %v2679 = vadd.f32 0.0, %v2678
        %2680 = vmatprep.mubr.bf16.mxu0 %v2390
        %2681 = vmatmul.mubr.bf16.gmra.mxu0 %v2388
        %v2682 = vpop.f32.mrf.mxu0
        %v2683 = vadd.f32 0.0, %v2682
        %v2684 = vpop.f32.mrf.mxu0
        %v2685 = vadd.f32 0.0, %v2684
        %v2686 = vpop.f32.mrf.mxu0
        %v2687 = vadd.f32 0.0, %v2686
        %v2688 = vpop.f32.mrf.mxu0
        %v2689 = vadd.f32 0.0, %v2688
        %2690 = vmatprep.mubr.bf16.mxu0 %v2392
        %2691 = vmatmul.mubr.bf16.gmra.mxu0 %v2390
        %v2692 = vpop.f32.mrf.mxu0
        %v2693 = vadd.f32 0.0, %v2692
        %v2694 = vpop.f32.mrf.mxu0
        %v2695 = vadd.f32 0.0, %v2694
        %v2696 = vpop.f32.mrf.mxu0
        %v2697 = vadd.f32 0.0, %v2696
        %v2698 = vpop.f32.mrf.mxu0
        %v2699 = vadd.f32 0.0, %v2698
        %2700 = vmatprep.mubr.bf16.mxu0 %v2394
        %2701 = vmatmul.mubr.bf16.gmra.mxu0 %v2392
        %v2702 = vpop.f32.mrf.mxu0
        %v2703 = vadd.f32 0.0, %v2702
        %v2704 = vpop.f32.mrf.mxu0
        %v2705 = vadd.f32 0.0, %v2704
        %v2706 = vpop.f32.mrf.mxu0
        %v2707 = vadd.f32 0.0, %v2706
        %v2708 = vpop.f32.mrf.mxu0
        %v2709 = vadd.f32 0.0, %v2708
        %2710 = vmatprep.mubr.bf16.mxu0 %v2396
        %2711 = vmatmul.mubr.bf16.gmra.mxu0 %v2394
        %v2712 = vpop.f32.mrf.mxu0
        %v2713 = vadd.f32 0.0, %v2712
        %v2714 = vpop.f32.mrf.mxu0
        %v2715 = vadd.f32 0.0, %v2714
        %v2716 = vpop.f32.mrf.mxu0
        %v2717 = vadd.f32 0.0, %v2716
        %v2718 = vpop.f32.mrf.mxu0
        %v2719 = vadd.f32 0.0, %v2718
        %2720 = vmatprep.mubr.bf16.mxu0 %v2398
        %2721 = vmatmul.mubr.bf16.gmra.mxu0 %v2396
        %v2722 = vpop.f32.mrf.mxu0
        %v2723 = vadd.f32 0.0, %v2722
        %v2724 = vpop.f32.mrf.mxu0
        %v2725 = vadd.f32 0.0, %v2724
        %v2726 = vpop.f32.mrf.mxu0
        %v2727 = vadd.f32 0.0, %v2726
        %v2728 = vpop.f32.mrf.mxu0
        %v2729 = vadd.f32 0.0, %v2728
        %2730 = vmatprep.mubr.bf16.mxu0 %v2400
        %2731 = vmatmul.mubr.bf16.gmra.mxu0 %v2398
        %v2732 = vpop.f32.mrf.mxu0
        %v2733 = vadd.f32 0.0, %v2732
        %v2734 = vpop.f32.mrf.mxu0
        %v2735 = vadd.f32 0.0, %v2734
        %v2736 = vpop.f32.mrf.mxu0
        %v2737 = vadd.f32 0.0, %v2736
        %v2738 = vpop.f32.mrf.mxu0
        %v2739 = vadd.f32 0.0, %v2738
        %2740 = vmatprep.mubr.bf16.mxu0 %v2402
        %2741 = vmatmul.mubr.bf16.gmra.mxu0 %v2400
        %v2742 = vpop.f32.mrf.mxu0
        %v2743 = vadd.f32 0.0, %v2742
        %v2744 = vpop.f32.mrf.mxu0
        %v2745 = vadd.f32 0.0, %v2744
        %v2746 = vpop.f32.mrf.mxu0
        %v2747 = vadd.f32 0.0, %v2746
        %v2748 = vpop.f32.mrf.mxu0
        %v2749 = vadd.f32 0.0, %v2748
        %2750 = vmatprep.mubr.bf16.mxu0 %v2404
        %2751 = vmatmul.mubr.bf16.gmra.mxu0 %v2402
        %v2752 = vpop.f32.mrf.mxu0
        %v2753 = vadd.f32 0.0, %v2752
        %v2754 = vpop.f32.mrf.mxu0
        %v2755 = vadd.f32 0.0, %v2754
        %v2756 = vpop.f32.mrf.mxu0
        %v2757 = vadd.f32 0.0, %v2756
        %v2758 = vpop.f32.mrf.mxu0
        %v2759 = vadd.f32 0.0, %v2758
        %2760 = vmatprep.mubr.bf16.mxu0 %v2406
        %2761 = vmatmul.mubr.bf16.gmra.mxu0 %v2404
        %v2762 = vpop.f32.mrf.mxu0
        %v2763 = vadd.f32 0.0, %v2762
        %v2764 = vpop.f32.mrf.mxu0
        %v2765 = vadd.f32 0.0, %v2764
        %v2766 = vpop.f32.mrf.mxu0
        %v2767 = vadd.f32 0.0, %v2766
        %v2768 = vpop.f32.mrf.mxu0
        %v2769 = vadd.f32 0.0, %v2768
        %2770 = vmatprep.mubr.bf16.mxu0 %v2408
        %2771 = vmatmul.mubr.bf16.gmra.mxu0 %v2406
        %v2772 = vpop.f32.mrf.mxu0
        %v2773 = vadd.f32 0.0, %v2772
        %v2774 = vpop.f32.mrf.mxu0
        %v2775 = vadd.f32 0.0, %v2774
        %v2776 = vpop.f32.mrf.mxu0
        %v2777 = vadd.f32 0.0, %v2776
        %v2778 = vpop.f32.mrf.mxu0
        %v2779 = vadd.f32 0.0, %v2778
        %2780 = vmatprep.mubr.bf16.mxu0 %v2410
        %2781 = vmatmul.mubr.bf16.gmra.mxu0 %v2408
        %v2782 = vpop.f32.mrf.mxu0
        %v2783 = vadd.f32 0.0, %v2782
        %v2784 = vpop.f32.mrf.mxu0
        %v2785 = vadd.f32 0.0, %v2784
        %v2786 = vpop.f32.mrf.mxu0
        %v2787 = vadd.f32 0.0, %v2786
        %v2788 = vpop.f32.mrf.mxu0
        %v2789 = vadd.f32 0.0, %v2788
        %2790 = vmatprep.mubr.bf16.mxu0 %v2412
        %2791 = vmatmul.mubr.bf16.gmra.mxu0 %v2410
        %v2792 = vpop.f32.mrf.mxu0
        %v2793 = vadd.f32 0.0, %v2792
        %v2794 = vpop.f32.mrf.mxu0
        %v2795 = vadd.f32 0.0, %v2794
        %v2796 = vpop.f32.mrf.mxu0
        %v2797 = vadd.f32 0.0, %v2796
        %v2798 = vpop.f32.mrf.mxu0
        %v2799 = vadd.f32 0.0, %v2798
        %2800 = vmatprep.mubr.bf16.mxu0 %v2416
        %2801 = vmatmul.mubr.bf16.gmra.mxu0 %v2414
        %v2802 = vpop.f32.mrf.mxu0
        %v2803 = vadd.f32 0.0, %v2802
        %v2804 = vpop.f32.mrf.mxu0
        %v2805 = vadd.f32 0.0, %v2804
        %v2806 = vpop.f32.mrf.mxu0
        %v2807 = vadd.f32 0.0, %v2806
        %v2808 = vpop.f32.mrf.mxu0
        %v2809 = vadd.f32 0.0, %v2808
        %2810 = vdwg.mxu0
        %v2843 = vunpack.c.l.b16 %v2290
        %v2844 = vunpack.c.h.b16 %v2290
        %v2845 = vunpack.c.l.b16 %v2291
        %v2846 = vunpack.c.h.b16 %v2291
        %v2847 = vunpack.c.l.b16 %v2292
        %v2848 = vunpack.c.h.b16 %v2292
        %v2849 = vunpack.c.l.b16 %v2293
        %v2850 = vunpack.c.h.b16 %v2293
        %v2851 = vunpack.c.l.b16 %v2294
        %v2852 = vunpack.c.h.b16 %v2294
        %v2853 = vunpack.c.l.b16 %v2295
        %v2854 = vunpack.c.h.b16 %v2295
        %v2855 = vunpack.c.l.b16 %v2296
        %v2856 = vunpack.c.h.b16 %v2296
        %v2857 = vunpack.c.l.b16 %v2297
        %v2858 = vunpack.c.h.b16 %v2297
        %v2859 = vunpack.c.l.b16 %v2298
        %v2860 = vunpack.c.h.b16 %v2298
        %v2861 = vunpack.c.l.b16 %v2299
        %v2862 = vunpack.c.h.b16 %v2299
        %v2863 = vunpack.c.l.b16 %v2300
        %v2864 = vunpack.c.h.b16 %v2300
        %v2865 = vunpack.c.l.b16 %v2301
        %v2866 = vunpack.c.h.b16 %v2301
        %v2867 = vunpack.c.l.b16 %v2302
        %v2868 = vunpack.c.h.b16 %v2302
        %v2869 = vunpack.c.l.b16 %v2303
        %v2870 = vunpack.c.h.b16 %v2303
        %v2871 = vunpack.c.l.b16 %v2304
        %v2872 = vunpack.c.h.b16 %v2304
        %v2873 = vunpack.c.l.b16 %v2305
        %v2874 = vunpack.c.h.b16 %v2305
        %v2875 = vunpack.c.l.b16 %v2306
        %v2876 = vunpack.c.h.b16 %v2306
        %v2877 = vunpack.c.l.b16 %v2307
        %v2878 = vunpack.c.h.b16 %v2307
        %v2879 = vunpack.c.l.b16 %v2308
        %v2880 = vunpack.c.h.b16 %v2308
        %v2881 = vunpack.c.l.b16 %v2309
        %v2882 = vunpack.c.h.b16 %v2309
        %v2883 = vunpack.c.l.b16 %v2310
        %v2884 = vunpack.c.h.b16 %v2310
        %v2885 = vunpack.c.l.b16 %v2311
        %v2886 = vunpack.c.h.b16 %v2311
        %v2887 = vunpack.c.l.b16 %v2312
        %v2888 = vunpack.c.h.b16 %v2312
        %v2889 = vunpack.c.l.b16 %v2313
        %v2890 = vunpack.c.h.b16 %v2313
        %v2891 = vunpack.c.l.b16 %v2314
        %v2892 = vunpack.c.h.b16 %v2314
        %v2893 = vunpack.c.l.b16 %v2315
        %v2894 = vunpack.c.h.b16 %v2315
        %v2895 = vunpack.c.l.b16 %v2316
        %v2896 = vunpack.c.h.b16 %v2316
        %v2897 = vunpack.c.l.b16 %v2317
        %v2898 = vunpack.c.h.b16 %v2317
        %v2899 = vunpack.c.l.b16 %v2318
        %v2900 = vunpack.c.h.b16 %v2318
        %v2901 = vunpack.c.l.b16 %v2319
        %v2902 = vunpack.c.h.b16 %v2319
        %v2903 = vunpack.c.l.b16 %v2320
        %v2904 = vunpack.c.h.b16 %v2320
        %v2905 = vunpack.c.l.b16 %v2321
        %v2906 = vunpack.c.h.b16 %v2321
        %v2907 = vpack.c.b16 %v2845, %v2843
        %v2908 = vpack.c.b16 %v2846, %v2844
        %v2909 = vpack.c.b16 %v2849, %v2847
        %v2910 = vpack.c.b16 %v2850, %v2848
        %v2911 = vpack.c.b16 %v2853, %v2851
        %v2912 = vpack.c.b16 %v2854, %v2852
        %v2913 = vpack.c.b16 %v2857, %v2855
        %v2914 = vpack.c.b16 %v2858, %v2856
        %v2915 = vpack.c.b16 %v2861, %v2859
        %v2916 = vpack.c.b16 %v2862, %v2860
        %v2917 = vpack.c.b16 %v2865, %v2863
        %v2918 = vpack.c.b16 %v2866, %v2864
        %v2919 = vpack.c.b16 %v2869, %v2867
        %v2920 = vpack.c.b16 %v2870, %v2868
        %v2921 = vpack.c.b16 %v2873, %v2871
        %v2922 = vpack.c.b16 %v2874, %v2872
        %v2923 = vpack.c.b16 %v2877, %v2875
        %v2924 = vpack.c.b16 %v2878, %v2876
        %v2925 = vpack.c.b16 %v2881, %v2879
        %v2926 = vpack.c.b16 %v2882, %v2880
        %v2927 = vpack.c.b16 %v2885, %v2883
        %v2928 = vpack.c.b16 %v2886, %v2884
        %v2929 = vpack.c.b16 %v2889, %v2887
        %v2930 = vpack.c.b16 %v2890, %v2888
        %v2931 = vpack.c.b16 %v2893, %v2891
        %v2932 = vpack.c.b16 %v2894, %v2892
        %v2933 = vpack.c.b16 %v2897, %v2895
        %v2934 = vpack.c.b16 %v2898, %v2896
        %v2935 = vpack.c.b16 %v2901, %v2899
        %v2936 = vpack.c.b16 %v2902, %v2900
        %v2937 = vpack.c.b16 %v2905, %v2903
        %v2938 = vpack.c.b16 %v2906, %v2904
        %2971 = vmatprep.subr.bf16.mxu0 %v2922
        %2972 = vmatpush1.bf16.msra.mxu0 %v2921
        %2973 = vmatprep.subr.bf16.mxu0 %v2920
        %2974 = vmatpush1.bf16.msra.mxu0 %v2919
        %2975 = vmatprep.subr.bf16.mxu0 %v2918
        %2976 = vmatpush1.bf16.msra.mxu0 %v2917
        %2977 = vmatprep.subr.bf16.mxu0 %v2916
        %2978 = vmatpush1.bf16.msra.mxu0 %v2915
        %2979 = vmatprep.subr.bf16.mxu0 %v2914
        %2980 = vmatpush1.bf16.msra.mxu0 %v2913
        %2981 = vmatprep.subr.bf16.mxu0 %v2912
        %2982 = vmatpush1.bf16.msra.mxu0 %v2911
        %2983 = vmatprep.subr.bf16.mxu0 %v2910
        %2984 = vmatpush1.bf16.msra.mxu0 %v2909
        %2985 = vmatprep.subr.bf16.mxu0 %v2908
        %2986 = vmatpush1.bf16.msra.mxu0 %v2907
        %2987 = vmatprep.subr.bf16.mxu0 %v2938
        %2988 = vmatpush2.bf16.msra.mxu0 %v2937
        %2989 = vmatprep.subr.bf16.mxu0 %v2936
        %2990 = vmatpush2.bf16.msra.mxu0 %v2935
        %2991 = vmatprep.subr.bf16.mxu0 %v2934
        %2992 = vmatpush2.bf16.msra.mxu0 %v2933
        %2993 = vmatprep.subr.bf16.mxu0 %v2932
        %2994 = vmatpush2.bf16.msra.mxu0 %v2931
        %2995 = vmatprep.subr.bf16.mxu0 %v2930
        %2996 = vmatpush2.bf16.msra.mxu0 %v2929
        %2997 = vmatprep.subr.bf16.mxu0 %v2928
        %2998 = vmatpush2.bf16.msra.mxu0 %v2927
        %2999 = vmatprep.subr.bf16.mxu0 %v2926
        %3000 = vmatpush2.bf16.msra.mxu0 %v2925
        %3001 = vmatprep.subr.bf16.mxu0 %v2924
        %3002 = vmatpush2.bf16.msra.mxu0 %v2923
        %3003 = vmatprep.mubr.bf16.mxu0 %v2135
        %3004 = vmatmul.mubr.bf16.gmra.mxu0 %v2084
        %v3005 = vpop.f32.mrf.mxu0
        %v3006 = vadd.f32 %v2633, %v3005
        %v3007 = vpop.f32.mrf.mxu0
        %v3008 = vadd.f32 %v2635, %v3007
        %v3009 = vpop.f32.mrf.mxu0
        %v3010 = vadd.f32 %v2637, %v3009
        %v3011 = vpop.f32.mrf.mxu0
        %v3012 = vadd.f32 %v2639, %v3011
        %3013 = vmatprep.mubr.bf16.mxu0 %v2143
        %3014 = vmatmul.mubr.bf16.gmra.mxu0 %v2085
        %v3015 = vpop.f32.mrf.mxu0
        %v3016 = vadd.f32 %v2643, %v3015
        %v3017 = vpop.f32.mrf.mxu0
        %v3018 = vadd.f32 %v2645, %v3017
        %v3019 = vpop.f32.mrf.mxu0
        %v3020 = vadd.f32 %v2647, %v3019
        %v3021 = vpop.f32.mrf.mxu0
        %v3022 = vadd.f32 %v2649, %v3021
        %3023 = vmatprep.mubr.bf16.mxu0 %v2151
        %3024 = vmatmul.mubr.bf16.gmra.mxu0 %v2086
        %v3025 = vpop.f32.mrf.mxu0
        %v3026 = vadd.f32 %v2653, %v3025
        %v3027 = vpop.f32.mrf.mxu0
        %v3028 = vadd.f32 %v2655, %v3027
        %v3029 = vpop.f32.mrf.mxu0
        %v3030 = vadd.f32 %v2657, %v3029
        %v3031 = vpop.f32.mrf.mxu0
        %v3032 = vadd.f32 %v2659, %v3031
        %3033 = vmatprep.mubr.bf16.mxu0 %v2159
        %3034 = vmatmul.mubr.bf16.gmra.mxu0 %v2087
        %v3035 = vpop.f32.mrf.mxu0
        %v3036 = vadd.f32 %v2663, %v3035
        %v3037 = vpop.f32.mrf.mxu0
        %v3038 = vadd.f32 %v2665, %v3037
        %v3039 = vpop.f32.mrf.mxu0
        %v3040 = vadd.f32 %v2667, %v3039
        %v3041 = vpop.f32.mrf.mxu0
        %v3042 = vadd.f32 %v2669, %v3041
        %3043 = vmatprep.mubr.bf16.mxu0 %v2167
        %3044 = vmatmul.mubr.bf16.gmra.mxu0 %v2088
        %v3045 = vpop.f32.mrf.mxu0
        %v3046 = vadd.f32 %v2673, %v3045
        %v3047 = vpop.f32.mrf.mxu0
        %v3048 = vadd.f32 %v2675, %v3047
        %v3049 = vpop.f32.mrf.mxu0
        %v3050 = vadd.f32 %v2677, %v3049
        %v3051 = vpop.f32.mrf.mxu0
        %v3052 = vadd.f32 %v2679, %v3051
        %3053 = vmatprep.mubr.bf16.mxu0 %v2175
        %3054 = vmatmul.mubr.bf16.gmra.mxu0 %v2089
        %v3055 = vpop.f32.mrf.mxu0
        %v3056 = vadd.f32 %v2683, %v3055
        %v3057 = vpop.f32.mrf.mxu0
        %v3058 = vadd.f32 %v2685, %v3057
        %v3059 = vpop.f32.mrf.mxu0
        %v3060 = vadd.f32 %v2687, %v3059
        %v3061 = vpop.f32.mrf.mxu0
        %v3062 = vadd.f32 %v2689, %v3061
        %3063 = vmatprep.mubr.bf16.mxu0 %v2183
        %3064 = vmatmul.mubr.bf16.gmra.mxu0 %v2090
        %v3065 = vpop.f32.mrf.mxu0
        %v3066 = vadd.f32 %v2693, %v3065
        %v3067 = vpop.f32.mrf.mxu0
        %v3068 = vadd.f32 %v2695, %v3067
        %v3069 = vpop.f32.mrf.mxu0
        %v3070 = vadd.f32 %v2697, %v3069
        %v3071 = vpop.f32.mrf.mxu0
        %v3072 = vadd.f32 %v2699, %v3071
        %3073 = vmatprep.mubr.bf16.mxu0 %v2191
        %3074 = vmatmul.mubr.bf16.gmra.mxu0 %v2091
        %v3075 = vpop.f32.mrf.mxu0
        %v3076 = vadd.f32 %v2703, %v3075
        %v3077 = vpop.f32.mrf.mxu0
        %v3078 = vadd.f32 %v2705, %v3077
        %v3079 = vpop.f32.mrf.mxu0
        %v3080 = vadd.f32 %v2707, %v3079
        %v3081 = vpop.f32.mrf.mxu0
        %v3082 = vadd.f32 %v2709, %v3081
        %3083 = vmatprep.mubr.bf16.mxu0 %v2199
        %3084 = vmatmul.mubr.bf16.gmra.mxu0 %v2092
        %v3085 = vpop.f32.mrf.mxu0
        %v3086 = vadd.f32 %v2713, %v3085
        %v3087 = vpop.f32.mrf.mxu0
        %v3088 = vadd.f32 %v2715, %v3087
        %v3089 = vpop.f32.mrf.mxu0
        %v3090 = vadd.f32 %v2717, %v3089
        %v3091 = vpop.f32.mrf.mxu0
        %v3092 = vadd.f32 %v2719, %v3091
        %3093 = vmatprep.mubr.bf16.mxu0 %v2207
        %3094 = vmatmul.mubr.bf16.gmra.mxu0 %v2093
        %v3095 = vpop.f32.mrf.mxu0
        %v3096 = vadd.f32 %v2723, %v3095
        %v3097 = vpop.f32.mrf.mxu0
        %v3098 = vadd.f32 %v2725, %v3097
        %v3099 = vpop.f32.mrf.mxu0
        %v3100 = vadd.f32 %v2727, %v3099
        %v3101 = vpop.f32.mrf.mxu0
        %v3102 = vadd.f32 %v2729, %v3101
        %3103 = vmatprep.mubr.bf16.mxu0 %v2215
        %3104 = vmatmul.mubr.bf16.gmra.mxu0 %v2094
        %v3105 = vpop.f32.mrf.mxu0
        %v3106 = vadd.f32 %v2733, %v3105
        %v3107 = vpop.f32.mrf.mxu0
        %v3108 = vadd.f32 %v2735, %v3107
        %v3109 = vpop.f32.mrf.mxu0
        %v3110 = vadd.f32 %v2737, %v3109
        %v3111 = vpop.f32.mrf.mxu0
        %v3112 = vadd.f32 %v2739, %v3111
        %3113 = vmatprep.mubr.bf16.mxu0 %v2223
        %3114 = vmatmul.mubr.bf16.gmra.mxu0 %v2095
        %v3115 = vpop.f32.mrf.mxu0
        %v3116 = vadd.f32 %v2743, %v3115
        %v3117 = vpop.f32.mrf.mxu0
        %v3118 = vadd.f32 %v2745, %v3117
        %v3119 = vpop.f32.mrf.mxu0
        %v3120 = vadd.f32 %v2747, %v3119
        %v3121 = vpop.f32.mrf.mxu0
        %v3122 = vadd.f32 %v2749, %v3121
        %3123 = vmatprep.mubr.bf16.mxu0 %v2231
        %3124 = vmatmul.mubr.bf16.gmra.mxu0 %v2096
        %v3125 = vpop.f32.mrf.mxu0
        %v3126 = vadd.f32 %v2753, %v3125
        %v3127 = vpop.f32.mrf.mxu0
        %v3128 = vadd.f32 %v2755, %v3127
        %v3129 = vpop.f32.mrf.mxu0
        %v3130 = vadd.f32 %v2757, %v3129
        %v3131 = vpop.f32.mrf.mxu0
        %v3132 = vadd.f32 %v2759, %v3131
        %3133 = vmatprep.mubr.bf16.mxu0 %v2239
        %3134 = vmatmul.mubr.bf16.gmra.mxu0 %v2097
        %v3135 = vpop.f32.mrf.mxu0
        %v3136 = vadd.f32 %v2763, %v3135
        %v3137 = vpop.f32.mrf.mxu0
        %v3138 = vadd.f32 %v2765, %v3137
        %v3139 = vpop.f32.mrf.mxu0
        %v3140 = vadd.f32 %v2767, %v3139
        %v3141 = vpop.f32.mrf.mxu0
        %v3142 = vadd.f32 %v2769, %v3141
        %3143 = vmatprep.mubr.bf16.mxu0 %v2247
        %3144 = vmatmul.mubr.bf16.gmra.mxu0 %v2098
        %v3145 = vpop.f32.mrf.mxu0
        %v3146 = vadd.f32 %v2773, %v3145
        %v3147 = vpop.f32.mrf.mxu0
        %v3148 = vadd.f32 %v2775, %v3147
        %v3149 = vpop.f32.mrf.mxu0
        %v3150 = vadd.f32 %v2777, %v3149
        %v3151 = vpop.f32.mrf.mxu0
        %v3152 = vadd.f32 %v2779, %v3151
        %3153 = vmatprep.mubr.bf16.mxu0 %v2255
        %3154 = vmatmul.mubr.bf16.gmra.mxu0 %v2099
        %v3155 = vpop.f32.mrf.mxu0
        %v3156 = vadd.f32 %v2783, %v3155
        %v3157 = vpop.f32.mrf.mxu0
        %v3158 = vadd.f32 %v2785, %v3157
        %v3159 = vpop.f32.mrf.mxu0
        %v3160 = vadd.f32 %v2787, %v3159
        %v3161 = vpop.f32.mrf.mxu0
        %v3162 = vadd.f32 %v2789, %v3161
        %3163 = vmatprep.mubr.bf16.mxu0 %v2263
        %3164 = vmatmul.mubr.bf16.gmra.mxu0 %v2100
        %v3165 = vpop.f32.mrf.mxu0
        %v3166 = vadd.f32 %v2793, %v3165
        %v3167 = vpop.f32.mrf.mxu0
        %v3168 = vadd.f32 %v2795, %v3167
        %v3169 = vpop.f32.mrf.mxu0
        %v3170 = vadd.f32 %v2797, %v3169
        %v3171 = vpop.f32.mrf.mxu0
        %v3172 = vadd.f32 %v2799, %v3171
        %3173 = vmatprep.mubr.bf16.mxu0 %v2271
        %3174 = vmatmul.mubr.bf16.gmra.mxu0 %v2101
        %v3175 = vpop.f32.mrf.mxu0
        %v3176 = vadd.f32 %v2803, %v3175
        %v3177 = vpop.f32.mrf.mxu0
        %v3178 = vadd.f32 %v2805, %v3177
        %v3179 = vpop.f32.mrf.mxu0
        %v3180 = vadd.f32 %v2807, %v3179
        %v3181 = vpop.f32.mrf.mxu0
        %v3182 = vadd.f32 %v2809, %v3181
        %3183 = vdwg.mxu0
        %v3184 = vld [vmem:[#allocation2 + $0x98] sm:$0x3]
        %v3185 = vld [vmem:[#allocation2 + $0x8] sm:$0xc]
        %v3187 = vunpack.c.l.b16 %v3184
        %v3188 = vpack.c.b16 %v3187, %v3187
        %v3190 = vunpack.c.l.b16 %v3185
        %v3191 = vpack.c.b16 %v2051, %v3190
        %v3193 = vshrl.u32 %v3191, 16
        %v3195 = vshll.u32 %v3191, 16
        %v3197 = vrot.slane %v3195, 1
        %v3198 = vor.u32 %v3193, %v3197
        %v3199 = vsel %vm2123, %v3198, %v2142
        %v3201 = vshll.u32 %v2339, 16
        %v3203 = vrot.slane %v3201, 1
        %v3204 = vsel %vm2123, %v2266, %v3203
        %v3205 = vshrl.u32 %v2339, 16
        %v3207 = vor.u32 %v3205, %v3203
        %v3209 = vshll.u32 %v3188, 16
        %v3211 = vrot.slane %v3209, 1
        %v3212 = vsel %vm2123, %v3207, %v3211
        %v3213 = vshrl.u32 %v3188, 16
        %v3215 = vor.u32 %v3213, %v3211
        %v3216 = vld [vmem:[%s4 + $0x200] sm:$0xff]
        %v3217 = vld [vmem:[%s4 + $0x208] sm:$0xff]
        %v3218 = vld [vmem:[%s4 + $0x210] sm:$0xff]
        %v3219 = vld [vmem:[%s4 + $0x218] sm:$0xff]
        %v3220 = vld [vmem:[%s4 + $0x220] sm:$0xff]
        %v3221 = vld [vmem:[%s4 + $0x228] sm:$0xff]
        %v3222 = vld [vmem:[%s4 + $0x230] sm:$0xff]
        %v3223 = vld [vmem:[%s4 + $0x238] sm:$0xff]
        %v3224 = vld [vmem:[%s4 + $0x240] sm:$0xff]
        %v3225 = vld [vmem:[%s4 + $0x248] sm:$0xff]
        %v3226 = vld [vmem:[%s4 + $0x250] sm:$0xff]
        %v3227 = vld [vmem:[%s4 + $0x258] sm:$0xff]
        %v3228 = vld [vmem:[%s4 + $0x260] sm:$0xff]
        %v3229 = vld [vmem:[%s4 + $0x268] sm:$0xff]
        %v3230 = vld [vmem:[%s4 + $0x270] sm:$0xff]
        %v3231 = vld [vmem:[%s4 + $0x278] sm:$0xff]
        %v3232 = vld [vmem:[%s4 + $0x280] sm:$0xff]
        %v3233 = vld [vmem:[%s4 + $0x288] sm:$0xff]
        %v3234 = vld [vmem:[%s4 + $0x290] sm:$0xff]
        %v3235 = vld [vmem:[%s4 + $0x298] sm:$0xff]
        %v3236 = vld [vmem:[%s4 + $0x2a0] sm:$0xff]
        %v3237 = vld [vmem:[%s4 + $0x2a8] sm:$0xff]
        %v3238 = vld [vmem:[%s4 + $0x2b0] sm:$0xff]
        %v3239 = vld [vmem:[%s4 + $0x2b8] sm:$0xff]
        %v3240 = vld [vmem:[%s4 + $0x2c0] sm:$0xff]
        %v3241 = vld [vmem:[%s4 + $0x2c8] sm:$0xff]
        %v3242 = vld [vmem:[%s4 + $0x2d0] sm:$0xff]
        %v3243 = vld [vmem:[%s4 + $0x2d8] sm:$0xff]
        %v3244 = vld [vmem:[%s4 + $0x2e0] sm:$0xff]
        %v3245 = vld [vmem:[%s4 + $0x2e8] sm:$0xff]
        %v3246 = vld [vmem:[%s4 + $0x2f0] sm:$0xff]
        %v3247 = vld [vmem:[%s4 + $0x2f8] sm:$0xff]
        %vm3248 = vsmask.f32 6400
        %v3250 = vshrl.u32 %v2338, 16
        %v3252 = vrot.slane %v3250, 1
        %v3253 = vshll.u32 %v2338, 16
        %v3255 = vrot.slane %v3253, 2
        %v3256 = vor.u32 %v3252, %v3255
        %v3257 = vrot.slane %v2144, 1
        %v3258 = vrot.slane %v2140, 2
        %v3259 = vor.u32 %v3257, %v3258
        %v3260 = vsel %vm3248, %v3256, %v3259
        %v3262 = vshrl.u32 %v3199, 16
        %v3264 = vrot.slane %v3262, 1
        %v3265 = vshll.u32 %v3199, 16
        %v3267 = vrot.slane %v3265, 2
        %v3268 = vor.u32 %v3264, %v3267
        %v3270 = vshrl.u32 %v2151, 16
        %v3272 = vrot.slane %v3270, 1
        %v3273 = vshll.u32 %v2151, 16
        %v3275 = vrot.slane %v3273, 2
        %v3276 = vor.u32 %v3272, %v3275
        %v3277 = vsel %vm3248, %v3268, %v3276
        %v3278 = vrot.slane %v2152, 1
        %v3279 = vrot.slane %v2148, 2
        %v3280 = vor.u32 %v3278, %v3279
        %v3281 = vsel %vm3248, %v3259, %v3280
        %v3283 = vshrl.u32 %v2159, 16
        %v3285 = vrot.slane %v3283, 1
        %v3286 = vshll.u32 %v2159, 16
        %v3288 = vrot.slane %v3286, 2
        %v3289 = vor.u32 %v3285, %v3288
        %v3290 = vsel %vm3248, %v3276, %v3289
        %v3291 = vrot.slane %v2160, 1
        %v3292 = vrot.slane %v2156, 2
        %v3293 = vor.u32 %v3291, %v3292
        %v3294 = vsel %vm3248, %v3280, %v3293
        %v3296 = vshrl.u32 %v2167, 16
        %v3298 = vrot.slane %v3296, 1
        %v3299 = vshll.u32 %v2167, 16
        %v3301 = vrot.slane %v3299, 2
        %v3302 = vor.u32 %v3298, %v3301
        %v3303 = vsel %vm3248, %v3289, %v3302
        %v3304 = vrot.slane %v2168, 1
        %v3305 = vrot.slane %v2164, 2
        %v3306 = vor.u32 %v3304, %v3305
        %v3307 = vsel %vm3248, %v3293, %v3306
        %v3309 = vshrl.u32 %v2175, 16
        %v3311 = vrot.slane %v3309, 1
        %v3312 = vshll.u32 %v2175, 16
        %v3314 = vrot.slane %v3312, 2
        %v3315 = vor.u32 %v3311, %v3314
        %v3316 = vsel %vm3248, %v3302, %v3315
        %v3317 = vrot.slane %v2176, 1
        %v3318 = vrot.slane %v2172, 2
        %v3319 = vor.u32 %v3317, %v3318
        %v3320 = vsel %vm3248, %v3306, %v3319
        %v3322 = vshrl.u32 %v2183, 16
        %v3324 = vrot.slane %v3322, 1
        %v3325 = vshll.u32 %v2183, 16
        %v3327 = vrot.slane %v3325, 2
        %v3328 = vor.u32 %v3324, %v3327
        %v3329 = vsel %vm3248, %v3315, %v3328
        %v3330 = vrot.slane %v2184, 1
        %v3331 = vrot.slane %v2180, 2
        %v3332 = vor.u32 %v3330, %v3331
        %v3333 = vsel %vm3248, %v3319, %v3332
        %v3335 = vshrl.u32 %v2191, 16
        %v3337 = vrot.slane %v3335, 1
        %v3338 = vshll.u32 %v2191, 16
        %v3340 = vrot.slane %v3338, 2
        %v3341 = vor.u32 %v3337, %v3340
        %v3342 = vsel %vm3248, %v3328, %v3341
        %v3343 = vrot.slane %v2192, 1
        %v3344 = vrot.slane %v2188, 2
        %v3345 = vor.u32 %v3343, %v3344
        %v3346 = vsel %vm3248, %v3332, %v3345
        %v3348 = vshrl.u32 %v2199, 16
        %v3350 = vrot.slane %v3348, 1
        %v3351 = vshll.u32 %v2199, 16
        %v3353 = vrot.slane %v3351, 2
        %v3354 = vor.u32 %v3350, %v3353
        %v3355 = vsel %vm3248, %v3341, %v3354
        %v3356 = vrot.slane %v2200, 1
        %v3357 = vrot.slane %v2196, 2
        %v3358 = vor.u32 %v3356, %v3357
        %v3359 = vsel %vm3248, %v3345, %v3358
        %v3361 = vshrl.u32 %v2207, 16
        %v3363 = vrot.slane %v3361, 1
        %v3364 = vshll.u32 %v2207, 16
        %v3366 = vrot.slane %v3364, 2
        %v3367 = vor.u32 %v3363, %v3366
        %v3368 = vsel %vm3248, %v3354, %v3367
        %v3369 = vrot.slane %v2208, 1
        %v3370 = vrot.slane %v2204, 2
        %v3371 = vor.u32 %v3369, %v3370
        %v3372 = vsel %vm3248, %v3358, %v3371
        %v3374 = vshrl.u32 %v2215, 16
        %v3376 = vrot.slane %v3374, 1
        %v3377 = vshll.u32 %v2215, 16
        %v3379 = vrot.slane %v3377, 2
        %v3380 = vor.u32 %v3376, %v3379
        %v3381 = vsel %vm3248, %v3367, %v3380
        %v3382 = vrot.slane %v2216, 1
        %v3383 = vrot.slane %v2212, 2
        %v3384 = vor.u32 %v3382, %v3383
        %v3385 = vsel %vm3248, %v3371, %v3384
        %v3387 = vshrl.u32 %v2223, 16
        %v3389 = vrot.slane %v3387, 1
        %v3390 = vshll.u32 %v2223, 16
        %v3392 = vrot.slane %v3390, 2
        %v3393 = vor.u32 %v3389, %v3392
        %v3394 = vsel %vm3248, %v3380, %v3393
        %v3395 = vrot.slane %v2224, 1
        %v3396 = vrot.slane %v2220, 2
        %v3397 = vor.u32 %v3395, %v3396
        %v3398 = vsel %vm3248, %v3384, %v3397
        %v3400 = vshrl.u32 %v2231, 16
        %v3402 = vrot.slane %v3400, 1
        %v3403 = vshll.u32 %v2231, 16
        %v3405 = vrot.slane %v3403, 2
        %v3406 = vor.u32 %v3402, %v3405
        %v3407 = vsel %vm3248, %v3393, %v3406
        %v3408 = vrot.slane %v2232, 1
        %v3409 = vrot.slane %v2228, 2
        %v3410 = vor.u32 %v3408, %v3409
        %v3411 = vsel %vm3248, %v3397, %v3410
        %v3413 = vshrl.u32 %v2239, 16
        %v3415 = vrot.slane %v3413, 1
        %v3416 = vshll.u32 %v2239, 16
        %v3418 = vrot.slane %v3416, 2
        %v3419 = vor.u32 %v3415, %v3418
        %v3420 = vsel %vm3248, %v3406, %v3419
        %v3421 = vrot.slane %v2240, 1
        %v3422 = vrot.slane %v2236, 2
        %v3423 = vor.u32 %v3421, %v3422
        %v3424 = vsel %vm3248, %v3410, %v3423
        %v3426 = vshrl.u32 %v2247, 16
        %v3428 = vrot.slane %v3426, 1
        %v3429 = vshll.u32 %v2247, 16
        %v3431 = vrot.slane %v3429, 2
        %v3432 = vor.u32 %v3428, %v3431
        %v3433 = vsel %vm3248, %v3419, %v3432
        %v3434 = vrot.slane %v2248, 1
        %v3435 = vrot.slane %v2244, 2
        %v3436 = vor.u32 %v3434, %v3435
        %v3437 = vsel %vm3248, %v3423, %v3436
        %v3439 = vshrl.u32 %v2255, 16
        %v3441 = vrot.slane %v3439, 1
        %v3442 = vshll.u32 %v2255, 16
        %v3444 = vrot.slane %v3442, 2
        %v3445 = vor.u32 %v3441, %v3444
        %v3446 = vsel %vm3248, %v3432, %v3445
        %v3447 = vrot.slane %v2256, 1
        %v3448 = vrot.slane %v2252, 2
        %v3449 = vor.u32 %v3447, %v3448
        %v3450 = vsel %vm3248, %v3436, %v3449
        %v3452 = vshrl.u32 %v2263, 16
        %v3454 = vrot.slane %v3452, 1
        %v3455 = vshll.u32 %v2263, 16
        %v3457 = vrot.slane %v3455, 2
        %v3458 = vor.u32 %v3454, %v3457
        %v3459 = vsel %vm3248, %v3445, %v3458
        %v3460 = vrot.slane %v2264, 1
        %v3461 = vrot.slane %v2260, 2
        %v3462 = vor.u32 %v3460, %v3461
        %v3463 = vsel %vm3248, %v3449, %v3462
        %v3465 = vshrl.u32 %v3204, 16
        %v3467 = vrot.slane %v3465, 1
        %v3468 = vshll.u32 %v3204, 16
        %v3470 = vrot.slane %v3468, 2
        %v3471 = vor.u32 %v3467, %v3470
        %v3472 = vsel %vm3248, %v3458, %v3471
        %v3473 = vrot.slane %v3205, 1
        %v3474 = vrot.slane %v3201, 2
        %v3475 = vor.u32 %v3473, %v3474
        %v3476 = vsel %vm3248, %v3462, %v3475
        %v3478 = vshrl.u32 %v3212, 16
        %v3480 = vrot.slane %v3478, 1
        %v3481 = vshll.u32 %v3212, 16
        %v3483 = vrot.slane %v3481, 2
        %v3484 = vor.u32 %v3480, %v3483
        %v3485 = vsel %vm3248, %v3471, %v3484
        %v3486 = vrot.slane %v3213, 1
        %v3487 = vrot.slane %v3209, 2
        %v3488 = vor.u32 %v3486, %v3487
        %v3489 = vsel %vm3248, %v3475, %v3488
        %v3491 = vshrl.u32 %v3215, 16
        %v3493 = vrot.slane %v3491, 1
        %v3494 = vshll.u32 %v3215, 16
        %v3496 = vrot.slane %v3494, 2
        %v3497 = vor.u32 %v3493, %v3496
        %v3498 = vsel %vm3248, %v3484, %v3497
        %v3567 = vunpack.c.l.b16 %v3216
        %v3568 = vunpack.c.h.b16 %v3216
        %v3569 = vunpack.c.l.b16 %v3217
        %v3570 = vunpack.c.h.b16 %v3217
        %v3571 = vunpack.c.l.b16 %v3218
        %v3572 = vunpack.c.h.b16 %v3218
        %v3573 = vunpack.c.l.b16 %v3219
        %v3574 = vunpack.c.h.b16 %v3219
        %v3575 = vunpack.c.l.b16 %v3220
        %v3576 = vunpack.c.h.b16 %v3220
        %v3577 = vunpack.c.l.b16 %v3221
        %v3578 = vunpack.c.h.b16 %v3221
        %v3579 = vunpack.c.l.b16 %v3222
        %v3580 = vunpack.c.h.b16 %v3222
        %v3581 = vunpack.c.l.b16 %v3223
        %v3582 = vunpack.c.h.b16 %v3223
        %v3583 = vunpack.c.l.b16 %v3224
        %v3584 = vunpack.c.h.b16 %v3224
        %v3585 = vunpack.c.l.b16 %v3225
        %v3586 = vunpack.c.h.b16 %v3225
        %v3587 = vunpack.c.l.b16 %v3226
        %v3588 = vunpack.c.h.b16 %v3226
        %v3589 = vunpack.c.l.b16 %v3227
        %v3590 = vunpack.c.h.b16 %v3227
        %v3591 = vunpack.c.l.b16 %v3228
        %v3592 = vunpack.c.h.b16 %v3228
        %v3593 = vunpack.c.l.b16 %v3229
        %v3594 = vunpack.c.h.b16 %v3229
        %v3595 = vunpack.c.l.b16 %v3230
        %v3596 = vunpack.c.h.b16 %v3230
        %v3597 = vunpack.c.l.b16 %v3231
        %v3598 = vunpack.c.h.b16 %v3231
        %v3599 = vunpack.c.l.b16 %v3232
        %v3600 = vunpack.c.h.b16 %v3232
        %v3601 = vunpack.c.l.b16 %v3233
        %v3602 = vunpack.c.h.b16 %v3233
        %v3603 = vunpack.c.l.b16 %v3234
        %v3604 = vunpack.c.h.b16 %v3234
        %v3605 = vunpack.c.l.b16 %v3235
        %v3606 = vunpack.c.h.b16 %v3235
        %v3607 = vunpack.c.l.b16 %v3236
        %v3608 = vunpack.c.h.b16 %v3236
        %v3609 = vunpack.c.l.b16 %v3237
        %v3610 = vunpack.c.h.b16 %v3237
        %v3611 = vunpack.c.l.b16 %v3238
        %v3612 = vunpack.c.h.b16 %v3238
        %v3613 = vunpack.c.l.b16 %v3239
        %v3614 = vunpack.c.h.b16 %v3239
        %v3615 = vunpack.c.l.b16 %v3240
        %v3616 = vunpack.c.h.b16 %v3240
        %v3617 = vunpack.c.l.b16 %v3241
        %v3618 = vunpack.c.h.b16 %v3241
        %v3619 = vunpack.c.l.b16 %v3242
        %v3620 = vunpack.c.h.b16 %v3242
        %v3621 = vunpack.c.l.b16 %v3243
        %v3622 = vunpack.c.h.b16 %v3243
        %v3623 = vunpack.c.l.b16 %v3244
        %v3624 = vunpack.c.h.b16 %v3244
        %v3625 = vunpack.c.l.b16 %v3245
        %v3626 = vunpack.c.h.b16 %v3245
        %v3627 = vunpack.c.l.b16 %v3246
        %v3628 = vunpack.c.h.b16 %v3246
        %v3629 = vunpack.c.l.b16 %v3247
        %v3630 = vunpack.c.h.b16 %v3247
        %v3631 = vpack.c.b16 %v3569, %v3567
        %v3632 = vpack.c.b16 %v3570, %v3568
        %v3633 = vpack.c.b16 %v3573, %v3571
        %v3634 = vpack.c.b16 %v3574, %v3572
        %v3635 = vpack.c.b16 %v3577, %v3575
        %v3636 = vpack.c.b16 %v3578, %v3576
        %v3637 = vpack.c.b16 %v3581, %v3579
        %v3638 = vpack.c.b16 %v3582, %v3580
        %v3639 = vpack.c.b16 %v3585, %v3583
        %v3640 = vpack.c.b16 %v3586, %v3584
        %v3641 = vpack.c.b16 %v3589, %v3587
        %v3642 = vpack.c.b16 %v3590, %v3588
        %v3643 = vpack.c.b16 %v3593, %v3591
        %v3644 = vpack.c.b16 %v3594, %v3592
        %v3645 = vpack.c.b16 %v3597, %v3595
        %v3646 = vpack.c.b16 %v3598, %v3596
        %v3647 = vpack.c.b16 %v3601, %v3599
        %v3648 = vpack.c.b16 %v3602, %v3600
        %v3649 = vpack.c.b16 %v3605, %v3603
        %v3650 = vpack.c.b16 %v3606, %v3604
        %v3651 = vpack.c.b16 %v3609, %v3607
        %v3652 = vpack.c.b16 %v3610, %v3608
        %v3653 = vpack.c.b16 %v3613, %v3611
        %v3654 = vpack.c.b16 %v3614, %v3612
        %v3655 = vpack.c.b16 %v3617, %v3615
        %v3656 = vpack.c.b16 %v3618, %v3616
        %v3657 = vpack.c.b16 %v3621, %v3619
        %v3658 = vpack.c.b16 %v3622, %v3620
        %v3659 = vpack.c.b16 %v3625, %v3623
        %v3660 = vpack.c.b16 %v3626, %v3624
        %v3661 = vpack.c.b16 %v3629, %v3627
        %v3662 = vpack.c.b16 %v3630, %v3628
        %3695 = vmatprep.subr.bf16.mxu0 %v3646
        %3696 = vmatpush1.bf16.msra.mxu0 %v3645
        %3697 = vmatprep.subr.bf16.mxu0 %v3644
        %3698 = vmatpush1.bf16.msra.mxu0 %v3643
        %3699 = vmatprep.subr.bf16.mxu0 %v3642
        %3700 = vmatpush1.bf16.msra.mxu0 %v3641
        %3701 = vmatprep.subr.bf16.mxu0 %v3640
        %3702 = vmatpush1.bf16.msra.mxu0 %v3639
        %3703 = vmatprep.subr.bf16.mxu0 %v3638
        %3704 = vmatpush1.bf16.msra.mxu0 %v3637
        %3705 = vmatprep.subr.bf16.mxu0 %v3636
        %3706 = vmatpush1.bf16.msra.mxu0 %v3635
        %3707 = vmatprep.subr.bf16.mxu0 %v3634
        %3708 = vmatpush1.bf16.msra.mxu0 %v3633
        %3709 = vmatprep.subr.bf16.mxu0 %v3632
        %3710 = vmatpush1.bf16.msra.mxu0 %v3631
        %3711 = vmatprep.subr.bf16.mxu0 %v3662
        %3712 = vmatpush2.bf16.msra.mxu0 %v3661
        %3713 = vmatprep.subr.bf16.mxu0 %v3660
        %3714 = vmatpush2.bf16.msra.mxu0 %v3659
        %3715 = vmatprep.subr.bf16.mxu0 %v3658
        %3716 = vmatpush2.bf16.msra.mxu0 %v3657
        %3717 = vmatprep.subr.bf16.mxu0 %v3656
        %3718 = vmatpush2.bf16.msra.mxu0 %v3655
        %3719 = vmatprep.subr.bf16.mxu0 %v3654
        %3720 = vmatpush2.bf16.msra.mxu0 %v3653
        %3721 = vmatprep.subr.bf16.mxu0 %v3652
        %3722 = vmatpush2.bf16.msra.mxu0 %v3651
        %3723 = vmatprep.subr.bf16.mxu0 %v3650
        %3724 = vmatpush2.bf16.msra.mxu0 %v3649
        %3725 = vmatprep.subr.bf16.mxu0 %v3648
        %3726 = vmatpush2.bf16.msra.mxu0 %v3647
        %3727 = vmatprep.mubr.bf16.mxu0 %v3277
        %3728 = vmatmul.mubr.bf16.gmra.mxu0 %v3260
        %v3729 = vpop.f32.mrf.mxu0
        %v3730 = vadd.f32 0.0, %v3729
        %v3731 = vpop.f32.mrf.mxu0
        %v3732 = vadd.f32 0.0, %v3731
        %v3733 = vpop.f32.mrf.mxu0
        %v3734 = vadd.f32 0.0, %v3733
        %v3735 = vpop.f32.mrf.mxu0
        %v3736 = vadd.f32 0.0, %v3735
        %3737 = vmatprep.mubr.bf16.mxu0 %v3290
        %3738 = vmatmul.mubr.bf16.gmra.mxu0 %v3281
        %v3739 = vpop.f32.mrf.mxu0
        %v3740 = vadd.f32 0.0, %v3739
        %v3741 = vpop.f32.mrf.mxu0
        %v3742 = vadd.f32 0.0, %v3741
        %v3743 = vpop.f32.mrf.mxu0
        %v3744 = vadd.f32 0.0, %v3743
        %v3745 = vpop.f32.mrf.mxu0
        %v3746 = vadd.f32 0.0, %v3745
        %3747 = vmatprep.mubr.bf16.mxu0 %v3303
        %3748 = vmatmul.mubr.bf16.gmra.mxu0 %v3294
        %v3749 = vpop.f32.mrf.mxu0
        %v3750 = vadd.f32 0.0, %v3749
        %v3751 = vpop.f32.mrf.mxu0
        %v3752 = vadd.f32 0.0, %v3751
        %v3753 = vpop.f32.mrf.mxu0
        %v3754 = vadd.f32 0.0, %v3753
        %v3755 = vpop.f32.mrf.mxu0
        %v3756 = vadd.f32 0.0, %v3755
        %3757 = vmatprep.mubr.bf16.mxu0 %v3316
        %3758 = vmatmul.mubr.bf16.gmra.mxu0 %v3307
        %v3759 = vpop.f32.mrf.mxu0
        %v3760 = vadd.f32 0.0, %v3759
        %v3761 = vpop.f32.mrf.mxu0
        %v3762 = vadd.f32 0.0, %v3761
        %v3763 = vpop.f32.mrf.mxu0
        %v3764 = vadd.f32 0.0, %v3763
        %v3765 = vpop.f32.mrf.mxu0
        %v3766 = vadd.f32 0.0, %v3765
        %3767 = vmatprep.mubr.bf16.mxu0 %v3329
        %3768 = vmatmul.mubr.bf16.gmra.mxu0 %v3320
        %v3769 = vpop.f32.mrf.mxu0
        %v3770 = vadd.f32 0.0, %v3769
        %v3771 = vpop.f32.mrf.mxu0
        %v3772 = vadd.f32 0.0, %v3771
        %v3773 = vpop.f32.mrf.mxu0
        %v3774 = vadd.f32 0.0, %v3773
        %v3775 = vpop.f32.mrf.mxu0
        %v3776 = vadd.f32 0.0, %v3775
        %3777 = vmatprep.mubr.bf16.mxu0 %v3342
        %3778 = vmatmul.mubr.bf16.gmra.mxu0 %v3333
        %v3779 = vpop.f32.mrf.mxu0
        %v3780 = vadd.f32 0.0, %v3779
        %v3781 = vpop.f32.mrf.mxu0
        %v3782 = vadd.f32 0.0, %v3781
        %v3783 = vpop.f32.mrf.mxu0
        %v3784 = vadd.f32 0.0, %v3783
        %v3785 = vpop.f32.mrf.mxu0
        %v3786 = vadd.f32 0.0, %v3785
        %3787 = vmatprep.mubr.bf16.mxu0 %v3355
        %3788 = vmatmul.mubr.bf16.gmra.mxu0 %v3346
        %v3789 = vpop.f32.mrf.mxu0
        %v3790 = vadd.f32 0.0, %v3789
        %v3791 = vpop.f32.mrf.mxu0
        %v3792 = vadd.f32 0.0, %v3791
        %v3793 = vpop.f32.mrf.mxu0
        %v3794 = vadd.f32 0.0, %v3793
        %v3795 = vpop.f32.mrf.mxu0
        %v3796 = vadd.f32 0.0, %v3795
        %3797 = vmatprep.mubr.bf16.mxu0 %v3368
        %3798 = vmatmul.mubr.bf16.gmra.mxu0 %v3359
        %v3799 = vpop.f32.mrf.mxu0
        %v3800 = vadd.f32 0.0, %v3799
        %v3801 = vpop.f32.mrf.mxu0
        %v3802 = vadd.f32 0.0, %v3801
        %v3803 = vpop.f32.mrf.mxu0
        %v3804 = vadd.f32 0.0, %v3803
        %v3805 = vpop.f32.mrf.mxu0
        %v3806 = vadd.f32 0.0, %v3805
        %3807 = vmatprep.mubr.bf16.mxu0 %v3381
        %3808 = vmatmul.mubr.bf16.gmra.mxu0 %v3372
        %v3809 = vpop.f32.mrf.mxu0
        %v3810 = vadd.f32 0.0, %v3809
        %v3811 = vpop.f32.mrf.mxu0
        %v3812 = vadd.f32 0.0, %v3811
        %v3813 = vpop.f32.mrf.mxu0
        %v3814 = vadd.f32 0.0, %v3813
        %v3815 = vpop.f32.mrf.mxu0
        %v3816 = vadd.f32 0.0, %v3815
        %3817 = vmatprep.mubr.bf16.mxu0 %v3394
        %3818 = vmatmul.mubr.bf16.gmra.mxu0 %v3385
        %v3819 = vpop.f32.mrf.mxu0
        %v3820 = vadd.f32 0.0, %v3819
        %v3821 = vpop.f32.mrf.mxu0
        %v3822 = vadd.f32 0.0, %v3821
        %v3823 = vpop.f32.mrf.mxu0
        %v3824 = vadd.f32 0.0, %v3823
        %v3825 = vpop.f32.mrf.mxu0
        %v3826 = vadd.f32 0.0, %v3825
        %3827 = vmatprep.mubr.bf16.mxu0 %v3407
        %3828 = vmatmul.mubr.bf16.gmra.mxu0 %v3398
        %v3829 = vpop.f32.mrf.mxu0
        %v3830 = vadd.f32 0.0, %v3829
        %v3831 = vpop.f32.mrf.mxu0
        %v3832 = vadd.f32 0.0, %v3831
        %v3833 = vpop.f32.mrf.mxu0
        %v3834 = vadd.f32 0.0, %v3833
        %v3835 = vpop.f32.mrf.mxu0
        %v3836 = vadd.f32 0.0, %v3835
        %3837 = vmatprep.mubr.bf16.mxu0 %v3420
        %3838 = vmatmul.mubr.bf16.gmra.mxu0 %v3411
        %v3839 = vpop.f32.mrf.mxu0
        %v3840 = vadd.f32 0.0, %v3839
        %v3841 = vpop.f32.mrf.mxu0
        %v3842 = vadd.f32 0.0, %v3841
        %v3843 = vpop.f32.mrf.mxu0
        %v3844 = vadd.f32 0.0, %v3843
        %v3845 = vpop.f32.mrf.mxu0
        %v3846 = vadd.f32 0.0, %v3845
        %3847 = vmatprep.mubr.bf16.mxu0 %v3433
        %3848 = vmatmul.mubr.bf16.gmra.mxu0 %v3424
        %v3849 = vpop.f32.mrf.mxu0
        %v3850 = vadd.f32 0.0, %v3849
        %v3851 = vpop.f32.mrf.mxu0
        %v3852 = vadd.f32 0.0, %v3851
        %v3853 = vpop.f32.mrf.mxu0
        %v3854 = vadd.f32 0.0, %v3853
        %v3855 = vpop.f32.mrf.mxu0
        %v3856 = vadd.f32 0.0, %v3855
        %3857 = vmatprep.mubr.bf16.mxu0 %v3446
        %3858 = vmatmul.mubr.bf16.gmra.mxu0 %v3437
        %v3859 = vpop.f32.mrf.mxu0
        %v3860 = vadd.f32 0.0, %v3859
        %v3861 = vpop.f32.mrf.mxu0
        %v3862 = vadd.f32 0.0, %v3861
        %v3863 = vpop.f32.mrf.mxu0
        %v3864 = vadd.f32 0.0, %v3863
        %v3865 = vpop.f32.mrf.mxu0
        %v3866 = vadd.f32 0.0, %v3865
        %3867 = vmatprep.mubr.bf16.mxu0 %v3459
        %3868 = vmatmul.mubr.bf16.gmra.mxu0 %v3450
        %v3869 = vpop.f32.mrf.mxu0
        %v3870 = vadd.f32 0.0, %v3869
        %v3871 = vpop.f32.mrf.mxu0
        %v3872 = vadd.f32 0.0, %v3871
        %v3873 = vpop.f32.mrf.mxu0
        %v3874 = vadd.f32 0.0, %v3873
        %v3875 = vpop.f32.mrf.mxu0
        %v3876 = vadd.f32 0.0, %v3875
        %3877 = vmatprep.mubr.bf16.mxu0 %v3472
        %3878 = vmatmul.mubr.bf16.gmra.mxu0 %v3463
        %v3879 = vpop.f32.mrf.mxu0
        %v3880 = vadd.f32 0.0, %v3879
        %v3881 = vpop.f32.mrf.mxu0
        %v3882 = vadd.f32 0.0, %v3881
        %v3883 = vpop.f32.mrf.mxu0
        %v3884 = vadd.f32 0.0, %v3883
        %v3885 = vpop.f32.mrf.mxu0
        %v3886 = vadd.f32 0.0, %v3885
        %3887 = vmatprep.mubr.bf16.mxu0 %v3485
        %3888 = vmatmul.mubr.bf16.gmra.mxu0 %v3476
        %v3889 = vpop.f32.mrf.mxu0
        %v3890 = vadd.f32 0.0, %v3889
        %v3891 = vpop.f32.mrf.mxu0
        %v3892 = vadd.f32 0.0, %v3891
        %v3893 = vpop.f32.mrf.mxu0
        %v3894 = vadd.f32 0.0, %v3893
        %v3895 = vpop.f32.mrf.mxu0
        %v3896 = vadd.f32 0.0, %v3895
        %3897 = vmatprep.mubr.bf16.mxu0 %v3498
        %3898 = vmatmul.mubr.bf16.gmra.mxu0 %v3489
        %v3899 = vpop.f32.mrf.mxu0
        %v3900 = vadd.f32 0.0, %v3899
        %v3901 = vpop.f32.mrf.mxu0
        %v3902 = vadd.f32 0.0, %v3901
        %v3903 = vpop.f32.mrf.mxu0
        %v3904 = vadd.f32 0.0, %v3903
        %v3905 = vpop.f32.mrf.mxu0
        %v3906 = vadd.f32 0.0, %v3905
        %3907 = vdwg.mxu0
        %v3908 = vadd.f32 %v3006, %v3730
        %v3909 = vadd.f32 %v3008, %v3732
        %v3910 = vadd.f32 %v3010, %v3734
        %v3911 = vadd.f32 %v3012, %v3736
        %v3912 = vadd.f32 %v3016, %v3740
        %v3913 = vadd.f32 %v3018, %v3742
        %v3914 = vadd.f32 %v3020, %v3744
        %v3915 = vadd.f32 %v3022, %v3746
        %v3916 = vadd.f32 %v3026, %v3750
        %v3917 = vadd.f32 %v3028, %v3752
        %v3918 = vadd.f32 %v3030, %v3754
        %v3919 = vadd.f32 %v3032, %v3756
        %v3920 = vadd.f32 %v3036, %v3760
        %v3921 = vadd.f32 %v3038, %v3762
        %v3922 = vadd.f32 %v3040, %v3764
        %v3923 = vadd.f32 %v3042, %v3766
        %v3924 = vadd.f32 %v3046, %v3770
        %v3925 = vadd.f32 %v3048, %v3772
        %v3926 = vadd.f32 %v3050, %v3774
        %v3927 = vadd.f32 %v3052, %v3776
        %v3928 = vadd.f32 %v3056, %v3780
        %v3929 = vadd.f32 %v3058, %v3782
        %v3930 = vadd.f32 %v3060, %v3784
        %v3931 = vadd.f32 %v3062, %v3786
        %v3932 = vadd.f32 %v3066, %v3790
        %v3933 = vadd.f32 %v3068, %v3792
        %v3934 = vadd.f32 %v3070, %v3794
        %v3935 = vadd.f32 %v3072, %v3796
        %v3936 = vadd.f32 %v3076, %v3800
        %v3937 = vadd.f32 %v3078, %v3802
        %v3938 = vadd.f32 %v3080, %v3804
        %v3939 = vadd.f32 %v3082, %v3806
        %v3940 = vadd.f32 %v3086, %v3810
        %v3941 = vadd.f32 %v3088, %v3812
        %v3942 = vadd.f32 %v3090, %v3814
        %v3943 = vadd.f32 %v3092, %v3816
        %v3944 = vadd.f32 %v3096, %v3820
        %v3945 = vadd.f32 %v3098, %v3822
        %v3946 = vadd.f32 %v3100, %v3824
        %v3947 = vadd.f32 %v3102, %v3826
        %v3948 = vadd.f32 %v3106, %v3830
        %v3949 = vadd.f32 %v3108, %v3832
        %v3950 = vadd.f32 %v3110, %v3834
        %v3951 = vadd.f32 %v3112, %v3836
        %v3952 = vadd.f32 %v3116, %v3840
        %v3953 = vadd.f32 %v3118, %v3842
        %v3954 = vadd.f32 %v3120, %v3844
        %v3955 = vadd.f32 %v3122, %v3846
        %v3956 = vadd.f32 %v3126, %v3850
        %v3957 = vadd.f32 %v3128, %v3852
        %v3958 = vadd.f32 %v3130, %v3854
        %v3959 = vadd.f32 %v3132, %v3856
        %v3960 = vadd.f32 %v3136, %v3860
        %v3961 = vadd.f32 %v3138, %v3862
        %v3962 = vadd.f32 %v3140, %v3864
        %v3963 = vadd.f32 %v3142, %v3866
        %v3964 = vadd.f32 %v3146, %v3870
        %v3965 = vadd.f32 %v3148, %v3872
        %v3966 = vadd.f32 %v3150, %v3874
        %v3967 = vadd.f32 %v3152, %v3876
        %v3968 = vadd.f32 %v3156, %v3880
        %v3969 = vadd.f32 %v3158, %v3882
        %v3970 = vadd.f32 %v3160, %v3884
        %v3971 = vadd.f32 %v3162, %v3886
        %v3972 = vadd.f32 %v3166, %v3890
        %v3973 = vadd.f32 %v3168, %v3892
        %v3974 = vadd.f32 %v3170, %v3894
        %v3975 = vadd.f32 %v3172, %v3896
        %v3976 = vadd.f32 %v3176, %v3900
        %v3977 = vadd.f32 %v3178, %v3902
        %v3978 = vadd.f32 %v3180, %v3904
        %v3979 = vadd.f32 %v3182, %v3906
        %v3980 = vld [vmem:[#allocation2 + $0x10] sm:$0xc]
        %v3981 = vld [vmem:[#allocation2 + $0x14] sm:$0xf]
        %v3982 = vld [vmem:[#allocation2 + $0x18] sm:$0xf]
        %v3983 = vld [vmem:[#allocation2 + $0x1c] sm:$0xf]
        %v3984 = vld [vmem:[#allocation2 + $0x20] sm:$0xf]
        %v3985 = vld [vmem:[#allocation2 + $0x24] sm:$0xf]
        %v3986 = vld [vmem:[#allocation2 + $0x28] sm:$0xf]
        %v3987 = vld [vmem:[#allocation2 + $0x2c] sm:$0xf]
        %v3988 = vld [vmem:[#allocation2 + $0x30] sm:$0xf]
        %v3989 = vld [vmem:[#allocation2 + $0x34] sm:$0xf]
        %v3990 = vld [vmem:[#allocation2 + $0x38] sm:$0xf]
        %v3991 = vld [vmem:[#allocation2 + $0x3c] sm:$0xf]
        %v3992 = vld [vmem:[#allocation2 + $0x40] sm:$0xf]
        %v3993 = vld [vmem:[#allocation2 + $0x44] sm:$0xf]
        %v3994 = vld [vmem:[#allocation2 + $0x48] sm:$0xf]
        %v3995 = vld [vmem:[#allocation2 + $0x4c] sm:$0xf]
        %v3996 = vld [vmem:[#allocation2 + $0x50] sm:$0xf]
        %v3997 = vld [vmem:[#allocation2 + $0x54] sm:$0xf]
        %v3998 = vld [vmem:[#allocation2 + $0x58] sm:$0xf]
        %v3999 = vld [vmem:[#allocation2 + $0x5c] sm:$0xf]
        %v4000 = vld [vmem:[#allocation2 + $0x60] sm:$0xf]
        %v4001 = vld [vmem:[#allocation2 + $0x64] sm:$0xf]
        %v4002 = vld [vmem:[#allocation2 + $0x68] sm:$0xf]
        %v4003 = vld [vmem:[#allocation2 + $0x6c] sm:$0xf]
        %v4004 = vld [vmem:[#allocation2 + $0x70] sm:$0xf]
        %v4005 = vld [vmem:[#allocation2 + $0x74] sm:$0xf]
        %v4006 = vld [vmem:[#allocation2 + $0x78] sm:$0xf]
        %v4007 = vld [vmem:[#allocation2 + $0x7c] sm:$0xf]
        %v4008 = vld [vmem:[#allocation2 + $0x80] sm:$0xf]
        %v4009 = vld [vmem:[#allocation2 + $0x84] sm:$0xf]
        %v4010 = vld [vmem:[#allocation2 + $0x88] sm:$0xf]
        %v4011 = vld [vmem:[#allocation2 + $0x8c] sm:$0xf]
        %v4012 = vld [vmem:[#allocation2 + $0x90] sm:$0xf]
        %v4013 = vld [vmem:[#allocation2 + $0x94] sm:$0xf]
        %v4014 = vld [vmem:[#allocation2 + $0x98] sm:$0xf]
        %v4015 = vld [vmem:[#allocation2 + $0x9c] sm:$0xf]
        %v4016 = vld [vmem:[#allocation2 + $0xa0] sm:$0x3]
        %v4017 = vld [vmem:[#allocation2 + $0xa0] sm:$0x7]
        %v4055 = vunpack.c.l.b16 %v3980
        %v4056 = vunpack.c.l.b16 %v3981
        %v4057 = vunpack.c.l.b16 %v3982
        %v4058 = vunpack.c.l.b16 %v3983
        %v4059 = vunpack.c.l.b16 %v3984
        %v4060 = vunpack.c.l.b16 %v3985
        %v4061 = vunpack.c.l.b16 %v3986
        %v4062 = vunpack.c.l.b16 %v3987
        %v4063 = vunpack.c.l.b16 %v3988
        %v4064 = vunpack.c.l.b16 %v3989
        %v4065 = vunpack.c.l.b16 %v3990
        %v4066 = vunpack.c.l.b16 %v3991
        %v4067 = vunpack.c.l.b16 %v3992
        %v4068 = vunpack.c.l.b16 %v3993
        %v4069 = vunpack.c.l.b16 %v3994
        %v4070 = vunpack.c.l.b16 %v3995
        %v4071 = vunpack.c.l.b16 %v3996
        %v4072 = vunpack.c.l.b16 %v3997
        %v4073 = vunpack.c.l.b16 %v3998
        %v4074 = vunpack.c.l.b16 %v3999
        %v4075 = vunpack.c.l.b16 %v4000
        %v4076 = vunpack.c.l.b16 %v4001
        %v4077 = vunpack.c.l.b16 %v4002
        %v4078 = vunpack.c.l.b16 %v4003
        %v4079 = vunpack.c.l.b16 %v4004
        %v4080 = vunpack.c.l.b16 %v4005
        %v4081 = vunpack.c.l.b16 %v4006
        %v4082 = vunpack.c.l.b16 %v4007
        %v4083 = vunpack.c.l.b16 %v4008
        %v4084 = vunpack.c.l.b16 %v4009
        %v4085 = vunpack.c.l.b16 %v4010
        %v4086 = vunpack.c.l.b16 %v4011
        %v4087 = vunpack.c.l.b16 %v4012
        %v4088 = vunpack.c.l.b16 %v4013
        %v4089 = vunpack.c.l.b16 %v4014
        %v4090 = vunpack.c.l.b16 %v4015
        %v4091 = vunpack.c.l.b16 %v4016
        %v4092 = vpack.c.b16 %v4056, %v4055
        %v4093 = vpack.c.b16 %v4058, %v4057
        %v4094 = vpack.c.b16 %v4060, %v4059
        %v4095 = vpack.c.b16 %v4062, %v4061
        %v4096 = vpack.c.b16 %v4064, %v4063
        %v4097 = vpack.c.b16 %v4066, %v4065
        %v4098 = vpack.c.b16 %v4068, %v4067
        %v4099 = vpack.c.b16 %v4070, %v4069
        %v4100 = vpack.c.b16 %v4072, %v4071
        %v4101 = vpack.c.b16 %v4074, %v4073
        %v4102 = vpack.c.b16 %v4076, %v4075
        %v4103 = vpack.c.b16 %v4078, %v4077
        %v4104 = vpack.c.b16 %v4080, %v4079
        %v4105 = vpack.c.b16 %v4082, %v4081
        %v4106 = vpack.c.b16 %v4084, %v4083
        %v4107 = vpack.c.b16 %v4086, %v4085
        %v4108 = vpack.c.b16 %v4088, %v4087
        %v4109 = vpack.c.b16 %v4090, %v4089
        %v4110 = vpack.c.b16 %v4091, %v4091
        %v4112 = vunpack.c.l.b16 %v4017
        %v4113 = vpack.c.b16 %v4112, %v4112
        %v4115 = vshrl.u32 %v4092, 16
        %v4117 = vshll.u32 %v4092, 16
        %v4119 = vrot.slane %v4117, 1
        %v4120 = vor.u32 %v4115, %v4119
        %v4122 = vshll.u32 %v4093, 16
        %v4124 = vrot.slane %v4122, 1
        %v4125 = vsel %vm2123, %v4120, %v4124
        %v4126 = vshrl.u32 %v4093, 16
        %v4128 = vor.u32 %v4126, %v4124
        %v4130 = vshll.u32 %v4094, 16
        %v4132 = vrot.slane %v4130, 1
        %v4133 = vsel %vm2123, %v4128, %v4132
        %v4134 = vshrl.u32 %v4094, 16
        %v4136 = vor.u32 %v4134, %v4132
        %v4138 = vshll.u32 %v4095, 16
        %v4140 = vrot.slane %v4138, 1
        %v4141 = vsel %vm2123, %v4136, %v4140
        %v4142 = vshrl.u32 %v4095, 16
        %v4144 = vor.u32 %v4142, %v4140
        %v4146 = vshll.u32 %v4096, 16
        %v4148 = vrot.slane %v4146, 1
        %v4149 = vsel %vm2123, %v4144, %v4148
        %v4150 = vshrl.u32 %v4096, 16
        %v4152 = vor.u32 %v4150, %v4148
        %v4154 = vshll.u32 %v4097, 16
        %v4156 = vrot.slane %v4154, 1
        %v4157 = vsel %vm2123, %v4152, %v4156
        %v4158 = vshrl.u32 %v4097, 16
        %v4160 = vor.u32 %v4158, %v4156
        %v4162 = vshll.u32 %v4098, 16
        %v4164 = vrot.slane %v4162, 1
        %v4165 = vsel %vm2123, %v4160, %v4164
        %v4166 = vshrl.u32 %v4098, 16
        %v4168 = vor.u32 %v4166, %v4164
        %v4170 = vshll.u32 %v4099, 16
        %v4172 = vrot.slane %v4170, 1
        %v4173 = vsel %vm2123, %v4168, %v4172
        %v4174 = vshrl.u32 %v4099, 16
        %v4176 = vor.u32 %v4174, %v4172
        %v4178 = vshll.u32 %v4100, 16
        %v4180 = vrot.slane %v4178, 1
        %v4181 = vsel %vm2123, %v4176, %v4180
        %v4182 = vshrl.u32 %v4100, 16
        %v4184 = vor.u32 %v4182, %v4180
        %v4186 = vshll.u32 %v4101, 16
        %v4188 = vrot.slane %v4186, 1
        %v4189 = vsel %vm2123, %v4184, %v4188
        %v4190 = vshrl.u32 %v4101, 16
        %v4192 = vor.u32 %v4190, %v4188
        %v4194 = vshll.u32 %v4102, 16
        %v4196 = vrot.slane %v4194, 1
        %v4197 = vsel %vm2123, %v4192, %v4196
        %v4198 = vshrl.u32 %v4102, 16
        %v4200 = vor.u32 %v4198, %v4196
        %v4202 = vshll.u32 %v4103, 16
        %v4204 = vrot.slane %v4202, 1
        %v4205 = vsel %vm2123, %v4200, %v4204
        %v4206 = vshrl.u32 %v4103, 16
        %v4208 = vor.u32 %v4206, %v4204
        %v4210 = vshll.u32 %v4104, 16
        %v4212 = vrot.slane %v4210, 1
        %v4213 = vsel %vm2123, %v4208, %v4212
        %v4214 = vshrl.u32 %v4104, 16
        %v4216 = vor.u32 %v4214, %v4212
        %v4218 = vshll.u32 %v4105, 16
        %v4220 = vrot.slane %v4218, 1
        %v4221 = vsel %vm2123, %v4216, %v4220
        %v4222 = vshrl.u32 %v4105, 16
        %v4224 = vor.u32 %v4222, %v4220
        %v4226 = vshll.u32 %v4106, 16
        %v4228 = vrot.slane %v4226, 1
        %v4229 = vsel %vm2123, %v4224, %v4228
        %v4230 = vshrl.u32 %v4106, 16
        %v4232 = vor.u32 %v4230, %v4228
        %v4234 = vshll.u32 %v4107, 16
        %v4236 = vrot.slane %v4234, 1
        %v4237 = vsel %vm2123, %v4232, %v4236
        %v4238 = vshrl.u32 %v4107, 16
        %v4240 = vor.u32 %v4238, %v4236
        %v4242 = vshll.u32 %v4108, 16
        %v4244 = vrot.slane %v4242, 1
        %v4245 = vsel %vm2123, %v4240, %v4244
        %v4246 = vshrl.u32 %v4108, 16
        %v4248 = vor.u32 %v4246, %v4244
        %v4250 = vshll.u32 %v4109, 16
        %v4252 = vrot.slane %v4250, 1
        %v4253 = vsel %vm2123, %v4248, %v4252
        %v4254 = vshrl.u32 %v4109, 16
        %v4256 = vor.u32 %v4254, %v4252
        %v4258 = vshll.u32 %v4113, 16
        %v4260 = vrot.slane %v4258, 1
        %v4261 = vsel %vm2123, %v4256, %v4260
        %v4262 = vshrl.u32 %v4113, 16
        %v4264 = vor.u32 %v4262, %v4260
        %v4265 = vld [vmem:[%s4 + $0x300] sm:$0xff]
        %v4266 = vld [vmem:[%s4 + $0x308] sm:$0xff]
        %v4267 = vld [vmem:[%s4 + $0x310] sm:$0xff]
        %v4268 = vld [vmem:[%s4 + $0x318] sm:$0xff]
        %v4269 = vld [vmem:[%s4 + $0x320] sm:$0xff]
        %v4270 = vld [vmem:[%s4 + $0x328] sm:$0xff]
        %v4271 = vld [vmem:[%s4 + $0x330] sm:$0xff]
        %v4272 = vld [vmem:[%s4 + $0x338] sm:$0xff]
        %v4273 = vld [vmem:[%s4 + $0x340] sm:$0xff]
        %v4274 = vld [vmem:[%s4 + $0x348] sm:$0xff]
        %v4275 = vld [vmem:[%s4 + $0x350] sm:$0xff]
        %v4276 = vld [vmem:[%s4 + $0x358] sm:$0xff]
        %v4277 = vld [vmem:[%s4 + $0x360] sm:$0xff]
        %v4278 = vld [vmem:[%s4 + $0x368] sm:$0xff]
        %v4279 = vld [vmem:[%s4 + $0x370] sm:$0xff]
        %v4280 = vld [vmem:[%s4 + $0x378] sm:$0xff]
        %v4281 = vld [vmem:[%s4 + $0x380] sm:$0xff]
        %v4282 = vld [vmem:[%s4 + $0x388] sm:$0xff]
        %v4283 = vld [vmem:[%s4 + $0x390] sm:$0xff]
        %v4284 = vld [vmem:[%s4 + $0x398] sm:$0xff]
        %v4285 = vld [vmem:[%s4 + $0x3a0] sm:$0xff]
        %v4286 = vld [vmem:[%s4 + $0x3a8] sm:$0xff]
        %v4287 = vld [vmem:[%s4 + $0x3b0] sm:$0xff]
        %v4288 = vld [vmem:[%s4 + $0x3b8] sm:$0xff]
        %v4289 = vld [vmem:[%s4 + $0x3c0] sm:$0xff]
        %v4290 = vld [vmem:[%s4 + $0x3c8] sm:$0xff]
        %v4291 = vld [vmem:[%s4 + $0x3d0] sm:$0xff]
        %v4292 = vld [vmem:[%s4 + $0x3d8] sm:$0xff]
        %v4293 = vld [vmem:[%s4 + $0x3e0] sm:$0xff]
        %v4294 = vld [vmem:[%s4 + $0x3e8] sm:$0xff]
        %v4295 = vld [vmem:[%s4 + $0x3f0] sm:$0xff]
        %v4296 = vld [vmem:[%s4 + $0x3f8] sm:$0xff]
        %vm4297 = vcmask 1045504
        %v4298 = vrot.slane %v4092, 2
        %v4299 = vrot.slane %v4093, 2
        %v4300 = vsel %vm4297, %v4298, %v4299
        %v4301 = vrot.slane %v4125, 2
        %v4302 = vrot.slane %v4133, 2
        %v4303 = vsel %vm4297, %v4301, %v4302
        %v4304 = vrot.slane %v4094, 2
        %v4305 = vsel %vm4297, %v4299, %v4304
        %v4306 = vrot.slane %v4141, 2
        %v4307 = vsel %vm4297, %v4302, %v4306
        %v4308 = vrot.slane %v4095, 2
        %v4309 = vsel %vm4297, %v4304, %v4308
        %v4310 = vrot.slane %v4149, 2
        %v4311 = vsel %vm4297, %v4306, %v4310
        %v4312 = vrot.slane %v4096, 2
        %v4313 = vsel %vm4297, %v4308, %v4312
        %v4314 = vrot.slane %v4157, 2
        %v4315 = vsel %vm4297, %v4310, %v4314
        %v4316 = vrot.slane %v4097, 2
        %v4317 = vsel %vm4297, %v4312, %v4316
        %v4318 = vrot.slane %v4165, 2
        %v4319 = vsel %vm4297, %v4314, %v4318
        %v4320 = vrot.slane %v4098, 2
        %v4321 = vsel %vm4297, %v4316, %v4320
        %v4322 = vrot.slane %v4173, 2
        %v4323 = vsel %vm4297, %v4318, %v4322
        %v4324 = vrot.slane %v4099, 2
        %v4325 = vsel %vm4297, %v4320, %v4324
        %v4326 = vrot.slane %v4181, 2
        %v4327 = vsel %vm4297, %v4322, %v4326
        %v4328 = vrot.slane %v4100, 2
        %v4329 = vsel %vm4297, %v4324, %v4328
        %v4330 = vrot.slane %v4189, 2
        %v4331 = vsel %vm4297, %v4326, %v4330
        %v4332 = vrot.slane %v4101, 2
        %v4333 = vsel %vm4297, %v4328, %v4332
        %v4334 = vrot.slane %v4197, 2
        %v4335 = vsel %vm4297, %v4330, %v4334
        %v4336 = vrot.slane %v4102, 2
        %v4337 = vsel %vm4297, %v4332, %v4336
        %v4338 = vrot.slane %v4205, 2
        %v4339 = vsel %vm4297, %v4334, %v4338
        %v4340 = vrot.slane %v4103, 2
        %v4341 = vsel %vm4297, %v4336, %v4340
        %v4342 = vrot.slane %v4213, 2
        %v4343 = vsel %vm4297, %v4338, %v4342
        %v4344 = vrot.slane %v4104, 2
        %v4345 = vsel %vm4297, %v4340, %v4344
        %v4346 = vrot.slane %v4221, 2
        %v4347 = vsel %vm4297, %v4342, %v4346
        %v4348 = vrot.slane %v4105, 2
        %v4349 = vsel %vm4297, %v4344, %v4348
        %v4350 = vrot.slane %v4229, 2
        %v4351 = vsel %vm4297, %v4346, %v4350
        %v4352 = vrot.slane %v4106, 2
        %v4353 = vsel %vm4297, %v4348, %v4352
        %v4354 = vrot.slane %v4237, 2
        %v4355 = vsel %vm4297, %v4350, %v4354
        %v4356 = vrot.slane %v4107, 2
        %v4357 = vsel %vm4297, %v4352, %v4356
        %v4358 = vrot.slane %v4245, 2
        %v4359 = vsel %vm4297, %v4354, %v4358
        %v4360 = vrot.slane %v4108, 2
        %v4361 = vsel %vm4297, %v4356, %v4360
        %v4362 = vrot.slane %v4253, 2
        %v4363 = vsel %vm4297, %v4358, %v4362
        %v4364 = vrot.slane %v4109, 2
        %v4365 = vsel %vm4297, %v4360, %v4364
        %v4366 = vrot.slane %v4261, 2
        %v4367 = vsel %vm4297, %v4362, %v4366
        %v4368 = vrot.slane %v4110, 2
        %v4369 = vsel %vm4297, %v4364, %v4368
        %v4370 = vrot.slane %v4264, 2
        %v4371 = vsel %vm4297, %v4366, %v4370
        %v4440 = vunpack.c.l.b16 %v4265
        %v4441 = vunpack.c.h.b16 %v4265
        %v4442 = vunpack.c.l.b16 %v4266
        %v4443 = vunpack.c.h.b16 %v4266
        %v4444 = vunpack.c.l.b16 %v4267
        %v4445 = vunpack.c.h.b16 %v4267
        %v4446 = vunpack.c.l.b16 %v4268
        %v4447 = vunpack.c.h.b16 %v4268
        %v4448 = vunpack.c.l.b16 %v4269
        %v4449 = vunpack.c.h.b16 %v4269
        %v4450 = vunpack.c.l.b16 %v4270
        %v4451 = vunpack.c.h.b16 %v4270
        %v4452 = vunpack.c.l.b16 %v4271
        %v4453 = vunpack.c.h.b16 %v4271
        %v4454 = vunpack.c.l.b16 %v4272
        %v4455 = vunpack.c.h.b16 %v4272
        %v4456 = vunpack.c.l.b16 %v4273
        %v4457 = vunpack.c.h.b16 %v4273
        %v4458 = vunpack.c.l.b16 %v4274
        %v4459 = vunpack.c.h.b16 %v4274
        %v4460 = vunpack.c.l.b16 %v4275
        %v4461 = vunpack.c.h.b16 %v4275
        %v4462 = vunpack.c.l.b16 %v4276
        %v4463 = vunpack.c.h.b16 %v4276
        %v4464 = vunpack.c.l.b16 %v4277
        %v4465 = vunpack.c.h.b16 %v4277
        %v4466 = vunpack.c.l.b16 %v4278
        %v4467 = vunpack.c.h.b16 %v4278
        %v4468 = vunpack.c.l.b16 %v4279
        %v4469 = vunpack.c.h.b16 %v4279
        %v4470 = vunpack.c.l.b16 %v4280
        %v4471 = vunpack.c.h.b16 %v4280
        %v4472 = vunpack.c.l.b16 %v4281
        %v4473 = vunpack.c.h.b16 %v4281
        %v4474 = vunpack.c.l.b16 %v4282
        %v4475 = vunpack.c.h.b16 %v4282
        %v4476 = vunpack.c.l.b16 %v4283
        %v4477 = vunpack.c.h.b16 %v4283
        %v4478 = vunpack.c.l.b16 %v4284
        %v4479 = vunpack.c.h.b16 %v4284
        %v4480 = vunpack.c.l.b16 %v4285
        %v4481 = vunpack.c.h.b16 %v4285
        %v4482 = vunpack.c.l.b16 %v4286
        %v4483 = vunpack.c.h.b16 %v4286
        %v4484 = vunpack.c.l.b16 %v4287
        %v4485 = vunpack.c.h.b16 %v4287
        %v4486 = vunpack.c.l.b16 %v4288
        %v4487 = vunpack.c.h.b16 %v4288
        %v4488 = vunpack.c.l.b16 %v4289
        %v4489 = vunpack.c.h.b16 %v4289
        %v4490 = vunpack.c.l.b16 %v4290
        %v4491 = vunpack.c.h.b16 %v4290
        %v4492 = vunpack.c.l.b16 %v4291
        %v4493 = vunpack.c.h.b16 %v4291
        %v4494 = vunpack.c.l.b16 %v4292
        %v4495 = vunpack.c.h.b16 %v4292
        %v4496 = vunpack.c.l.b16 %v4293
        %v4497 = vunpack.c.h.b16 %v4293
        %v4498 = vunpack.c.l.b16 %v4294
        %v4499 = vunpack.c.h.b16 %v4294
        %v4500 = vunpack.c.l.b16 %v4295
        %v4501 = vunpack.c.h.b16 %v4295
        %v4502 = vunpack.c.l.b16 %v4296
        %v4503 = vunpack.c.h.b16 %v4296
        %v4504 = vpack.c.b16 %v4442, %v4440
        %v4505 = vpack.c.b16 %v4443, %v4441
        %v4506 = vpack.c.b16 %v4446, %v4444
        %v4507 = vpack.c.b16 %v4447, %v4445
        %v4508 = vpack.c.b16 %v4450, %v4448
        %v4509 = vpack.c.b16 %v4451, %v4449
        %v4510 = vpack.c.b16 %v4454, %v4452
        %v4511 = vpack.c.b16 %v4455, %v4453
        %v4512 = vpack.c.b16 %v4458, %v4456
        %v4513 = vpack.c.b16 %v4459, %v4457
        %v4514 = vpack.c.b16 %v4462, %v4460
        %v4515 = vpack.c.b16 %v4463, %v4461
        %v4516 = vpack.c.b16 %v4466, %v4464
        %v4517 = vpack.c.b16 %v4467, %v4465
        %v4518 = vpack.c.b16 %v4470, %v4468
        %v4519 = vpack.c.b16 %v4471, %v4469
        %v4520 = vpack.c.b16 %v4474, %v4472
        %v4521 = vpack.c.b16 %v4475, %v4473
        %v4522 = vpack.c.b16 %v4478, %v4476
        %v4523 = vpack.c.b16 %v4479, %v4477
        %v4524 = vpack.c.b16 %v4482, %v4480
        %v4525 = vpack.c.b16 %v4483, %v4481
        %v4526 = vpack.c.b16 %v4486, %v4484
        %v4527 = vpack.c.b16 %v4487, %v4485
        %v4528 = vpack.c.b16 %v4490, %v4488
        %v4529 = vpack.c.b16 %v4491, %v4489
        %v4530 = vpack.c.b16 %v4494, %v4492
        %v4531 = vpack.c.b16 %v4495, %v4493
        %v4532 = vpack.c.b16 %v4498, %v4496
        %v4533 = vpack.c.b16 %v4499, %v4497
        %v4534 = vpack.c.b16 %v4502, %v4500
        %v4535 = vpack.c.b16 %v4503, %v4501
        %4568 = vmatprep.subr.bf16.mxu0 %v4519
        %4569 = vmatpush1.bf16.msra.mxu0 %v4518
        %4570 = vmatprep.subr.bf16.mxu0 %v4517
        %4571 = vmatpush1.bf16.msra.mxu0 %v4516
        %4572 = vmatprep.subr.bf16.mxu0 %v4515
        %4573 = vmatpush1.bf16.msra.mxu0 %v4514
        %4574 = vmatprep.subr.bf16.mxu0 %v4513
        %4575 = vmatpush1.bf16.msra.mxu0 %v4512
        %4576 = vmatprep.subr.bf16.mxu0 %v4511
        %4577 = vmatpush1.bf16.msra.mxu0 %v4510
        %4578 = vmatprep.subr.bf16.mxu0 %v4509
        %4579 = vmatpush1.bf16.msra.mxu0 %v4508
        %4580 = vmatprep.subr.bf16.mxu0 %v4507
        %4581 = vmatpush1.bf16.msra.mxu0 %v4506
        %4582 = vmatprep.subr.bf16.mxu0 %v4505
        %4583 = vmatpush1.bf16.msra.mxu0 %v4504
        %4584 = vmatprep.subr.bf16.mxu0 %v4535
        %4585 = vmatpush2.bf16.msra.mxu0 %v4534
        %4586 = vmatprep.subr.bf16.mxu0 %v4533
        %4587 = vmatpush2.bf16.msra.mxu0 %v4532
        %4588 = vmatprep.subr.bf16.mxu0 %v4531
        %4589 = vmatpush2.bf16.msra.mxu0 %v4530
        %4590 = vmatprep.subr.bf16.mxu0 %v4529
        %4591 = vmatpush2.bf16.msra.mxu0 %v4528
        %4592 = vmatprep.subr.bf16.mxu0 %v4527
        %4593 = vmatpush2.bf16.msra.mxu0 %v4526
        %4594 = vmatprep.subr.bf16.mxu0 %v4525
        %4595 = vmatpush2.bf16.msra.mxu0 %v4524
        %4596 = vmatprep.subr.bf16.mxu0 %v4523
        %4597 = vmatpush2.bf16.msra.mxu0 %v4522
        %4598 = vmatprep.subr.bf16.mxu0 %v4521
        %4599 = vmatpush2.bf16.msra.mxu0 %v4520
        %4600 = vmatprep.mubr.bf16.mxu0 %v4303
        %4601 = vmatmul.mubr.bf16.gmra.mxu0 %v4300
        %v4602 = vpop.f32.mrf.mxu0
        %v4603 = vadd.f32 0.0, %v4602
        %v4604 = vpop.f32.mrf.mxu0
        %v4605 = vadd.f32 0.0, %v4604
        %v4606 = vpop.f32.mrf.mxu0
        %v4607 = vadd.f32 0.0, %v4606
        %v4608 = vpop.f32.mrf.mxu0
        %v4609 = vadd.f32 0.0, %v4608
        %4610 = vmatprep.mubr.bf16.mxu0 %v4307
        %4611 = vmatmul.mubr.bf16.gmra.mxu0 %v4305
        %v4612 = vpop.f32.mrf.mxu0
        %v4613 = vadd.f32 0.0, %v4612
        %v4614 = vpop.f32.mrf.mxu0
        %v4615 = vadd.f32 0.0, %v4614
        %v4616 = vpop.f32.mrf.mxu0
        %v4617 = vadd.f32 0.0, %v4616
        %v4618 = vpop.f32.mrf.mxu0
        %v4619 = vadd.f32 0.0, %v4618
        %4620 = vmatprep.mubr.bf16.mxu0 %v4311
        %4621 = vmatmul.mubr.bf16.gmra.mxu0 %v4309
        %v4622 = vpop.f32.mrf.mxu0
        %v4623 = vadd.f32 0.0, %v4622
        %v4624 = vpop.f32.mrf.mxu0
        %v4625 = vadd.f32 0.0, %v4624
        %v4626 = vpop.f32.mrf.mxu0
        %v4627 = vadd.f32 0.0, %v4626
        %v4628 = vpop.f32.mrf.mxu0
        %v4629 = vadd.f32 0.0, %v4628
        %4630 = vmatprep.mubr.bf16.mxu0 %v4315
        %4631 = vmatmul.mubr.bf16.gmra.mxu0 %v4313
        %v4632 = vpop.f32.mrf.mxu0
        %v4633 = vadd.f32 0.0, %v4632
        %v4634 = vpop.f32.mrf.mxu0
        %v4635 = vadd.f32 0.0, %v4634
        %v4636 = vpop.f32.mrf.mxu0
        %v4637 = vadd.f32 0.0, %v4636
        %v4638 = vpop.f32.mrf.mxu0
        %v4639 = vadd.f32 0.0, %v4638
        %4640 = vmatprep.mubr.bf16.mxu0 %v4319
        %4641 = vmatmul.mubr.bf16.gmra.mxu0 %v4317
        %v4642 = vpop.f32.mrf.mxu0
        %v4643 = vadd.f32 0.0, %v4642
        %v4644 = vpop.f32.mrf.mxu0
        %v4645 = vadd.f32 0.0, %v4644
        %v4646 = vpop.f32.mrf.mxu0
        %v4647 = vadd.f32 0.0, %v4646
        %v4648 = vpop.f32.mrf.mxu0
        %v4649 = vadd.f32 0.0, %v4648
        %4650 = vmatprep.mubr.bf16.mxu0 %v4323
        %4651 = vmatmul.mubr.bf16.gmra.mxu0 %v4321
        %v4652 = vpop.f32.mrf.mxu0
        %v4653 = vadd.f32 0.0, %v4652
        %v4654 = vpop.f32.mrf.mxu0
        %v4655 = vadd.f32 0.0, %v4654
        %v4656 = vpop.f32.mrf.mxu0
        %v4657 = vadd.f32 0.0, %v4656
        %v4658 = vpop.f32.mrf.mxu0
        %v4659 = vadd.f32 0.0, %v4658
        %4660 = vmatprep.mubr.bf16.mxu0 %v4327
        %4661 = vmatmul.mubr.bf16.gmra.mxu0 %v4325
        %v4662 = vpop.f32.mrf.mxu0
        %v4663 = vadd.f32 0.0, %v4662
        %v4664 = vpop.f32.mrf.mxu0
        %v4665 = vadd.f32 0.0, %v4664
        %v4666 = vpop.f32.mrf.mxu0
        %v4667 = vadd.f32 0.0, %v4666
        %v4668 = vpop.f32.mrf.mxu0
        %v4669 = vadd.f32 0.0, %v4668
        %4670 = vmatprep.mubr.bf16.mxu0 %v4331
        %4671 = vmatmul.mubr.bf16.gmra.mxu0 %v4329
        %v4672 = vpop.f32.mrf.mxu0
        %v4673 = vadd.f32 0.0, %v4672
        %v4674 = vpop.f32.mrf.mxu0
        %v4675 = vadd.f32 0.0, %v4674
        %v4676 = vpop.f32.mrf.mxu0
        %v4677 = vadd.f32 0.0, %v4676
        %v4678 = vpop.f32.mrf.mxu0
        %v4679 = vadd.f32 0.0, %v4678
        %4680 = vmatprep.mubr.bf16.mxu0 %v4335
        %4681 = vmatmul.mubr.bf16.gmra.mxu0 %v4333
        %v4682 = vpop.f32.mrf.mxu0
        %v4683 = vadd.f32 0.0, %v4682
        %v4684 = vpop.f32.mrf.mxu0
        %v4685 = vadd.f32 0.0, %v4684
        %v4686 = vpop.f32.mrf.mxu0
        %v4687 = vadd.f32 0.0, %v4686
        %v4688 = vpop.f32.mrf.mxu0
        %v4689 = vadd.f32 0.0, %v4688
        %4690 = vmatprep.mubr.bf16.mxu0 %v4339
        %4691 = vmatmul.mubr.bf16.gmra.mxu0 %v4337
        %v4692 = vpop.f32.mrf.mxu0
        %v4693 = vadd.f32 0.0, %v4692
        %v4694 = vpop.f32.mrf.mxu0
        %v4695 = vadd.f32 0.0, %v4694
        %v4696 = vpop.f32.mrf.mxu0
        %v4697 = vadd.f32 0.0, %v4696
        %v4698 = vpop.f32.mrf.mxu0
        %v4699 = vadd.f32 0.0, %v4698
        %4700 = vmatprep.mubr.bf16.mxu0 %v4343
        %4701 = vmatmul.mubr.bf16.gmra.mxu0 %v4341
        %v4702 = vpop.f32.mrf.mxu0
        %v4703 = vadd.f32 0.0, %v4702
        %v4704 = vpop.f32.mrf.mxu0
        %v4705 = vadd.f32 0.0, %v4704
        %v4706 = vpop.f32.mrf.mxu0
        %v4707 = vadd.f32 0.0, %v4706
        %v4708 = vpop.f32.mrf.mxu0
        %v4709 = vadd.f32 0.0, %v4708
        %4710 = vmatprep.mubr.bf16.mxu0 %v4347
        %4711 = vmatmul.mubr.bf16.gmra.mxu0 %v4345
        %v4712 = vpop.f32.mrf.mxu0
        %v4713 = vadd.f32 0.0, %v4712
        %v4714 = vpop.f32.mrf.mxu0
        %v4715 = vadd.f32 0.0, %v4714
        %v4716 = vpop.f32.mrf.mxu0
        %v4717 = vadd.f32 0.0, %v4716
        %v4718 = vpop.f32.mrf.mxu0
        %v4719 = vadd.f32 0.0, %v4718
        %4720 = vmatprep.mubr.bf16.mxu0 %v4351
        %4721 = vmatmul.mubr.bf16.gmra.mxu0 %v4349
        %v4722 = vpop.f32.mrf.mxu0
        %v4723 = vadd.f32 0.0, %v4722
        %v4724 = vpop.f32.mrf.mxu0
        %v4725 = vadd.f32 0.0, %v4724
        %v4726 = vpop.f32.mrf.mxu0
        %v4727 = vadd.f32 0.0, %v4726
        %v4728 = vpop.f32.mrf.mxu0
        %v4729 = vadd.f32 0.0, %v4728
        %4730 = vmatprep.mubr.bf16.mxu0 %v4355
        %4731 = vmatmul.mubr.bf16.gmra.mxu0 %v4353
        %v4732 = vpop.f32.mrf.mxu0
        %v4733 = vadd.f32 0.0, %v4732
        %v4734 = vpop.f32.mrf.mxu0
        %v4735 = vadd.f32 0.0, %v4734
        %v4736 = vpop.f32.mrf.mxu0
        %v4737 = vadd.f32 0.0, %v4736
        %v4738 = vpop.f32.mrf.mxu0
        %v4739 = vadd.f32 0.0, %v4738
        %4740 = vmatprep.mubr.bf16.mxu0 %v4359
        %4741 = vmatmul.mubr.bf16.gmra.mxu0 %v4357
        %v4742 = vpop.f32.mrf.mxu0
        %v4743 = vadd.f32 0.0, %v4742
        %v4744 = vpop.f32.mrf.mxu0
        %v4745 = vadd.f32 0.0, %v4744
        %v4746 = vpop.f32.mrf.mxu0
        %v4747 = vadd.f32 0.0, %v4746
        %v4748 = vpop.f32.mrf.mxu0
        %v4749 = vadd.f32 0.0, %v4748
        %4750 = vmatprep.mubr.bf16.mxu0 %v4363
        %4751 = vmatmul.mubr.bf16.gmra.mxu0 %v4361
        %v4752 = vpop.f32.mrf.mxu0
        %v4753 = vadd.f32 0.0, %v4752
        %v4754 = vpop.f32.mrf.mxu0
        %v4755 = vadd.f32 0.0, %v4754
        %v4756 = vpop.f32.mrf.mxu0
        %v4757 = vadd.f32 0.0, %v4756
        %v4758 = vpop.f32.mrf.mxu0
        %v4759 = vadd.f32 0.0, %v4758
        %4760 = vmatprep.mubr.bf16.mxu0 %v4367
        %4761 = vmatmul.mubr.bf16.gmra.mxu0 %v4365
        %v4762 = vpop.f32.mrf.mxu0
        %v4763 = vadd.f32 0.0, %v4762
        %v4764 = vpop.f32.mrf.mxu0
        %v4765 = vadd.f32 0.0, %v4764
        %v4766 = vpop.f32.mrf.mxu0
        %v4767 = vadd.f32 0.0, %v4766
        %v4768 = vpop.f32.mrf.mxu0
        %v4769 = vadd.f32 0.0, %v4768
        %4770 = vmatprep.mubr.bf16.mxu0 %v4371
        %4771 = vmatmul.mubr.bf16.gmra.mxu0 %v4369
        %v4772 = vpop.f32.mrf.mxu0
        %v4773 = vadd.f32 0.0, %v4772
        %v4774 = vpop.f32.mrf.mxu0
        %v4775 = vadd.f32 0.0, %v4774
        %v4776 = vpop.f32.mrf.mxu0
        %v4777 = vadd.f32 0.0, %v4776
        %v4778 = vpop.f32.mrf.mxu0
        %v4779 = vadd.f32 0.0, %v4778
        %4780 = vdwg.mxu0
        %v4781 = vadd.f32 %v3908, %v4603
        %v4782 = vadd.f32 %v3909, %v4605
        %v4783 = vadd.f32 %v3910, %v4607
        %v4784 = vadd.f32 %v3911, %v4609
        %v4785 = vadd.f32 %v3912, %v4613
        %v4786 = vadd.f32 %v3913, %v4615
        %v4787 = vadd.f32 %v3914, %v4617
        %v4788 = vadd.f32 %v3915, %v4619
        %v4789 = vadd.f32 %v3916, %v4623
        %v4790 = vadd.f32 %v3917, %v4625
        %v4791 = vadd.f32 %v3918, %v4627
        %v4792 = vadd.f32 %v3919, %v4629
        %v4793 = vadd.f32 %v3920, %v4633
        %v4794 = vadd.f32 %v3921, %v4635
        %v4795 = vadd.f32 %v3922, %v4637
        %v4796 = vadd.f32 %v3923, %v4639
        %v4797 = vadd.f32 %v3924, %v4643
        %v4798 = vadd.f32 %v3925, %v4645
        %v4799 = vadd.f32 %v3926, %v4647
        %v4800 = vadd.f32 %v3927, %v4649
        %v4801 = vadd.f32 %v3928, %v4653
        %v4802 = vadd.f32 %v3929, %v4655
        %v4803 = vadd.f32 %v3930, %v4657
        %v4804 = vadd.f32 %v3931, %v4659
        %v4805 = vadd.f32 %v3932, %v4663
        %v4806 = vadd.f32 %v3933, %v4665
        %v4807 = vadd.f32 %v3934, %v4667
        %v4808 = vadd.f32 %v3935, %v4669
        %v4809 = vadd.f32 %v3936, %v4673
        %v4810 = vadd.f32 %v3937, %v4675
        %v4811 = vadd.f32 %v3938, %v4677
        %v4812 = vadd.f32 %v3939, %v4679
        %v4813 = vadd.f32 %v3940, %v4683
        %v4814 = vadd.f32 %v3941, %v4685
        %v4815 = vadd.f32 %v3942, %v4687
        %v4816 = vadd.f32 %v3943, %v4689
        %v4817 = vadd.f32 %v3944, %v4693
        %v4818 = vadd.f32 %v3945, %v4695
        %v4819 = vadd.f32 %v3946, %v4697
        %v4820 = vadd.f32 %v3947, %v4699
        %v4821 = vadd.f32 %v3948, %v4703
        %v4822 = vadd.f32 %v3949, %v4705
        %v4823 = vadd.f32 %v3950, %v4707
        %v4824 = vadd.f32 %v3951, %v4709
        %v4825 = vadd.f32 %v3952, %v4713
        %v4826 = vadd.f32 %v3953, %v4715
        %v4827 = vadd.f32 %v3954, %v4717
        %v4828 = vadd.f32 %v3955, %v4719
        %v4829 = vadd.f32 %v3956, %v4723
        %v4830 = vadd.f32 %v3957, %v4725
        %v4831 = vadd.f32 %v3958, %v4727
        %v4832 = vadd.f32 %v3959, %v4729
        %v4833 = vadd.f32 %v3960, %v4733
        %v4834 = vadd.f32 %v3961, %v4735
        %v4835 = vadd.f32 %v3962, %v4737
        %v4836 = vadd.f32 %v3963, %v4739
        %v4837 = vadd.f32 %v3964, %v4743
        %v4838 = vadd.f32 %v3965, %v4745
        %v4839 = vadd.f32 %v3966, %v4747
        %v4840 = vadd.f32 %v3967, %v4749
        %v4841 = vadd.f32 %v3968, %v4753
        %v4842 = vadd.f32 %v3969, %v4755
        %v4843 = vadd.f32 %v3970, %v4757
        %v4844 = vadd.f32 %v3971, %v4759
        %v4845 = vadd.f32 %v3972, %v4763
        %v4846 = vadd.f32 %v3973, %v4765
        %v4847 = vadd.f32 %v3974, %v4767
        %v4848 = vadd.f32 %v3975, %v4769
        %v4849 = vadd.f32 %v3976, %v4773
        %v4850 = vadd.f32 %v3977, %v4775
        %v4851 = vadd.f32 %v3978, %v4777
        %v4852 = vadd.f32 %v3979, %v4779
        %v4853 = vld [vmem:[#allocation2 + $0x10] sm:$0x8]
        %v4854 = vld [vmem:[%s4 + $0x400] sm:$0xff]
        %v4855 = vld [vmem:[%s4 + $0x408] sm:$0xff]
        %v4856 = vld [vmem:[%s4 + $0x410] sm:$0xff]
        %v4857 = vld [vmem:[%s4 + $0x418] sm:$0xff]
        %v4858 = vld [vmem:[%s4 + $0x420] sm:$0xff]
        %v4859 = vld [vmem:[%s4 + $0x428] sm:$0xff]
        %v4860 = vld [vmem:[%s4 + $0x430] sm:$0xff]
        %v4861 = vld [vmem:[%s4 + $0x438] sm:$0xff]
        %v4862 = vld [vmem:[%s4 + $0x440] sm:$0xff]
        %v4863 = vld [vmem:[%s4 + $0x448] sm:$0xff]
        %v4864 = vld [vmem:[%s4 + $0x450] sm:$0xff]
        %v4865 = vld [vmem:[%s4 + $0x458] sm:$0xff]
        %v4866 = vld [vmem:[%s4 + $0x460] sm:$0xff]
        %v4867 = vld [vmem:[%s4 + $0x468] sm:$0xff]
        %v4868 = vld [vmem:[%s4 + $0x470] sm:$0xff]
        %v4869 = vld [vmem:[%s4 + $0x478] sm:$0xff]
        %v4871 = vunpack.c.l.b16 %v4853
        %v4872 = vpack.c.b16 %v4056, %v4871
        %vm4873 = vcmask 1044480
        %v4874 = vrot.slane %v4872, 3
        %v4875 = vrot.slane %v4093, 3
        %v4876 = vsel %vm4873, %v4874, %v4875
        %v4877 = vrot.slane %v4094, 3
        %v4878 = vsel %vm4873, %v4875, %v4877
        %v4879 = vrot.slane %v4095, 3
        %v4880 = vsel %vm4873, %v4877, %v4879
        %v4881 = vrot.slane %v4096, 3
        %v4882 = vsel %vm4873, %v4879, %v4881
        %v4883 = vrot.slane %v4097, 3
        %v4884 = vsel %vm4873, %v4881, %v4883
        %v4885 = vrot.slane %v4098, 3
        %v4886 = vsel %vm4873, %v4883, %v4885
        %v4887 = vrot.slane %v4099, 3
        %v4888 = vsel %vm4873, %v4885, %v4887
        %v4889 = vrot.slane %v4100, 3
        %v4890 = vsel %vm4873, %v4887, %v4889
        %v4891 = vrot.slane %v4101, 3
        %v4892 = vsel %vm4873, %v4889, %v4891
        %v4893 = vrot.slane %v4102, 3
        %v4894 = vsel %vm4873, %v4891, %v4893
        %v4895 = vrot.slane %v4103, 3
        %v4896 = vsel %vm4873, %v4893, %v4895
        %v4897 = vrot.slane %v4104, 3
        %v4898 = vsel %vm4873, %v4895, %v4897
        %v4899 = vrot.slane %v4105, 3
        %v4900 = vsel %vm4873, %v4897, %v4899
        %v4901 = vrot.slane %v4106, 3
        %v4902 = vsel %vm4873, %v4899, %v4901
        %v4903 = vrot.slane %v4107, 3
        %v4904 = vsel %vm4873, %v4901, %v4903
        %v4905 = vrot.slane %v4108, 3
        %v4906 = vsel %vm4873, %v4903, %v4905
        %v4907 = vrot.slane %v4109, 3
        %v4908 = vsel %vm4873, %v4905, %v4907
        %v4909 = vrot.slane %v4113, 3
        %v4910 = vsel %vm4873, %v4907, %v4909
        %v4945 = vunpack.c.l.b16 %v4854
        %v4946 = vunpack.c.h.b16 %v4854
        %v4947 = vunpack.c.l.b16 %v4855
        %v4948 = vunpack.c.h.b16 %v4855
        %v4949 = vunpack.c.l.b16 %v4856
        %v4950 = vunpack.c.h.b16 %v4856
        %v4951 = vunpack.c.l.b16 %v4857
        %v4952 = vunpack.c.h.b16 %v4857
        %v4953 = vunpack.c.l.b16 %v4858
        %v4954 = vunpack.c.h.b16 %v4858
        %v4955 = vunpack.c.l.b16 %v4859
        %v4956 = vunpack.c.h.b16 %v4859
        %v4957 = vunpack.c.l.b16 %v4860
        %v4958 = vunpack.c.h.b16 %v4860
        %v4959 = vunpack.c.l.b16 %v4861
        %v4960 = vunpack.c.h.b16 %v4861
        %v4961 = vunpack.c.l.b16 %v4862
        %v4962 = vunpack.c.h.b16 %v4862
        %v4963 = vunpack.c.l.b16 %v4863
        %v4964 = vunpack.c.h.b16 %v4863
        %v4965 = vunpack.c.l.b16 %v4864
        %v4966 = vunpack.c.h.b16 %v4864
        %v4967 = vunpack.c.l.b16 %v4865
        %v4968 = vunpack.c.h.b16 %v4865
        %v4969 = vunpack.c.l.b16 %v4866
        %v4970 = vunpack.c.h.b16 %v4866
        %v4971 = vunpack.c.l.b16 %v4867
        %v4972 = vunpack.c.h.b16 %v4867
        %v4973 = vunpack.c.l.b16 %v4868
        %v4974 = vunpack.c.h.b16 %v4868
        %v4975 = vunpack.c.l.b16 %v4869
        %v4976 = vunpack.c.h.b16 %v4869
        %v4977 = vpack.c.b16 %v4947, %v4945
        %v4978 = vpack.c.b16 %v4948, %v4946
        %v4979 = vpack.c.b16 %v4951, %v4949
        %v4980 = vpack.c.b16 %v4952, %v4950
        %v4981 = vpack.c.b16 %v4955, %v4953
        %v4982 = vpack.c.b16 %v4956, %v4954
        %v4983 = vpack.c.b16 %v4959, %v4957
        %v4984 = vpack.c.b16 %v4960, %v4958
        %v4985 = vpack.c.b16 %v4963, %v4961
        %v4986 = vpack.c.b16 %v4964, %v4962
        %v4987 = vpack.c.b16 %v4967, %v4965
        %v4988 = vpack.c.b16 %v4968, %v4966
        %v4989 = vpack.c.b16 %v4971, %v4969
        %v4990 = vpack.c.b16 %v4972, %v4970
        %v4991 = vpack.c.b16 %v4975, %v4973
        %v4992 = vpack.c.b16 %v4976, %v4974
        %5009 = vmatprep.subr.bf16.mxu0 %v4992
        %5010 = vmatpush1.bf16.msra.mxu0 %v4991
        %5011 = vmatprep.subr.bf16.mxu0 %v4990
        %5012 = vmatpush1.bf16.msra.mxu0 %v4989
        %5013 = vmatprep.subr.bf16.mxu0 %v4988
        %5014 = vmatpush1.bf16.msra.mxu0 %v4987
        %5015 = vmatprep.subr.bf16.mxu0 %v4986
        %5016 = vmatpush1.bf16.msra.mxu0 %v4985
        %5017 = vmatprep.subr.bf16.mxu0 %v4984
        %5018 = vmatpush1.bf16.msra.mxu0 %v4983
        %5019 = vmatprep.subr.bf16.mxu0 %v4982
        %5020 = vmatpush1.bf16.msra.mxu0 %v4981
        %5021 = vmatprep.subr.bf16.mxu0 %v4980
        %5022 = vmatpush1.bf16.msra.mxu0 %v4979
        %5023 = vmatprep.subr.bf16.mxu0 %v4978
        %5024 = vmatpush1.bf16.msra.mxu0 %v4977
        %5025 = vmatprep.subr.bf16.mxu0 0
        %5026 = vmatpush2.bf16.msra.mxu0 0
        %5027 = vmatprep.subr.bf16.mxu0 0
        %5028 = vmatpush2.bf16.msra.mxu0 0
        %5029 = vmatprep.subr.bf16.mxu0 0
        %5030 = vmatpush2.bf16.msra.mxu0 0
        %5031 = vmatprep.subr.bf16.mxu0 0
        %5032 = vmatpush2.bf16.msra.mxu0 0
        %5033 = vmatprep.subr.bf16.mxu0 0
        %5034 = vmatpush2.bf16.msra.mxu0 0
        %5035 = vmatprep.subr.bf16.mxu0 0
        %5036 = vmatpush2.bf16.msra.mxu0 0
        %5037 = vmatprep.subr.bf16.mxu0 0
        %5038 = vmatpush2.bf16.msra.mxu0 0
        %5039 = vmatprep.subr.bf16.mxu0 0
        %5040 = vmatpush2.bf16.msra.mxu0 0
        %5041 = vmatprep.mubr.bf16.mxu0 0
        %5042 = vmatmul.mubr.bf16.gmra.mxu0 %v4876
        %v5043 = vpop.f32.mrf.mxu0
        %v5044 = vadd.f32 0.0, %v5043
        %v5045 = vpop.f32.mrf.mxu0
        %v5046 = vadd.f32 0.0, %v5045
        %v5047 = vpop.f32.mrf.mxu0
        %v5048 = vadd.f32 0.0, %v5047
        %v5049 = vpop.f32.mrf.mxu0
        %v5050 = vadd.f32 0.0, %v5049
        %5051 = vmatprep.mubr.bf16.mxu0 0
        %5052 = vmatmul.mubr.bf16.gmra.mxu0 %v4878
        %v5053 = vpop.f32.mrf.mxu0
        %v5054 = vadd.f32 0.0, %v5053
        %v5055 = vpop.f32.mrf.mxu0
        %v5056 = vadd.f32 0.0, %v5055
        %v5057 = vpop.f32.mrf.mxu0
        %v5058 = vadd.f32 0.0, %v5057
        %v5059 = vpop.f32.mrf.mxu0
        %v5060 = vadd.f32 0.0, %v5059
        %5061 = vmatprep.mubr.bf16.mxu0 0
        %5062 = vmatmul.mubr.bf16.gmra.mxu0 %v4880
        %v5063 = vpop.f32.mrf.mxu0
        %v5064 = vadd.f32 0.0, %v5063
        %v5065 = vpop.f32.mrf.mxu0
        %v5066 = vadd.f32 0.0, %v5065
        %v5067 = vpop.f32.mrf.mxu0
        %v5068 = vadd.f32 0.0, %v5067
        %v5069 = vpop.f32.mrf.mxu0
        %v5070 = vadd.f32 0.0, %v5069
        %5071 = vmatprep.mubr.bf16.mxu0 0
        %5072 = vmatmul.mubr.bf16.gmra.mxu0 %v4882
        %v5073 = vpop.f32.mrf.mxu0
        %v5074 = vadd.f32 0.0, %v5073
        %v5075 = vpop.f32.mrf.mxu0
        %v5076 = vadd.f32 0.0, %v5075
        %v5077 = vpop.f32.mrf.mxu0
        %v5078 = vadd.f32 0.0, %v5077
        %v5079 = vpop.f32.mrf.mxu0
        %v5080 = vadd.f32 0.0, %v5079
        %5081 = vmatprep.mubr.bf16.mxu0 0
        %5082 = vmatmul.mubr.bf16.gmra.mxu0 %v4884
        %v5083 = vpop.f32.mrf.mxu0
        %v5084 = vadd.f32 0.0, %v5083
        %v5085 = vpop.f32.mrf.mxu0
        %v5086 = vadd.f32 0.0, %v5085
        %v5087 = vpop.f32.mrf.mxu0
        %v5088 = vadd.f32 0.0, %v5087
        %v5089 = vpop.f32.mrf.mxu0
        %v5090 = vadd.f32 0.0, %v5089
        %5091 = vmatprep.mubr.bf16.mxu0 0
        %5092 = vmatmul.mubr.bf16.gmra.mxu0 %v4886
        %v5093 = vpop.f32.mrf.mxu0
        %v5094 = vadd.f32 0.0, %v5093
        %v5095 = vpop.f32.mrf.mxu0
        %v5096 = vadd.f32 0.0, %v5095
        %v5097 = vpop.f32.mrf.mxu0
        %v5098 = vadd.f32 0.0, %v5097
        %v5099 = vpop.f32.mrf.mxu0
        %v5100 = vadd.f32 0.0, %v5099
        %5101 = vmatprep.mubr.bf16.mxu0 0
        %5102 = vmatmul.mubr.bf16.gmra.mxu0 %v4888
        %v5103 = vpop.f32.mrf.mxu0
        %v5104 = vadd.f32 0.0, %v5103
        %v5105 = vpop.f32.mrf.mxu0
        %v5106 = vadd.f32 0.0, %v5105
        %v5107 = vpop.f32.mrf.mxu0
        %v5108 = vadd.f32 0.0, %v5107
        %v5109 = vpop.f32.mrf.mxu0
        %v5110 = vadd.f32 0.0, %v5109
        %5111 = vmatprep.mubr.bf16.mxu0 0
        %5112 = vmatmul.mubr.bf16.gmra.mxu0 %v4890
        %v5113 = vpop.f32.mrf.mxu0
        %v5114 = vadd.f32 0.0, %v5113
        %v5115 = vpop.f32.mrf.mxu0
        %v5116 = vadd.f32 0.0, %v5115
        %v5117 = vpop.f32.mrf.mxu0
        %v5118 = vadd.f32 0.0, %v5117
        %v5119 = vpop.f32.mrf.mxu0
        %v5120 = vadd.f32 0.0, %v5119
        %5121 = vmatprep.mubr.bf16.mxu0 0
        %5122 = vmatmul.mubr.bf16.gmra.mxu0 %v4892
        %v5123 = vpop.f32.mrf.mxu0
        %v5124 = vadd.f32 0.0, %v5123
        %v5125 = vpop.f32.mrf.mxu0
        %v5126 = vadd.f32 0.0, %v5125
        %v5127 = vpop.f32.mrf.mxu0
        %v5128 = vadd.f32 0.0, %v5127
        %v5129 = vpop.f32.mrf.mxu0
        %v5130 = vadd.f32 0.0, %v5129
        %5131 = vmatprep.mubr.bf16.mxu0 0
        %5132 = vmatmul.mubr.bf16.gmra.mxu0 %v4894
        %v5133 = vpop.f32.mrf.mxu0
        %v5134 = vadd.f32 0.0, %v5133
        %v5135 = vpop.f32.mrf.mxu0
        %v5136 = vadd.f32 0.0, %v5135
        %v5137 = vpop.f32.mrf.mxu0
        %v5138 = vadd.f32 0.0, %v5137
        %v5139 = vpop.f32.mrf.mxu0
        %v5140 = vadd.f32 0.0, %v5139
        %5141 = vmatprep.mubr.bf16.mxu0 0
        %5142 = vmatmul.mubr.bf16.gmra.mxu0 %v4896
        %v5143 = vpop.f32.mrf.mxu0
        %v5144 = vadd.f32 0.0, %v5143
        %v5145 = vpop.f32.mrf.mxu0
        %v5146 = vadd.f32 0.0, %v5145
        %v5147 = vpop.f32.mrf.mxu0
        %v5148 = vadd.f32 0.0, %v5147
        %v5149 = vpop.f32.mrf.mxu0
        %v5150 = vadd.f32 0.0, %v5149
        %5151 = vmatprep.mubr.bf16.mxu0 0
        %5152 = vmatmul.mubr.bf16.gmra.mxu0 %v4898
        %v5153 = vpop.f32.mrf.mxu0
        %v5154 = vadd.f32 0.0, %v5153
        %v5155 = vpop.f32.mrf.mxu0
        %v5156 = vadd.f32 0.0, %v5155
        %v5157 = vpop.f32.mrf.mxu0
        %v5158 = vadd.f32 0.0, %v5157
        %v5159 = vpop.f32.mrf.mxu0
        %v5160 = vadd.f32 0.0, %v5159
        %5161 = vmatprep.mubr.bf16.mxu0 0
        %5162 = vmatmul.mubr.bf16.gmra.mxu0 %v4900
        %v5163 = vpop.f32.mrf.mxu0
        %v5164 = vadd.f32 0.0, %v5163
        %v5165 = vpop.f32.mrf.mxu0
        %v5166 = vadd.f32 0.0, %v5165
        %v5167 = vpop.f32.mrf.mxu0
        %v5168 = vadd.f32 0.0, %v5167
        %v5169 = vpop.f32.mrf.mxu0
        %v5170 = vadd.f32 0.0, %v5169
        %5171 = vmatprep.mubr.bf16.mxu0 0
        %5172 = vmatmul.mubr.bf16.gmra.mxu0 %v4902
        %v5173 = vpop.f32.mrf.mxu0
        %v5174 = vadd.f32 0.0, %v5173
        %v5175 = vpop.f32.mrf.mxu0
        %v5176 = vadd.f32 0.0, %v5175
        %v5177 = vpop.f32.mrf.mxu0
        %v5178 = vadd.f32 0.0, %v5177
        %v5179 = vpop.f32.mrf.mxu0
        %v5180 = vadd.f32 0.0, %v5179
        %5181 = vmatprep.mubr.bf16.mxu0 0
        %5182 = vmatmul.mubr.bf16.gmra.mxu0 %v4904
        %v5183 = vpop.f32.mrf.mxu0
        %v5184 = vadd.f32 0.0, %v5183
        %v5185 = vpop.f32.mrf.mxu0
        %v5186 = vadd.f32 0.0, %v5185
        %v5187 = vpop.f32.mrf.mxu0
        %v5188 = vadd.f32 0.0, %v5187
        %v5189 = vpop.f32.mrf.mxu0
        %v5190 = vadd.f32 0.0, %v5189
        %5191 = vmatprep.mubr.bf16.mxu0 0
        %5192 = vmatmul.mubr.bf16.gmra.mxu0 %v4906
        %v5193 = vpop.f32.mrf.mxu0
        %v5194 = vadd.f32 0.0, %v5193
        %v5195 = vpop.f32.mrf.mxu0
        %v5196 = vadd.f32 0.0, %v5195
        %v5197 = vpop.f32.mrf.mxu0
        %v5198 = vadd.f32 0.0, %v5197
        %v5199 = vpop.f32.mrf.mxu0
        %v5200 = vadd.f32 0.0, %v5199
        %5201 = vmatprep.mubr.bf16.mxu0 0
        %5202 = vmatmul.mubr.bf16.gmra.mxu0 %v4908
        %v5203 = vpop.f32.mrf.mxu0
        %v5204 = vadd.f32 0.0, %v5203
        %v5205 = vpop.f32.mrf.mxu0
        %v5206 = vadd.f32 0.0, %v5205
        %v5207 = vpop.f32.mrf.mxu0
        %v5208 = vadd.f32 0.0, %v5207
        %v5209 = vpop.f32.mrf.mxu0
        %v5210 = vadd.f32 0.0, %v5209
        %5211 = vmatprep.mubr.bf16.mxu0 0
        %5212 = vmatmul.mubr.bf16.gmra.mxu0 %v4910
        %v5213 = vpop.f32.mrf.mxu0
        %v5214 = vadd.f32 0.0, %v5213
        %v5215 = vpop.f32.mrf.mxu0
        %v5216 = vadd.f32 0.0, %v5215
        %v5217 = vpop.f32.mrf.mxu0
        %v5218 = vadd.f32 0.0, %v5217
        %v5219 = vpop.f32.mrf.mxu0
        %v5220 = vadd.f32 0.0, %v5219
        %5221 = vdwg.mxu0
        %v5222 = vadd.f32 %v4781, %v5044
        %v5223 = vadd.f32 %v4782, %v5046
        %v5224 = vadd.f32 %v4783, %v5048
        %v5225 = vadd.f32 %v4784, %v5050
        %v5226 = vadd.f32 %v4785, %v5054
        %v5227 = vadd.f32 %v4786, %v5056
        %v5228 = vadd.f32 %v4787, %v5058
        %v5229 = vadd.f32 %v4788, %v5060
        %v5230 = vadd.f32 %v4789, %v5064
        %v5231 = vadd.f32 %v4790, %v5066
        %v5232 = vadd.f32 %v4791, %v5068
        %v5233 = vadd.f32 %v4792, %v5070
        %v5234 = vadd.f32 %v4793, %v5074
        %v5235 = vadd.f32 %v4794, %v5076
        %v5236 = vadd.f32 %v4795, %v5078
        %v5237 = vadd.f32 %v4796, %v5080
        %v5238 = vadd.f32 %v4797, %v5084
        %v5239 = vadd.f32 %v4798, %v5086
        %v5240 = vadd.f32 %v4799, %v5088
        %v5241 = vadd.f32 %v4800, %v5090
        %v5242 = vadd.f32 %v4801, %v5094
        %v5243 = vadd.f32 %v4802, %v5096
        %v5244 = vadd.f32 %v4803, %v5098
        %v5245 = vadd.f32 %v4804, %v5100
        %v5246 = vadd.f32 %v4805, %v5104
        %v5247 = vadd.f32 %v4806, %v5106
        %v5248 = vadd.f32 %v4807, %v5108
        %v5249 = vadd.f32 %v4808, %v5110
        %v5250 = vadd.f32 %v4809, %v5114
        %v5251 = vadd.f32 %v4810, %v5116
        %v5252 = vadd.f32 %v4811, %v5118
        %v5253 = vadd.f32 %v4812, %v5120
        %v5254 = vadd.f32 %v4813, %v5124
        %v5255 = vadd.f32 %v4814, %v5126
        %v5256 = vadd.f32 %v4815, %v5128
        %v5257 = vadd.f32 %v4816, %v5130
        %v5258 = vadd.f32 %v4817, %v5134
        %v5259 = vadd.f32 %v4818, %v5136
        %v5260 = vadd.f32 %v4819, %v5138
        %v5261 = vadd.f32 %v4820, %v5140
        %v5262 = vadd.f32 %v4821, %v5144
        %v5263 = vadd.f32 %v4822, %v5146
        %v5264 = vadd.f32 %v4823, %v5148
        %v5265 = vadd.f32 %v4824, %v5150
        %v5266 = vadd.f32 %v4825, %v5154
        %v5267 = vadd.f32 %v4826, %v5156
        %v5268 = vadd.f32 %v4827, %v5158
        %v5269 = vadd.f32 %v4828, %v5160
        %v5270 = vadd.f32 %v4829, %v5164
        %v5271 = vadd.f32 %v4830, %v5166
        %v5272 = vadd.f32 %v4831, %v5168
        %v5273 = vadd.f32 %v4832, %v5170
        %v5274 = vadd.f32 %v4833, %v5174
        %v5275 = vadd.f32 %v4834, %v5176
        %v5276 = vadd.f32 %v4835, %v5178
        %v5277 = vadd.f32 %v4836, %v5180
        %v5278 = vadd.f32 %v4837, %v5184
        %v5279 = vadd.f32 %v4838, %v5186
        %v5280 = vadd.f32 %v4839, %v5188
        %v5281 = vadd.f32 %v4840, %v5190
        %v5282 = vadd.f32 %v4841, %v5194
        %v5283 = vadd.f32 %v4842, %v5196
        %v5284 = vadd.f32 %v4843, %v5198
        %v5285 = vadd.f32 %v4844, %v5200
        %v5286 = vadd.f32 %v4845, %v5204
        %v5287 = vadd.f32 %v4846, %v5206
        %v5288 = vadd.f32 %v4847, %v5208
        %v5289 = vadd.f32 %v4848, %v5210
        %v5290 = vadd.f32 %v4849, %v5214
        %v5291 = vadd.f32 %v4850, %v5216
        %v5292 = vadd.f32 %v4851, %v5218
        %v5293 = vadd.f32 %v4852, %v5220
        %v5294 = vld [vmem:[%s5] sm:$0x3]
        %v5296 = vlaneseq
        %v5297 = vshrl.u32 %v5296, 7
        %v5298 = vsub.s32 0, %v5297
        %v5299 = vrot.slane %v5294, %v5298
        %v5300 = vlaneseq
        %v5301 = vshrl.u32 %v5300, 7
        %v5302 = vsub.s32 1, %v5301
        %v5303 = vrot.slane %v5294, %v5302
        %v5306 = vadd.f32 %v5222, %v5299
        %v5307 = vadd.f32 %v5223, %v5303
        %v5308 = vadd.f32 %v5224, %v5299
        %v5309 = vadd.f32 %v5225, %v5303
        %v5310 = vadd.f32 %v5226, %v5299
        %v5311 = vadd.f32 %v5227, %v5303
        %v5312 = vadd.f32 %v5228, %v5299
        %v5313 = vadd.f32 %v5229, %v5303
        %v5314 = vadd.f32 %v5230, %v5299
        %v5315 = vadd.f32 %v5231, %v5303
        %v5316 = vadd.f32 %v5232, %v5299
        %v5317 = vadd.f32 %v5233, %v5303
        %v5318 = vadd.f32 %v5234, %v5299
        %v5319 = vadd.f32 %v5235, %v5303
        %v5320 = vadd.f32 %v5236, %v5299
        %v5321 = vadd.f32 %v5237, %v5303
        %v5322 = vadd.f32 %v5238, %v5299
        %v5323 = vadd.f32 %v5239, %v5303
        %v5324 = vadd.f32 %v5240, %v5299
        %v5325 = vadd.f32 %v5241, %v5303
        %v5326 = vadd.f32 %v5242, %v5299
        %v5327 = vadd.f32 %v5243, %v5303
        %v5328 = vadd.f32 %v5244, %v5299
        %v5329 = vadd.f32 %v5245, %v5303
        %v5330 = vadd.f32 %v5246, %v5299
        %v5331 = vadd.f32 %v5247, %v5303
        %v5332 = vadd.f32 %v5248, %v5299
        %v5333 = vadd.f32 %v5249, %v5303
        %v5334 = vadd.f32 %v5250, %v5299
        %v5335 = vadd.f32 %v5251, %v5303
        %v5336 = vadd.f32 %v5252, %v5299
        %v5337 = vadd.f32 %v5253, %v5303
        %v5338 = vadd.f32 %v5254, %v5299
        %v5339 = vadd.f32 %v5255, %v5303
        %v5340 = vadd.f32 %v5256, %v5299
        %v5341 = vadd.f32 %v5257, %v5303
        %v5342 = vadd.f32 %v5258, %v5299
        %v5343 = vadd.f32 %v5259, %v5303
        %v5344 = vadd.f32 %v5260, %v5299
        %v5345 = vadd.f32 %v5261, %v5303
        %v5346 = vadd.f32 %v5262, %v5299
        %v5347 = vadd.f32 %v5263, %v5303
        %v5348 = vadd.f32 %v5264, %v5299
        %v5349 = vadd.f32 %v5265, %v5303
        %v5350 = vadd.f32 %v5266, %v5299
        %v5351 = vadd.f32 %v5267, %v5303
        %v5352 = vadd.f32 %v5268, %v5299
        %v5353 = vadd.f32 %v5269, %v5303
        %v5354 = vadd.f32 %v5270, %v5299
        %v5355 = vadd.f32 %v5271, %v5303
        %v5356 = vadd.f32 %v5272, %v5299
        %v5357 = vadd.f32 %v5273, %v5303
        %v5358 = vadd.f32 %v5274, %v5299
        %v5359 = vadd.f32 %v5275, %v5303
        %v5360 = vadd.f32 %v5276, %v5299
        %v5361 = vadd.f32 %v5277, %v5303
        %v5362 = vadd.f32 %v5278, %v5299
        %v5363 = vadd.f32 %v5279, %v5303
        %v5364 = vadd.f32 %v5280, %v5299
        %v5365 = vadd.f32 %v5281, %v5303
        %v5366 = vadd.f32 %v5282, %v5299
        %v5367 = vadd.f32 %v5283, %v5303
        %v5368 = vadd.f32 %v5284, %v5299
        %v5369 = vadd.f32 %v5285, %v5303
        %v5370 = vadd.f32 %v5286, %v5299
        %v5371 = vadd.f32 %v5287, %v5303
        %v5372 = vadd.f32 %v5288, %v5299
        %v5373 = vadd.f32 %v5289, %v5303
        %v5374 = vadd.f32 %v5290, %v5299
        %v5375 = vadd.f32 %v5291, %v5303
        %v5376 = vadd.f32 %v5292, %v5299
        %v5377 = vadd.f32 %v5293, %v5303
        %5378 = vst [vmem:[#allocation3] sm:$0xff] %v5306
        %5379 = vst [vmem:[#allocation3 + $0x8] sm:$0xff] %v5307
        %5380 = vst [vmem:[#allocation3 + $0x10] sm:$0xff] %v5308
        %5381 = vst [vmem:[#allocation3 + $0x18] sm:$0xff] %v5309
        %5382 = vst [vmem:[#allocation3 + $0x20] sm:$0xff] %v5310
        %5383 = vst [vmem:[#allocation3 + $0x28] sm:$0xff] %v5311
        %5384 = vst [vmem:[#allocation3 + $0x30] sm:$0xff] %v5312
        %5385 = vst [vmem:[#allocation3 + $0x38] sm:$0xff] %v5313
        %5386 = vst [vmem:[#allocation3 + $0x40] sm:$0xff] %v5314
        %5387 = vst [vmem:[#allocation3 + $0x48] sm:$0xff] %v5315
        %5388 = vst [vmem:[#allocation3 + $0x50] sm:$0xff] %v5316
        %5389 = vst [vmem:[#allocation3 + $0x58] sm:$0xff] %v5317
        %5390 = vst [vmem:[#allocation3 + $0x60] sm:$0xff] %v5318
        %5391 = vst [vmem:[#allocation3 + $0x68] sm:$0xff] %v5319
        %5392 = vst [vmem:[#allocation3 + $0x70] sm:$0xff] %v5320
        %5393 = vst [vmem:[#allocation3 + $0x78] sm:$0xff] %v5321
        %5394 = vst [vmem:[#allocation3 + $0x80] sm:$0xff] %v5322
        %5395 = vst [vmem:[#allocation3 + $0x88] sm:$0xff] %v5323
        %5396 = vst [vmem:[#allocation3 + $0x90] sm:$0xff] %v5324
        %5397 = vst [vmem:[#allocation3 + $0x98] sm:$0xff] %v5325
        %5398 = vst [vmem:[#allocation3 + $0xa0] sm:$0xff] %v5326
        %5399 = vst [vmem:[#allocation3 + $0xa8] sm:$0xff] %v5327
        %5400 = vst [vmem:[#allocation3 + $0xb0] sm:$0xff] %v5328
        %5401 = vst [vmem:[#allocation3 + $0xb8] sm:$0xff] %v5329
        %5402 = vst [vmem:[#allocation3 + $0xc0] sm:$0xff] %v5330
        %5403 = vst [vmem:[#allocation3 + $0xc8] sm:$0xff] %v5331
        %5404 = vst [vmem:[#allocation3 + $0xd0] sm:$0xff] %v5332
        %5405 = vst [vmem:[#allocation3 + $0xd8] sm:$0xff] %v5333
        %5406 = vst [vmem:[#allocation3 + $0xe0] sm:$0xff] %v5334
        %5407 = vst [vmem:[#allocation3 + $0xe8] sm:$0xff] %v5335
        %5408 = vst [vmem:[#allocation3 + $0xf0] sm:$0xff] %v5336
        %5409 = vst [vmem:[#allocation3 + $0xf8] sm:$0xff] %v5337
        %5410 = vst [vmem:[#allocation3 + $0x100] sm:$0xff] %v5338
        %5411 = vst [vmem:[#allocation3 + $0x108] sm:$0xff] %v5339
        %5412 = vst [vmem:[#allocation3 + $0x110] sm:$0xff] %v5340
        %5413 = vst [vmem:[#allocation3 + $0x118] sm:$0xff] %v5341
        %5414 = vst [vmem:[#allocation3 + $0x120] sm:$0xff] %v5342
        %5415 = vst [vmem:[#allocation3 + $0x128] sm:$0xff] %v5343
        %5416 = vst [vmem:[#allocation3 + $0x130] sm:$0xff] %v5344
        %5417 = vst [vmem:[#allocation3 + $0x138] sm:$0xff] %v5345
        %5418 = vst [vmem:[#allocation3 + $0x140] sm:$0xff] %v5346
        %5419 = vst [vmem:[#allocation3 + $0x148] sm:$0xff] %v5347
        %5420 = vst [vmem:[#allocation3 + $0x150] sm:$0xff] %v5348
        %5421 = vst [vmem:[#allocation3 + $0x158] sm:$0xff] %v5349
        %5422 = vst [vmem:[#allocation3 + $0x160] sm:$0xff] %v5350
        %5423 = vst [vmem:[#allocation3 + $0x168] sm:$0xff] %v5351
        %5424 = vst [vmem:[#allocation3 + $0x170] sm:$0xff] %v5352
        %5425 = vst [vmem:[#allocation3 + $0x178] sm:$0xff] %v5353
        %5426 = vst [vmem:[#allocation3 + $0x180] sm:$0xff] %v5354
        %5427 = vst [vmem:[#allocation3 + $0x188] sm:$0xff] %v5355
        %5428 = vst [vmem:[#allocation3 + $0x190] sm:$0xff] %v5356
        %5429 = vst [vmem:[#allocation3 + $0x198] sm:$0xff] %v5357
        %5430 = vst [vmem:[#allocation3 + $0x1a0] sm:$0xff] %v5358
        %5431 = vst [vmem:[#allocation3 + $0x1a8] sm:$0xff] %v5359
        %5432 = vst [vmem:[#allocation3 + $0x1b0] sm:$0xff] %v5360
        %5433 = vst [vmem:[#allocation3 + $0x1b8] sm:$0xff] %v5361
        %5434 = vst [vmem:[#allocation3 + $0x1c0] sm:$0xff] %v5362
        %5435 = vst [vmem:[#allocation3 + $0x1c8] sm:$0xff] %v5363
        %5436 = vst [vmem:[#allocation3 + $0x1d0] sm:$0xff] %v5364
        %5437 = vst [vmem:[#allocation3 + $0x1d8] sm:$0xff] %v5365
        %5438 = vst [vmem:[#allocation3 + $0x1e0] sm:$0xff] %v5366
        %5439 = vst [vmem:[#allocation3 + $0x1e8] sm:$0xff] %v5367
        %5440 = vst [vmem:[#allocation3 + $0x1f0] sm:$0xff] %v5368
        %5441 = vst [vmem:[#allocation3 + $0x1f8] sm:$0xff] %v5369
        %5442 = vst [vmem:[#allocation3 + $0x200] sm:$0xff] %v5370
        %5443 = vst [vmem:[#allocation3 + $0x208] sm:$0xff] %v5371
        %5444 = vst [vmem:[#allocation3 + $0x210] sm:$0xff] %v5372
        %5445 = vst [vmem:[#allocation3 + $0x218] sm:$0xff] %v5373
        %5446 = vst [vmem:[#allocation3 + $0x220] sm:$0xff] %v5374
        %5447 = vst [vmem:[#allocation3 + $0x228] sm:$0xff] %v5375
        %5448 = vst [vmem:[#allocation3 + $0x230] sm:$0xff] %v5376
        %5449 = vst [vmem:[#allocation3 + $0x238] sm:$0xff] %v5377
        %v5450 = vld [vmem:[%s269] sm:$0xff]
        %v5451 = vld [vmem:[%s269 + $0x8] sm:$0xff]
        %v5452 = vadd.f32 %v5450, %v5451
        %v5453 = vrot.slane %v5452, 4
        %v5454 = vadd.f32 %v5452, %v5453
        %v5455 = vrot.slane %v5454, 2
        %v5456 = vadd.f32 %v5454, %v5455
        %v5457 = vrot.slane %v5456, 1
        %v5458 = vadd.f32 %v5456, %v5457
        %v5459 = vadd.f32 %v5458, 0.0
        %v5460 = vmul.f32 %v5450, %v5450
        %v5461 = vmul.f32 %v5451, %v5451
        %v5462 = vadd.f32 %v5460, %v5461
        %v5463 = vrot.slane %v5462, 4
        %v5464 = vadd.f32 %v5462, %v5463
        %v5465 = vrot.slane %v5464, 2
        %v5466 = vadd.f32 %v5464, %v5465
        %v5467 = vrot.slane %v5466, 1
        %v5468 = vadd.f32 %v5466, %v5467
        %v5469 = vadd.f32 %v5468, 0.0
        %s5470 = scalar_lea.vmem %s269, 16
        %v5471 = vld [vmem:[%s5470] sm:$0xff]
        %v5472 = vld [vmem:[%s5470 + $0x8] sm:$0xff]
        %v5473 = vadd.f32 %v5471, %v5472
        %v5474 = vrot.slane %v5473, 4
        %v5475 = vadd.f32 %v5473, %v5474
        %v5476 = vrot.slane %v5475, 2
        %v5477 = vadd.f32 %v5475, %v5476
        %v5478 = vrot.slane %v5477, 1
        %v5479 = vadd.f32 %v5477, %v5478
        %v5480 = vadd.f32 %v5459, %v5479
        %v5481 = vmul.f32 %v5471, %v5471
        %v5482 = vmul.f32 %v5472, %v5472
        %v5483 = vadd.f32 %v5481, %v5482
        %v5484 = vrot.slane %v5483, 4
        %v5485 = vadd.f32 %v5483, %v5484
        %v5486 = vrot.slane %v5485, 2
        %v5487 = vadd.f32 %v5485, %v5486
        %v5488 = vrot.slane %v5487, 1
        %v5489 = vadd.f32 %v5487, %v5488
        %v5490 = vadd.f32 %v5469, %v5489
        %s5491 = scalar_lea.vmem %s269, 32
        %v5492 = vld [vmem:[%s5491] sm:$0xff]
        %v5493 = vld [vmem:[%s5491 + $0x8] sm:$0xff]
        %v5494 = vadd.f32 %v5492, %v5493
        %v5495 = vrot.slane %v5494, 4
        %v5496 = vadd.f32 %v5494, %v5495
        %v5497 = vrot.slane %v5496, 2
        %v5498 = vadd.f32 %v5496, %v5497
        %v5499 = vrot.slane %v5498, 1
        %v5500 = vadd.f32 %v5498, %v5499
        %v5501 = vadd.f32 %v5480, %v5500
        %v5502 = vmul.f32 %v5492, %v5492
        %v5503 = vmul.f32 %v5493, %v5493
        %v5504 = vadd.f32 %v5502, %v5503
        %v5505 = vrot.slane %v5504, 4
        %v5506 = vadd.f32 %v5504, %v5505
        %v5507 = vrot.slane %v5506, 2
        %v5508 = vadd.f32 %v5506, %v5507
        %v5509 = vrot.slane %v5508, 1
        %v5510 = vadd.f32 %v5508, %v5509
        %v5511 = vadd.f32 %v5490, %v5510
        %s5512 = scalar_lea.vmem %s269, 48
        %v5513 = vld [vmem:[%s5512] sm:$0xff]
        %v5514 = vld [vmem:[%s5512 + $0x8] sm:$0xff]
        %v5515 = vadd.f32 %v5513, %v5514
        %v5516 = vrot.slane %v5515, 4
        %v5517 = vadd.f32 %v5515, %v5516
        %v5518 = vrot.slane %v5517, 2
        %v5519 = vadd.f32 %v5517, %v5518
        %v5520 = vrot.slane %v5519, 1
        %v5521 = vadd.f32 %v5519, %v5520
        %v5522 = vadd.f32 %v5501, %v5521
        %v5523 = vmul.f32 %v5513, %v5513
        %v5524 = vmul.f32 %v5514, %v5514
        %v5525 = vadd.f32 %v5523, %v5524
        %v5526 = vrot.slane %v5525, 4
        %v5527 = vadd.f32 %v5525, %v5526
        %v5528 = vrot.slane %v5527, 2
        %v5529 = vadd.f32 %v5527, %v5528
        %v5530 = vrot.slane %v5529, 1
        %v5531 = vadd.f32 %v5529, %v5530
        %v5532 = vadd.f32 %v5511, %v5531
        %s5533 = scalar_lea.vmem %s269, 64
        %v5534 = vld [vmem:[%s5533] sm:$0xff]
        %v5535 = vld [vmem:[%s5533 + $0x8] sm:$0xff]
        %v5536 = vadd.f32 %v5534, %v5535
        %v5537 = vrot.slane %v5536, 4
        %v5538 = vadd.f32 %v5536, %v5537
        %v5539 = vrot.slane %v5538, 2
        %v5540 = vadd.f32 %v5538, %v5539
        %v5541 = vrot.slane %v5540, 1
        %v5542 = vadd.f32 %v5540, %v5541
        %v5543 = vadd.f32 %v5522, %v5542
        %v5544 = vmul.f32 %v5534, %v5534
        %v5545 = vmul.f32 %v5535, %v5535
        %v5546 = vadd.f32 %v5544, %v5545
        %v5547 = vrot.slane %v5546, 4
        %v5548 = vadd.f32 %v5546, %v5547
        %v5549 = vrot.slane %v5548, 2
        %v5550 = vadd.f32 %v5548, %v5549
        %v5551 = vrot.slane %v5550, 1
        %v5552 = vadd.f32 %v5550, %v5551
        %v5553 = vadd.f32 %v5532, %v5552
        %s5554 = scalar_lea.vmem %s269, 80
        %v5555 = vld [vmem:[%s5554] sm:$0xff]
        %v5556 = vld [vmem:[%s5554 + $0x8] sm:$0xff]
        %v5557 = vadd.f32 %v5555, %v5556
        %v5558 = vrot.slane %v5557, 4
        %v5559 = vadd.f32 %v5557, %v5558
        %v5560 = vrot.slane %v5559, 2
        %v5561 = vadd.f32 %v5559, %v5560
        %v5562 = vrot.slane %v5561, 1
        %v5563 = vadd.f32 %v5561, %v5562
        %v5564 = vadd.f32 %v5543, %v5563
        %v5565 = vmul.f32 %v5555, %v5555
        %v5566 = vmul.f32 %v5556, %v5556
        %v5567 = vadd.f32 %v5565, %v5566
        %v5568 = vrot.slane %v5567, 4
        %v5569 = vadd.f32 %v5567, %v5568
        %v5570 = vrot.slane %v5569, 2
        %v5571 = vadd.f32 %v5569, %v5570
        %v5572 = vrot.slane %v5571, 1
        %v5573 = vadd.f32 %v5571, %v5572
        %v5574 = vadd.f32 %v5553, %v5573
        %s5575 = scalar_lea.vmem %s269, 96
        %v5576 = vld [vmem:[%s5575] sm:$0xff]
        %v5577 = vld [vmem:[%s5575 + $0x8] sm:$0xff]
        %v5578 = vadd.f32 %v5576, %v5577
        %v5579 = vrot.slane %v5578, 4
        %v5580 = vadd.f32 %v5578, %v5579
        %v5581 = vrot.slane %v5580, 2
        %v5582 = vadd.f32 %v5580, %v5581
        %v5583 = vrot.slane %v5582, 1
        %v5584 = vadd.f32 %v5582, %v5583
        %v5585 = vadd.f32 %v5564, %v5584
        %v5586 = vmul.f32 %v5576, %v5576
        %v5587 = vmul.f32 %v5577, %v5577
        %v5588 = vadd.f32 %v5586, %v5587
        %v5589 = vrot.slane %v5588, 4
        %v5590 = vadd.f32 %v5588, %v5589
        %v5591 = vrot.slane %v5590, 2
        %v5592 = vadd.f32 %v5590, %v5591
        %v5593 = vrot.slane %v5592, 1
        %v5594 = vadd.f32 %v5592, %v5593
        %v5595 = vadd.f32 %v5574, %v5594
        %s5596 = scalar_lea.vmem %s269, 112
        %v5597 = vld [vmem:[%s5596] sm:$0xff]
        %v5598 = vld [vmem:[%s5596 + $0x8] sm:$0xff]
        %v5599 = vadd.f32 %v5597, %v5598
        %v5600 = vrot.slane %v5599, 4
        %v5601 = vadd.f32 %v5599, %v5600
        %v5602 = vrot.slane %v5601, 2
        %v5603 = vadd.f32 %v5601, %v5602
        %v5604 = vrot.slane %v5603, 1
        %v5605 = vadd.f32 %v5603, %v5604
        %v5606 = vadd.f32 %v5585, %v5605
        %v5607 = vmul.f32 %v5597, %v5597
        %v5608 = vmul.f32 %v5598, %v5598
        %v5609 = vadd.f32 %v5607, %v5608
        %v5610 = vrot.slane %v5609, 4
        %v5611 = vadd.f32 %v5609, %v5610
        %v5612 = vrot.slane %v5611, 2
        %v5613 = vadd.f32 %v5611, %v5612
        %v5614 = vrot.slane %v5613, 1
        %v5615 = vadd.f32 %v5613, %v5614
        %v5616 = vadd.f32 %v5595, %v5615
        %s5617 = scalar_lea.vmem %s269, 128
        %v5618 = vld [vmem:[%s5617] sm:$0xff]
        %v5619 = vld [vmem:[%s5617 + $0x8] sm:$0xff]
        %v5620 = vadd.f32 %v5618, %v5619
        %v5621 = vrot.slane %v5620, 4
        %v5622 = vadd.f32 %v5620, %v5621
        %v5623 = vrot.slane %v5622, 2
        %v5624 = vadd.f32 %v5622, %v5623
        %v5625 = vrot.slane %v5624, 1
        %v5626 = vadd.f32 %v5624, %v5625
        %v5627 = vadd.f32 %v5606, %v5626
        %v5628 = vmul.f32 %v5618, %v5618
        %v5629 = vmul.f32 %v5619, %v5619
        %v5630 = vadd.f32 %v5628, %v5629
        %v5631 = vrot.slane %v5630, 4
        %v5632 = vadd.f32 %v5630, %v5631
        %v5633 = vrot.slane %v5632, 2
        %v5634 = vadd.f32 %v5632, %v5633
        %v5635 = vrot.slane %v5634, 1
        %v5636 = vadd.f32 %v5634, %v5635
        %v5637 = vadd.f32 %v5616, %v5636
        %s5638 = scalar_lea.vmem %s269, 144
        %v5639 = vld [vmem:[%s5638] sm:$0xff]
        %v5640 = vld [vmem:[%s5638 + $0x8] sm:$0xff]
        %v5641 = vadd.f32 %v5639, %v5640
        %v5642 = vrot.slane %v5641, 4
        %v5643 = vadd.f32 %v5641, %v5642
        %v5644 = vrot.slane %v5643, 2
        %v5645 = vadd.f32 %v5643, %v5644
        %v5646 = vrot.slane %v5645, 1
        %v5647 = vadd.f32 %v5645, %v5646
        %v5648 = vadd.f32 %v5627, %v5647
        %v5649 = vmul.f32 %v5639, %v5639
        %v5650 = vmul.f32 %v5640, %v5640
        %v5651 = vadd.f32 %v5649, %v5650
        %v5652 = vrot.slane %v5651, 4
        %v5653 = vadd.f32 %v5651, %v5652
        %v5654 = vrot.slane %v5653, 2
        %v5655 = vadd.f32 %v5653, %v5654
        %v5656 = vrot.slane %v5655, 1
        %v5657 = vadd.f32 %v5655, %v5656
        %v5658 = vadd.f32 %v5637, %v5657
        %s5659 = scalar_lea.vmem %s269, 160
        %v5660 = vld [vmem:[%s5659] sm:$0xff]
        %v5661 = vld [vmem:[%s5659 + $0x8] sm:$0xff]
        %v5662 = vadd.f32 %v5660, %v5661
        %v5663 = vrot.slane %v5662, 4
        %v5664 = vadd.f32 %v5662, %v5663
        %v5665 = vrot.slane %v5664, 2
        %v5666 = vadd.f32 %v5664, %v5665
        %v5667 = vrot.slane %v5666, 1
        %v5668 = vadd.f32 %v5666, %v5667
        %v5669 = vadd.f32 %v5648, %v5668
        %v5670 = vmul.f32 %v5660, %v5660
        %v5671 = vmul.f32 %v5661, %v5661
        %v5672 = vadd.f32 %v5670, %v5671
        %v5673 = vrot.slane %v5672, 4
        %v5674 = vadd.f32 %v5672, %v5673
        %v5675 = vrot.slane %v5674, 2
        %v5676 = vadd.f32 %v5674, %v5675
        %v5677 = vrot.slane %v5676, 1
        %v5678 = vadd.f32 %v5676, %v5677
        %v5679 = vadd.f32 %v5658, %v5678
        %s5680 = scalar_lea.vmem %s269, 176
        %v5681 = vld [vmem:[%s5680] sm:$0xff]
        %v5682 = vld [vmem:[%s5680 + $0x8] sm:$0xff]
        %v5683 = vadd.f32 %v5681, %v5682
        %v5684 = vrot.slane %v5683, 4
        %v5685 = vadd.f32 %v5683, %v5684
        %v5686 = vrot.slane %v5685, 2
        %v5687 = vadd.f32 %v5685, %v5686
        %v5688 = vrot.slane %v5687, 1
        %v5689 = vadd.f32 %v5687, %v5688
        %v5690 = vadd.f32 %v5669, %v5689
        %v5691 = vmul.f32 %v5681, %v5681
        %v5692 = vmul.f32 %v5682, %v5682
        %v5693 = vadd.f32 %v5691, %v5692
        %v5694 = vrot.slane %v5693, 4
        %v5695 = vadd.f32 %v5693, %v5694
        %v5696 = vrot.slane %v5695, 2
        %v5697 = vadd.f32 %v5695, %v5696
        %v5698 = vrot.slane %v5697, 1
        %v5699 = vadd.f32 %v5697, %v5698
        %v5700 = vadd.f32 %v5679, %v5699
        %s5701 = scalar_lea.vmem %s269, 192
        %v5702 = vld [vmem:[%s5701] sm:$0xff]
        %v5703 = vld [vmem:[%s5701 + $0x8] sm:$0xff]
        %v5704 = vadd.f32 %v5702, %v5703
        %v5705 = vrot.slane %v5704, 4
        %v5706 = vadd.f32 %v5704, %v5705
        %v5707 = vrot.slane %v5706, 2
        %v5708 = vadd.f32 %v5706, %v5707
        %v5709 = vrot.slane %v5708, 1
        %v5710 = vadd.f32 %v5708, %v5709
        %v5711 = vadd.f32 %v5690, %v5710
        %v5712 = vmul.f32 %v5702, %v5702
        %v5713 = vmul.f32 %v5703, %v5703
        %v5714 = vadd.f32 %v5712, %v5713
        %v5715 = vrot.slane %v5714, 4
        %v5716 = vadd.f32 %v5714, %v5715
        %v5717 = vrot.slane %v5716, 2
        %v5718 = vadd.f32 %v5716, %v5717
        %v5719 = vrot.slane %v5718, 1
        %v5720 = vadd.f32 %v5718, %v5719
        %v5721 = vadd.f32 %v5700, %v5720
        %s5722 = scalar_lea.vmem %s269, 208
        %v5723 = vld [vmem:[%s5722] sm:$0xff]
        %v5724 = vld [vmem:[%s5722 + $0x8] sm:$0xff]
        %v5725 = vadd.f32 %v5723, %v5724
        %v5726 = vrot.slane %v5725, 4
        %v5727 = vadd.f32 %v5725, %v5726
        %v5728 = vrot.slane %v5727, 2
        %v5729 = vadd.f32 %v5727, %v5728
        %v5730 = vrot.slane %v5729, 1
        %v5731 = vadd.f32 %v5729, %v5730
        %v5732 = vadd.f32 %v5711, %v5731
        %v5733 = vmul.f32 %v5723, %v5723
        %v5734 = vmul.f32 %v5724, %v5724
        %v5735 = vadd.f32 %v5733, %v5734
        %v5736 = vrot.slane %v5735, 4
        %v5737 = vadd.f32 %v5735, %v5736
        %v5738 = vrot.slane %v5737, 2
        %v5739 = vadd.f32 %v5737, %v5738
        %v5740 = vrot.slane %v5739, 1
        %v5741 = vadd.f32 %v5739, %v5740
        %v5742 = vadd.f32 %v5721, %v5741
        %s5743 = scalar_lea.vmem %s269, 224
        %v5744 = vld [vmem:[%s5743] sm:$0xff]
        %v5745 = vld [vmem:[%s5743 + $0x8] sm:$0xff]
        %v5746 = vadd.f32 %v5744, %v5745
        %v5747 = vrot.slane %v5746, 4
        %v5748 = vadd.f32 %v5746, %v5747
        %v5749 = vrot.slane %v5748, 2
        %v5750 = vadd.f32 %v5748, %v5749
        %v5751 = vrot.slane %v5750, 1
        %v5752 = vadd.f32 %v5750, %v5751
        %v5753 = vadd.f32 %v5732, %v5752
        %v5754 = vmul.f32 %v5744, %v5744
        %v5755 = vmul.f32 %v5745, %v5745
        %v5756 = vadd.f32 %v5754, %v5755
        %v5757 = vrot.slane %v5756, 4
        %v5758 = vadd.f32 %v5756, %v5757
        %v5759 = vrot.slane %v5758, 2
        %v5760 = vadd.f32 %v5758, %v5759
        %v5761 = vrot.slane %v5760, 1
        %v5762 = vadd.f32 %v5760, %v5761
        %v5763 = vadd.f32 %v5742, %v5762
        %s5764 = scalar_lea.vmem %s269, 240
        %v5765 = vld [vmem:[%s5764] sm:$0xff]
        %v5766 = vld [vmem:[%s5764 + $0x8] sm:$0xff]
        %v5767 = vadd.f32 %v5765, %v5766
        %v5768 = vrot.slane %v5767, 4
        %v5769 = vadd.f32 %v5767, %v5768
        %v5770 = vrot.slane %v5769, 2
        %v5771 = vadd.f32 %v5769, %v5770
        %v5772 = vrot.slane %v5771, 1
        %v5773 = vadd.f32 %v5771, %v5772
        %v5774 = vadd.f32 %v5753, %v5773
        %v5775 = vmul.f32 %v5765, %v5765
        %v5776 = vmul.f32 %v5766, %v5766
        %v5777 = vadd.f32 %v5775, %v5776
        %v5778 = vrot.slane %v5777, 4
        %v5779 = vadd.f32 %v5777, %v5778
        %v5780 = vrot.slane %v5779, 2
        %v5781 = vadd.f32 %v5779, %v5780
        %v5782 = vrot.slane %v5781, 1
        %v5783 = vadd.f32 %v5781, %v5782
        %v5784 = vadd.f32 %v5763, %v5783
        %v5785 = vmul.f32 %v5774, 0.00390625
        %v5786 = vmul.f32 %v5784, 0.00390625
        %v5787 = vmul.f32 %v5785, %v5785
        %v5788 = vsub.f32 %v5786, %v5787
        %v5789 = vmax.f32 %v5788, 0.0
        %v5790 = vadd.f32 %v5789, 1e-05
        %v5791 = vrsqrt.pop %v5790
        %v5792 = vld [vmem:[#allocation3] sm:$0xff]
        %v5793 = vld [vmem:[#allocation3 + $0x8] sm:$0xff]
        %v5794 = vld [vmem:[#allocation3 + $0x10] sm:$0xff]
        %v5795 = vld [vmem:[#allocation3 + $0x18] sm:$0xff]
        %v5796 = vsub.f32 %v5450, %v5785
        %v5797 = vsub.f32 %v5451, %v5785
        %v5798 = vmul.f32 %v5796, %v5791
        %v5799 = vmul.f32 %v5797, %v5791
        %v5800 = vadd.f32 %v5792, 1.0
        %v5801 = vadd.f32 %v5794, 1.0
        %v5802 = vmul.f32 %v5798, %v5800
        %v5803 = vmul.f32 %v5799, %v5801
        %v5804 = vadd.f32 %v5802, %v5793
        %v5805 = vadd.f32 %v5803, %v5795
        %5806 = vst [vmem:[%s259] sm:$0xff] %v5804
        %5807 = vst [vmem:[%s259 + $0x8] sm:$0xff] %v5805
        %v5808 = vld [vmem:[#allocation3 + $0x20] sm:$0xfc]
        %v5809 = vld [vmem:[#allocation3 + $0x28] sm:$0xfc]
        %v5810 = vld [vmem:[#allocation3 + $0x30] sm:$0xff]
        %v5811 = vld [vmem:[#allocation3 + $0x38] sm:$0xff]
        %v5812 = vld [vmem:[#allocation3 + $0x40] sm:$0x3]
        %v5813 = vld [vmem:[#allocation3 + $0x48] sm:$0x3]
        %v5814 = vld [vmem:[%s5470] sm:$0xff]
        %v5815 = vld [vmem:[%s5470 + $0x8] sm:$0xff]
        %v5816 = vsub.f32 %v5814, %v5785
        %v5817 = vsub.f32 %v5815, %v5785
        %v5818 = vmul.f32 %v5816, %v5791
        %v5819 = vmul.f32 %v5817, %v5791
        %v5820 = vadd.f32 %v5808, 1.0
        %v5821 = vadd.f32 %v5810, 1.0
        %v5822 = vadd.f32 %v5812, 1.0
        %v5826 = vrot.slane %v5820, 2
        %v5827 = vrot.slane %v5821, 2
        %v5828 = vsel %vm475, %v5826, %v5827
        %v5829 = vrot.slane %v5822, 2
        %v5830 = vsel %vm475, %v5827, %v5829
        %v5833 = vmul.f32 %v5818, %v5828
        %v5834 = vmul.f32 %v5819, %v5830
        %v5838 = vrot.slane %v5809, 2
        %v5839 = vrot.slane %v5811, 2
        %v5840 = vsel %vm475, %v5838, %v5839
        %v5841 = vrot.slane %v5813, 2
        %v5842 = vsel %vm475, %v5839, %v5841
        %v5845 = vadd.f32 %v5833, %v5840
        %v5846 = vadd.f32 %v5834, %v5842
        %s5847 = scalar_lea.vmem %s259, 16 [#allocation4]
        %5848 = vst [vmem:[%s5847] sm:$0xff] %v5845
        %5849 = vst [vmem:[%s5847 + $0x8] sm:$0xff] %v5846
        %v5850 = vld [vmem:[#allocation3 + $0x40] sm:$0xf0]
        %v5851 = vld [vmem:[#allocation3 + $0x48] sm:$0xf0]
        %v5852 = vld [vmem:[#allocation3 + $0x50] sm:$0xff]
        %v5853 = vld [vmem:[#allocation3 + $0x58] sm:$0xff]
        %v5854 = vld [vmem:[#allocation3 + $0x60] sm:$0xf]
        %v5855 = vld [vmem:[#allocation3 + $0x68] sm:$0xf]
        %v5856 = vld [vmem:[%s5491] sm:$0xff]
        %v5857 = vld [vmem:[%s5491 + $0x8] sm:$0xff]
        %v5858 = vsub.f32 %v5856, %v5785
        %v5859 = vsub.f32 %v5857, %v5785
        %v5860 = vmul.f32 %v5858, %v5791
        %v5861 = vmul.f32 %v5859, %v5791
        %v5862 = vadd.f32 %v5850, 1.0
        %v5863 = vadd.f32 %v5852, 1.0
        %v5864 = vadd.f32 %v5854, 1.0
        %vm5868 = vcmask 1043456
        %v5869 = vrot.slane %v5862, 4
        %v5870 = vrot.slane %v5863, 4
        %v5871 = vsel %vm5868, %v5869, %v5870
        %v5872 = vrot.slane %v5864, 4
        %v5873 = vsel %vm5868, %v5870, %v5872
        %v5876 = vmul.f32 %v5860, %v5871
        %v5877 = vmul.f32 %v5861, %v5873
        %v5881 = vrot.slane %v5851, 4
        %v5882 = vrot.slane %v5853, 4
        %v5883 = vsel %vm5868, %v5881, %v5882
        %v5884 = vrot.slane %v5855, 4
        %v5885 = vsel %vm5868, %v5882, %v5884
        %v5888 = vadd.f32 %v5876, %v5883
        %v5889 = vadd.f32 %v5877, %v5885
        %s5890 = scalar_lea.vmem %s259, 32 [#allocation4]
        %5891 = vst [vmem:[%s5890] sm:$0xff] %v5888
        %5892 = vst [vmem:[%s5890 + $0x8] sm:$0xff] %v5889
        %v5893 = vld [vmem:[#allocation3 + $0x60] sm:$0xc0]
        %v5894 = vld [vmem:[#allocation3 + $0x68] sm:$0xc0]
        %v5895 = vld [vmem:[#allocation3 + $0x70] sm:$0xff]
        %v5896 = vld [vmem:[#allocation3 + $0x78] sm:$0xff]
        %v5897 = vld [vmem:[#allocation3 + $0x80] sm:$0x3f]
        %v5898 = vld [vmem:[#allocation3 + $0x88] sm:$0x3f]
        %v5899 = vld [vmem:[%s5512] sm:$0xff]
        %v5900 = vld [vmem:[%s5512 + $0x8] sm:$0xff]
        %v5901 = vsub.f32 %v5899, %v5785
        %v5902 = vsub.f32 %v5900, %v5785
        %v5903 = vmul.f32 %v5901, %v5791
        %v5904 = vmul.f32 %v5902, %v5791
        %v5905 = vadd.f32 %v5893, 1.0
        %v5906 = vadd.f32 %v5895, 1.0
        %v5907 = vadd.f32 %v5897, 1.0
        %vm5911 = vcmask 1041408
        %v5912 = vrot.slane %v5905, 6
        %v5913 = vrot.slane %v5906, 6
        %v5914 = vsel %vm5911, %v5912, %v5913
        %v5915 = vrot.slane %v5907, 6
        %v5916 = vsel %vm5911, %v5913, %v5915
        %v5919 = vmul.f32 %v5903, %v5914
        %v5920 = vmul.f32 %v5904, %v5916
        %v5924 = vrot.slane %v5894, 6
        %v5925 = vrot.slane %v5896, 6
        %v5926 = vsel %vm5911, %v5924, %v5925
        %v5927 = vrot.slane %v5898, 6
        %v5928 = vsel %vm5911, %v5925, %v5927
        %v5931 = vadd.f32 %v5919, %v5926
        %v5932 = vadd.f32 %v5920, %v5928
        %s5933 = scalar_lea.vmem %s259, 48 [#allocation4]
        %5934 = vst [vmem:[%s5933] sm:$0xff] %v5931
        %5935 = vst [vmem:[%s5933 + $0x8] sm:$0xff] %v5932
        %v5936 = vld [vmem:[#allocation3 + $0x90] sm:$0xff]
        %v5937 = vld [vmem:[#allocation3 + $0x98] sm:$0xff]
        %v5938 = vld [vmem:[#allocation3 + $0xa0] sm:$0xff]
        %v5939 = vld [vmem:[#allocation3 + $0xa8] sm:$0xff]
        %v5940 = vld [vmem:[%s5533] sm:$0xff]
        %v5941 = vld [vmem:[%s5533 + $0x8] sm:$0xff]
        %v5942 = vsub.f32 %v5940, %v5785
        %v5943 = vsub.f32 %v5941, %v5785
        %v5944 = vmul.f32 %v5942, %v5791
        %v5945 = vmul.f32 %v5943, %v5791
        %v5946 = vadd.f32 %v5936, 1.0
        %v5947 = vadd.f32 %v5938, 1.0
        %v5948 = vmul.f32 %v5944, %v5946
        %v5949 = vmul.f32 %v5945, %v5947
        %v5950 = vadd.f32 %v5948, %v5937
        %v5951 = vadd.f32 %v5949, %v5939
        %s5952 = scalar_lea.vmem %s259, 64 [#allocation4]
        %5953 = vst [vmem:[%s5952] sm:$0xff] %v5950
        %5954 = vst [vmem:[%s5952 + $0x8] sm:$0xff] %v5951
        %v5955 = vld [vmem:[#allocation3 + $0xb0] sm:$0xfc]
        %v5956 = vld [vmem:[#allocation3 + $0xb8] sm:$0xfc]
        %v5957 = vld [vmem:[#allocation3 + $0xc0] sm:$0xff]
        %v5958 = vld [vmem:[#allocation3 + $0xc8] sm:$0xff]
        %v5959 = vld [vmem:[#allocation3 + $0xd0] sm:$0x3]
        %v5960 = vld [vmem:[#allocation3 + $0xd8] sm:$0x3]
        %v5961 = vld [vmem:[%s5554] sm:$0xff]
        %v5962 = vld [vmem:[%s5554 + $0x8] sm:$0xff]
        %v5963 = vsub.f32 %v5961, %v5785
        %v5964 = vsub.f32 %v5962, %v5785
        %v5965 = vmul.f32 %v5963, %v5791
        %v5966 = vmul.f32 %v5964, %v5791
        %v5967 = vadd.f32 %v5955, 1.0
        %v5968 = vadd.f32 %v5957, 1.0
        %v5969 = vadd.f32 %v5959, 1.0
        %v5973 = vrot.slane %v5967, 2
        %v5974 = vrot.slane %v5968, 2
        %v5975 = vsel %vm475, %v5973, %v5974
        %v5976 = vrot.slane %v5969, 2
        %v5977 = vsel %vm475, %v5974, %v5976
        %v5980 = vmul.f32 %v5965, %v5975
        %v5981 = vmul.f32 %v5966, %v5977
        %v5985 = vrot.slane %v5956, 2
        %v5986 = vrot.slane %v5958, 2
        %v5987 = vsel %vm475, %v5985, %v5986
        %v5988 = vrot.slane %v5960, 2
        %v5989 = vsel %vm475, %v5986, %v5988
        %v5992 = vadd.f32 %v5980, %v5987
        %v5993 = vadd.f32 %v5981, %v5989
        %s5994 = scalar_lea.vmem %s259, 80 [#allocation4]
        %5995 = vst [vmem:[%s5994] sm:$0xff] %v5992
        %5996 = vst [vmem:[%s5994 + $0x8] sm:$0xff] %v5993
        %v5997 = vld [vmem:[#allocation3 + $0xd0] sm:$0xf0]
        %v5998 = vld [vmem:[#allocation3 + $0xd8] sm:$0xf0]
        %v5999 = vld [vmem:[#allocation3 + $0xe0] sm:$0xff]
        %v6000 = vld [vmem:[#allocation3 + $0xe8] sm:$0xff]
        %v6001 = vld [vmem:[#allocation3 + $0xf0] sm:$0xf]
        %v6002 = vld [vmem:[#allocation3 + $0xf8] sm:$0xf]
        %v6003 = vld [vmem:[%s5575] sm:$0xff]
        %v6004 = vld [vmem:[%s5575 + $0x8] sm:$0xff]
        %v6005 = vsub.f32 %v6003, %v5785
        %v6006 = vsub.f32 %v6004, %v5785
        %v6007 = vmul.f32 %v6005, %v5791
        %v6008 = vmul.f32 %v6006, %v5791
        %v6009 = vadd.f32 %v5997, 1.0
        %v6010 = vadd.f32 %v5999, 1.0
        %v6011 = vadd.f32 %v6001, 1.0
        %v6015 = vrot.slane %v6009, 4
        %v6016 = vrot.slane %v6010, 4
        %v6017 = vsel %vm5868, %v6015, %v6016
        %v6018 = vrot.slane %v6011, 4
        %v6019 = vsel %vm5868, %v6016, %v6018
        %v6022 = vmul.f32 %v6007, %v6017
        %v6023 = vmul.f32 %v6008, %v6019
        %v6027 = vrot.slane %v5998, 4
        %v6028 = vrot.slane %v6000, 4
        %v6029 = vsel %vm5868, %v6027, %v6028
        %v6030 = vrot.slane %v6002, 4
        %v6031 = vsel %vm5868, %v6028, %v6030
        %v6034 = vadd.f32 %v6022, %v6029
        %v6035 = vadd.f32 %v6023, %v6031
        %s6036 = scalar_lea.vmem %s259, 96 [#allocation4]
        %6037 = vst [vmem:[%s6036] sm:$0xff] %v6034
        %6038 = vst [vmem:[%s6036 + $0x8] sm:$0xff] %v6035
        %v6039 = vld [vmem:[#allocation3 + $0xf0] sm:$0xc0]
        %v6040 = vld [vmem:[#allocation3 + $0xf8] sm:$0xc0]
        %v6041 = vld [vmem:[#allocation3 + $0x100] sm:$0xff]
        %v6042 = vld [vmem:[#allocation3 + $0x108] sm:$0xff]
        %v6043 = vld [vmem:[#allocation3 + $0x110] sm:$0x3f]
        %v6044 = vld [vmem:[#allocation3 + $0x118] sm:$0x3f]
        %v6045 = vld [vmem:[%s5596] sm:$0xff]
        %v6046 = vld [vmem:[%s5596 + $0x8] sm:$0xff]
        %v6047 = vsub.f32 %v6045, %v5785
        %v6048 = vsub.f32 %v6046, %v5785
        %v6049 = vmul.f32 %v6047, %v5791
        %v6050 = vmul.f32 %v6048, %v5791
        %v6051 = vadd.f32 %v6039, 1.0
        %v6052 = vadd.f32 %v6041, 1.0
        %v6053 = vadd.f32 %v6043, 1.0
        %v6057 = vrot.slane %v6051, 6
        %v6058 = vrot.slane %v6052, 6
        %v6059 = vsel %vm5911, %v6057, %v6058
        %v6060 = vrot.slane %v6053, 6
        %v6061 = vsel %vm5911, %v6058, %v6060
        %v6064 = vmul.f32 %v6049, %v6059
        %v6065 = vmul.f32 %v6050, %v6061
        %v6069 = vrot.slane %v6040, 6
        %v6070 = vrot.slane %v6042, 6
        %v6071 = vsel %vm5911, %v6069, %v6070
        %v6072 = vrot.slane %v6044, 6
        %v6073 = vsel %vm5911, %v6070, %v6072
        %v6076 = vadd.f32 %v6064, %v6071
        %v6077 = vadd.f32 %v6065, %v6073
        %s6078 = scalar_lea.vmem %s259, 112 [#allocation4]
        %6079 = vst [vmem:[%s6078] sm:$0xff] %v6076
        %6080 = vst [vmem:[%s6078 + $0x8] sm:$0xff] %v6077
        %v6081 = vld [vmem:[#allocation3 + $0x120] sm:$0xff]
        %v6082 = vld [vmem:[#allocation3 + $0x128] sm:$0xff]
        %v6083 = vld [vmem:[#allocation3 + $0x130] sm:$0xff]
        %v6084 = vld [vmem:[#allocation3 + $0x138] sm:$0xff]
        %v6085 = vld [vmem:[%s5617] sm:$0xff]
        %v6086 = vld [vmem:[%s5617 + $0x8] sm:$0xff]
        %v6087 = vsub.f32 %v6085, %v5785
        %v6088 = vsub.f32 %v6086, %v5785
        %v6089 = vmul.f32 %v6087, %v5791
        %v6090 = vmul.f32 %v6088, %v5791
        %v6091 = vadd.f32 %v6081, 1.0
        %v6092 = vadd.f32 %v6083, 1.0
        %v6093 = vmul.f32 %v6089, %v6091
        %v6094 = vmul.f32 %v6090, %v6092
        %v6095 = vadd.f32 %v6093, %v6082
        %v6096 = vadd.f32 %v6094, %v6084
        %s6097 = scalar_lea.vmem %s259, 128 [#allocation4]
        %6098 = vst [vmem:[%s6097] sm:$0xff] %v6095
        %6099 = vst [vmem:[%s6097 + $0x8] sm:$0xff] %v6096
        %v6100 = vld [vmem:[#allocation3 + $0x140] sm:$0xfc]
        %v6101 = vld [vmem:[#allocation3 + $0x148] sm:$0xfc]
        %v6102 = vld [vmem:[#allocation3 + $0x150] sm:$0xff]
        %v6103 = vld [vmem:[#allocation3 + $0x158] sm:$0xff]
        %v6104 = vld [vmem:[#allocation3 + $0x160] sm:$0x3]
        %v6105 = vld [vmem:[#allocation3 + $0x168] sm:$0x3]
        %v6106 = vld [vmem:[%s5638] sm:$0xff]
        %v6107 = vld [vmem:[%s5638 + $0x8] sm:$0xff]
        %v6108 = vsub.f32 %v6106, %v5785
        %v6109 = vsub.f32 %v6107, %v5785
        %v6110 = vmul.f32 %v6108, %v5791
        %v6111 = vmul.f32 %v6109, %v5791
        %v6112 = vadd.f32 %v6100, 1.0
        %v6113 = vadd.f32 %v6102, 1.0
        %v6114 = vadd.f32 %v6104, 1.0
        %v6118 = vrot.slane %v6112, 2
        %v6119 = vrot.slane %v6113, 2
        %v6120 = vsel %vm475, %v6118, %v6119
        %v6121 = vrot.slane %v6114, 2
        %v6122 = vsel %vm475, %v6119, %v6121
        %v6125 = vmul.f32 %v6110, %v6120
        %v6126 = vmul.f32 %v6111, %v6122
        %v6130 = vrot.slane %v6101, 2
        %v6131 = vrot.slane %v6103, 2
        %v6132 = vsel %vm475, %v6130, %v6131
        %v6133 = vrot.slane %v6105, 2
        %v6134 = vsel %vm475, %v6131, %v6133
        %v6137 = vadd.f32 %v6125, %v6132
        %v6138 = vadd.f32 %v6126, %v6134
        %s6139 = scalar_lea.vmem %s259, 144 [#allocation4]
        %6140 = vst [vmem:[%s6139] sm:$0xff] %v6137
        %6141 = vst [vmem:[%s6139 + $0x8] sm:$0xff] %v6138
        %v6142 = vld [vmem:[#allocation3 + $0x160] sm:$0xf0]
        %v6143 = vld [vmem:[#allocation3 + $0x168] sm:$0xf0]
        %v6144 = vld [vmem:[#allocation3 + $0x170] sm:$0xff]
        %v6145 = vld [vmem:[#allocation3 + $0x178] sm:$0xff]
        %v6146 = vld [vmem:[#allocation3 + $0x180] sm:$0xf]
        %v6147 = vld [vmem:[#allocation3 + $0x188] sm:$0xf]
        %v6148 = vld [vmem:[%s5659] sm:$0xff]
        %v6149 = vld [vmem:[%s5659 + $0x8] sm:$0xff]
        %v6150 = vsub.f32 %v6148, %v5785
        %v6151 = vsub.f32 %v6149, %v5785
        %v6152 = vmul.f32 %v6150, %v5791
        %v6153 = vmul.f32 %v6151, %v5791
        %v6154 = vadd.f32 %v6142, 1.0
        %v6155 = vadd.f32 %v6144, 1.0
        %v6156 = vadd.f32 %v6146, 1.0
        %v6160 = vrot.slane %v6154, 4
        %v6161 = vrot.slane %v6155, 4
        %v6162 = vsel %vm5868, %v6160, %v6161
        %v6163 = vrot.slane %v6156, 4
        %v6164 = vsel %vm5868, %v6161, %v6163
        %v6167 = vmul.f32 %v6152, %v6162
        %v6168 = vmul.f32 %v6153, %v6164
        %v6172 = vrot.slane %v6143, 4
        %v6173 = vrot.slane %v6145, 4
        %v6174 = vsel %vm5868, %v6172, %v6173
        %v6175 = vrot.slane %v6147, 4
        %v6176 = vsel %vm5868, %v6173, %v6175
        %v6179 = vadd.f32 %v6167, %v6174
        %v6180 = vadd.f32 %v6168, %v6176
        %s6181 = scalar_lea.vmem %s259, 160 [#allocation4]
        %6182 = vst [vmem:[%s6181] sm:$0xff] %v6179
        %6183 = vst [vmem:[%s6181 + $0x8] sm:$0xff] %v6180
        %v6184 = vld [vmem:[#allocation3 + $0x180] sm:$0xc0]
        %v6185 = vld [vmem:[#allocation3 + $0x188] sm:$0xc0]
        %v6186 = vld [vmem:[#allocation3 + $0x190] sm:$0xff]
        %v6187 = vld [vmem:[#allocation3 + $0x198] sm:$0xff]
        %v6188 = vld [vmem:[#allocation3 + $0x1a0] sm:$0x3f]
        %v6189 = vld [vmem:[#allocation3 + $0x1a8] sm:$0x3f]
        %v6190 = vld [vmem:[%s5680] sm:$0xff]
        %v6191 = vld [vmem:[%s5680 + $0x8] sm:$0xff]
        %v6192 = vsub.f32 %v6190, %v5785
        %v6193 = vsub.f32 %v6191, %v5785
        %v6194 = vmul.f32 %v6192, %v5791
        %v6195 = vmul.f32 %v6193, %v5791
        %v6196 = vadd.f32 %v6184, 1.0
        %v6197 = vadd.f32 %v6186, 1.0
        %v6198 = vadd.f32 %v6188, 1.0
        %v6202 = vrot.slane %v6196, 6
        %v6203 = vrot.slane %v6197, 6
        %v6204 = vsel %vm5911, %v6202, %v6203
        %v6205 = vrot.slane %v6198, 6
        %v6206 = vsel %vm5911, %v6203, %v6205
        %v6209 = vmul.f32 %v6194, %v6204
        %v6210 = vmul.f32 %v6195, %v6206
        %v6214 = vrot.slane %v6185, 6
        %v6215 = vrot.slane %v6187, 6
        %v6216 = vsel %vm5911, %v6214, %v6215
        %v6217 = vrot.slane %v6189, 6
        %v6218 = vsel %vm5911, %v6215, %v6217
        %v6221 = vadd.f32 %v6209, %v6216
        %v6222 = vadd.f32 %v6210, %v6218
        %s6223 = scalar_lea.vmem %s259, 176 [#allocation4]
        %6224 = vst [vmem:[%s6223] sm:$0xff] %v6221
        %6225 = vst [vmem:[%s6223 + $0x8] sm:$0xff] %v6222
        %v6226 = vld [vmem:[#allocation3 + $0x1b0] sm:$0xff]
        %v6227 = vld [vmem:[#allocation3 + $0x1b8] sm:$0xff]
        %v6228 = vld [vmem:[#allocation3 + $0x1c0] sm:$0xff]
        %v6229 = vld [vmem:[#allocation3 + $0x1c8] sm:$0xff]
        %v6230 = vld [vmem:[%s5701] sm:$0xff]
        %v6231 = vld [vmem:[%s5701 + $0x8] sm:$0xff]
        %v6232 = vsub.f32 %v6230, %v5785
        %v6233 = vsub.f32 %v6231, %v5785
        %v6234 = vmul.f32 %v6232, %v5791
        %v6235 = vmul.f32 %v6233, %v5791
        %v6236 = vadd.f32 %v6226, 1.0
        %v6237 = vadd.f32 %v6228, 1.0
        %v6238 = vmul.f32 %v6234, %v6236
        %v6239 = vmul.f32 %v6235, %v6237
        %v6240 = vadd.f32 %v6238, %v6227
        %v6241 = vadd.f32 %v6239, %v6229
        %s6242 = scalar_lea.vmem %s259, 192 [#allocation4]
        %6243 = vst [vmem:[%s6242] sm:$0xff] %v6240
        %6244 = vst [vmem:[%s6242 + $0x8] sm:$0xff] %v6241
        %v6245 = vld [vmem:[#allocation3 + $0x1d0] sm:$0xfc]
        %v6246 = vld [vmem:[#allocation3 + $0x1d8] sm:$0xfc]
        %v6247 = vld [vmem:[#allocation3 + $0x1e0] sm:$0xff]
        %v6248 = vld [vmem:[#allocation3 + $0x1e8] sm:$0xff]
        %v6249 = vld [vmem:[#allocation3 + $0x1f0] sm:$0x3]
        %v6250 = vld [vmem:[#allocation3 + $0x1f8] sm:$0x3]
        %v6251 = vld [vmem:[%s5722] sm:$0xff]
        %v6252 = vld [vmem:[%s5722 + $0x8] sm:$0xff]
        %v6253 = vsub.f32 %v6251, %v5785
        %v6254 = vsub.f32 %v6252, %v5785
        %v6255 = vmul.f32 %v6253, %v5791
        %v6256 = vmul.f32 %v6254, %v5791
        %v6257 = vadd.f32 %v6245, 1.0
        %v6258 = vadd.f32 %v6247, 1.0
        %v6259 = vadd.f32 %v6249, 1.0
        %v6263 = vrot.slane %v6257, 2
        %v6264 = vrot.slane %v6258, 2
        %v6265 = vsel %vm475, %v6263, %v6264
        %v6266 = vrot.slane %v6259, 2
        %v6267 = vsel %vm475, %v6264, %v6266
        %v6270 = vmul.f32 %v6255, %v6265
        %v6271 = vmul.f32 %v6256, %v6267
        %v6275 = vrot.slane %v6246, 2
        %v6276 = vrot.slane %v6248, 2
        %v6277 = vsel %vm475, %v6275, %v6276
        %v6278 = vrot.slane %v6250, 2
        %v6279 = vsel %vm475, %v6276, %v6278
        %v6282 = vadd.f32 %v6270, %v6277
        %v6283 = vadd.f32 %v6271, %v6279
        %s6284 = scalar_lea.vmem %s259, 208 [#allocation4]
        %6285 = vst [vmem:[%s6284] sm:$0xff] %v6282
        %6286 = vst [vmem:[%s6284 + $0x8] sm:$0xff] %v6283
        %v6287 = vld [vmem:[#allocation3 + $0x1f0] sm:$0xf0]
        %v6288 = vld [vmem:[#allocation3 + $0x1f8] sm:$0xf0]
        %v6289 = vld [vmem:[#allocation3 + $0x200] sm:$0xff]
        %v6290 = vld [vmem:[#allocation3 + $0x208] sm:$0xff]
        %v6291 = vld [vmem:[#allocation3 + $0x210] sm:$0xf]
        %v6292 = vld [vmem:[#allocation3 + $0x218] sm:$0xf]
        %v6293 = vld [vmem:[%s5743] sm:$0xff]
        %v6294 = vld [vmem:[%s5743 + $0x8] sm:$0xff]
        %v6295 = vsub.f32 %v6293, %v5785
        %v6296 = vsub.f32 %v6294, %v5785
        %v6297 = vmul.f32 %v6295, %v5791
        %v6298 = vmul.f32 %v6296, %v5791
        %v6299 = vadd.f32 %v6287, 1.0
        %v6300 = vadd.f32 %v6289, 1.0
        %v6301 = vadd.f32 %v6291, 1.0
        %v6305 = vrot.slane %v6299, 4
        %v6306 = vrot.slane %v6300, 4
        %v6307 = vsel %vm5868, %v6305, %v6306
        %v6308 = vrot.slane %v6301, 4
        %v6309 = vsel %vm5868, %v6306, %v6308
        %v6312 = vmul.f32 %v6297, %v6307
        %v6313 = vmul.f32 %v6298, %v6309
        %v6317 = vrot.slane %v6288, 4
        %v6318 = vrot.slane %v6290, 4
        %v6319 = vsel %vm5868, %v6317, %v6318
        %v6320 = vrot.slane %v6292, 4
        %v6321 = vsel %vm5868, %v6318, %v6320
        %v6324 = vadd.f32 %v6312, %v6319
        %v6325 = vadd.f32 %v6313, %v6321
        %s6326 = scalar_lea.vmem %s259, 224 [#allocation4]
        %6327 = vst [vmem:[%s6326] sm:$0xff] %v6324
        %6328 = vst [vmem:[%s6326 + $0x8] sm:$0xff] %v6325
        %v6329 = vld [vmem:[#allocation3 + $0x210] sm:$0xc0]
        %v6330 = vld [vmem:[#allocation3 + $0x218] sm:$0xc0]
        %v6331 = vld [vmem:[#allocation3 + $0x220] sm:$0xff]
        %v6332 = vld [vmem:[#allocation3 + $0x228] sm:$0xff]
        %v6333 = vld [vmem:[#allocation3 + $0x230] sm:$0x3f]
        %v6334 = vld [vmem:[#allocation3 + $0x238] sm:$0x3f]
        %v6335 = vld [vmem:[%s5764] sm:$0xff]
        %v6336 = vld [vmem:[%s5764 + $0x8] sm:$0xff]
        %v6337 = vsub.f32 %v6335, %v5785
        %v6338 = vsub.f32 %v6336, %v5785
        %v6339 = vmul.f32 %v6337, %v5791
        %v6340 = vmul.f32 %v6338, %v5791
        %v6341 = vadd.f32 %v6329, 1.0
        %v6342 = vadd.f32 %v6331, 1.0
        %v6343 = vadd.f32 %v6333, 1.0
        %v6347 = vrot.slane %v6341, 6
        %v6348 = vrot.slane %v6342, 6
        %v6349 = vsel %vm5911, %v6347, %v6348
        %v6350 = vrot.slane %v6343, 6
        %v6351 = vsel %vm5911, %v6348, %v6350
        %v6354 = vmul.f32 %v6339, %v6349
        %v6355 = vmul.f32 %v6340, %v6351
        %v6359 = vrot.slane %v6330, 6
        %v6360 = vrot.slane %v6332, 6
        %v6361 = vsel %vm5911, %v6359, %v6360
        %v6362 = vrot.slane %v6334, 6
        %v6363 = vsel %vm5911, %v6360, %v6362
        %v6366 = vadd.f32 %v6354, %v6361
        %v6367 = vadd.f32 %v6355, %v6363
        %s6368 = scalar_lea.vmem %s259, 240 [#allocation4]
        %6369 = vst [vmem:[%s6368] sm:$0xff] %v6366
        %6370 = vst [vmem:[%s6368 + $0x8] sm:$0xff] %v6367
        %s6371 = sand.u32 %s164, 1
        %s6372 = scalar_lea.sflag [#allocation5], %s6371
        %s6373 = sand.u32 %s164, 1
        %s6374 = smul.addr %s6373, 256
        %s6375 = scalar_lea.vmem [#allocation4], %s6374
        // Predicated region
        $region45: #{spade_forward.1} parent=43 // pred_check
          %p6376 = pneg %p174
        $region46: #{spade_forward.1} parent=43 // pred_check_branch
          %6378 = sbr.rel (%p6376) target = $region48
        $region47: #{spade_forward.1} parent=43 // pred_region
          %s6380 = ssub.s32 4096, 4096
          %6381 = vsyncadd %s6372, %s6380
          %s6382 = smul.addr %s20, 32
          %s6383 = smul.addr %s6382, 128
          %s6384 = scalar_lea.hbm %s6, %s6383
          %s6385 = sshll.u32 %s6375, 4
          %s6386 = int_to_ptr.vmem [resolvable:$true] %s6385
          %6391 = dma.vmem_to_hbm [thread:$0]  %s6386, 4096, %s6384, %s6372, 128, 128, 8
        $region48: #{spade_forward.1} parent=43 // pred_fallthru
          _
      $region44: #{spade_forward.1} parent=5 // pred_fallthru
        _
      %p6392 = scmp.le.s32.totalorder 2, %s15
      // Predicated region
      $region49: #{spade_forward.1} parent=5 // pred_check
        %p6393 = pneg %p6392
      $region50: #{spade_forward.1} parent=5 // pred_check_branch
        %6395 = sbr.rel (%p6393) target = $region52
      $region51: #{spade_forward.1} parent=5 // pred_region
        %s6396 = ssub.s32 %s15, 2
        // Predicated region
        $region53: #{spade_forward.1} parent=51 // pred_check
          %p6397 = pneg %p180
        $region54: #{spade_forward.1} parent=51 // pred_check_branch
          %6399 = sbr.rel (%p6397) target = $region56
        $region55: #{spade_forward.1} parent=51 // pred_region
          %s6400 = sand.u32 %s165, 1
          %s6401 = scalar_lea.sflag [#allocation5], %s6400
          %s6402 = sand.u32 %s165, 1
          %s6403 = smul.addr %s6402, 256
          %s6404 = scalar_lea.vmem [#allocation4], %s6403
          %6405 = dma.done %s6401, 4096
        $region56: #{spade_forward.1} parent=51 // pred_fallthru
          _
      $region52: #{spade_forward.1} parent=5 // pred_fallthru
        _
    $region6: #{spade_forward.1} parent=1 // loop_footer
      %s19 = sadd.s32 1, %s15
    $region7: #{spade_forward.1} parent=1 // loop_footer_branch
      %14 = sbr.rel target = $region3
    $region8: #{spade_forward.1} parent=1 // loop_exit
      _
    %6406 = vsyncpa [#allocation5], 1
    %s6407 = scalar_lea.sflag [#allocation5], 1
    %6408 = vsyncpa %s6407, 1

</llo_original>
